<compile_context>
chip_gen: v7x
topology: tpu7x:2x2x1
jax: 0.10.0
libtpu: 0.0.40
codegen_flags: <defaults>
</compile_context>

<pallas_src>
import functools

import jax
import jax.numpy as jnp
from jax.experimental import pallas as pl
from jax.experimental.pallas import tpu as pltpu

GN_GROUPS = 8
GN_EPS = 1e-5
MAX_B_L1 = 8        # layer-1 batch block cap (4x the spatial of later layers)
MAX_B_DEEP = 16     # layers 2-4 batch block cap (fits v7x's 64 MiB VMEM)


# -----------------------------------------------------------------------------
# Host-side helpers
# -----------------------------------------------------------------------------
def _vmem_limit_bytes():
    """Explicit scoped-VMEM limit, sized from the detected VMEM capacity."""
    try:
        cap = getattr(pltpu.get_tpu_info(), "vmem_capacity_bytes", None)
        if cap:
            return int(min(cap - (16 << 20), 100 << 20))
    except Exception:
        pass
    return 48 << 20   # safe on v5e/v6e (128 MiB) and v7x (64 MiB per TC)


def _compiler_params():
    return pltpu.CompilerParams(dimension_semantics=("parallel",),
                                vmem_limit_bytes=_vmem_limit_bytes())


def _pick_batch_block(n, cap):
    """Batch block <= cap and <= n//2 so the grid has >=2 steps (v7x 2 TCs)."""
    b = max(1, min(cap, n // 2 if n >= 2 else n))
    while n % b:
        b -= 1
    return b


def _pad_last(a, target):
    pad = target - a.shape[-1]
    if pad <= 0:
        return a
    return jnp.pad(a, [(0, 0)] * (a.ndim - 1) + [(0, pad)])


def _group_onehots(c_pad, c_real, groups):
    cg = c_real // groups
    ch = jnp.arange(c_pad)
    gr = jnp.arange(groups)
    gc = ((ch[None, :] // cg) == gr[:, None]) & (ch[None, :] < c_real)
    gc = gc.astype(jnp.float32)                  # [G, c_pad]
    return gc, gc.T                              # (group->chan, chan->group)


def _im2col_3x3_s1(x_pad, OH, OW):
    """Tiny XLA-side im2col for layer 1 only (K = 9*Cin <= 36)."""
    N, _, _, Cin = x_pad.shape
    slabs = [x_pad[:, di:di + OH, dj:dj + OW, :]
             for di in range(3) for dj in range(3)]
    return jnp.concatenate(slabs, axis=-1).reshape(N, OH * OW, 9 * Cin)


# -----------------------------------------------------------------------------
# In-kernel helpers
# -----------------------------------------------------------------------------
def _build_patch(x_ref, patch_ref, *, stride, OH, OW, C):
    """im2col into VMEM scratch: stripe t = 3*di + dj holds the (di, dj) tap."""
    B = x_ref.shape[0]
    P = OH * OW
    for di in range(3):
        for dj in range(3):
            t = 3 * di + dj
            if stride == 1:
                # x_ref: [B, OH+2, OW+2, C] padded NHWC tile.
                slab = x_ref[:, di:di + OH, dj:dj + OW, :]
            else:
                # x_ref: [B, OH+1, 2, OW+1, 2C] "paired" view of the padded
                # tile (a zero-copy reshape of [B, 2*OH+2, 2*OW+2, C]); every
                # stride-2 tap slab is a contiguous slice of it.
                r0, ph = di // 2, di % 2
                c0, off = dj // 2, (dj % 2) * C
                slab = x_ref[:, r0:r0 + OH, ph:ph + 1,
                             c0:c0 + OW, off:off + C]
            patch_ref[:, t * C:(t + 1) * C] = slab.reshape(B * P, C)


def _gn_scale_shift(s1, s2, oh_gc, oh_cg, gamma, beta, inv_cnt):
    """One-pass GroupNorm(8) stats -> per-(sample, channel) scale & shift."""
    mean_g = jnp.dot(s1, oh_cg, preferred_element_type=jnp.float32) * inv_cnt
    ex2_g = jnp.dot(s2, oh_cg, preferred_element_type=jnp.float32) * inv_cnt
    var_g = jnp.maximum(ex2_g - mean_g * mean_g, 0.0)
    inv_g = jax.lax.rsqrt(var_g + GN_EPS)
    mean_c = jnp.dot(mean_g, oh_gc, preferred_element_type=jnp.float32)
    inv_c = jnp.dot(inv_g, oh_gc, preferred_element_type=jnp.float32)
    scale = inv_c * gamma                        # [B, C]
    shift = beta - mean_c * scale                # [B, C]
    return scale, shift


def _store_padded(o_ref, out4):
    """Write a zero-bordered padded tile so the next layer needs no XLA pad."""
    B, OH, OW, C = out4.shape
    dt = o_ref.dtype
    zrow = jnp.zeros((B, 1, OW + 2, C), dt)
    zcol = jnp.zeros((B, OH, 1, C), dt)
    o_ref[:, 0:1, :, :] = zrow
    o_ref[:, OH + 1:OH + 2, :, :] = zrow
    o_ref[:, 1:OH + 1, 0:1, :] = zcol
    o_ref[:, 1:OH + 1, OW + 1:OW + 2, :] = zcol
    o_ref[:, 1:OH + 1, 1:OW + 1, :] = out4.astype(dt)


# -----------------------------------------------------------------------------
# Pallas kernels
# -----------------------------------------------------------------------------
def gemm_gn_pad_kernel(x_ref, w_ref, b_ref, g_ref, beta_ref,
                       oh_gc_ref, oh_cg_ref, o_ref, *, OH, OW, inv_cnt):
    """Layer 1: one GEMM over pre-built tiny-K im2col patches + bias + ReLU
    + GroupNorm(8); writes a zero-bordered padded bf16 tile."""
    B, P, K = x_ref.shape
    Cout = w_ref.shape[-1]
    acc = jnp.dot(x_ref[...].reshape(B * P, K), w_ref[...],
                  preferred_element_type=jnp.float32)            # [B*P, Cout]
    y = jnp.maximum(acc + b_ref[...], 0.0).reshape(B, OH, OW, Cout)
    s1 = jnp.sum(y, axis=(1, 2))                                 # [B, Cout]
    s2 = jnp.sum(y * y, axis=(1, 2))
    scale, shift = _gn_scale_shift(s1, s2, oh_gc_ref[...], oh_cg_ref[...],
                                   g_ref[...], beta_ref[...], inv_cnt)
    out = y * scale[:, None, None, :] + shift[:, None, None, :]
    _store_padded(o_ref, out)


def conv_gn_pad_kernel(x_ref, w_ref, b_ref, g_ref, beta_ref,
                       oh_gc_ref, oh_cg_ref, o_ref, patch_ref, *,
                       stride, OH, OW, C_tap, inv_cnt):
    """Layers 2/3: 3x3 conv as ONE K=9*C_tap MXU matmul over an in-VMEM
    im2col patch + bias + ReLU + GroupNorm(8); writes a padded bf16 tile."""
    B = x_ref.shape[0]
    Cout = w_ref.shape[-1]
    _build_patch(x_ref, patch_ref, stride=stride, OH=OH, OW=OW, C=C_tap)
    acc = jnp.dot(patch_ref[...], w_ref[...],
                  preferred_element_type=jnp.float32)            # [B*P, Cout]
    y = jnp.maximum(acc + b_ref[...], 0.0).reshape(B, OH, OW, Cout)
    s1 = jnp.sum(y, axis=(1, 2))
    s2 = jnp.sum(y * y, axis=(1, 2))
    scale, shift = _gn_scale_shift(s1, s2, oh_gc_ref[...], oh_cg_ref[...],
                                   g_ref[...], beta_ref[...], inv_cnt)
    out = y * scale[:, None, None, :] + shift[:, None, None, :]
    _store_padded(o_ref, out)


def conv_gn_pool_fc_kernel(x_ref, w_ref, b_ref, g_ref, beta_ref,
                           oh_gc_ref, oh_cg_ref, wfc_ref, bfc_ref,
                           o_ref, patch_ref, *, OH, OW, C_tap, inv_cnt):
    """Layer 4: conv + bias + ReLU + GroupNorm fused with global average
    pooling and the final Linear; the [B, P, 128] activation never hits HBM."""
    B = x_ref.shape[0]
    P = OH * OW
    Cout = w_ref.shape[-1]
    D = wfc_ref.shape[-1]
    _build_patch(x_ref, patch_ref, stride=1, OH=OH, OW=OW, C=C_tap)
    acc = jnp.dot(patch_ref[...], w_ref[...],
                  preferred_element_type=jnp.float32)            # [B*P, Cout]
    y = jnp.maximum(acc + b_ref[...], 0.0).reshape(B, P, Cout)
    s1 = jnp.sum(y, axis=1)                                      # [B, Cout]
    s2 = jnp.sum(y * y, axis=1)
    scale, shift = _gn_scale_shift(s1, s2, oh_gc_ref[...], oh_cg_ref[...],
                                   g_ref[...], beta_ref[...], inv_cnt)
    pooled = (s1 * (1.0 / P)) * scale + shift    # == mean_P of the GN output
    res = jnp.dot(pooled, wfc_ref[...],
                  preferred_element_type=jnp.float32) + bfc_ref[...]
    o_ref[...] = res.reshape(B, 1, D)


# -----------------------------------------------------------------------------
# pallas_call wrappers
# -----------------------------------------------------------------------------
def gemm_gn_block(patches, w_flat, b, gamma, beta, oh_gc, oh_cg, *,
                  OH, OW, cg_real, batch_block):
    N, P, K = patches.shape
    Cout = w_flat.shape[-1]
    B = batch_block
    Hp, Wp = OH + 2, OW + 2
    kernel = functools.partial(gemm_gn_pad_kernel, OH=OH, OW=OW,
                               inv_cnt=1.0 / float(P * cg_real))
    return pl.pallas_call(
        kernel,
        out_shape=jax.ShapeDtypeStruct((N, Hp, Wp, Cout), jnp.bfloat16),
        grid=(N // B,),
        in_specs=[
            pl.BlockSpec((B, P, K), lambda n: (n, 0, 0)),
            pl.BlockSpec((K, Cout), lambda n: (0, 0)),
            pl.BlockSpec((1, Cout), lambda n: (0, 0)),
            pl.BlockSpec((1, Cout), lambda n: (0, 0)),
            pl.BlockSpec((1, Cout), lambda n: (0, 0)),
            pl.BlockSpec(oh_gc.shape, lambda n: (0, 0)),
            pl.BlockSpec(oh_cg.shape, lambda n: (0, 0)),
        ],
        out_specs=pl.BlockSpec((B, Hp, Wp, Cout), lambda n: (n, 0, 0, 0)),
        compiler_params=_compiler_params(),
    )(patches, w_flat, b, gamma, beta, oh_gc, oh_cg)


def conv_gn_block(x_pad, w_flat, b, gamma, beta, oh_gc, oh_cg, *,
                  stride, OH, OW, C_tap, cg_real, batch_block):
    N = x_pad.shape[0]
    Cout = w_flat.shape[-1]
    P = OH * OW
    B = batch_block
    Hp, Wp = OH + 2, OW + 2
    kernel = functools.partial(conv_gn_pad_kernel, stride=stride, OH=OH, OW=OW,
                               C_tap=C_tap, inv_cnt=1.0 / float(P * cg_real))
    xin_block = (B,) + x_pad.shape[1:]
    return pl.pallas_call(
        kernel,
        out_shape=jax.ShapeDtypeStruct((N, Hp, Wp, Cout), jnp.bfloat16),
        grid=(N // B,),
        in_specs=[
            pl.BlockSpec(xin_block,
                         lambda n: (n,) + (0,) * (len(xin_block) - 1)),
            pl.BlockSpec(w_flat.shape, lambda n: (0, 0)),
            pl.BlockSpec((1, Cout), lambda n: (0, 0)),
            pl.BlockSpec((1, Cout), lambda n: (0, 0)),
            pl.BlockSpec((1, Cout), lambda n: (0, 0)),
            pl.BlockSpec(oh_gc.shape, lambda n: (0, 0)),
            pl.BlockSpec(oh_cg.shape, lambda n: (0, 0)),
        ],
        out_specs=pl.BlockSpec((B, Hp, Wp, Cout), lambda n: (n, 0, 0, 0)),
        scratch_shapes=[pltpu.VMEM((B * P, 9 * C_tap), jnp.bfloat16)],
        compiler_params=_compiler_params(),
    )(x_pad, w_flat, b, gamma, beta, oh_gc, oh_cg)


def conv_gn_pool_fc_block(x_pad, w_flat, b, gamma, beta, oh_gc, oh_cg,
                          wfc, bfc, *, OH, OW, C_tap, cg_real, batch_block):
    N = x_pad.shape[0]
    Cout = w_flat.shape[-1]
    D = wfc.shape[-1]
    P = OH * OW
    B = batch_block
    kernel = functools.partial(conv_gn_pool_fc_kernel, OH=OH, OW=OW,
                               C_tap=C_tap, inv_cnt=1.0 / float(P * cg_real))
    return pl.pallas_call(
        kernel,
        out_shape=jax.ShapeDtypeStruct((N, 1, D), jnp.float32),
        grid=(N // B,),
        in_specs=[
            pl.BlockSpec((B,) + x_pad.shape[1:], lambda n: (n, 0, 0, 0)),
            pl.BlockSpec(w_flat.shape, lambda n: (0, 0)),
            pl.BlockSpec((1, Cout), lambda n: (0, 0)),
            pl.BlockSpec((1, Cout), lambda n: (0, 0)),
            pl.BlockSpec((1, Cout), lambda n: (0, 0)),
            pl.BlockSpec(oh_gc.shape, lambda n: (0, 0)),
            pl.BlockSpec(oh_cg.shape, lambda n: (0, 0)),
            pl.BlockSpec(wfc.shape, lambda n: (0, 0)),
            pl.BlockSpec((1, D), lambda n: (0, 0)),
        ],
        out_specs=pl.BlockSpec((B, 1, D), lambda n: (n, 0, 0)),
        scratch_shapes=[pltpu.VMEM((B * P, 9 * C_tap), jnp.bfloat16)],
        compiler_params=_compiler_params(),
    )(x_pad, w_flat, b, gamma, beta, oh_gc, oh_cg, wfc, bfc)


# -----------------------------------------------------------------------------
# Forward pass
# -----------------------------------------------------------------------------
@jax.jit
def mnist_cnn_forward(x_nchw, params):
    """Forward pass of MNIST_CNN.  Accepts PyTorch-style NCHW input."""
    x = jnp.transpose(x_nchw, (0, 2, 3, 1)).astype(jnp.bfloat16)   # NHWC bf16
    N, H, W, Cin = x.shape
    assert H % 2 == 0 and W % 2 == 0      # stride-2 paired-view path (28x28 ok)

    C1 = 128      # layer-1 Cout padded 64 -> 128 (lane-dense activations)
    b1 = _pick_batch_block(N, MAX_B_L1)
    b2 = _pick_batch_block(N, MAX_B_DEEP)

    # ---- layer 1: conv(Cin -> 64, stride 1) as one GEMM over tiny im2col ----
    xp = jnp.pad(x, ((0, 0), (1, 1), (1, 1), (0, 0)))
    patches = _im2col_3x3_s1(xp, H, W)                       # [N, H*W, 9*Cin]
    K1 = 9 * Cin
    K1p = ((K1 + 127) // 128) * 128                          # lane-dense K
    if K1p != K1:
        patches = jnp.pad(patches, ((0, 0), (0, 0), (0, K1p - K1)))
    w1 = _pad_last(params["w1"], C1).reshape(K1, C1)
    w1 = jnp.pad(w1, ((0, K1p - K1), (0, 0))).astype(jnp.bfloat16)
    oh_gc1, oh_cg1 = _group_onehots(C1, 64, GN_GROUPS)
    y1p = gemm_gn_block(patches.astype(jnp.bfloat16), w1,
                        _pad_last(params["b1"], C1),
                        _pad_last(params["g1"], C1),
                        _pad_last(params["beta1"], C1),
                        oh_gc1, oh_cg1,
                        OH=H, OW=W, cg_real=64 // GN_GROUPS, batch_block=b1)
    # y1p: [N, H+2, W+2, 128] zero-bordered padded bf16 tile.

    # ---- layer 2: conv(64 -> 128, stride 2) via zero-copy paired reshape ----
    OH2, OW2 = H // 2, W // 2
    v = y1p.reshape(N, (H + 2) // 2, 2, (W + 2) // 2, 2 * C1)      # no copy
    w2 = params["w2"]
    w2 = jnp.pad(w2, ((0, 0), (0, 0), (0, C1 - w2.shape[2]), (0, 0)))
    w2 = w2.reshape(9 * C1, 128).astype(jnp.bfloat16)
    oh_gc, oh_cg = _group_onehots(128, 128, GN_GROUPS)
    y2p = conv_gn_block(v, w2, params["b2"], params["g2"], params["beta2"],
                        oh_gc, oh_cg, stride=2, OH=OH2, OW=OW2, C_tap=C1,
                        cg_real=128 // GN_GROUPS, batch_block=b2)

    # ---- layer 3: conv(128 -> 128, stride 1) --------------------------------
    w3 = params["w3"].reshape(9 * 128, 128).astype(jnp.bfloat16)
    y3p = conv_gn_block(y2p, w3, params["b3"], params["g3"], params["beta3"],
                        oh_gc, oh_cg, stride=1, OH=OH2, OW=OW2, C_tap=128,
                        cg_real=128 // GN_GROUPS, batch_block=b2)

    # ---- layer 4 + global average pool + fc (fused epilogue) ----------------
    w4 = params["w4"].reshape(9 * 128, 128).astype(jnp.bfloat16)
    out = conv_gn_pool_fc_block(y3p, w4, params["b4"], params["g4"],
                                params["beta4"], oh_gc, oh_cg,
                                params["wfc"], params["bfc"],
                                OH=OH2, OW=OW2, C_tap=128,
                                cg_real=128 // GN_GROUPS, batch_block=b2)
    return out[:, 0, :]


# -----------------------------------------------------------------------------
# Pure-JAX reference (for correctness check)
# -----------------------------------------------------------------------------
def reference_forward(x_nchw, params, compute_dtype=jnp.float32):
    x = jnp.transpose(x_nchw, (0, 2, 3, 1)).astype(jnp.float32)

    def conv(x, w, b, stride):
        y = jax.lax.conv_general_dilated(
            x.astype(compute_dtype), w.astype(compute_dtype),
            (stride, stride), ((1, 1), (1, 1)),
            dimension_numbers=("NHWC", "HWIO", "NHWC"),
            preferred_element_type=jnp.float32)
        return y + b.reshape(1, 1, 1, -1)

    def gn(x, gamma, beta, G=GN_GROUPS):
        N, H, W, C = x.shape
        xg = x.reshape(N, H * W, G, C // G)
        mean = xg.mean(axis=(1, 3), keepdims=True)
        var = ((xg - mean) ** 2).mean(axis=(1, 3), keepdims=True)
        xn = ((xg - mean) / jnp.sqrt(var + GN_EPS)).reshape(N, H, W, C)
        return xn * gamma.reshape(1, 1, 1, -1) + beta.reshape(1, 1, 1, -1)

    layers = [("1", 1), ("2", 2), ("3", 1), ("4", 1)]
    for idx, (name, stride) in enumerate(layers):
        x = conv(x, params["w" + name], params["b" + name], stride)
        x = jnp.maximum(x, 0.0)
        x = gn(x, params["g" + name], params["beta" + name])
        # The Pallas pipeline stores inter-layer activations in bf16 but keeps
        # the final (pooled) layer in f32.
        if compute_dtype != jnp.float32 and idx < len(layers) - 1:
            x = x.astype(compute_dtype).astype(jnp.float32)
    pooled = x.mean(axis=(1, 2))                        # [N, 128]
    return pooled @ params["wfc"] + params["bfc"]


# -----------------------------------------------------------------------------
# Deterministic parameter init + main
# -----------------------------------------------------------------------------
def init_params(key, cin):
    ks = jax.random.split(key, 16)
    p = {}
    chans = {"1": (cin, 64), "2": (64, 128), "3": (128, 128), "4": (128, 128)}
    i = 0
    for name, (ci, co) in chans.items():
        p["w" + name] = (jax.random.normal(ks[i], (3, 3, ci, co), jnp.float32)
                         / jnp.sqrt(9.0 * ci))
        p["b" + name] = 0.05 * jax.random.normal(ks[i + 1], (1, co), jnp.float32)
        p["g" + name] = 1.0 + 0.1 * jax.random.normal(ks[i + 2], (1, co),
                                                      jnp.float32)
        p["beta" + name] = 0.1 * jax.random.normal(ks[i + 3], (1, co),
                                                   jnp.float32)
        i += 4
    kfc = jax.random.split(ks[-1], 2)
    p["wfc"] = jax.random.normal(kfc[0], (128, 128), jnp.float32) / jnp.sqrt(128.0)
    p["bfc"] = 0.05 * jax.random.normal(kfc[1], (1, 128), jnp.float32)
    return p


if __name__ == "__main__":
    key = jax.random.PRNGKey(0)
    kx, kp = jax.random.split(key)

    # Small synthetic input consistent with the module: NCHW [2, 4, 16, 16].
    x = jax.random.normal(kx, (2, 4, 16, 16), jnp.float32)
    params = init_params(kp, cin=4)

    out = jax.block_until_ready(mnist_cnn_forward(x, params))
    assert out.shape == (2, 128), out.shape

    # Tight check against a reference using the same bf16 GEMM operands /
    # bf16 inter-layer activation storage (verifies the Pallas kernel logic).
    ref_bf16 = reference_forward(x, params, compute_dtype=jnp.bfloat16)
    err_bf16 = float(jnp.max(jnp.abs(out - ref_bf16)))
    assert err_bf16 < 2e-2, f"mismatch vs bf16-matched reference: {err_bf16}"

    # Loose sanity check against the full-f32 module semantics (slack covers
    # the deliberate bf16 quantisation of GEMM operands / activations).
    ref_f32 = reference_forward(x, params, compute_dtype=jnp.float32)
    err_f32 = float(jnp.max(jnp.abs(out - ref_f32)))
    assert err_f32 < 2e-1, f"mismatch vs f32 reference: {err_f32}"

    print("KERNEL_OK")
</pallas_src>

<mosaic_0001>
module attributes {stable_mosaic.version = 11 : i64} {
  func.func @gemm_gn_pad_kernel(%arg0: i32, %arg1: memref<1x256x128xbf16, #tpu.memory_space<vmem>>, %arg2: memref<128x128xbf16, #tpu.memory_space<vmem>>, %arg3: memref<1x128xf32, #tpu.memory_space<vmem>>, %arg4: memref<1x128xf32, #tpu.memory_space<vmem>>, %arg5: memref<1x128xf32, #tpu.memory_space<vmem>>, %arg6: memref<8x128xf32, #tpu.memory_space<vmem>>, %arg7: memref<128x8xf32, #tpu.memory_space<vmem>>, %arg8: memref<1x18x18x128xbf16, #tpu.memory_space<vmem>>) attributes {dimension_semantics = [#tpu.dimension_semantics<parallel>], iteration_bounds = array<i64: 2>, scalar_prefetch = 0 : i64, scratch_operands = 0 : i64, tpu.core_type = #tpu.core_type<tc>, window_params = [{transform_indices = @transform_0, window_bounds = array<i64: 1, 256, 128>}, {pipeline_mode = #tpu.pipeline_mode<synchronous>, transform_indices = @transform_1, window_bounds = array<i64: 128, 128>}, {pipeline_mode = #tpu.pipeline_mode<synchronous>, transform_indices = @transform_2, window_bounds = array<i64: 1, 128>}, {pipeline_mode = #tpu.pipeline_mode<synchronous>, transform_indices = @transform_3, window_bounds = array<i64: 1, 128>}, {pipeline_mode = #tpu.pipeline_mode<synchronous>, transform_indices = @transform_4, window_bounds = array<i64: 1, 128>}, {pipeline_mode = #tpu.pipeline_mode<synchronous>, transform_indices = @transform_5, window_bounds = array<i64: 8, 128>}, {pipeline_mode = #tpu.pipeline_mode<synchronous>, transform_indices = @transform_6, window_bounds = array<i64: 128, 8>}, {transform_indices = @transform_7, window_bounds = array<i64: 1, 18, 18, 128>}]} {
    %c0 = arith.constant 0 : index
    %c0_0 = arith.constant 0 : index
    %c0_1 = arith.constant 0 : index
    %0 = vector.load %arg1[%c0, %c0_0, %c0_1] : memref<1x256x128xbf16, #tpu.memory_space<vmem>>, vector<1x256x128xbf16>
    %1 = vector.shape_cast %0 : vector<1x256x128xbf16> to vector<256x128xbf16>
    %c0_2 = arith.constant 0 : index
    %c0_3 = arith.constant 0 : index
    %2 = vector.load %arg2[%c0_2, %c0_3] : memref<128x128xbf16, #tpu.memory_space<vmem>>, vector<128x128xbf16>
    %cst = arith.constant dense<0.000000e+00> : vector<256x128xf32>
    %3 = tpu.matmul %1, %2, %cst {dimension_numbers = #tpu.dot_dimension_numbers<[1], [0], [0], [1], [0, 0, 1, 1], [], []>} : vector<256x128xbf16>, vector<128x128xbf16>, vector<256x128xf32> -> vector<256x128xf32>
    %c0_4 = arith.constant 0 : index
    %c0_5 = arith.constant 0 : index
    %4 = vector.load %arg3[%c0_4, %c0_5] : memref<1x128xf32, #tpu.memory_space<vmem>>, vector<1x128xf32>
    %5 = vector.broadcast %4 : vector<1x128xf32> to vector<256x128xf32>
    %6 = arith.addf %3, %5 : vector<256x128xf32>
    %cst_6 = arith.constant 0.000000e+00 : f32
    %7 = vector.broadcast %cst_6 : f32 to vector<256x128xf32>
    %8 = arith.maximumf %6, %7 : vector<256x128xf32>
    %9 = vector.shape_cast %8 : vector<256x128xf32> to vector<1x16x16x128xf32>
    %cst_7 = arith.constant dense<0.000000e+00> : vector<1x128xf32>
    %10 = vector.multi_reduction <add>, %9, %cst_7 [1, 2] : vector<1x16x16x128xf32> to vector<1x128xf32>
    %11 = arith.mulf %9, %9 : vector<1x16x16x128xf32>
    %cst_8 = arith.constant dense<0.000000e+00> : vector<1x128xf32>
    %12 = vector.multi_reduction <add>, %11, %cst_8 [1, 2] : vector<1x16x16x128xf32> to vector<1x128xf32>
    %c0_9 = arith.constant 0 : index
    %c0_10 = arith.constant 0 : index
    %13 = vector.load %arg6[%c0_9, %c0_10] : memref<8x128xf32, #tpu.memory_space<vmem>>, vector<8x128xf32>
    %c0_11 = arith.constant 0 : index
    %c0_12 = arith.constant 0 : index
    %14 = vector.load %arg7[%c0_11, %c0_12] : memref<128x8xf32, #tpu.memory_space<vmem>>, vector<128x8xf32>
    %c0_13 = arith.constant 0 : index
    %c0_14 = arith.constant 0 : index
    %15 = vector.load %arg4[%c0_13, %c0_14] : memref<1x128xf32, #tpu.memory_space<vmem>>, vector<1x128xf32>
    %c0_15 = arith.constant 0 : index
    %c0_16 = arith.constant 0 : index
    %16 = vector.load %arg5[%c0_15, %c0_16] : memref<1x128xf32, #tpu.memory_space<vmem>>, vector<1x128xf32>
    %cst_17 = arith.constant dense<0.000000e+00> : vector<1x8xf32>
    %17 = tpu.matmul %10, %14, %cst_17 {dimension_numbers = #tpu.dot_dimension_numbers<[1], [0], [0], [1], [0, 0, 1, 1], [], []>} : vector<1x128xf32>, vector<128x8xf32>, vector<1x8xf32> -> vector<1x8xf32>
    %cst_18 = arith.constant 4.8828125E-4 : f32
    %18 = vector.broadcast %cst_18 : f32 to vector<1x8xf32>
    %19 = arith.mulf %17, %18 : vector<1x8xf32>
    %cst_19 = arith.constant dense<0.000000e+00> : vector<1x8xf32>
    %20 = tpu.matmul %12, %14, %cst_19 {dimension_numbers = #tpu.dot_dimension_numbers<[1], [0], [0], [1], [0, 0, 1, 1], [], []>} : vector<1x128xf32>, vector<128x8xf32>, vector<1x8xf32> -> vector<1x8xf32>
    %cst_20 = arith.constant 4.8828125E-4 : f32
    %21 = vector.broadcast %cst_20 : f32 to vector<1x8xf32>
    %22 = arith.mulf %20, %21 : vector<1x8xf32>
    %23 = arith.mulf %19, %19 : vector<1x8xf32>
    %24 = arith.subf %22, %23 : vector<1x8xf32>
    %cst_21 = arith.constant 0.000000e+00 : f32
    %25 = vector.broadcast %cst_21 : f32 to vector<1x8xf32>
    %26 = arith.maximumf %24, %25 : vector<1x8xf32>
    %cst_22 = arith.constant 9.99999974E-6 : f32
    %27 = vector.broadcast %cst_22 : f32 to vector<1x8xf32>
    %28 = arith.addf %26, %27 : vector<1x8xf32>
    %29 = math.rsqrt %28 : vector<1x8xf32>
    %cst_23 = arith.constant dense<0.000000e+00> : vector<1x128xf32>
    %30 = tpu.matmul %19, %13, %cst_23 {dimension_numbers = #tpu.dot_dimension_numbers<[1], [0], [0], [1], [0, 0, 1, 1], [], []>} : vector<1x8xf32>, vector<8x128xf32>, vector<1x128xf32> -> vector<1x128xf32>
    %cst_24 = arith.constant dense<0.000000e+00> : vector<1x128xf32>
    %31 = tpu.matmul %29, %13, %cst_24 {dimension_numbers = #tpu.dot_dimension_numbers<[1], [0], [0], [1], [0, 0, 1, 1], [], []>} : vector<1x8xf32>, vector<8x128xf32>, vector<1x128xf32> -> vector<1x128xf32>
    %32 = arith.mulf %31, %15 : vector<1x128xf32>
    %33 = arith.mulf %30, %32 : vector<1x128xf32>
    %34 = arith.subf %16, %33 : vector<1x128xf32>
    %35 = vector.shape_cast %32 : vector<1x128xf32> to vector<1x1x1x128xf32>
    %36 = vector.broadcast %35 : vector<1x1x1x128xf32> to vector<1x16x16x128xf32>
    %37 = arith.mulf %9, %36 : vector<1x16x16x128xf32>
    %38 = vector.shape_cast %34 : vector<1x128xf32> to vector<1x1x1x128xf32>
    %39 = vector.broadcast %38 : vector<1x1x1x128xf32> to vector<1x16x16x128xf32>
    %40 = arith.addf %37, %39 : vector<1x16x16x128xf32>
    %cst_25 = arith.constant 0.000000e+00 : bf16
    %41 = vector.broadcast %cst_25 : bf16 to vector<1x1x18x128xbf16>
    %cst_26 = arith.constant 0.000000e+00 : bf16
    %42 = vector.broadcast %cst_26 : bf16 to vector<1x16x1x128xbf16>
    %c0_27 = arith.constant 0 : index
    %c0_28 = arith.constant 0 : index
    %c0_29 = arith.constant 0 : index
    %c0_30 = arith.constant 0 : index
    %43 = vector.load %arg8[%c0_27, %c0_28, %c0_29, %c0_30] : memref<1x18x18x128xbf16, #tpu.memory_space<vmem>>, vector<1x1x18x128xbf16>
    tpu.vector_store %arg8[%c0_27, %c0_28, %c0_29, %c0_30], %41 {strides = array<i32>} : memref<1x18x18x128xbf16, #tpu.memory_space<vmem>>, vector<1x1x18x128xbf16>,
    %c0_31 = arith.constant 0 : index
    %c17 = arith.constant 17 : index
    %c0_32 = arith.constant 0 : index
    %c0_33 = arith.constant 0 : index
    %44 = vector.load %arg8[%c0_31, %c17, %c0_32, %c0_33] : memref<1x18x18x128xbf16, #tpu.memory_space<vmem>>, vector<1x1x18x128xbf16>
    tpu.vector_store %arg8[%c0_31, %c17, %c0_32, %c0_33], %41 {strides = array<i32>} : memref<1x18x18x128xbf16, #tpu.memory_space<vmem>>, vector<1x1x18x128xbf16>,
    %c0_34 = arith.constant 0 : index
    %c1 = arith.constant 1 : index
    %c0_35 = arith.constant 0 : index
    %c0_36 = arith.constant 0 : index
    %45 = vector.load %arg8[%c0_34, %c1, %c0_35, %c0_36] : memref<1x18x18x128xbf16, #tpu.memory_space<vmem>>, vector<1x16x1x128xbf16>
    tpu.vector_store %arg8[%c0_34, %c1, %c0_35, %c0_36], %42 {strides = array<i32>} : memref<1x18x18x128xbf16, #tpu.memory_space<vmem>>, vector<1x16x1x128xbf16>,
    %c0_37 = arith.constant 0 : index
    %c1_38 = arith.constant 1 : index
    %c17_39 = arith.constant 17 : index
    %c0_40 = arith.constant 0 : index
    %46 = vector.load %arg8[%c0_37, %c1_38, %c17_39, %c0_40] : memref<1x18x18x128xbf16, #tpu.memory_space<vmem>>, vector<1x16x1x128xbf16>
    tpu.vector_store %arg8[%c0_37, %c1_38, %c17_39, %c0_40], %42 {strides = array<i32>} : memref<1x18x18x128xbf16, #tpu.memory_space<vmem>>, vector<1x16x1x128xbf16>,
    %47 = arith.truncf %40 : vector<1x16x16x128xf32> to vector<1x16x16x128xbf16>
    %c0_41 = arith.constant 0 : index
    %c1_42 = arith.constant 1 : index
    %c1_43 = arith.constant 1 : index
    %c0_44 = arith.constant 0 : index
    %48 = vector.load %arg8[%c0_41, %c1_42, %c1_43, %c0_44] : memref<1x18x18x128xbf16, #tpu.memory_space<vmem>>, vector<1x16x16x128xbf16>
    tpu.vector_store %arg8[%c0_41, %c1_42, %c1_43, %c0_44], %47 {strides = array<i32>} : memref<1x18x18x128xbf16, #tpu.memory_space<vmem>>, vector<1x16x16x128xbf16>,
    return
  }
  func.func @transform_0(%arg0: i32) -> (i32, i32, i32) {
    %c0_i32 = arith.constant 0 : i32
    %c0_i32_0 = arith.constant 0 : i32
    %c0_i32_1 = arith.constant 0 : i32
    return %arg0, %c0_i32, %c0_i32_0 : i32, i32, i32
  }
  func.func @transform_1(%arg0: i32) -> (i32, i32) {
    %c0_i32 = arith.constant 0 : i32
    %c0_i32_0 = arith.constant 0 : i32
    %c0_i32_1 = arith.constant 0 : i32
    return %c0_i32, %c0_i32_0 : i32, i32
  }
  func.func @transform_2(%arg0: i32) -> (i32, i32) {
    %c0_i32 = arith.constant 0 : i32
    %c0_i32_0 = arith.constant 0 : i32
    %c0_i32_1 = arith.constant 0 : i32
    return %c0_i32, %c0_i32_0 : i32, i32
  }
  func.func @transform_3(%arg0: i32) -> (i32, i32) {
    %c0_i32 = arith.constant 0 : i32
    %c0_i32_0 = arith.constant 0 : i32
    %c0_i32_1 = arith.constant 0 : i32
    return %c0_i32, %c0_i32_0 : i32, i32
  }
  func.func @transform_4(%arg0: i32) -> (i32, i32) {
    %c0_i32 = arith.constant 0 : i32
    %c0_i32_0 = arith.constant 0 : i32
    %c0_i32_1 = arith.constant 0 : i32
    return %c0_i32, %c0_i32_0 : i32, i32
  }
  func.func @transform_5(%arg0: i32) -> (i32, i32) {
    %c0_i32 = arith.constant 0 : i32
    %c0_i32_0 = arith.constant 0 : i32
    %c0_i32_1 = arith.constant 0 : i32
    return %c0_i32, %c0_i32_0 : i32, i32
  }
  func.func @transform_6(%arg0: i32) -> (i32, i32) {
    %c0_i32 = arith.constant 0 : i32
    %c0_i32_0 = arith.constant 0 : i32
    %c0_i32_1 = arith.constant 0 : i32
    return %c0_i32, %c0_i32_0 : i32, i32
  }
  func.func @transform_7(%arg0: i32) -> (i32, i32, i32, i32) {
    %c0_i32 = arith.constant 0 : i32
    %c0_i32_0 = arith.constant 0 : i32
    %c0_i32_1 = arith.constant 0 : i32
    %c0_i32_2 = arith.constant 0 : i32
    return %arg0, %c0_i32, %c0_i32_0, %c0_i32_1 : i32, i32, i32, i32
  }
}

module attributes {stable_mosaic.version = 11 : i64} {
  func.func @conv_gn_pad_kernel(%arg0: i32, %arg1: memref<1x9x2x9x256xbf16, #tpu.memory_space<vmem>>, %arg2: memref<1152x128xbf16, #tpu.memory_space<vmem>>, %arg3: memref<1x128xf32, #tpu.memory_space<vmem>>, %arg4: memref<1x128xf32, #tpu.memory_space<vmem>>, %arg5: memref<1x128xf32, #tpu.memory_space<vmem>>, %arg6: memref<8x128xf32, #tpu.memory_space<vmem>>, %arg7: memref<128x8xf32, #tpu.memory_space<vmem>>, %arg8: memref<1x10x10x128xbf16, #tpu.memory_space<vmem>>, %arg9: memref<64x1152xbf16, #tpu.memory_space<vmem>>) attributes {dimension_semantics = [#tpu.dimension_semantics<parallel>], iteration_bounds = array<i64: 2>, scalar_prefetch = 0 : i64, scratch_operands = 1 : i64, tpu.core_type = #tpu.core_type<tc>, window_params = [{transform_indices = @transform_0, window_bounds = array<i64: 1, 9, 2, 9, 256>}, {pipeline_mode = #tpu.pipeline_mode<synchronous>, transform_indices = @transform_1, window_bounds = array<i64: 1152, 128>}, {pipeline_mode = #tpu.pipeline_mode<synchronous>, transform_indices = @transform_2, window_bounds = array<i64: 1, 128>}, {pipeline_mode = #tpu.pipeline_mode<synchronous>, transform_indices = @transform_3, window_bounds = array<i64: 1, 128>}, {pipeline_mode = #tpu.pipeline_mode<synchronous>, transform_indices = @transform_4, window_bounds = array<i64: 1, 128>}, {pipeline_mode = #tpu.pipeline_mode<synchronous>, transform_indices = @transform_5, window_bounds = array<i64: 8, 128>}, {pipeline_mode = #tpu.pipeline_mode<synchronous>, transform_indices = @transform_6, window_bounds = array<i64: 128, 8>}, {transform_indices = @transform_7, window_bounds = array<i64: 1, 10, 10, 128>}]} {
    %c0 = arith.constant 0 : index
    %c0_0 = arith.constant 0 : index
    %c0_1 = arith.constant 0 : index
    %c0_2 = arith.constant 0 : index
    %c0_3 = arith.constant 0 : index
    %0 = vector.load %arg1[%c0, %c0_0, %c0_1, %c0_2, %c0_3] : memref<1x9x2x9x256xbf16, #tpu.memory_space<vmem>>, vector<1x8x1x8x128xbf16>
    %1 = vector.shape_cast %0 : vector<1x8x1x8x128xbf16> to vector<64x128xbf16>
    %c0_4 = arith.constant 0 : index
    %c0_5 = arith.constant 0 : index
    %2 = vector.load %arg9[%c0_4, %c0_5] : memref<64x1152xbf16, #tpu.memory_space<vmem>>, vector<64x128xbf16>
    tpu.vector_store %arg9[%c0_4, %c0_5], %1 {strides = array<i32>} : memref<64x1152xbf16, #tpu.memory_space<vmem>>, vector<64x128xbf16>,
    %c0_6 = arith.constant 0 : index
    %c0_7 = arith.constant 0 : index
    %c0_8 = arith.constant 0 : index
    %c0_9 = arith.constant 0 : index
    %c128 = arith.constant 128 : index
    %3 = vector.load %arg1[%c0_6, %c0_7, %c0_8, %c0_9, %c128] : memref<1x9x2x9x256xbf16, #tpu.memory_space<vmem>>, vector<1x8x1x8x128xbf16>
    %4 = vector.shape_cast %3 : vector<1x8x1x8x128xbf16> to vector<64x128xbf16>
    %c0_10 = arith.constant 0 : index
    %c128_11 = arith.constant 128 : index
    %5 = vector.load %arg9[%c0_10, %c128_11] : memref<64x1152xbf16, #tpu.memory_space<vmem>>, vector<64x128xbf16>
    tpu.vector_store %arg9[%c0_10, %c128_11], %4 {strides = array<i32>} : memref<64x1152xbf16, #tpu.memory_space<vmem>>, vector<64x128xbf16>,
    %c0_12 = arith.constant 0 : index
    %c0_13 = arith.constant 0 : index
    %c0_14 = arith.constant 0 : index
    %c1 = arith.constant 1 : index
    %c0_15 = arith.constant 0 : index
    %6 = vector.load %arg1[%c0_12, %c0_13, %c0_14, %c1, %c0_15] : memref<1x9x2x9x256xbf16, #tpu.memory_space<vmem>>, vector<1x8x1x8x128xbf16>
    %7 = vector.shape_cast %6 : vector<1x8x1x8x128xbf16> to vector<64x128xbf16>
    %c0_16 = arith.constant 0 : index
    %c256 = arith.constant 256 : index
    %8 = vector.load %arg9[%c0_16, %c256] : memref<64x1152xbf16, #tpu.memory_space<vmem>>, vector<64x128xbf16>
    tpu.vector_store %arg9[%c0_16, %c256], %7 {strides = array<i32>} : memref<64x1152xbf16, #tpu.memory_space<vmem>>, vector<64x128xbf16>,
    %c0_17 = arith.constant 0 : index
    %c0_18 = arith.constant 0 : index
    %c1_19 = arith.constant 1 : index
    %c0_20 = arith.constant 0 : index
    %c0_21 = arith.constant 0 : index
    %9 = vector.load %arg1[%c0_17, %c0_18, %c1_19, %c0_20, %c0_21] : memref<1x9x2x9x256xbf16, #tpu.memory_space<vmem>>, vector<1x8x1x8x128xbf16>
    %10 = vector.shape_cast %9 : vector<1x8x1x8x128xbf16> to vector<64x128xbf16>
    %c0_22 = arith.constant 0 : index
    %c384 = arith.constant 384 : index
    %11 = vector.load %arg9[%c0_22, %c384] : memref<64x1152xbf16, #tpu.memory_space<vmem>>, vector<64x128xbf16>
    tpu.vector_store %arg9[%c0_22, %c384], %10 {strides = array<i32>} : memref<64x1152xbf16, #tpu.memory_space<vmem>>, vector<64x128xbf16>,
    %c0_23 = arith.constant 0 : index
    %c0_24 = arith.constant 0 : index
    %c1_25 = arith.constant 1 : index
    %c0_26 = arith.constant 0 : index
    %c128_27 = arith.constant 128 : index
    %12 = vector.load %arg1[%c0_23, %c0_24, %c1_25, %c0_26, %c128_27] : memref<1x9x2x9x256xbf16, #tpu.memory_space<vmem>>, vector<1x8x1x8x128xbf16>
    %13 = vector.shape_cast %12 : vector<1x8x1x8x128xbf16> to vector<64x128xbf16>
    %c0_28 = arith.constant 0 : index
    %c512 = arith.constant 512 : index
    %14 = vector.load %arg9[%c0_28, %c512] : memref<64x1152xbf16, #tpu.memory_space<vmem>>, vector<64x128xbf16>
    tpu.vector_store %arg9[%c0_28, %c512], %13 {strides = array<i32>} : memref<64x1152xbf16, #tpu.memory_space<vmem>>, vector<64x128xbf16>,
    %c0_29 = arith.constant 0 : index
    %c0_30 = arith.constant 0 : index
    %c1_31 = arith.constant 1 : index
    %c1_32 = arith.constant 1 : index
    %c0_33 = arith.constant 0 : index
    %15 = vector.load %arg1[%c0_29, %c0_30, %c1_31, %c1_32, %c0_33] : memref<1x9x2x9x256xbf16, #tpu.memory_space<vmem>>, vector<1x8x1x8x128xbf16>
    %16 = vector.shape_cast %15 : vector<1x8x1x8x128xbf16> to vector<64x128xbf16>
    %c0_34 = arith.constant 0 : index
    %c640 = arith.constant 640 : index
    %17 = vector.load %arg9[%c0_34, %c640] : memref<64x1152xbf16, #tpu.memory_space<vmem>>, vector<64x128xbf16>
    tpu.vector_store %arg9[%c0_34, %c640], %16 {strides = array<i32>} : memref<64x1152xbf16, #tpu.memory_space<vmem>>, vector<64x128xbf16>,
    %c0_35 = arith.constant 0 : index
    %c1_36 = arith.constant 1 : index
    %c0_37 = arith.constant 0 : index
    %c0_38 = arith.constant 0 : index
    %c0_39 = arith.constant 0 : index
    %18 = vector.load %arg1[%c0_35, %c1_36, %c0_37, %c0_38, %c0_39] : memref<1x9x2x9x256xbf16, #tpu.memory_space<vmem>>, vector<1x8x1x8x128xbf16>
    %19 = vector.shape_cast %18 : vector<1x8x1x8x128xbf16> to vector<64x128xbf16>
    %c0_40 = arith.constant 0 : index
    %c768 = arith.constant 768 : index
    %20 = vector.load %arg9[%c0_40, %c768] : memref<64x1152xbf16, #tpu.memory_space<vmem>>, vector<64x128xbf16>
    tpu.vector_store %arg9[%c0_40, %c768], %19 {strides = array<i32>} : memref<64x1152xbf16, #tpu.memory_space<vmem>>, vector<64x128xbf16>,
    %c0_41 = arith.constant 0 : index
    %c1_42 = arith.constant 1 : index
    %c0_43 = arith.constant 0 : index
    %c0_44 = arith.constant 0 : index
    %c128_45 = arith.constant 128 : index
    %21 = vector.load %arg1[%c0_41, %c1_42, %c0_43, %c0_44, %c128_45] : memref<1x9x2x9x256xbf16, #tpu.memory_space<vmem>>, vector<1x8x1x8x128xbf16>
    %22 = vector.shape_cast %21 : vector<1x8x1x8x128xbf16> to vector<64x128xbf16>
    %c0_46 = arith.constant 0 : index
    %c896 = arith.constant 896 : index
    %23 = vector.load %arg9[%c0_46, %c896] : memref<64x1152xbf16, #tpu.memory_space<vmem>>, vector<64x128xbf16>
    tpu.vector_store %arg9[%c0_46, %c896], %22 {strides = array<i32>} : memref<64x1152xbf16, #tpu.memory_space<vmem>>, vector<64x128xbf16>,
    %c0_47 = arith.constant 0 : index
    %c1_48 = arith.constant 1 : index
    %c0_49 = arith.constant 0 : index
    %c1_50 = arith.constant 1 : index
    %c0_51 = arith.constant 0 : index
    %24 = vector.load %arg1[%c0_47, %c1_48, %c0_49, %c1_50, %c0_51] : memref<1x9x2x9x256xbf16, #tpu.memory_space<vmem>>, vector<1x8x1x8x128xbf16>
    %25 = vector.shape_cast %24 : vector<1x8x1x8x128xbf16> to vector<64x128xbf16>
    %c0_52 = arith.constant 0 : index
    %c1024 = arith.constant 1024 : index
    %26 = vector.load %arg9[%c0_52, %c1024] : memref<64x1152xbf16, #tpu.memory_space<vmem>>, vector<64x128xbf16>
    tpu.vector_store %arg9[%c0_52, %c1024], %25 {strides = array<i32>} : memref<64x1152xbf16, #tpu.memory_space<vmem>>, vector<64x128xbf16>,
    %c0_53 = arith.constant 0 : index
    %c0_54 = arith.constant 0 : index
    %27 = vector.load %arg9[%c0_53, %c0_54] : memref<64x1152xbf16, #tpu.memory_space<vmem>>, vector<64x1152xbf16>
    %c0_55 = arith.constant 0 : index
    %c0_56 = arith.constant 0 : index
    %28 = vector.load %arg2[%c0_55, %c0_56] : memref<1152x128xbf16, #tpu.memory_space<vmem>>, vector<1152x128xbf16>
    %cst = arith.constant dense<0.000000e+00> : vector<64x128xf32>
    %29 = tpu.matmul %27, %28, %cst {dimension_numbers = #tpu.dot_dimension_numbers<[1], [0], [0], [1], [0, 0, 1, 1], [], []>} : vector<64x1152xbf16>, vector<1152x128xbf16>, vector<64x128xf32> -> vector<64x128xf32>
    %c0_57 = arith.constant 0 : index
    %c0_58 = arith.constant 0 : index
    %30 = vector.load %arg3[%c0_57, %c0_58] : memref<1x128xf32, #tpu.memory_space<vmem>>, vector<1x128xf32>
    %31 = vector.broadcast %30 : vector<1x128xf32> to vector<64x128xf32>
    %32 = arith.addf %29, %31 : vector<64x128xf32>
    %cst_59 = arith.constant 0.000000e+00 : f32
    %33 = vector.broadcast %cst_59 : f32 to vector<64x128xf32>
    %34 = arith.maximumf %32, %33 : vector<64x128xf32>
    %35 = vector.shape_cast %34 : vector<64x128xf32> to vector<1x8x8x128xf32>
    %cst_60 = arith.constant dense<0.000000e+00> : vector<1x128xf32>
    %36 = vector.multi_reduction <add>, %35, %cst_60 [1, 2] : vector<1x8x8x128xf32> to vector<1x128xf32>
    %37 = arith.mulf %35, %35 : vector<1x8x8x128xf32>
    %cst_61 = arith.constant dense<0.000000e+00> : vector<1x128xf32>
    %38 = vector.multi_reduction <add>, %37, %cst_61 [1, 2] : vector<1x8x8x128xf32> to vector<1x128xf32>
    %c0_62 = arith.constant 0 : index
    %c0_63 = arith.constant 0 : index
    %39 = vector.load %arg6[%c0_62, %c0_63] : memref<8x128xf32, #tpu.memory_space<vmem>>, vector<8x128xf32>
    %c0_64 = arith.constant 0 : index
    %c0_65 = arith.constant 0 : index
    %40 = vector.load %arg7[%c0_64, %c0_65] : memref<128x8xf32, #tpu.memory_space<vmem>>, vector<128x8xf32>
    %c0_66 = arith.constant 0 : index
    %c0_67 = arith.constant 0 : index
    %41 = vector.load %arg4[%c0_66, %c0_67] : memref<1x128xf32, #tpu.memory_space<vmem>>, vector<1x128xf32>
    %c0_68 = arith.constant 0 : index
    %c0_69 = arith.constant 0 : index
    %42 = vector.load %arg5[%c0_68, %c0_69] : memref<1x128xf32, #tpu.memory_space<vmem>>, vector<1x128xf32>
    %cst_70 = arith.constant dense<0.000000e+00> : vector<1x8xf32>
    %43 = tpu.matmul %36, %40, %cst_70 {dimension_numbers = #tpu.dot_dimension_numbers<[1], [0], [0], [1], [0, 0, 1, 1], [], []>} : vector<1x128xf32>, vector<128x8xf32>, vector<1x8xf32> -> vector<1x8xf32>
    %cst_71 = arith.constant 9.765625E-4 : f32
    %44 = vector.broadcast %cst_71 : f32 to vector<1x8xf32>
    %45 = arith.mulf %43, %44 : vector<1x8xf32>
    %cst_72 = arith.constant dense<0.000000e+00> : vector<1x8xf32>
    %46 = tpu.matmul %38, %40, %cst_72 {dimension_numbers = #tpu.dot_dimension_numbers<[1], [0], [0], [1], [0, 0, 1, 1], [], []>} : vector<1x128xf32>, vector<128x8xf32>, vector<1x8xf32> -> vector<1x8xf32>
    %cst_73 = arith.constant 9.765625E-4 : f32
    %47 = vector.broadcast %cst_73 : f32 to vector<1x8xf32>
    %48 = arith.mulf %46, %47 : vector<1x8xf32>
    %49 = arith.mulf %45, %45 : vector<1x8xf32>
    %50 = arith.subf %48, %49 : vector<1x8xf32>
    %cst_74 = arith.constant 0.000000e+00 : f32
    %51 = vector.broadcast %cst_74 : f32 to vector<1x8xf32>
    %52 = arith.maximumf %50, %51 : vector<1x8xf32>
    %cst_75 = arith.constant 9.99999974E-6 : f32
    %53 = vector.broadcast %cst_75 : f32 to vector<1x8xf32>
    %54 = arith.addf %52, %53 : vector<1x8xf32>
    %55 = math.rsqrt %54 : vector<1x8xf32>
    %cst_76 = arith.constant dense<0.000000e+00> : vector<1x128xf32>
    %56 = tpu.matmul %45, %39, %cst_76 {dimension_numbers = #tpu.dot_dimension_numbers<[1], [0], [0], [1], [0, 0, 1, 1], [], []>} : vector<1x8xf32>, vector<8x128xf32>, vector<1x128xf32> -> vector<1x128xf32>
    %cst_77 = arith.constant dense<0.000000e+00> : vector<1x128xf32>
    %57 = tpu.matmul %55, %39, %cst_77 {dimension_numbers = #tpu.dot_dimension_numbers<[1], [0], [0], [1], [0, 0, 1, 1], [], []>} : vector<1x8xf32>, vector<8x128xf32>, vector<1x128xf32> -> vector<1x128xf32>
    %58 = arith.mulf %57, %41 : vector<1x128xf32>
    %59 = arith.mulf %56, %58 : vector<1x128xf32>
    %60 = arith.subf %42, %59 : vector<1x128xf32>
    %61 = vector.shape_cast %58 : vector<1x128xf32> to vector<1x1x1x128xf32>
    %62 = vector.broadcast %61 : vector<1x1x1x128xf32> to vector<1x8x8x128xf32>
    %63 = arith.mulf %35, %62 : vector<1x8x8x128xf32>
    %64 = vector.shape_cast %60 : vector<1x128xf32> to vector<1x1x1x128xf32>
    %65 = vector.broadcast %64 : vector<1x1x1x128xf32> to vector<1x8x8x128xf32>
    %66 = arith.addf %63, %65 : vector<1x8x8x128xf32>
    %cst_78 = arith.constant 0.000000e+00 : bf16
    %67 = vector.broadcast %cst_78 : bf16 to vector<1x1x10x128xbf16>
    %cst_79 = arith.constant 0.000000e+00 : bf16
    %68 = vector.broadcast %cst_79 : bf16 to vector<1x8x1x128xbf16>
    %c0_80 = arith.constant 0 : index
    %c0_81 = arith.constant 0 : index
    %c0_82 = arith.constant 0 : index
    %c0_83 = arith.constant 0 : index
    %69 = vector.load %arg8[%c0_80, %c0_81, %c0_82, %c0_83] : memref<1x10x10x128xbf16, #tpu.memory_space<vmem>>, vector<1x1x10x128xbf16>
    tpu.vector_store %arg8[%c0_80, %c0_81, %c0_82, %c0_83], %67 {strides = array<i32>} : memref<1x10x10x128xbf16, #tpu.memory_space<vmem>>, vector<1x1x10x128xbf16>,
    %c0_84 = arith.constant 0 : index
    %c9 = arith.constant 9 : index
    %c0_85 = arith.constant 0 : index
    %c0_86 = arith.constant 0 : index
    %70 = vector.load %arg8[%c0_84, %c9, %c0_85, %c0_86] : memref<1x10x10x128xbf16, #tpu.memory_space<vmem>>, vector<1x1x10x128xbf16>
    tpu.vector_store %arg8[%c0_84, %c9, %c0_85, %c0_86], %67 {strides = array<i32>} : memref<1x10x10x128xbf16, #tpu.memory_space<vmem>>, vector<1x1x10x128xbf16>,
    %c0_87 = arith.constant 0 : index
    %c1_88 = arith.constant 1 : index
    %c0_89 = arith.constant 0 : index
    %c0_90 = arith.constant 0 : index
    %71 = vector.load %arg8[%c0_87, %c1_88, %c0_89, %c0_90] : memref<1x10x10x128xbf16, #tpu.memory_space<vmem>>, vector<1x8x1x128xbf16>
    tpu.vector_store %arg8[%c0_87, %c1_88, %c0_89, %c0_90], %68 {strides = array<i32>} : memref<1x10x10x128xbf16, #tpu.memory_space<vmem>>, vector<1x8x1x128xbf16>,
    %c0_91 = arith.constant 0 : index
    %c1_92 = arith.constant 1 : index
    %c9_93 = arith.constant 9 : index
    %c0_94 = arith.constant 0 : index
    %72 = vector.load %arg8[%c0_91, %c1_92, %c9_93, %c0_94] : memref<1x10x10x128xbf16, #tpu.memory_space<vmem>>, vector<1x8x1x128xbf16>
    tpu.vector_store %arg8[%c0_91, %c1_92, %c9_93, %c0_94], %68 {strides = array<i32>} : memref<1x10x10x128xbf16, #tpu.memory_space<vmem>>, vector<1x8x1x128xbf16>,
    %73 = arith.truncf %66 : vector<1x8x8x128xf32> to vector<1x8x8x128xbf16>
    %c0_95 = arith.constant 0 : index
    %c1_96 = arith.constant 1 : index
    %c1_97 = arith.constant 1 : index
    %c0_98 = arith.constant 0 : index
    %74 = vector.load %arg8[%c0_95, %c1_96, %c1_97, %c0_98] : memref<1x10x10x128xbf16, #tpu.memory_space<vmem>>, vector<1x8x8x128xbf16>
    tpu.vector_store %arg8[%c0_95, %c1_96, %c1_97, %c0_98], %73 {strides = array<i32>} : memref<1x10x10x128xbf16, #tpu.memory_space<vmem>>, vector<1x8x8x128xbf16>,
    return
  }
  func.func @transform_0(%arg0: i32) -> (i32, i32, i32, i32, i32) {
    %c0_i32 = arith.constant 0 : i32
    %c0_i32_0 = arith.constant 0 : i32
    %c0_i32_1 = arith.constant 0 : i32
    %c0_i32_2 = arith.constant 0 : i32
    %c0_i32_3 = arith.constant 0 : i32
    return %arg0, %c0_i32, %c0_i32_0, %c0_i32_1, %c0_i32_2 : i32, i32, i32, i32, i32
  }
  func.func @transform_1(%arg0: i32) -> (i32, i32) {
    %c0_i32 = arith.constant 0 : i32
    %c0_i32_0 = arith.constant 0 : i32
    %c0_i32_1 = arith.constant 0 : i32
    return %c0_i32, %c0_i32_0 : i32, i32
  }
  func.func @transform_2(%arg0: i32) -> (i32, i32) {
    %c0_i32 = arith.constant 0 : i32
    %c0_i32_0 = arith.constant 0 : i32
    %c0_i32_1 = arith.constant 0 : i32
    return %c0_i32, %c0_i32_0 : i32, i32
  }
  func.func @transform_3(%arg0: i32) -> (i32, i32) {
    %c0_i32 = arith.constant 0 : i32
    %c0_i32_0 = arith.constant 0 : i32
    %c0_i32_1 = arith.constant 0 : i32
    return %c0_i32, %c0_i32_0 : i32, i32
  }
  func.func @transform_4(%arg0: i32) -> (i32, i32) {
    %c0_i32 = arith.constant 0 : i32
    %c0_i32_0 = arith.constant 0 : i32
    %c0_i32_1 = arith.constant 0 : i32
    return %c0_i32, %c0_i32_0 : i32, i32
  }
  func.func @transform_5(%arg0: i32) -> (i32, i32) {
    %c0_i32 = arith.constant 0 : i32
    %c0_i32_0 = arith.constant 0 : i32
    %c0_i32_1 = arith.constant 0 : i32
    return %c0_i32, %c0_i32_0 : i32, i32
  }
  func.func @transform_6(%arg0: i32) -> (i32, i32) {
    %c0_i32 = arith.constant 0 : i32
    %c0_i32_0 = arith.constant 0 : i32
    %c0_i32_1 = arith.constant 0 : i32
    return %c0_i32, %c0_i32_0 : i32, i32
  }
  func.func @transform_7(%arg0: i32) -> (i32, i32, i32, i32) {
    %c0_i32 = arith.constant 0 : i32
    %c0_i32_0 = arith.constant 0 : i32
    %c0_i32_1 = arith.constant 0 : i32
    %c0_i32_2 = arith.constant 0 : i32
    return %arg0, %c0_i32, %c0_i32_0, %c0_i32_1 : i32, i32, i32, i32
  }
}

module attributes {stable_mosaic.version = 11 : i64} {
  func.func @conv_gn_pool_fc_kernel(%arg0: i32, %arg1: memref<1x10x10x128xbf16, #tpu.memory_space<vmem>>, %arg2: memref<1152x128xbf16, #tpu.memory_space<vmem>>, %arg3: memref<1x128xf32, #tpu.memory_space<vmem>>, %arg4: memref<1x128xf32, #tpu.memory_space<vmem>>, %arg5: memref<1x128xf32, #tpu.memory_space<vmem>>, %arg6: memref<8x128xf32, #tpu.memory_space<vmem>>, %arg7: memref<128x8xf32, #tpu.memory_space<vmem>>, %arg8: memref<128x128xf32, #tpu.memory_space<vmem>>, %arg9: memref<1x128xf32, #tpu.memory_space<vmem>>, %arg10: memref<1x1x128xf32, #tpu.memory_space<vmem>>, %arg11: memref<64x1152xbf16, #tpu.memory_space<vmem>>) attributes {dimension_semantics = [#tpu.dimension_semantics<parallel>], iteration_bounds = array<i64: 2>, scalar_prefetch = 0 : i64, scratch_operands = 1 : i64, tpu.core_type = #tpu.core_type<tc>, window_params = [{transform_indices = @transform_0, window_bounds = array<i64: 1, 10, 10, 128>}, {pipeline_mode = #tpu.pipeline_mode<synchronous>, transform_indices = @transform_1, window_bounds = array<i64: 1152, 128>}, {pipeline_mode = #tpu.pipeline_mode<synchronous>, transform_indices = @transform_2, window_bounds = array<i64: 1, 128>}, {pipeline_mode = #tpu.pipeline_mode<synchronous>, transform_indices = @transform_3, window_bounds = array<i64: 1, 128>}, {pipeline_mode = #tpu.pipeline_mode<synchronous>, transform_indices = @transform_4, window_bounds = array<i64: 1, 128>}, {pipeline_mode = #tpu.pipeline_mode<synchronous>, transform_indices = @transform_5, window_bounds = array<i64: 8, 128>}, {pipeline_mode = #tpu.pipeline_mode<synchronous>, transform_indices = @transform_6, window_bounds = array<i64: 128, 8>}, {pipeline_mode = #tpu.pipeline_mode<synchronous>, transform_indices = @transform_7, window_bounds = array<i64: 128, 128>}, {pipeline_mode = #tpu.pipeline_mode<synchronous>, transform_indices = @transform_8, window_bounds = array<i64: 1, 128>}, {transform_indices = @transform_9, window_bounds = array<i64: 1, 1, 128>}]} {
    %c0 = arith.constant 0 : index
    %c0_0 = arith.constant 0 : index
    %c0_1 = arith.constant 0 : index
    %c0_2 = arith.constant 0 : index
    %0 = vector.load %arg1[%c0, %c0_0, %c0_1, %c0_2] : memref<1x10x10x128xbf16, #tpu.memory_space<vmem>>, vector<1x8x8x128xbf16>
    %1 = vector.shape_cast %0 : vector<1x8x8x128xbf16> to vector<64x128xbf16>
    %c0_3 = arith.constant 0 : index
    %c0_4 = arith.constant 0 : index
    %2 = vector.load %arg11[%c0_3, %c0_4] : memref<64x1152xbf16, #tpu.memory_space<vmem>>, vector<64x128xbf16>
    tpu.vector_store %arg11[%c0_3, %c0_4], %1 {strides = array<i32>} : memref<64x1152xbf16, #tpu.memory_space<vmem>>, vector<64x128xbf16>,
    %c0_5 = arith.constant 0 : index
    %c0_6 = arith.constant 0 : index
    %c1 = arith.constant 1 : index
    %c0_7 = arith.constant 0 : index
    %3 = vector.load %arg1[%c0_5, %c0_6, %c1, %c0_7] : memref<1x10x10x128xbf16, #tpu.memory_space<vmem>>, vector<1x8x8x128xbf16>
    %4 = vector.shape_cast %3 : vector<1x8x8x128xbf16> to vector<64x128xbf16>
    %c0_8 = arith.constant 0 : index
    %c128 = arith.constant 128 : index
    %5 = vector.load %arg11[%c0_8, %c128] : memref<64x1152xbf16, #tpu.memory_space<vmem>>, vector<64x128xbf16>
    tpu.vector_store %arg11[%c0_8, %c128], %4 {strides = array<i32>} : memref<64x1152xbf16, #tpu.memory_space<vmem>>, vector<64x128xbf16>,
    %c0_9 = arith.constant 0 : index
    %c0_10 = arith.constant 0 : index
    %c2 = arith.constant 2 : index
    %c0_11 = arith.constant 0 : index
    %6 = vector.load %arg1[%c0_9, %c0_10, %c2, %c0_11] : memref<1x10x10x128xbf16, #tpu.memory_space<vmem>>, vector<1x8x8x128xbf16>
    %7 = vector.shape_cast %6 : vector<1x8x8x128xbf16> to vector<64x128xbf16>
    %c0_12 = arith.constant 0 : index
    %c256 = arith.constant 256 : index
    %8 = vector.load %arg11[%c0_12, %c256] : memref<64x1152xbf16, #tpu.memory_space<vmem>>, vector<64x128xbf16>
    tpu.vector_store %arg11[%c0_12, %c256], %7 {strides = array<i32>} : memref<64x1152xbf16, #tpu.memory_space<vmem>>, vector<64x128xbf16>,
    %c0_13 = arith.constant 0 : index
    %c1_14 = arith.constant 1 : index
    %c0_15 = arith.constant 0 : index
    %c0_16 = arith.constant 0 : index
    %9 = vector.load %arg1[%c0_13, %c1_14, %c0_15, %c0_16] : memref<1x10x10x128xbf16, #tpu.memory_space<vmem>>, vector<1x8x8x128xbf16>
    %10 = vector.shape_cast %9 : vector<1x8x8x128xbf16> to vector<64x128xbf16>
    %c0_17 = arith.constant 0 : index
    %c384 = arith.constant 384 : index
    %11 = vector.load %arg11[%c0_17, %c384] : memref<64x1152xbf16, #tpu.memory_space<vmem>>, vector<64x128xbf16>
    tpu.vector_store %arg11[%c0_17, %c384], %10 {strides = array<i32>} : memref<64x1152xbf16, #tpu.memory_space<vmem>>, vector<64x128xbf16>,
    %c0_18 = arith.constant 0 : index
    %c1_19 = arith.constant 1 : index
    %c1_20 = arith.constant 1 : index
    %c0_21 = arith.constant 0 : index
    %12 = vector.load %arg1[%c0_18, %c1_19, %c1_20, %c0_21] : memref<1x10x10x128xbf16, #tpu.memory_space<vmem>>, vector<1x8x8x128xbf16>
    %13 = vector.shape_cast %12 : vector<1x8x8x128xbf16> to vector<64x128xbf16>
    %c0_22 = arith.constant 0 : index
    %c512 = arith.constant 512 : index
    %14 = vector.load %arg11[%c0_22, %c512] : memref<64x1152xbf16, #tpu.memory_space<vmem>>, vector<64x128xbf16>
    tpu.vector_store %arg11[%c0_22, %c512], %13 {strides = array<i32>} : memref<64x1152xbf16, #tpu.memory_space<vmem>>, vector<64x128xbf16>,
    %c0_23 = arith.constant 0 : index
    %c1_24 = arith.constant 1 : index
    %c2_25 = arith.constant 2 : index
    %c0_26 = arith.constant 0 : index
    %15 = vector.load %arg1[%c0_23, %c1_24, %c2_25, %c0_26] : memref<1x10x10x128xbf16, #tpu.memory_space<vmem>>, vector<1x8x8x128xbf16>
    %16 = vector.shape_cast %15 : vector<1x8x8x128xbf16> to vector<64x128xbf16>
    %c0_27 = arith.constant 0 : index
    %c640 = arith.constant 640 : index
    %17 = vector.load %arg11[%c0_27, %c640] : memref<64x1152xbf16, #tpu.memory_space<vmem>>, vector<64x128xbf16>
    tpu.vector_store %arg11[%c0_27, %c640], %16 {strides = array<i32>} : memref<64x1152xbf16, #tpu.memory_space<vmem>>, vector<64x128xbf16>,
    %c0_28 = arith.constant 0 : index
    %c2_29 = arith.constant 2 : index
    %c0_30 = arith.constant 0 : index
    %c0_31 = arith.constant 0 : index
    %18 = vector.load %arg1[%c0_28, %c2_29, %c0_30, %c0_31] : memref<1x10x10x128xbf16, #tpu.memory_space<vmem>>, vector<1x8x8x128xbf16>
    %19 = vector.shape_cast %18 : vector<1x8x8x128xbf16> to vector<64x128xbf16>
    %c0_32 = arith.constant 0 : index
    %c768 = arith.constant 768 : index
    %20 = vector.load %arg11[%c0_32, %c768] : memref<64x1152xbf16, #tpu.memory_space<vmem>>, vector<64x128xbf16>
    tpu.vector_store %arg11[%c0_32, %c768], %19 {strides = array<i32>} : memref<64x1152xbf16, #tpu.memory_space<vmem>>, vector<64x128xbf16>,
    %c0_33 = arith.constant 0 : index
    %c2_34 = arith.constant 2 : index
    %c1_35 = arith.constant 1 : index
    %c0_36 = arith.constant 0 : index
    %21 = vector.load %arg1[%c0_33, %c2_34, %c1_35, %c0_36] : memref<1x10x10x128xbf16, #tpu.memory_space<vmem>>, vector<1x8x8x128xbf16>
    %22 = vector.shape_cast %21 : vector<1x8x8x128xbf16> to vector<64x128xbf16>
    %c0_37 = arith.constant 0 : index
    %c896 = arith.constant 896 : index
    %23 = vector.load %arg11[%c0_37, %c896] : memref<64x1152xbf16, #tpu.memory_space<vmem>>, vector<64x128xbf16>
    tpu.vector_store %arg11[%c0_37, %c896], %22 {strides = array<i32>} : memref<64x1152xbf16, #tpu.memory_space<vmem>>, vector<64x128xbf16>,
    %c0_38 = arith.constant 0 : index
    %c2_39 = arith.constant 2 : index
    %c2_40 = arith.constant 2 : index
    %c0_41 = arith.constant 0 : index
    %24 = vector.load %arg1[%c0_38, %c2_39, %c2_40, %c0_41] : memref<1x10x10x128xbf16, #tpu.memory_space<vmem>>, vector<1x8x8x128xbf16>
    %25 = vector.shape_cast %24 : vector<1x8x8x128xbf16> to vector<64x128xbf16>
    %c0_42 = arith.constant 0 : index
    %c1024 = arith.constant 1024 : index
    %26 = vector.load %arg11[%c0_42, %c1024] : memref<64x1152xbf16, #tpu.memory_space<vmem>>, vector<64x128xbf16>
    tpu.vector_store %arg11[%c0_42, %c1024], %25 {strides = array<i32>} : memref<64x1152xbf16, #tpu.memory_space<vmem>>, vector<64x128xbf16>,
    %c0_43 = arith.constant 0 : index
    %c0_44 = arith.constant 0 : index
    %27 = vector.load %arg11[%c0_43, %c0_44] : memref<64x1152xbf16, #tpu.memory_space<vmem>>, vector<64x1152xbf16>
    %c0_45 = arith.constant 0 : index
    %c0_46 = arith.constant 0 : index
    %28 = vector.load %arg2[%c0_45, %c0_46] : memref<1152x128xbf16, #tpu.memory_space<vmem>>, vector<1152x128xbf16>
    %cst = arith.constant dense<0.000000e+00> : vector<64x128xf32>
    %29 = tpu.matmul %27, %28, %cst {dimension_numbers = #tpu.dot_dimension_numbers<[1], [0], [0], [1], [0, 0, 1, 1], [], []>} : vector<64x1152xbf16>, vector<1152x128xbf16>, vector<64x128xf32> -> vector<64x128xf32>
    %c0_47 = arith.constant 0 : index
    %c0_48 = arith.constant 0 : index
    %30 = vector.load %arg3[%c0_47, %c0_48] : memref<1x128xf32, #tpu.memory_space<vmem>>, vector<1x128xf32>
    %31 = vector.broadcast %30 : vector<1x128xf32> to vector<64x128xf32>
    %32 = arith.addf %29, %31 : vector<64x128xf32>
    %cst_49 = arith.constant 0.000000e+00 : f32
    %33 = vector.broadcast %cst_49 : f32 to vector<64x128xf32>
    %34 = arith.maximumf %32, %33 : vector<64x128xf32>
    %35 = vector.shape_cast %34 : vector<64x128xf32> to vector<1x64x128xf32>
    %cst_50 = arith.constant dense<0.000000e+00> : vector<1x128xf32>
    %36 = vector.multi_reduction <add>, %35, %cst_50 [1] : vector<1x64x128xf32> to vector<1x128xf32>
    %37 = arith.mulf %35, %35 : vector<1x64x128xf32>
    %cst_51 = arith.constant dense<0.000000e+00> : vector<1x128xf32>
    %38 = vector.multi_reduction <add>, %37, %cst_51 [1] : vector<1x64x128xf32> to vector<1x128xf32>
    %c0_52 = arith.constant 0 : index
    %c0_53 = arith.constant 0 : index
    %39 = vector.load %arg6[%c0_52, %c0_53] : memref<8x128xf32, #tpu.memory_space<vmem>>, vector<8x128xf32>
    %c0_54 = arith.constant 0 : index
    %c0_55 = arith.constant 0 : index
    %40 = vector.load %arg7[%c0_54, %c0_55] : memref<128x8xf32, #tpu.memory_space<vmem>>, vector<128x8xf32>
    %c0_56 = arith.constant 0 : index
    %c0_57 = arith.constant 0 : index
    %41 = vector.load %arg4[%c0_56, %c0_57] : memref<1x128xf32, #tpu.memory_space<vmem>>, vector<1x128xf32>
    %c0_58 = arith.constant 0 : index
    %c0_59 = arith.constant 0 : index
    %42 = vector.load %arg5[%c0_58, %c0_59] : memref<1x128xf32, #tpu.memory_space<vmem>>, vector<1x128xf32>
    %cst_60 = arith.constant dense<0.000000e+00> : vector<1x8xf32>
    %43 = tpu.matmul %36, %40, %cst_60 {dimension_numbers = #tpu.dot_dimension_numbers<[1], [0], [0], [1], [0, 0, 1, 1], [], []>} : vector<1x128xf32>, vector<128x8xf32>, vector<1x8xf32> -> vector<1x8xf32>
    %cst_61 = arith.constant 9.765625E-4 : f32
    %44 = vector.broadcast %cst_61 : f32 to vector<1x8xf32>
    %45 = arith.mulf %43, %44 : vector<1x8xf32>
    %cst_62 = arith.constant dense<0.000000e+00> : vector<1x8xf32>
    %46 = tpu.matmul %38, %40, %cst_62 {dimension_numbers = #tpu.dot_dimension_numbers<[1], [0], [0], [1], [0, 0, 1, 1], [], []>} : vector<1x128xf32>, vector<128x8xf32>, vector<1x8xf32> -> vector<1x8xf32>
    %cst_63 = arith.constant 9.765625E-4 : f32
    %47 = vector.broadcast %cst_63 : f32 to vector<1x8xf32>
    %48 = arith.mulf %46, %47 : vector<1x8xf32>
    %49 = arith.mulf %45, %45 : vector<1x8xf32>
    %50 = arith.subf %48, %49 : vector<1x8xf32>
    %cst_64 = arith.constant 0.000000e+00 : f32
    %51 = vector.broadcast %cst_64 : f32 to vector<1x8xf32>
    %52 = arith.maximumf %50, %51 : vector<1x8xf32>
    %cst_65 = arith.constant 9.99999974E-6 : f32
    %53 = vector.broadcast %cst_65 : f32 to vector<1x8xf32>
    %54 = arith.addf %52, %53 : vector<1x8xf32>
    %55 = math.rsqrt %54 : vector<1x8xf32>
    %cst_66 = arith.constant dense<0.000000e+00> : vector<1x128xf32>
    %56 = tpu.matmul %45, %39, %cst_66 {dimension_numbers = #tpu.dot_dimension_numbers<[1], [0], [0], [1], [0, 0, 1, 1], [], []>} : vector<1x8xf32>, vector<8x128xf32>, vector<1x128xf32> -> vector<1x128xf32>
    %cst_67 = arith.constant dense<0.000000e+00> : vector<1x128xf32>
    %57 = tpu.matmul %55, %39, %cst_67 {dimension_numbers = #tpu.dot_dimension_numbers<[1], [0], [0], [1], [0, 0, 1, 1], [], []>} : vector<1x8xf32>, vector<8x128xf32>, vector<1x128xf32> -> vector<1x128xf32>
    %58 = arith.mulf %57, %41 : vector<1x128xf32>
    %59 = arith.mulf %56, %58 : vector<1x128xf32>
    %60 = arith.subf %42, %59 : vector<1x128xf32>
    %cst_68 = arith.constant 1.562500e-02 : f32
    %61 = vector.broadcast %cst_68 : f32 to vector<1x128xf32>
    %62 = arith.mulf %36, %61 : vector<1x128xf32>
    %63 = arith.mulf %62, %58 : vector<1x128xf32>
    %64 = arith.addf %63, %60 : vector<1x128xf32>
    %c0_69 = arith.constant 0 : index
    %c0_70 = arith.constant 0 : index
    %65 = vector.load %arg8[%c0_69, %c0_70] : memref<128x128xf32, #tpu.memory_space<vmem>>, vector<128x128xf32>
    %cst_71 = arith.constant dense<0.000000e+00> : vector<1x128xf32>
    %66 = tpu.matmul %64, %65, %cst_71 {dimension_numbers = #tpu.dot_dimension_numbers<[1], [0], [0], [1], [0, 0, 1, 1], [], []>} : vector<1x128xf32>, vector<128x128xf32>, vector<1x128xf32> -> vector<1x128xf32>
    %c0_72 = arith.constant 0 : index
    %c0_73 = arith.constant 0 : index
    %67 = vector.load %arg9[%c0_72, %c0_73] : memref<1x128xf32, #tpu.memory_space<vmem>>, vector<1x128xf32>
    %68 = arith.addf %66, %67 : vector<1x128xf32>
    %69 = vector.shape_cast %68 : vector<1x128xf32> to vector<1x1x128xf32>
    %c0_74 = arith.constant 0 : index
    %c0_75 = arith.constant 0 : index
    %c0_76 = arith.constant 0 : index
    %70 = vector.load %arg10[%c0_74, %c0_75, %c0_76] : memref<1x1x128xf32, #tpu.memory_space<vmem>>, vector<1x1x128xf32>
    tpu.vector_store %arg10[%c0_74, %c0_75, %c0_76], %69 {strides = array<i32>} : memref<1x1x128xf32, #tpu.memory_space<vmem>>, vector<1x1x128xf32>,
    return
  }
  func.func @transform_0(%arg0: i32) -> (i32, i32, i32, i32) {
    %c0_i32 = arith.constant 0 : i32
    %c0_i32_0 = arith.constant 0 : i32
    %c0_i32_1 = arith.constant 0 : i32
    %c0_i32_2 = arith.constant 0 : i32
    return %arg0, %c0_i32, %c0_i32_0, %c0_i32_1 : i32, i32, i32, i32
  }
  func.func @transform_1(%arg0: i32) -> (i32, i32) {
    %c0_i32 = arith.constant 0 : i32
    %c0_i32_0 = arith.constant 0 : i32
    %c0_i32_1 = arith.constant 0 : i32
    return %c0_i32, %c0_i32_0 : i32, i32
  }
  func.func @transform_2(%arg0: i32) -> (i32, i32) {
    %c0_i32 = arith.constant 0 : i32
    %c0_i32_0 = arith.constant 0 : i32
    %c0_i32_1 = arith.constant 0 : i32
    return %c0_i32, %c0_i32_0 : i32, i32
  }
  func.func @transform_3(%arg0: i32) -> (i32, i32) {
    %c0_i32 = arith.constant 0 : i32
    %c0_i32_0 = arith.constant 0 : i32
    %c0_i32_1 = arith.constant 0 : i32
    return %c0_i32, %c0_i32_0 : i32, i32
  }
  func.func @transform_4(%arg0: i32) -> (i32, i32) {
    %c0_i32 = arith.constant 0 : i32
    %c0_i32_0 = arith.constant 0 : i32
    %c0_i32_1 = arith.constant 0 : i32
    return %c0_i32, %c0_i32_0 : i32, i32
  }
  func.func @transform_5(%arg0: i32) -> (i32, i32) {
    %c0_i32 = arith.constant 0 : i32
    %c0_i32_0 = arith.constant 0 : i32
    %c0_i32_1 = arith.constant 0 : i32
    return %c0_i32, %c0_i32_0 : i32, i32
  }
  func.func @transform_6(%arg0: i32) -> (i32, i32) {
    %c0_i32 = arith.constant 0 : i32
    %c0_i32_0 = arith.constant 0 : i32
    %c0_i32_1 = arith.constant 0 : i32
    return %c0_i32, %c0_i32_0 : i32, i32
  }
  func.func @transform_7(%arg0: i32) -> (i32, i32) {
    %c0_i32 = arith.constant 0 : i32
    %c0_i32_0 = arith.constant 0 : i32
    %c0_i32_1 = arith.constant 0 : i32
    return %c0_i32, %c0_i32_0 : i32, i32
  }
  func.func @transform_8(%arg0: i32) -> (i32, i32) {
    %c0_i32 = arith.constant 0 : i32
    %c0_i32_0 = arith.constant 0 : i32
    %c0_i32_1 = arith.constant 0 : i32
    return %c0_i32, %c0_i32_0 : i32, i32
  }
  func.func @transform_9(%arg0: i32) -> (i32, i32, i32) {
    %c0_i32 = arith.constant 0 : i32
    %c0_i32_0 = arith.constant 0 : i32
    %c0_i32_1 = arith.constant 0 : i32
    return %arg0, %c0_i32, %c0_i32_0 : i32, i32, i32
  }
}

module attributes {stable_mosaic.version = 11 : i64} {
  func.func @conv_gn_pad_kernel(%arg0: i32, %arg1: memref<1x10x10x128xbf16, #tpu.memory_space<vmem>>, %arg2: memref<1152x128xbf16, #tpu.memory_space<vmem>>, %arg3: memref<1x128xf32, #tpu.memory_space<vmem>>, %arg4: memref<1x128xf32, #tpu.memory_space<vmem>>, %arg5: memref<1x128xf32, #tpu.memory_space<vmem>>, %arg6: memref<8x128xf32, #tpu.memory_space<vmem>>, %arg7: memref<128x8xf32, #tpu.memory_space<vmem>>, %arg8: memref<1x10x10x128xbf16, #tpu.memory_space<vmem>>, %arg9: memref<64x1152xbf16, #tpu.memory_space<vmem>>) attributes {dimension_semantics = [#tpu.dimension_semantics<parallel>], iteration_bounds = array<i64: 2>, scalar_prefetch = 0 : i64, scratch_operands = 1 : i64, tpu.core_type = #tpu.core_type<tc>, window_params = [{transform_indices = @transform_0, window_bounds = array<i64: 1, 10, 10, 128>}, {pipeline_mode = #tpu.pipeline_mode<synchronous>, transform_indices = @transform_1, window_bounds = array<i64: 1152, 128>}, {pipeline_mode = #tpu.pipeline_mode<synchronous>, transform_indices = @transform_2, window_bounds = array<i64: 1, 128>}, {pipeline_mode = #tpu.pipeline_mode<synchronous>, transform_indices = @transform_3, window_bounds = array<i64: 1, 128>}, {pipeline_mode = #tpu.pipeline_mode<synchronous>, transform_indices = @transform_4, window_bounds = array<i64: 1, 128>}, {pipeline_mode = #tpu.pipeline_mode<synchronous>, transform_indices = @transform_5, window_bounds = array<i64: 8, 128>}, {pipeline_mode = #tpu.pipeline_mode<synchronous>, transform_indices = @transform_6, window_bounds = array<i64: 128, 8>}, {transform_indices = @transform_7, window_bounds = array<i64: 1, 10, 10, 128>}]} {
    %c0 = arith.constant 0 : index
    %c0_0 = arith.constant 0 : index
    %c0_1 = arith.constant 0 : index
    %c0_2 = arith.constant 0 : index
    %0 = vector.load %arg1[%c0, %c0_0, %c0_1, %c0_2] : memref<1x10x10x128xbf16, #tpu.memory_space<vmem>>, vector<1x8x8x128xbf16>
    %1 = vector.shape_cast %0 : vector<1x8x8x128xbf16> to vector<64x128xbf16>
    %c0_3 = arith.constant 0 : index
    %c0_4 = arith.constant 0 : index
    %2 = vector.load %arg9[%c0_3, %c0_4] : memref<64x1152xbf16, #tpu.memory_space<vmem>>, vector<64x128xbf16>
    tpu.vector_store %arg9[%c0_3, %c0_4], %1 {strides = array<i32>} : memref<64x1152xbf16, #tpu.memory_space<vmem>>, vector<64x128xbf16>,
    %c0_5 = arith.constant 0 : index
    %c0_6 = arith.constant 0 : index
    %c1 = arith.constant 1 : index
    %c0_7 = arith.constant 0 : index
    %3 = vector.load %arg1[%c0_5, %c0_6, %c1, %c0_7] : memref<1x10x10x128xbf16, #tpu.memory_space<vmem>>, vector<1x8x8x128xbf16>
    %4 = vector.shape_cast %3 : vector<1x8x8x128xbf16> to vector<64x128xbf16>
    %c0_8 = arith.constant 0 : index
    %c128 = arith.constant 128 : index
    %5 = vector.load %arg9[%c0_8, %c128] : memref<64x1152xbf16, #tpu.memory_space<vmem>>, vector<64x128xbf16>
    tpu.vector_store %arg9[%c0_8, %c128], %4 {strides = array<i32>} : memref<64x1152xbf16, #tpu.memory_space<vmem>>, vector<64x128xbf16>,
    %c0_9 = arith.constant 0 : index
    %c0_10 = arith.constant 0 : index
    %c2 = arith.constant 2 : index
    %c0_11 = arith.constant 0 : index
    %6 = vector.load %arg1[%c0_9, %c0_10, %c2, %c0_11] : memref<1x10x10x128xbf16, #tpu.memory_space<vmem>>, vector<1x8x8x128xbf16>
    %7 = vector.shape_cast %6 : vector<1x8x8x128xbf16> to vector<64x128xbf16>
    %c0_12 = arith.constant 0 : index
    %c256 = arith.constant 256 : index
    %8 = vector.load %arg9[%c0_12, %c256] : memref<64x1152xbf16, #tpu.memory_space<vmem>>, vector<64x128xbf16>
    tpu.vector_store %arg9[%c0_12, %c256], %7 {strides = array<i32>} : memref<64x1152xbf16, #tpu.memory_space<vmem>>, vector<64x128xbf16>,
    %c0_13 = arith.constant 0 : index
    %c1_14 = arith.constant 1 : index
    %c0_15 = arith.constant 0 : index
    %c0_16 = arith.constant 0 : index
    %9 = vector.load %arg1[%c0_13, %c1_14, %c0_15, %c0_16] : memref<1x10x10x128xbf16, #tpu.memory_space<vmem>>, vector<1x8x8x128xbf16>
    %10 = vector.shape_cast %9 : vector<1x8x8x128xbf16> to vector<64x128xbf16>
    %c0_17 = arith.constant 0 : index
    %c384 = arith.constant 384 : index
    %11 = vector.load %arg9[%c0_17, %c384] : memref<64x1152xbf16, #tpu.memory_space<vmem>>, vector<64x128xbf16>
    tpu.vector_store %arg9[%c0_17, %c384], %10 {strides = array<i32>} : memref<64x1152xbf16, #tpu.memory_space<vmem>>, vector<64x128xbf16>,
    %c0_18 = arith.constant 0 : index
    %c1_19 = arith.constant 1 : index
    %c1_20 = arith.constant 1 : index
    %c0_21 = arith.constant 0 : index
    %12 = vector.load %arg1[%c0_18, %c1_19, %c1_20, %c0_21] : memref<1x10x10x128xbf16, #tpu.memory_space<vmem>>, vector<1x8x8x128xbf16>
    %13 = vector.shape_cast %12 : vector<1x8x8x128xbf16> to vector<64x128xbf16>
    %c0_22 = arith.constant 0 : index
    %c512 = arith.constant 512 : index
    %14 = vector.load %arg9[%c0_22, %c512] : memref<64x1152xbf16, #tpu.memory_space<vmem>>, vector<64x128xbf16>
    tpu.vector_store %arg9[%c0_22, %c512], %13 {strides = array<i32>} : memref<64x1152xbf16, #tpu.memory_space<vmem>>, vector<64x128xbf16>,
    %c0_23 = arith.constant 0 : index
    %c1_24 = arith.constant 1 : index
    %c2_25 = arith.constant 2 : index
    %c0_26 = arith.constant 0 : index
    %15 = vector.load %arg1[%c0_23, %c1_24, %c2_25, %c0_26] : memref<1x10x10x128xbf16, #tpu.memory_space<vmem>>, vector<1x8x8x128xbf16>
    %16 = vector.shape_cast %15 : vector<1x8x8x128xbf16> to vector<64x128xbf16>
    %c0_27 = arith.constant 0 : index
    %c640 = arith.constant 640 : index
    %17 = vector.load %arg9[%c0_27, %c640] : memref<64x1152xbf16, #tpu.memory_space<vmem>>, vector<64x128xbf16>
    tpu.vector_store %arg9[%c0_27, %c640], %16 {strides = array<i32>} : memref<64x1152xbf16, #tpu.memory_space<vmem>>, vector<64x128xbf16>,
    %c0_28 = arith.constant 0 : index
    %c2_29 = arith.constant 2 : index
    %c0_30 = arith.constant 0 : index
    %c0_31 = arith.constant 0 : index
    %18 = vector.load %arg1[%c0_28, %c2_29, %c0_30, %c0_31] : memref<1x10x10x128xbf16, #tpu.memory_space<vmem>>, vector<1x8x8x128xbf16>
    %19 = vector.shape_cast %18 : vector<1x8x8x128xbf16> to vector<64x128xbf16>
    %c0_32 = arith.constant 0 : index
    %c768 = arith.constant 768 : index
    %20 = vector.load %arg9[%c0_32, %c768] : memref<64x1152xbf16, #tpu.memory_space<vmem>>, vector<64x128xbf16>
    tpu.vector_store %arg9[%c0_32, %c768], %19 {strides = array<i32>} : memref<64x1152xbf16, #tpu.memory_space<vmem>>, vector<64x128xbf16>,
    %c0_33 = arith.constant 0 : index
    %c2_34 = arith.constant 2 : index
    %c1_35 = arith.constant 1 : index
    %c0_36 = arith.constant 0 : index
    %21 = vector.load %arg1[%c0_33, %c2_34, %c1_35, %c0_36] : memref<1x10x10x128xbf16, #tpu.memory_space<vmem>>, vector<1x8x8x128xbf16>
    %22 = vector.shape_cast %21 : vector<1x8x8x128xbf16> to vector<64x128xbf16>
    %c0_37 = arith.constant 0 : index
    %c896 = arith.constant 896 : index
    %23 = vector.load %arg9[%c0_37, %c896] : memref<64x1152xbf16, #tpu.memory_space<vmem>>, vector<64x128xbf16>
    tpu.vector_store %arg9[%c0_37, %c896], %22 {strides = array<i32>} : memref<64x1152xbf16, #tpu.memory_space<vmem>>, vector<64x128xbf16>,
    %c0_38 = arith.constant 0 : index
    %c2_39 = arith.constant 2 : index
    %c2_40 = arith.constant 2 : index
    %c0_41 = arith.constant 0 : index
    %24 = vector.load %arg1[%c0_38, %c2_39, %c2_40, %c0_41] : memref<1x10x10x128xbf16, #tpu.memory_space<vmem>>, vector<1x8x8x128xbf16>
    %25 = vector.shape_cast %24 : vector<1x8x8x128xbf16> to vector<64x128xbf16>
    %c0_42 = arith.constant 0 : index
    %c1024 = arith.constant 1024 : index
    %26 = vector.load %arg9[%c0_42, %c1024] : memref<64x1152xbf16, #tpu.memory_space<vmem>>, vector<64x128xbf16>
    tpu.vector_store %arg9[%c0_42, %c1024], %25 {strides = array<i32>} : memref<64x1152xbf16, #tpu.memory_space<vmem>>, vector<64x128xbf16>,
    %c0_43 = arith.constant 0 : index
    %c0_44 = arith.constant 0 : index
    %27 = vector.load %arg9[%c0_43, %c0_44] : memref<64x1152xbf16, #tpu.memory_space<vmem>>, vector<64x1152xbf16>
    %c0_45 = arith.constant 0 : index
    %c0_46 = arith.constant 0 : index
    %28 = vector.load %arg2[%c0_45, %c0_46] : memref<1152x128xbf16, #tpu.memory_space<vmem>>, vector<1152x128xbf16>
    %cst = arith.constant dense<0.000000e+00> : vector<64x128xf32>
    %29 = tpu.matmul %27, %28, %cst {dimension_numbers = #tpu.dot_dimension_numbers<[1], [0], [0], [1], [0, 0, 1, 1], [], []>} : vector<64x1152xbf16>, vector<1152x128xbf16>, vector<64x128xf32> -> vector<64x128xf32>
    %c0_47 = arith.constant 0 : index
    %c0_48 = arith.constant 0 : index
    %30 = vector.load %arg3[%c0_47, %c0_48] : memref<1x128xf32, #tpu.memory_space<vmem>>, vector<1x128xf32>
    %31 = vector.broadcast %30 : vector<1x128xf32> to vector<64x128xf32>
    %32 = arith.addf %29, %31 : vector<64x128xf32>
    %cst_49 = arith.constant 0.000000e+00 : f32
    %33 = vector.broadcast %cst_49 : f32 to vector<64x128xf32>
    %34 = arith.maximumf %32, %33 : vector<64x128xf32>
    %35 = vector.shape_cast %34 : vector<64x128xf32> to vector<1x8x8x128xf32>
    %cst_50 = arith.constant dense<0.000000e+00> : vector<1x128xf32>
    %36 = vector.multi_reduction <add>, %35, %cst_50 [1, 2] : vector<1x8x8x128xf32> to vector<1x128xf32>
    %37 = arith.mulf %35, %35 : vector<1x8x8x128xf32>
    %cst_51 = arith.constant dense<0.000000e+00> : vector<1x128xf32>
    %38 = vector.multi_reduction <add>, %37, %cst_51 [1, 2] : vector<1x8x8x128xf32> to vector<1x128xf32>
    %c0_52 = arith.constant 0 : index
    %c0_53 = arith.constant 0 : index
    %39 = vector.load %arg6[%c0_52, %c0_53] : memref<8x128xf32, #tpu.memory_space<vmem>>, vector<8x128xf32>
    %c0_54 = arith.constant 0 : index
    %c0_55 = arith.constant 0 : index
    %40 = vector.load %arg7[%c0_54, %c0_55] : memref<128x8xf32, #tpu.memory_space<vmem>>, vector<128x8xf32>
    %c0_56 = arith.constant 0 : index
    %c0_57 = arith.constant 0 : index
    %41 = vector.load %arg4[%c0_56, %c0_57] : memref<1x128xf32, #tpu.memory_space<vmem>>, vector<1x128xf32>
    %c0_58 = arith.constant 0 : index
    %c0_59 = arith.constant 0 : index
    %42 = vector.load %arg5[%c0_58, %c0_59] : memref<1x128xf32, #tpu.memory_space<vmem>>, vector<1x128xf32>
    %cst_60 = arith.constant dense<0.000000e+00> : vector<1x8xf32>
    %43 = tpu.matmul %36, %40, %cst_60 {dimension_numbers = #tpu.dot_dimension_numbers<[1], [0], [0], [1], [0, 0, 1, 1], [], []>} : vector<1x128xf32>, vector<128x8xf32>, vector<1x8xf32> -> vector<1x8xf32>
    %cst_61 = arith.constant 9.765625E-4 : f32
    %44 = vector.broadcast %cst_61 : f32 to vector<1x8xf32>
    %45 = arith.mulf %43, %44 : vector<1x8xf32>
    %cst_62 = arith.constant dense<0.000000e+00> : vector<1x8xf32>
    %46 = tpu.matmul %38, %40, %cst_62 {dimension_numbers = #tpu.dot_dimension_numbers<[1], [0], [0], [1], [0, 0, 1, 1], [], []>} : vector<1x128xf32>, vector<128x8xf32>, vector<1x8xf32> -> vector<1x8xf32>
    %cst_63 = arith.constant 9.765625E-4 : f32
    %47 = vector.broadcast %cst_63 : f32 to vector<1x8xf32>
    %48 = arith.mulf %46, %47 : vector<1x8xf32>
    %49 = arith.mulf %45, %45 : vector<1x8xf32>
    %50 = arith.subf %48, %49 : vector<1x8xf32>
    %cst_64 = arith.constant 0.000000e+00 : f32
    %51 = vector.broadcast %cst_64 : f32 to vector<1x8xf32>
    %52 = arith.maximumf %50, %51 : vector<1x8xf32>
    %cst_65 = arith.constant 9.99999974E-6 : f32
    %53 = vector.broadcast %cst_65 : f32 to vector<1x8xf32>
    %54 = arith.addf %52, %53 : vector<1x8xf32>
    %55 = math.rsqrt %54 : vector<1x8xf32>
    %cst_66 = arith.constant dense<0.000000e+00> : vector<1x128xf32>
    %56 = tpu.matmul %45, %39, %cst_66 {dimension_numbers = #tpu.dot_dimension_numbers<[1], [0], [0], [1], [0, 0, 1, 1], [], []>} : vector<1x8xf32>, vector<8x128xf32>, vector<1x128xf32> -> vector<1x128xf32>
    %cst_67 = arith.constant dense<0.000000e+00> : vector<1x128xf32>
    %57 = tpu.matmul %55, %39, %cst_67 {dimension_numbers = #tpu.dot_dimension_numbers<[1], [0], [0], [1], [0, 0, 1, 1], [], []>} : vector<1x8xf32>, vector<8x128xf32>, vector<1x128xf32> -> vector<1x128xf32>
    %58 = arith.mulf %57, %41 : vector<1x128xf32>
    %59 = arith.mulf %56, %58 : vector<1x128xf32>
    %60 = arith.subf %42, %59 : vector<1x128xf32>
    %61 = vector.shape_cast %58 : vector<1x128xf32> to vector<1x1x1x128xf32>
    %62 = vector.broadcast %61 : vector<1x1x1x128xf32> to vector<1x8x8x128xf32>
    %63 = arith.mulf %35, %62 : vector<1x8x8x128xf32>
    %64 = vector.shape_cast %60 : vector<1x128xf32> to vector<1x1x1x128xf32>
    %65 = vector.broadcast %64 : vector<1x1x1x128xf32> to vector<1x8x8x128xf32>
    %66 = arith.addf %63, %65 : vector<1x8x8x128xf32>
    %cst_68 = arith.constant 0.000000e+00 : bf16
    %67 = vector.broadcast %cst_68 : bf16 to vector<1x1x10x128xbf16>
    %cst_69 = arith.constant 0.000000e+00 : bf16
    %68 = vector.broadcast %cst_69 : bf16 to vector<1x8x1x128xbf16>
    %c0_70 = arith.constant 0 : index
    %c0_71 = arith.constant 0 : index
    %c0_72 = arith.constant 0 : index
    %c0_73 = arith.constant 0 : index
    %69 = vector.load %arg8[%c0_70, %c0_71, %c0_72, %c0_73] : memref<1x10x10x128xbf16, #tpu.memory_space<vmem>>, vector<1x1x10x128xbf16>
    tpu.vector_store %arg8[%c0_70, %c0_71, %c0_72, %c0_73], %67 {strides = array<i32>} : memref<1x10x10x128xbf16, #tpu.memory_space<vmem>>, vector<1x1x10x128xbf16>,
    %c0_74 = arith.constant 0 : index
    %c9 = arith.constant 9 : index
    %c0_75 = arith.constant 0 : index
    %c0_76 = arith.constant 0 : index
    %70 = vector.load %arg8[%c0_74, %c9, %c0_75, %c0_76] : memref<1x10x10x128xbf16, #tpu.memory_space<vmem>>, vector<1x1x10x128xbf16>
    tpu.vector_store %arg8[%c0_74, %c9, %c0_75, %c0_76], %67 {strides = array<i32>} : memref<1x10x10x128xbf16, #tpu.memory_space<vmem>>, vector<1x1x10x128xbf16>,
    %c0_77 = arith.constant 0 : index
    %c1_78 = arith.constant 1 : index
    %c0_79 = arith.constant 0 : index
    %c0_80 = arith.constant 0 : index
    %71 = vector.load %arg8[%c0_77, %c1_78, %c0_79, %c0_80] : memref<1x10x10x128xbf16, #tpu.memory_space<vmem>>, vector<1x8x1x128xbf16>
    tpu.vector_store %arg8[%c0_77, %c1_78, %c0_79, %c0_80], %68 {strides = array<i32>} : memref<1x10x10x128xbf16, #tpu.memory_space<vmem>>, vector<1x8x1x128xbf16>,
    %c0_81 = arith.constant 0 : index
    %c1_82 = arith.constant 1 : index
    %c9_83 = arith.constant 9 : index
    %c0_84 = arith.constant 0 : index
    %72 = vector.load %arg8[%c0_81, %c1_82, %c9_83, %c0_84] : memref<1x10x10x128xbf16, #tpu.memory_space<vmem>>, vector<1x8x1x128xbf16>
    tpu.vector_store %arg8[%c0_81, %c1_82, %c9_83, %c0_84], %68 {strides = array<i32>} : memref<1x10x10x128xbf16, #tpu.memory_space<vmem>>, vector<1x8x1x128xbf16>,
    %73 = arith.truncf %66 : vector<1x8x8x128xf32> to vector<1x8x8x128xbf16>
    %c0_85 = arith.constant 0 : index
    %c1_86 = arith.constant 1 : index
    %c1_87 = arith.constant 1 : index
    %c0_88 = arith.constant 0 : index
    %74 = vector.load %arg8[%c0_85, %c1_86, %c1_87, %c0_88] : memref<1x10x10x128xbf16, #tpu.memory_space<vmem>>, vector<1x8x8x128xbf16>
    tpu.vector_store %arg8[%c0_85, %c1_86, %c1_87, %c0_88], %73 {strides = array<i32>} : memref<1x10x10x128xbf16, #tpu.memory_space<vmem>>, vector<1x8x8x128xbf16>,
    return
  }
  func.func @transform_0(%arg0: i32) -> (i32, i32, i32, i32) {
    %c0_i32 = arith.constant 0 : i32
    %c0_i32_0 = arith.constant 0 : i32
    %c0_i32_1 = arith.constant 0 : i32
    %c0_i32_2 = arith.constant 0 : i32
    return %arg0, %c0_i32, %c0_i32_0, %c0_i32_1 : i32, i32, i32, i32
  }
  func.func @transform_1(%arg0: i32) -> (i32, i32) {
    %c0_i32 = arith.constant 0 : i32
    %c0_i32_0 = arith.constant 0 : i32
    %c0_i32_1 = arith.constant 0 : i32
    return %c0_i32, %c0_i32_0 : i32, i32
  }
  func.func @transform_2(%arg0: i32) -> (i32, i32) {
    %c0_i32 = arith.constant 0 : i32
    %c0_i32_0 = arith.constant 0 : i32
    %c0_i32_1 = arith.constant 0 : i32
    return %c0_i32, %c0_i32_0 : i32, i32
  }
  func.func @transform_3(%arg0: i32) -> (i32, i32) {
    %c0_i32 = arith.constant 0 : i32
    %c0_i32_0 = arith.constant 0 : i32
    %c0_i32_1 = arith.constant 0 : i32
    return %c0_i32, %c0_i32_0 : i32, i32
  }
  func.func @transform_4(%arg0: i32) -> (i32, i32) {
    %c0_i32 = arith.constant 0 : i32
    %c0_i32_0 = arith.constant 0 : i32
    %c0_i32_1 = arith.constant 0 : i32
    return %c0_i32, %c0_i32_0 : i32, i32
  }
  func.func @transform_5(%arg0: i32) -> (i32, i32) {
    %c0_i32 = arith.constant 0 : i32
    %c0_i32_0 = arith.constant 0 : i32
    %c0_i32_1 = arith.constant 0 : i32
    return %c0_i32, %c0_i32_0 : i32, i32
  }
  func.func @transform_6(%arg0: i32) -> (i32, i32) {
    %c0_i32 = arith.constant 0 : i32
    %c0_i32_0 = arith.constant 0 : i32
    %c0_i32_1 = arith.constant 0 : i32
    return %c0_i32, %c0_i32_0 : i32, i32
  }
  func.func @transform_7(%arg0: i32) -> (i32, i32, i32, i32) {
    %c0_i32 = arith.constant 0 : i32
    %c0_i32_0 = arith.constant 0 : i32
    %c0_i32_1 = arith.constant 0 : i32
    %c0_i32_2 = arith.constant 0 : i32
    return %arg0, %c0_i32, %c0_i32_0, %c0_i32_1 : i32, i32, i32, i32
  }
}

</mosaic_0001>

<llo_original>
// kernel: mnist_cnn_forward.4
$region0: #{mnist_cnn_forward.4}
  #allocation0 [shape = 'u32[]', space=smem, size = 0x4, offset = 0x4, fixed_abs, tag = 'smem constant byte address 0x4 - core index']
  #allocation1 [shape = 'u32[144,128]{1,0:T(1,128)}', space=vmem, size = 0x12000, scoped, tag = 'internal scratch']
  %s0 = inlined_call_operand.vmem [shape: bf16[2,256,128], index: 0, kind: input, shape index: {}]
  %s1 = inlined_call_operand.vmem [shape: bf16[128,128], index: 1, kind: input, shape index: {}]
  %s2 = inlined_call_operand.vmem [shape: f32[1,128], index: 2, kind: input, shape index: {}]
  %s3 = inlined_call_operand.vmem [shape: f32[1,128], index: 3, kind: input, shape index: {}]
  %s4 = inlined_call_operand.vmem [shape: f32[1,128], index: 4, kind: input, shape index: {}]
  %s5 = inlined_call_operand.vmem [shape: f32[8,128], index: 5, kind: input, shape index: {}]
  %s6 = inlined_call_operand.vmem [shape: f32[128,8], index: 6, kind: input, shape index: {}]
  %s7 = inlined_call_operand.vmem [shape: bf16[2,18,18,128], index: 7, kind: output, shape index: {}]
  %s8 = sld [smem:[#allocation0]]
  $region61: #{mnist_cnn_forward.4} parent=0
    _
  %s10 = ssub.s32 1, %s8
  %s11 = scalar_select 0, %s10, %s8
  loop: start=0, step=1, limit=4
  $region2: #{mnist_cnn_forward.4} parent=0 // loop_pre_header
    _
  $region3: #{mnist_cnn_forward.4} parent=0 // loop_header
    %s13 = sphi 0, %s17
    %p14 = scmp.ge.s32.totalorder %s13, 4
    %s23 = sphi 0, %s25
    %s26 = sphi 0, %s23
    %s27 = sphi 0, %s26
    %s43 = sphi 0, %s27
    %s47 = sphi 0, %s47
    %s49 = sphi 0, %s47
    %s50 = sphi 0, %s49
    %s64 = sphi 0, %s50
    %s68 = sphi 0, %s68
    %s70 = sphi 0, %s68
    %s71 = sphi 0, %s70
    %s85 = sphi 0, %s71
    %s89 = sphi 0, %s89
    %s91 = sphi 0, %s89
    %s92 = sphi 0, %s91
    %s106 = sphi 0, %s92
    %s110 = sphi 0, %s110
    %s112 = sphi 0, %s110
    %s113 = sphi 0, %s112
    %s127 = sphi 0, %s113
    %s131 = sphi 0, %s131
    %s133 = sphi 0, %s131
    %s134 = sphi 0, %s133
    %s148 = sphi 0, %s134
    %s152 = sphi 0, %s152
    %s154 = sphi 0, %s152
    %s155 = sphi 0, %s154
    %s169 = sphi 0, %s155
    %s175 = sphi 0, %s177
    %s178 = sphi 0, %s175
    %s179 = sphi 0, %s178
    %s195 = sphi 0, %s179
  $region4: #{mnist_cnn_forward.4} parent=0 // loop_header_branch
    %16 = sbr.rel (%p14) target = $region8
  $region5: #{mnist_cnn_forward.4} parent=0 // loop_body
    %s18 = ssub.s32 %s13, 1
    %s19 = ssub.s32 %s13, 2
    %s20 = sadd.s32 %s13, 1
    %s21 = ssub.s32 %s13, %s20
    %p22 = scmp.eq.s32.totalorder %s21, 0
    %s24 = sadd.s32 %s23, 1
    %s25 = scalar_select %p22, %s23, %s24
    %p28 = pneg %p22
    %p29 = scmp.eq.s32.totalorder %s13, 1
    %p30 = por %p28, %p29
    %p31 = scmp.ne.s32.totalorder %s23, %s26
    %p32 = scmp.eq.s32.totalorder %s13, 0
    %p33 = por %p31, %p32
    %p34 = scmp.ne.s32.totalorder %s23, %s26
    %p35 = scmp.eq.s32.totalorder %s18, 1
    %p36 = por %p34, %p35
    %p37 = scmp.ne.s32.totalorder %s26, %s27
    %p38 = scmp.eq.s32.totalorder %s18, 0
    %p39 = por %p37, %p38
    %p40 = scmp.ne.s32.totalorder %s26, %s27
    %p41 = scmp.eq.s32.totalorder %s19, 1
    %p42 = por %p40, %p41
    %p44 = scmp.ne.s32.totalorder %s27, %s43
    %p45 = scmp.eq.s32.totalorder %s19, 0
    %p46 = por %p44, %p45
    %s48 = sadd.s32 %s47, 1
    %p51 = scmp.eq.s32.totalorder %s13, 1
    %p52 = scmp.ne.s32.totalorder %s47, %s49
    %p53 = scmp.eq.s32.totalorder %s13, 0
    %p54 = por %p52, %p53
    %p55 = scmp.ne.s32.totalorder %s47, %s49
    %p56 = scmp.eq.s32.totalorder %s18, 1
    %p57 = por %p55, %p56
    %p58 = scmp.ne.s32.totalorder %s49, %s50
    %p59 = scmp.eq.s32.totalorder %s18, 0
    %p60 = por %p58, %p59
    %p61 = scmp.ne.s32.totalorder %s49, %s50
    %p62 = scmp.eq.s32.totalorder %s19, 1
    %p63 = por %p61, %p62
    %p65 = scmp.ne.s32.totalorder %s50, %s64
    %p66 = scmp.eq.s32.totalorder %s19, 0
    %p67 = por %p65, %p66
    %s69 = sadd.s32 %s68, 1
    %p72 = scmp.eq.s32.totalorder %s13, 1
    %p73 = scmp.ne.s32.totalorder %s68, %s70
    %p74 = scmp.eq.s32.totalorder %s13, 0
    %p75 = por %p73, %p74
    %p76 = scmp.ne.s32.totalorder %s68, %s70
    %p77 = scmp.eq.s32.totalorder %s18, 1
    %p78 = por %p76, %p77
    %p79 = scmp.ne.s32.totalorder %s70, %s71
    %p80 = scmp.eq.s32.totalorder %s18, 0
    %p81 = por %p79, %p80
    %p82 = scmp.ne.s32.totalorder %s70, %s71
    %p83 = scmp.eq.s32.totalorder %s19, 1
    %p84 = por %p82, %p83
    %p86 = scmp.ne.s32.totalorder %s71, %s85
    %p87 = scmp.eq.s32.totalorder %s19, 0
    %p88 = por %p86, %p87
    %s90 = sadd.s32 %s89, 1
    %p93 = scmp.eq.s32.totalorder %s13, 1
    %p94 = scmp.ne.s32.totalorder %s89, %s91
    %p95 = scmp.eq.s32.totalorder %s13, 0
    %p96 = por %p94, %p95
    %p97 = scmp.ne.s32.totalorder %s89, %s91
    %p98 = scmp.eq.s32.totalorder %s18, 1
    %p99 = por %p97, %p98
    %p100 = scmp.ne.s32.totalorder %s91, %s92
    %p101 = scmp.eq.s32.totalorder %s18, 0
    %p102 = por %p100, %p101
    %p103 = scmp.ne.s32.totalorder %s91, %s92
    %p104 = scmp.eq.s32.totalorder %s19, 1
    %p105 = por %p103, %p104
    %p107 = scmp.ne.s32.totalorder %s92, %s106
    %p108 = scmp.eq.s32.totalorder %s19, 0
    %p109 = por %p107, %p108
    %s111 = sadd.s32 %s110, 1
    %p114 = scmp.eq.s32.totalorder %s13, 1
    %p115 = scmp.ne.s32.totalorder %s110, %s112
    %p116 = scmp.eq.s32.totalorder %s13, 0
    %p117 = por %p115, %p116
    %p118 = scmp.ne.s32.totalorder %s110, %s112
    %p119 = scmp.eq.s32.totalorder %s18, 1
    %p120 = por %p118, %p119
    %p121 = scmp.ne.s32.totalorder %s112, %s113
    %p122 = scmp.eq.s32.totalorder %s18, 0
    %p123 = por %p121, %p122
    %p124 = scmp.ne.s32.totalorder %s112, %s113
    %p125 = scmp.eq.s32.totalorder %s19, 1
    %p126 = por %p124, %p125
    %p128 = scmp.ne.s32.totalorder %s113, %s127
    %p129 = scmp.eq.s32.totalorder %s19, 0
    %p130 = por %p128, %p129
    %s132 = sadd.s32 %s131, 1
    %p135 = scmp.eq.s32.totalorder %s13, 1
    %p136 = scmp.ne.s32.totalorder %s131, %s133
    %p137 = scmp.eq.s32.totalorder %s13, 0
    %p138 = por %p136, %p137
    %p139 = scmp.ne.s32.totalorder %s131, %s133
    %p140 = scmp.eq.s32.totalorder %s18, 1
    %p141 = por %p139, %p140
    %p142 = scmp.ne.s32.totalorder %s133, %s134
    %p143 = scmp.eq.s32.totalorder %s18, 0
    %p144 = por %p142, %p143
    %p145 = scmp.ne.s32.totalorder %s133, %s134
    %p146 = scmp.eq.s32.totalorder %s19, 1
    %p147 = por %p145, %p146
    %p149 = scmp.ne.s32.totalorder %s134, %s148
    %p150 = scmp.eq.s32.totalorder %s19, 0
    %p151 = por %p149, %p150
    %s153 = sadd.s32 %s152, 1
    %p156 = scmp.eq.s32.totalorder %s13, 1
    %p157 = scmp.ne.s32.totalorder %s152, %s154
    %p158 = scmp.eq.s32.totalorder %s13, 0
    %p159 = por %p157, %p158
    %p160 = scmp.ne.s32.totalorder %s152, %s154
    %p161 = scmp.eq.s32.totalorder %s18, 1
    %p162 = por %p160, %p161
    %p163 = scmp.ne.s32.totalorder %s154, %s155
    %p164 = scmp.eq.s32.totalorder %s18, 0
    %p165 = por %p163, %p164
    %p166 = scmp.ne.s32.totalorder %s154, %s155
    %p167 = scmp.eq.s32.totalorder %s19, 1
    %p168 = por %p166, %p167
    %p170 = scmp.ne.s32.totalorder %s155, %s169
    %p171 = scmp.eq.s32.totalorder %s19, 0
    %p172 = por %p170, %p171
    %s173 = ssub.s32 %s13, %s20
    %p174 = scmp.eq.s32.totalorder %s173, 0
    %s176 = sadd.s32 %s175, 1
    %s177 = scalar_select %p174, %s175, %s176
    %p180 = pneg %p174
    %p181 = scmp.eq.s32.totalorder %s13, 1
    %p182 = por %p180, %p181
    %p183 = scmp.ne.s32.totalorder %s175, %s178
    %p184 = scmp.eq.s32.totalorder %s13, 0
    %p185 = por %p183, %p184
    %p186 = scmp.ne.s32.totalorder %s175, %s178
    %p187 = scmp.eq.s32.totalorder %s18, 1
    %p188 = por %p186, %p187
    %p189 = scmp.ne.s32.totalorder %s178, %s179
    %p190 = scmp.eq.s32.totalorder %s18, 0
    %p191 = por %p189, %p190
    %p192 = scmp.ne.s32.totalorder %s178, %s179
    %p193 = scmp.eq.s32.totalorder %s19, 1
    %p194 = por %p192, %p193
    %p196 = scmp.ne.s32.totalorder %s179, %s195
    %p197 = scmp.eq.s32.totalorder %s19, 0
    %p198 = por %p196, %p197
    %p199 = scmp.le.s32.totalorder 1, %s13
    %p200 = scmp.lt.s32.totalorder %s13, 3
    %p201 = pnand %p199, %p200
    %p202 = pneg %p201
    // Predicated region
    $region9: #{mnist_cnn_forward.4} parent=5 // pred_check
      _
    $region10: #{mnist_cnn_forward.4} parent=5 // pred_check_branch
      %204 = sbr.rel (%p201) target = $region12
    $region11: #{mnist_cnn_forward.4} parent=5 // pred_region
      %s205 = ssub.s32 %s13, 1
      // Predicated region
      $region13: #{mnist_cnn_forward.4} parent=11 // pred_check
        %p206 = pneg %p60
      $region14: #{mnist_cnn_forward.4} parent=11 // pred_check_branch
        %208 = sbr.rel (%p206) target = $region16
      $region15: #{mnist_cnn_forward.4} parent=11 // pred_region
        _
      $region16: #{mnist_cnn_forward.4} parent=11 // pred_fallthru
        _
      // Predicated region
      $region17: #{mnist_cnn_forward.4} parent=11 // pred_check
        %p209 = pneg %p81
      $region18: #{mnist_cnn_forward.4} parent=11 // pred_check_branch
        %211 = sbr.rel (%p209) target = $region20
      $region19: #{mnist_cnn_forward.4} parent=11 // pred_region
        _
      $region20: #{mnist_cnn_forward.4} parent=11 // pred_fallthru
        _
      // Predicated region
      $region21: #{mnist_cnn_forward.4} parent=11 // pred_check
        %p212 = pneg %p102
      $region22: #{mnist_cnn_forward.4} parent=11 // pred_check_branch
        %214 = sbr.rel (%p212) target = $region24
      $region23: #{mnist_cnn_forward.4} parent=11 // pred_region
        _
      $region24: #{mnist_cnn_forward.4} parent=11 // pred_fallthru
        _
      // Predicated region
      $region25: #{mnist_cnn_forward.4} parent=11 // pred_check
        %p215 = pneg %p123
      $region26: #{mnist_cnn_forward.4} parent=11 // pred_check_branch
        %217 = sbr.rel (%p215) target = $region28
      $region27: #{mnist_cnn_forward.4} parent=11 // pred_region
        _
      $region28: #{mnist_cnn_forward.4} parent=11 // pred_fallthru
        _
      // Predicated region
      $region29: #{mnist_cnn_forward.4} parent=11 // pred_check
        %p218 = pneg %p144
      $region30: #{mnist_cnn_forward.4} parent=11 // pred_check_branch
        %220 = sbr.rel (%p218) target = $region32
      $region31: #{mnist_cnn_forward.4} parent=11 // pred_region
        _
      $region32: #{mnist_cnn_forward.4} parent=11 // pred_fallthru
        _
      // Predicated region
      $region33: #{mnist_cnn_forward.4} parent=11 // pred_check
        %p221 = pneg %p165
      $region34: #{mnist_cnn_forward.4} parent=11 // pred_check_branch
        %223 = sbr.rel (%p221) target = $region36
      $region35: #{mnist_cnn_forward.4} parent=11 // pred_region
        _
      $region36: #{mnist_cnn_forward.4} parent=11 // pred_fallthru
        _
    $region12: #{mnist_cnn_forward.4} parent=5 // pred_fallthru
      _
    %p224 = scmp.lt.s32.totalorder %s13, 2
    // Predicated region
    $region37: #{mnist_cnn_forward.4} parent=5 // pred_check
      %p225 = pneg %p224
    $region38: #{mnist_cnn_forward.4} parent=5 // pred_check_branch
      %227 = sbr.rel (%p225) target = $region40
    $region39: #{mnist_cnn_forward.4} parent=5 // pred_region
      // Predicated region
      $region41: #{mnist_cnn_forward.4} parent=39 // pred_check
        %p228 = pneg %p33
      $region42: #{mnist_cnn_forward.4} parent=39 // pred_check_branch
        %230 = sbr.rel (%p228) target = $region44
      $region43: #{mnist_cnn_forward.4} parent=39 // pred_region
        %p231 = scmp.lt.s32.totalorder %s13, 1
        %s232 = scalar_select %p231, %s13, 1
        %s233 = smul.addr %s232, 32
        %s234 = smul.addr %s233, 4
        %s235 = scalar_lea.vmem %s0, %s234
      $region44: #{mnist_cnn_forward.4} parent=39 // pred_fallthru
        _
    $region40: #{mnist_cnn_forward.4} parent=5 // pred_fallthru
      _
    %p236 = scmp.le.s32.totalorder 1, %s13
    %p237 = scmp.lt.s32.totalorder %s13, 3
    %p238 = pnand %p236, %p237
    %p239 = pneg %p238
    // Predicated region
    $region45: #{mnist_cnn_forward.4} parent=5 // pred_check
      _
    $region46: #{mnist_cnn_forward.4} parent=5 // pred_check_branch
      %241 = sbr.rel (%p238) target = $region48
    $region47: #{mnist_cnn_forward.4} parent=5 // pred_region
      %s242 = ssub.s32 %s13, 1
      %p243 = scmp.lt.s32.totalorder %s18, 1
      %s244 = scalar_select %p243, %s18, 1
      %s245 = smul.addr %s244, 32
      %s246 = smul.addr %s245, 4
      %s247 = scalar_lea.vmem %s0, %s246
      %p248 = pneg %p39
      %p249 = pneg %p36
      %p250 = pneg %p60
      %p251 = pneg %p57
      %p252 = pneg %p81
      %p253 = pneg %p78
      %p254 = pneg %p102
      %p255 = pneg %p99
      %p256 = pneg %p123
      %p257 = pneg %p120
      %p258 = pneg %p144
      %p259 = pneg %p141
      %p260 = pneg %p165
      %p261 = pneg %p162
      %p262 = pneg %p191
      %p263 = pneg %p188
      %p264 = scmp.lt.s32.totalorder %s18, 1
      %s265 = scalar_select %p264, %s18, 1
      %s266 = smul.addr %s265, 54
      %s267 = smul.addr %s266, 4
      %s268 = scalar_lea.vmem %s7, %s267
      %p269 = scmp.lt.s32.totalorder %s18, 1
      %s270 = scalar_select %p269, %s18, 1
      %s271 = smul.addr %s270, 32
      %s272 = smul.addr %s271, 4
      %s273 = scalar_lea.vmem %s0, %s272
      %p274 = scmp.lt.s32.totalorder %s18, 1
      %s275 = scalar_select %p274, %s18, 1
      %s276 = smul.addr %s275, 54
      %s277 = smul.addr %s276, 4
      %s278 = scalar_lea.vmem %s7, %s277
      %v280 = vld [vmem:[%s273] sm:$0xf]
      %v281 = vld [vmem:[%s273 + $0x4] sm:$0xf]
      %v282 = vld [vmem:[%s273 + $0x8] sm:$0xf]
      %v283 = vld [vmem:[%s273 + $0xc] sm:$0xf]
      %v284 = vld [vmem:[%s273 + $0x10] sm:$0xf]
      %v285 = vld [vmem:[%s273 + $0x14] sm:$0xf]
      %v286 = vld [vmem:[%s273 + $0x18] sm:$0xf]
      %v287 = vld [vmem:[%s273 + $0x1c] sm:$0xf]
      %v288 = vld [vmem:[%s273 + $0x20] sm:$0xf]
      %v289 = vld [vmem:[%s273 + $0x24] sm:$0xf]
      %v290 = vld [vmem:[%s273 + $0x28] sm:$0xf]
      %v291 = vld [vmem:[%s273 + $0x2c] sm:$0xf]
      %v292 = vld [vmem:[%s273 + $0x30] sm:$0xf]
      %v293 = vld [vmem:[%s273 + $0x34] sm:$0xf]
      %v294 = vld [vmem:[%s273 + $0x38] sm:$0xf]
      %v295 = vld [vmem:[%s273 + $0x3c] sm:$0xf]
      %v296 = vld [vmem:[%s273 + $0x40] sm:$0xf]
      %v297 = vld [vmem:[%s273 + $0x44] sm:$0xf]
      %v298 = vld [vmem:[%s273 + $0x48] sm:$0xf]
      %v299 = vld [vmem:[%s273 + $0x4c] sm:$0xf]
      %v300 = vld [vmem:[%s273 + $0x50] sm:$0xf]
      %v301 = vld [vmem:[%s273 + $0x54] sm:$0xf]
      %v302 = vld [vmem:[%s273 + $0x58] sm:$0xf]
      %v303 = vld [vmem:[%s273 + $0x5c] sm:$0xf]
      %v304 = vld [vmem:[%s273 + $0x60] sm:$0xf]
      %v305 = vld [vmem:[%s273 + $0x64] sm:$0xf]
      %v306 = vld [vmem:[%s273 + $0x68] sm:$0xf]
      %v307 = vld [vmem:[%s273 + $0x6c] sm:$0xf]
      %v308 = vld [vmem:[%s273 + $0x70] sm:$0xf]
      %v309 = vld [vmem:[%s273 + $0x74] sm:$0xf]
      %v310 = vld [vmem:[%s273 + $0x78] sm:$0xf]
      %v311 = vld [vmem:[%s273 + $0x7c] sm:$0xf]
      %v312 = vld [vmem:[%s1] sm:$0xf]
      %v313 = vld [vmem:[%s1 + $0x4] sm:$0xf]
      %v314 = vld [vmem:[%s1 + $0x8] sm:$0xf]
      %v315 = vld [vmem:[%s1 + $0xc] sm:$0xf]
      %v316 = vld [vmem:[%s1 + $0x10] sm:$0xf]
      %v317 = vld [vmem:[%s1 + $0x14] sm:$0xf]
      %v318 = vld [vmem:[%s1 + $0x18] sm:$0xf]
      %v319 = vld [vmem:[%s1 + $0x1c] sm:$0xf]
      %v320 = vld [vmem:[%s1 + $0x20] sm:$0xf]
      %v321 = vld [vmem:[%s1 + $0x24] sm:$0xf]
      %v322 = vld [vmem:[%s1 + $0x28] sm:$0xf]
      %v323 = vld [vmem:[%s1 + $0x2c] sm:$0xf]
      %v324 = vld [vmem:[%s1 + $0x30] sm:$0xf]
      %v325 = vld [vmem:[%s1 + $0x34] sm:$0xf]
      %v326 = vld [vmem:[%s1 + $0x38] sm:$0xf]
      %v327 = vld [vmem:[%s1 + $0x3c] sm:$0xf]
      %v328 = vld [vmem:[%s2] sm:$0x1]
      %v330 = vlaneseq
      %v331 = vshrl.u32 %v330, 7
      %v332 = vsub.s32 0, %v331
      %v333 = vrot.slane %v328, %v332
      %v367 = vunpack.c.l.b16 %v280
      %v368 = vunpack.c.l.b16 %v281
      %v369 = vunpack.c.l.b16 %v282
      %v370 = vunpack.c.l.b16 %v283
      %v371 = vunpack.c.l.b16 %v284
      %v372 = vunpack.c.l.b16 %v285
      %v373 = vunpack.c.l.b16 %v286
      %v374 = vunpack.c.l.b16 %v287
      %v375 = vunpack.c.l.b16 %v288
      %v376 = vunpack.c.l.b16 %v289
      %v377 = vunpack.c.l.b16 %v290
      %v378 = vunpack.c.l.b16 %v291
      %v379 = vunpack.c.l.b16 %v292
      %v380 = vunpack.c.l.b16 %v293
      %v381 = vunpack.c.l.b16 %v294
      %v382 = vunpack.c.l.b16 %v295
      %v383 = vunpack.c.l.b16 %v296
      %v384 = vunpack.c.l.b16 %v297
      %v385 = vunpack.c.l.b16 %v298
      %v386 = vunpack.c.l.b16 %v299
      %v387 = vunpack.c.l.b16 %v300
      %v388 = vunpack.c.l.b16 %v301
      %v389 = vunpack.c.l.b16 %v302
      %v390 = vunpack.c.l.b16 %v303
      %v391 = vunpack.c.l.b16 %v304
      %v392 = vunpack.c.l.b16 %v305
      %v393 = vunpack.c.l.b16 %v306
      %v394 = vunpack.c.l.b16 %v307
      %v395 = vunpack.c.l.b16 %v308
      %v396 = vunpack.c.l.b16 %v309
      %v397 = vunpack.c.l.b16 %v310
      %v398 = vunpack.c.l.b16 %v311
      %v399 = vpack.c.b16 %v368, %v367
      %v400 = vpack.c.b16 %v370, %v369
      %v401 = vpack.c.b16 %v372, %v371
      %v402 = vpack.c.b16 %v374, %v373
      %v403 = vpack.c.b16 %v376, %v375
      %v404 = vpack.c.b16 %v378, %v377
      %v405 = vpack.c.b16 %v380, %v379
      %v406 = vpack.c.b16 %v382, %v381
      %v407 = vpack.c.b16 %v384, %v383
      %v408 = vpack.c.b16 %v386, %v385
      %v409 = vpack.c.b16 %v388, %v387
      %v410 = vpack.c.b16 %v390, %v389
      %v411 = vpack.c.b16 %v392, %v391
      %v412 = vpack.c.b16 %v394, %v393
      %v413 = vpack.c.b16 %v396, %v395
      %v414 = vpack.c.b16 %v398, %v397
      %v447 = vunpack.c.l.b16 %v312
      %v448 = vunpack.c.l.b16 %v313
      %v449 = vunpack.c.l.b16 %v314
      %v450 = vunpack.c.l.b16 %v315
      %v451 = vunpack.c.l.b16 %v316
      %v452 = vunpack.c.l.b16 %v317
      %v453 = vunpack.c.l.b16 %v318
      %v454 = vunpack.c.l.b16 %v319
      %v455 = vunpack.c.l.b16 %v320
      %v456 = vunpack.c.l.b16 %v321
      %v457 = vunpack.c.l.b16 %v322
      %v458 = vunpack.c.l.b16 %v323
      %v459 = vunpack.c.l.b16 %v324
      %v460 = vunpack.c.l.b16 %v325
      %v461 = vunpack.c.l.b16 %v326
      %v462 = vunpack.c.l.b16 %v327
      %v463 = vpack.c.b16 %v448, %v447
      %v464 = vpack.c.b16 %v450, %v449
      %v465 = vpack.c.b16 %v452, %v451
      %v466 = vpack.c.b16 %v454, %v453
      %v467 = vpack.c.b16 %v456, %v455
      %v468 = vpack.c.b16 %v458, %v457
      %v469 = vpack.c.b16 %v460, %v459
      %v470 = vpack.c.b16 %v462, %v461
      %479 = vmatprep.subr.bf16.mxu0 0
      %480 = vmatpush1.bf16.msra.mxu0 %v463
      %481 = vmatprep.subr.bf16.mxu0 0
      %482 = vmatpush1.bf16.msra.mxu0 %v464
      %483 = vmatprep.subr.bf16.mxu0 0
      %484 = vmatpush1.bf16.msra.mxu0 %v465
      %485 = vmatprep.subr.bf16.mxu0 0
      %486 = vmatpush1.bf16.msra.mxu0 %v466
      %487 = vmatprep.subr.bf16.mxu0 0
      %488 = vmatpush1.bf16.msra.mxu0 %v467
      %489 = vmatprep.subr.bf16.mxu0 0
      %490 = vmatpush1.bf16.msra.mxu0 %v468
      %491 = vmatprep.subr.bf16.mxu0 0
      %492 = vmatpush1.bf16.msra.mxu0 %v469
      %493 = vmatprep.subr.bf16.mxu0 0
      %494 = vmatpush1.bf16.msra.mxu0 %v470
      %495 = vmatprep.subr.bf16.mxu0 0
      %496 = vmatpush1.bf16.msra.mxu0 0
      %497 = vmatprep.subr.bf16.mxu0 0
      %498 = vmatpush1.bf16.msra.mxu0 0
      %499 = vmatprep.subr.bf16.mxu0 0
      %500 = vmatpush1.bf16.msra.mxu0 0
      %501 = vmatprep.subr.bf16.mxu0 0
      %502 = vmatpush1.bf16.msra.mxu0 0
      %503 = vmatprep.subr.bf16.mxu0 0
      %504 = vmatpush1.bf16.msra.mxu0 0
      %505 = vmatprep.subr.bf16.mxu0 0
      %506 = vmatpush1.bf16.msra.mxu0 0
      %507 = vmatprep.subr.bf16.mxu0 0
      %508 = vmatpush1.bf16.msra.mxu0 0
      %509 = vmatprep.subr.bf16.mxu0 0
      %510 = vmatpush1.bf16.msra.mxu0 0
      %511 = vmatprep.mubr.bf16.mxu0 0
      %512 = vmatmul.mubr.bf16.gmra.mrb[0].mxu0 %v399
      %v513 = vpop.f32.mrb[0].mxu0
      %v514 = vadd.f32 %v333, %v513
      %v515 = vpop.f32.mrb[0].mxu0
      %v516 = vpop.f32.mrb[0].mxu0
      %v517 = vadd.f32 %v333, %v516
      %v518 = vpop.f32.mrb[0].mxu0
      %519 = vmatprep.mubr.bf16.mxu0 0
      %520 = vmatmul.mubr.bf16.gmra.mrb[0].mxu0 %v400
      %v521 = vpop.f32.mrb[0].mxu0
      %v522 = vadd.f32 %v333, %v521
      %v523 = vpop.f32.mrb[0].mxu0
      %v524 = vpop.f32.mrb[0].mxu0
      %v525 = vadd.f32 %v333, %v524
      %v526 = vpop.f32.mrb[0].mxu0
      %527 = vmatprep.mubr.bf16.mxu0 0
      %528 = vmatmul.mubr.bf16.gmra.mrb[0].mxu0 %v401
      %v529 = vpop.f32.mrb[0].mxu0
      %v530 = vadd.f32 %v333, %v529
      %v531 = vpop.f32.mrb[0].mxu0
      %v532 = vpop.f32.mrb[0].mxu0
      %v533 = vadd.f32 %v333, %v532
      %v534 = vpop.f32.mrb[0].mxu0
      %535 = vmatprep.mubr.bf16.mxu0 0
      %536 = vmatmul.mubr.bf16.gmra.mrb[0].mxu0 %v402
      %v537 = vpop.f32.mrb[0].mxu0
      %v538 = vadd.f32 %v333, %v537
      %v539 = vpop.f32.mrb[0].mxu0
      %v540 = vpop.f32.mrb[0].mxu0
      %v541 = vadd.f32 %v333, %v540
      %v542 = vpop.f32.mrb[0].mxu0
      %543 = vmatprep.mubr.bf16.mxu0 0
      %544 = vmatmul.mubr.bf16.gmra.mrb[0].mxu0 %v403
      %v545 = vpop.f32.mrb[0].mxu0
      %v546 = vadd.f32 %v333, %v545
      %v547 = vpop.f32.mrb[0].mxu0
      %v548 = vpop.f32.mrb[0].mxu0
      %v549 = vadd.f32 %v333, %v548
      %v550 = vpop.f32.mrb[0].mxu0
      %551 = vmatprep.mubr.bf16.mxu0 0
      %552 = vmatmul.mubr.bf16.gmra.mrb[0].mxu0 %v404
      %v553 = vpop.f32.mrb[0].mxu0
      %v554 = vadd.f32 %v333, %v553
      %v555 = vpop.f32.mrb[0].mxu0
      %v556 = vpop.f32.mrb[0].mxu0
      %v557 = vadd.f32 %v333, %v556
      %v558 = vpop.f32.mrb[0].mxu0
      %559 = vmatprep.mubr.bf16.mxu0 0
      %560 = vmatmul.mubr.bf16.gmra.mrb[0].mxu0 %v405
      %v561 = vpop.f32.mrb[0].mxu0
      %v562 = vadd.f32 %v333, %v561
      %v563 = vpop.f32.mrb[0].mxu0
      %v564 = vpop.f32.mrb[0].mxu0
      %v565 = vadd.f32 %v333, %v564
      %v566 = vpop.f32.mrb[0].mxu0
      %567 = vmatprep.mubr.bf16.mxu0 0
      %568 = vmatmul.mubr.bf16.gmra.mrb[0].mxu0 %v406
      %v569 = vpop.f32.mrb[0].mxu0
      %v570 = vadd.f32 %v333, %v569
      %v571 = vpop.f32.mrb[0].mxu0
      %v572 = vpop.f32.mrb[0].mxu0
      %v573 = vadd.f32 %v333, %v572
      %v574 = vpop.f32.mrb[0].mxu0
      %575 = vmatprep.mubr.bf16.mxu0 0
      %576 = vmatmul.mubr.bf16.gmra.mrb[0].mxu0 %v407
      %v577 = vpop.f32.mrb[0].mxu0
      %v578 = vadd.f32 %v333, %v577
      %v579 = vpop.f32.mrb[0].mxu0
      %v580 = vpop.f32.mrb[0].mxu0
      %v581 = vadd.f32 %v333, %v580
      %v582 = vpop.f32.mrb[0].mxu0
      %583 = vmatprep.mubr.bf16.mxu0 0
      %584 = vmatmul.mubr.bf16.gmra.mrb[0].mxu0 %v408
      %v585 = vpop.f32.mrb[0].mxu0
      %v586 = vadd.f32 %v333, %v585
      %v587 = vpop.f32.mrb[0].mxu0
      %v588 = vpop.f32.mrb[0].mxu0
      %v589 = vadd.f32 %v333, %v588
      %v590 = vpop.f32.mrb[0].mxu0
      %591 = vmatprep.mubr.bf16.mxu0 0
      %592 = vmatmul.mubr.bf16.gmra.mrb[0].mxu0 %v409
      %v593 = vpop.f32.mrb[0].mxu0
      %v594 = vadd.f32 %v333, %v593
      %v595 = vpop.f32.mrb[0].mxu0
      %v596 = vpop.f32.mrb[0].mxu0
      %v597 = vadd.f32 %v333, %v596
      %v598 = vpop.f32.mrb[0].mxu0
      %599 = vmatprep.mubr.bf16.mxu0 0
      %600 = vmatmul.mubr.bf16.gmra.mrb[0].mxu0 %v410
      %v601 = vpop.f32.mrb[0].mxu0
      %v602 = vadd.f32 %v333, %v601
      %v603 = vpop.f32.mrb[0].mxu0
      %v604 = vpop.f32.mrb[0].mxu0
      %v605 = vadd.f32 %v333, %v604
      %v606 = vpop.f32.mrb[0].mxu0
      %607 = vmatprep.mubr.bf16.mxu0 0
      %608 = vmatmul.mubr.bf16.gmra.mrb[0].mxu0 %v411
      %v609 = vpop.f32.mrb[0].mxu0
      %v610 = vadd.f32 %v333, %v609
      %v611 = vpop.f32.mrb[0].mxu0
      %v612 = vpop.f32.mrb[0].mxu0
      %v613 = vadd.f32 %v333, %v612
      %v614 = vpop.f32.mrb[0].mxu0
      %615 = vmatprep.mubr.bf16.mxu0 0
      %616 = vmatmul.mubr.bf16.gmra.mrb[0].mxu0 %v412
      %v617 = vpop.f32.mrb[0].mxu0
      %v618 = vadd.f32 %v333, %v617
      %v619 = vpop.f32.mrb[0].mxu0
      %v620 = vpop.f32.mrb[0].mxu0
      %v621 = vadd.f32 %v333, %v620
      %v622 = vpop.f32.mrb[0].mxu0
      %623 = vmatprep.mubr.bf16.mxu0 0
      %624 = vmatmul.mubr.bf16.gmra.mrb[0].mxu0 %v413
      %v625 = vpop.f32.mrb[0].mxu0
      %v626 = vadd.f32 %v333, %v625
      %v627 = vpop.f32.mrb[0].mxu0
      %v628 = vpop.f32.mrb[0].mxu0
      %v629 = vadd.f32 %v333, %v628
      %v630 = vpop.f32.mrb[0].mxu0
      %631 = vmatprep.mubr.bf16.mxu0 0
      %632 = vmatmul.mubr.bf16.gmra.mrb[0].mxu0 %v414
      %v633 = vpop.f32.mrb[0].mxu0
      %v634 = vadd.f32 %v333, %v633
      %v635 = vpop.f32.mrb[0].mxu0
      %v636 = vpop.f32.mrb[0].mxu0
      %v637 = vadd.f32 %v333, %v636
      %v638 = vpop.f32.mrb[0].mxu0
      %639 = vdwg.mxu0
      %v640 = vmax.f32 %v514, 0.0
      %v641 = vmax.f32 %v517, 0.0
      %v642 = vmax.f32 %v522, 0.0
      %v643 = vmax.f32 %v525, 0.0
      %v644 = vmax.f32 %v530, 0.0
      %v645 = vmax.f32 %v533, 0.0
      %v646 = vmax.f32 %v538, 0.0
      %v647 = vmax.f32 %v541, 0.0
      %v648 = vmax.f32 %v546, 0.0
      %v649 = vmax.f32 %v549, 0.0
      %v650 = vmax.f32 %v554, 0.0
      %v651 = vmax.f32 %v557, 0.0
      %v652 = vmax.f32 %v562, 0.0
      %v653 = vmax.f32 %v565, 0.0
      %v654 = vmax.f32 %v570, 0.0
      %v655 = vmax.f32 %v573, 0.0
      %v656 = vmax.f32 %v578, 0.0
      %v657 = vmax.f32 %v581, 0.0
      %v658 = vmax.f32 %v586, 0.0
      %v659 = vmax.f32 %v589, 0.0
      %v660 = vmax.f32 %v594, 0.0
      %v661 = vmax.f32 %v597, 0.0
      %v662 = vmax.f32 %v602, 0.0
      %v663 = vmax.f32 %v605, 0.0
      %v664 = vmax.f32 %v610, 0.0
      %v665 = vmax.f32 %v613, 0.0
      %v666 = vmax.f32 %v618, 0.0
      %v667 = vmax.f32 %v621, 0.0
      %v668 = vmax.f32 %v626, 0.0
      %v669 = vmax.f32 %v629, 0.0
      %v670 = vmax.f32 %v634, 0.0
      %v671 = vmax.f32 %v637, 0.0
      %v672 = vadd.f32 %v640, %v641
      %v673 = vadd.f32 %v672, %v642
      %v674 = vadd.f32 %v673, %v643
      %v675 = vadd.f32 %v674, %v644
      %v676 = vadd.f32 %v675, %v645
      %v677 = vadd.f32 %v676, %v646
      %v678 = vadd.f32 %v677, %v647
      %v679 = vadd.f32 %v678, %v648
      %v680 = vadd.f32 %v679, %v649
      %v681 = vadd.f32 %v680, %v650
      %v682 = vadd.f32 %v681, %v651
      %v683 = vadd.f32 %v682, %v652
      %v684 = vadd.f32 %v683, %v653
      %v685 = vadd.f32 %v684, %v654
      %v686 = vadd.f32 %v685, %v655
      %v687 = vadd.f32 %v686, %v656
      %v688 = vadd.f32 %v687, %v657
      %v689 = vadd.f32 %v688, %v658
      %v690 = vadd.f32 %v689, %v659
      %v691 = vadd.f32 %v690, %v660
      %v692 = vadd.f32 %v691, %v661
      %v693 = vadd.f32 %v692, %v662
      %v694 = vadd.f32 %v693, %v663
      %v695 = vadd.f32 %v694, %v664
      %v696 = vadd.f32 %v695, %v665
      %v697 = vadd.f32 %v696, %v666
      %v698 = vadd.f32 %v697, %v667
      %v699 = vadd.f32 %v698, %v668
      %v700 = vadd.f32 %v699, %v669
      %v701 = vadd.f32 %v700, %v670
      %v702 = vadd.f32 %v701, %v671
      %v703 = vrot.slane %v702, 4
      %v704 = vadd.f32 %v702, %v703
      %v705 = vrot.slane %v704, 2
      %v706 = vadd.f32 %v704, %v705
      %v707 = vrot.slane %v706, 1
      %v708 = vadd.f32 %v706, %v707
      %v709 = vmul.f32 %v640, %v640
      %v710 = vmul.f32 %v641, %v641
      %v711 = vmul.f32 %v642, %v642
      %v712 = vmul.f32 %v643, %v643
      %v713 = vmul.f32 %v644, %v644
      %v714 = vmul.f32 %v645, %v645
      %v715 = vmul.f32 %v646, %v646
      %v716 = vmul.f32 %v647, %v647
      %v717 = vmul.f32 %v648, %v648
      %v718 = vmul.f32 %v649, %v649
      %v719 = vmul.f32 %v650, %v650
      %v720 = vmul.f32 %v651, %v651
      %v721 = vmul.f32 %v652, %v652
      %v722 = vmul.f32 %v653, %v653
      %v723 = vmul.f32 %v654, %v654
      %v724 = vmul.f32 %v655, %v655
      %v725 = vmul.f32 %v656, %v656
      %v726 = vmul.f32 %v657, %v657
      %v727 = vmul.f32 %v658, %v658
      %v728 = vmul.f32 %v659, %v659
      %v729 = vmul.f32 %v660, %v660
      %v730 = vmul.f32 %v661, %v661
      %v731 = vmul.f32 %v662, %v662
      %v732 = vmul.f32 %v663, %v663
      %v733 = vmul.f32 %v664, %v664
      %v734 = vmul.f32 %v665, %v665
      %v735 = vmul.f32 %v666, %v666
      %v736 = vmul.f32 %v667, %v667
      %v737 = vmul.f32 %v668, %v668
      %v738 = vmul.f32 %v669, %v669
      %v739 = vmul.f32 %v670, %v670
      %v740 = vmul.f32 %v671, %v671
      %v741 = vadd.f32 %v709, %v710
      %v742 = vadd.f32 %v741, %v711
      %v743 = vadd.f32 %v742, %v712
      %v744 = vadd.f32 %v743, %v713
      %v745 = vadd.f32 %v744, %v714
      %v746 = vadd.f32 %v745, %v715
      %v747 = vadd.f32 %v746, %v716
      %v748 = vadd.f32 %v747, %v717
      %v749 = vadd.f32 %v748, %v718
      %v750 = vadd.f32 %v749, %v719
      %v751 = vadd.f32 %v750, %v720
      %v752 = vadd.f32 %v751, %v721
      %v753 = vadd.f32 %v752, %v722
      %v754 = vadd.f32 %v753, %v723
      %v755 = vadd.f32 %v754, %v724
      %v756 = vadd.f32 %v755, %v725
      %v757 = vadd.f32 %v756, %v726
      %v758 = vadd.f32 %v757, %v727
      %v759 = vadd.f32 %v758, %v728
      %v760 = vadd.f32 %v759, %v729
      %v761 = vadd.f32 %v760, %v730
      %v762 = vadd.f32 %v761, %v731
      %v763 = vadd.f32 %v762, %v732
      %v764 = vadd.f32 %v763, %v733
      %v765 = vadd.f32 %v764, %v734
      %v766 = vadd.f32 %v765, %v735
      %v767 = vadd.f32 %v766, %v736
      %v768 = vadd.f32 %v767, %v737
      %v769 = vadd.f32 %v768, %v738
      %v770 = vadd.f32 %v769, %v739
      %v771 = vadd.f32 %v770, %v740
      %v772 = vrot.slane %v771, 4
      %v773 = vadd.f32 %v771, %v772
      %v774 = vrot.slane %v773, 2
      %v775 = vadd.f32 %v773, %v774
      %v776 = vrot.slane %v775, 1
      %v777 = vadd.f32 %v775, %v776
      %v778 = vld [vmem:[%s5] sm:$0xff]
      %v779 = vld [vmem:[%s6] sm:$0xff]
      %v780 = vld [vmem:[%s6 + $0x8] sm:$0xff]
      %v781 = vld [vmem:[%s6 + $0x10] sm:$0xff]
      %v782 = vld [vmem:[%s6 + $0x18] sm:$0xff]
      %v783 = vld [vmem:[%s6 + $0x20] sm:$0xff]
      %v784 = vld [vmem:[%s6 + $0x28] sm:$0xff]
      %v785 = vld [vmem:[%s6 + $0x30] sm:$0xff]
      %v786 = vld [vmem:[%s6 + $0x38] sm:$0xff]
      %v787 = vld [vmem:[%s6 + $0x40] sm:$0xff]
      %v788 = vld [vmem:[%s6 + $0x48] sm:$0xff]
      %v789 = vld [vmem:[%s6 + $0x50] sm:$0xff]
      %v790 = vld [vmem:[%s6 + $0x58] sm:$0xff]
      %v791 = vld [vmem:[%s6 + $0x60] sm:$0xff]
      %v792 = vld [vmem:[%s6 + $0x68] sm:$0xff]
      %v793 = vld [vmem:[%s6 + $0x70] sm:$0xff]
      %v794 = vld [vmem:[%s6 + $0x78] sm:$0xff]
      %v795 = vld [vmem:[%s3] sm:$0x1]
      %v796 = vld [vmem:[%s4] sm:$0x1]
      %797 = vmatprep.subr.mxu0 0.0
      %798 = vmatpush1.msra.mxu0 %v779
      %799 = vmatprep.subr.mxu0 0.0
      %800 = vmatpush1.msra.mxu0 %v780
      %801 = vmatprep.subr.mxu0 0.0
      %802 = vmatpush1.msra.mxu0 %v781
      %803 = vmatprep.subr.mxu0 0.0
      %804 = vmatpush1.msra.mxu0 %v782
      %805 = vmatprep.subr.mxu0 0.0
      %806 = vmatpush1.msra.mxu0 %v783
      %807 = vmatprep.subr.mxu0 0.0
      %808 = vmatpush1.msra.mxu0 %v784
      %809 = vmatprep.subr.mxu0 0.0
      %810 = vmatpush1.msra.mxu0 %v785
      %811 = vmatprep.subr.mxu0 0.0
      %812 = vmatpush1.msra.mxu0 %v786
      %813 = vmatprep.subr.mxu0 0.0
      %814 = vmatpush1.msra.mxu0 %v787
      %815 = vmatprep.subr.mxu0 0.0
      %816 = vmatpush1.msra.mxu0 %v788
      %817 = vmatprep.subr.mxu0 0.0
      %818 = vmatpush1.msra.mxu0 %v789
      %819 = vmatprep.subr.mxu0 0.0
      %820 = vmatpush1.msra.mxu0 %v790
      %821 = vmatprep.subr.mxu0 0.0
      %822 = vmatpush1.msra.mxu0 %v791
      %823 = vmatprep.subr.mxu0 0.0
      %824 = vmatpush1.msra.mxu0 %v792
      %825 = vmatprep.subr.mxu0 0.0
      %826 = vmatpush1.msra.mxu0 %v793
      %827 = vmatprep.subr.mxu0 0.0
      %828 = vmatpush1.msra.mxu0 %v794
      %829 = vmatprep.subr.mxu0 0.0
      %830 = vmatpush1.msra.mxu0 0.0
      %831 = vmatprep.subr.mxu0 0.0
      %832 = vmatpush1.msra.mxu0 0.0
      %833 = vmatprep.subr.mxu0 0.0
      %834 = vmatpush1.msra.mxu0 0.0
      %835 = vmatprep.subr.mxu0 0.0
      %836 = vmatpush1.msra.mxu0 0.0
      %837 = vmatprep.subr.mxu0 0.0
      %838 = vmatpush1.msra.mxu0 0.0
      %839 = vmatprep.subr.mxu0 0.0
      %840 = vmatpush1.msra.mxu0 0.0
      %841 = vmatprep.subr.mxu0 0.0
      %842 = vmatpush1.msra.mxu0 0.0
      %843 = vmatprep.subr.mxu0 0.0
      %844 = vmatpush1.msra.mxu0 0.0
      %845 = vmatprep.subr.mxu0 0.0
      %846 = vmatpush1.msra.mxu0 0.0
      %847 = vmatprep.subr.mxu0 0.0
      %848 = vmatpush1.msra.mxu0 0.0
      %849 = vmatprep.subr.mxu0 0.0
      %850 = vmatpush1.msra.mxu0 0.0
      %851 = vmatprep.subr.mxu0 0.0
      %852 = vmatpush1.msra.mxu0 0.0
      %853 = vmatprep.subr.mxu0 0.0
      %854 = vmatpush1.msra.mxu0 0.0
      %855 = vmatprep.subr.mxu0 0.0
      %856 = vmatpush1.msra.mxu0 0.0
      %857 = vmatprep.subr.mxu0 0.0
      %858 = vmatpush1.msra.mxu0 0.0
      %859 = vmatprep.subr.mxu0 0.0
      %860 = vmatpush1.msra.mxu0 0.0
      %861 = vmatprep.mubr.f32.mxu0 0.0
      %862 = vmatmul.mubr.f32.gmra.mrb[0].mxu0 %v708
      %v863 = vpop.f32.mrb[0].mxu0
      %v864 = vadd.f32 0.0, %v863
      %v865 = vpop.f32.mrb[0].mxu0
      %866 = vdwg.mxu0
      %v867 = vmul.f32 %v864, 0.00048828125
      %868 = vmatprep.subr.mxu0 0.0
      %869 = vmatpush1.msra.mxu0 %v779
      %870 = vmatprep.subr.mxu0 0.0
      %871 = vmatpush1.msra.mxu0 %v780
      %872 = vmatprep.subr.mxu0 0.0
      %873 = vmatpush1.msra.mxu0 %v781
      %874 = vmatprep.subr.mxu0 0.0
      %875 = vmatpush1.msra.mxu0 %v782
      %876 = vmatprep.subr.mxu0 0.0
      %877 = vmatpush1.msra.mxu0 %v783
      %878 = vmatprep.subr.mxu0 0.0
      %879 = vmatpush1.msra.mxu0 %v784
      %880 = vmatprep.subr.mxu0 0.0
      %881 = vmatpush1.msra.mxu0 %v785
      %882 = vmatprep.subr.mxu0 0.0
      %883 = vmatpush1.msra.mxu0 %v786
      %884 = vmatprep.subr.mxu0 0.0
      %885 = vmatpush1.msra.mxu0 %v787
      %886 = vmatprep.subr.mxu0 0.0
      %887 = vmatpush1.msra.mxu0 %v788
      %888 = vmatprep.subr.mxu0 0.0
      %889 = vmatpush1.msra.mxu0 %v789
      %890 = vmatprep.subr.mxu0 0.0
      %891 = vmatpush1.msra.mxu0 %v790
      %892 = vmatprep.subr.mxu0 0.0
      %893 = vmatpush1.msra.mxu0 %v791
      %894 = vmatprep.subr.mxu0 0.0
      %895 = vmatpush1.msra.mxu0 %v792
      %896 = vmatprep.subr.mxu0 0.0
      %897 = vmatpush1.msra.mxu0 %v793
      %898 = vmatprep.subr.mxu0 0.0
      %899 = vmatpush1.msra.mxu0 %v794
      %900 = vmatprep.subr.mxu0 0.0
      %901 = vmatpush1.msra.mxu0 0.0
      %902 = vmatprep.subr.mxu0 0.0
      %903 = vmatpush1.msra.mxu0 0.0
      %904 = vmatprep.subr.mxu0 0.0
      %905 = vmatpush1.msra.mxu0 0.0
      %906 = vmatprep.subr.mxu0 0.0
      %907 = vmatpush1.msra.mxu0 0.0
      %908 = vmatprep.subr.mxu0 0.0
      %909 = vmatpush1.msra.mxu0 0.0
      %910 = vmatprep.subr.mxu0 0.0
      %911 = vmatpush1.msra.mxu0 0.0
      %912 = vmatprep.subr.mxu0 0.0
      %913 = vmatpush1.msra.mxu0 0.0
      %914 = vmatprep.subr.mxu0 0.0
      %915 = vmatpush1.msra.mxu0 0.0
      %916 = vmatprep.subr.mxu0 0.0
      %917 = vmatpush1.msra.mxu0 0.0
      %918 = vmatprep.subr.mxu0 0.0
      %919 = vmatpush1.msra.mxu0 0.0
      %920 = vmatprep.subr.mxu0 0.0
      %921 = vmatpush1.msra.mxu0 0.0
      %922 = vmatprep.subr.mxu0 0.0
      %923 = vmatpush1.msra.mxu0 0.0
      %924 = vmatprep.subr.mxu0 0.0
      %925 = vmatpush1.msra.mxu0 0.0
      %926 = vmatprep.subr.mxu0 0.0
      %927 = vmatpush1.msra.mxu0 0.0
      %928 = vmatprep.subr.mxu0 0.0
      %929 = vmatpush1.msra.mxu0 0.0
      %930 = vmatprep.subr.mxu0 0.0
      %931 = vmatpush1.msra.mxu0 0.0
      %932 = vmatprep.mubr.f32.mxu0 0.0
      %933 = vmatmul.mubr.f32.gmra.mrb[0].mxu0 %v777
      %v934 = vpop.f32.mrb[0].mxu0
      %v935 = vadd.f32 0.0, %v934
      %v936 = vpop.f32.mrb[0].mxu0
      %937 = vdwg.mxu0
      %v938 = vmul.f32 %v935, 0.00048828125
      %v939 = vmul.f32 %v867, %v867
      %v940 = vsub.f32 %v938, %v939
      %v941 = vmax.f32 %v940, 0.0
      %v942 = vadd.f32 %v941, 1e-05
      %v943 = vrsqrt.pop %v942
      %vm944 = vcmask 64512
      %v946 = vsel %vm944, %v867, 0
      %948 = vmatprep.subr.mxu0 0.0
      %949 = vmatpush1.msra.mxu0 %v778
      %950 = vmatprep.subr.mxu0 0.0
      %951 = vmatpush1.msra.mxu0 0.0
      %952 = vmatprep.subr.mxu0 0.0
      %953 = vmatpush1.msra.mxu0 0.0
      %954 = vmatprep.subr.mxu0 0.0
      %955 = vmatpush1.msra.mxu0 0.0
      %956 = vmatprep.subr.mxu0 0.0
      %957 = vmatpush1.msra.mxu0 0.0
      %958 = vmatprep.subr.mxu0 0.0
      %959 = vmatpush1.msra.mxu0 0.0
      %960 = vmatprep.subr.mxu0 0.0
      %961 = vmatpush1.msra.mxu0 0.0
      %962 = vmatprep.subr.mxu0 0.0
      %963 = vmatpush1.msra.mxu0 0.0
      %964 = vmatprep.subr.mxu0 0.0
      %965 = vmatpush1.msra.mxu0 0.0
      %966 = vmatprep.subr.mxu0 0.0
      %967 = vmatpush1.msra.mxu0 0.0
      %968 = vmatprep.subr.mxu0 0.0
      %969 = vmatpush1.msra.mxu0 0.0
      %970 = vmatprep.subr.mxu0 0.0
      %971 = vmatpush1.msra.mxu0 0.0
      %972 = vmatprep.subr.mxu0 0.0
      %973 = vmatpush1.msra.mxu0 0.0
      %974 = vmatprep.subr.mxu0 0.0
      %975 = vmatpush1.msra.mxu0 0.0
      %976 = vmatprep.subr.mxu0 0.0
      %977 = vmatpush1.msra.mxu0 0.0
      %978 = vmatprep.subr.mxu0 0.0
      %979 = vmatpush1.msra.mxu0 0.0
      %980 = vmatprep.subr.mxu0 0.0
      %981 = vmatpush1.msra.mxu0 0.0
      %982 = vmatprep.subr.mxu0 0.0
      %983 = vmatpush1.msra.mxu0 0.0
      %984 = vmatprep.subr.mxu0 0.0
      %985 = vmatpush1.msra.mxu0 0.0
      %986 = vmatprep.subr.mxu0 0.0
      %987 = vmatpush1.msra.mxu0 0.0
      %988 = vmatprep.subr.mxu0 0.0
      %989 = vmatpush1.msra.mxu0 0.0
      %990 = vmatprep.subr.mxu0 0.0
      %991 = vmatpush1.msra.mxu0 0.0
      %992 = vmatprep.subr.mxu0 0.0
      %993 = vmatpush1.msra.mxu0 0.0
      %994 = vmatprep.subr.mxu0 0.0
      %995 = vmatpush1.msra.mxu0 0.0
      %996 = vmatprep.subr.mxu0 0.0
      %997 = vmatpush1.msra.mxu0 0.0
      %998 = vmatprep.subr.mxu0 0.0
      %999 = vmatpush1.msra.mxu0 0.0
      %1000 = vmatprep.subr.mxu0 0.0
      %1001 = vmatpush1.msra.mxu0 0.0
      %1002 = vmatprep.subr.mxu0 0.0
      %1003 = vmatpush1.msra.mxu0 0.0
      %1004 = vmatprep.subr.mxu0 0.0
      %1005 = vmatpush1.msra.mxu0 0.0
      %1006 = vmatprep.subr.mxu0 0.0
      %1007 = vmatpush1.msra.mxu0 0.0
      %1008 = vmatprep.subr.mxu0 0.0
      %1009 = vmatpush1.msra.mxu0 0.0
      %1010 = vmatprep.subr.mxu0 0.0
      %1011 = vmatpush1.msra.mxu0 0.0
      %1012 = vmatprep.mubr.f32.mxu0 0.0
      %1013 = vmatmul.mubr.f32.gmra.mrb[0].mxu0 %v946
      %v1014 = vpop.f32.mrb[0].mxu0
      %v1015 = vadd.f32 0.0, %v1014
      %v1016 = vpop.f32.mrb[0].mxu0
      %1017 = vdwg.mxu0
      %v1019 = vsel %vm944, %v943, 0
      %1021 = vmatprep.subr.mxu0 0.0
      %1022 = vmatpush1.msra.mxu0 %v778
      %1023 = vmatprep.subr.mxu0 0.0
      %1024 = vmatpush1.msra.mxu0 0.0
      %1025 = vmatprep.subr.mxu0 0.0
      %1026 = vmatpush1.msra.mxu0 0.0
      %1027 = vmatprep.subr.mxu0 0.0
      %1028 = vmatpush1.msra.mxu0 0.0
      %1029 = vmatprep.subr.mxu0 0.0
      %1030 = vmatpush1.msra.mxu0 0.0
      %1031 = vmatprep.subr.mxu0 0.0
      %1032 = vmatpush1.msra.mxu0 0.0
      %1033 = vmatprep.subr.mxu0 0.0
      %1034 = vmatpush1.msra.mxu0 0.0
      %1035 = vmatprep.subr.mxu0 0.0
      %1036 = vmatpush1.msra.mxu0 0.0
      %1037 = vmatprep.subr.mxu0 0.0
      %1038 = vmatpush1.msra.mxu0 0.0
      %1039 = vmatprep.subr.mxu0 0.0
      %1040 = vmatpush1.msra.mxu0 0.0
      %1041 = vmatprep.subr.mxu0 0.0
      %1042 = vmatpush1.msra.mxu0 0.0
      %1043 = vmatprep.subr.mxu0 0.0
      %1044 = vmatpush1.msra.mxu0 0.0
      %1045 = vmatprep.subr.mxu0 0.0
      %1046 = vmatpush1.msra.mxu0 0.0
      %1047 = vmatprep.subr.mxu0 0.0
      %1048 = vmatpush1.msra.mxu0 0.0
      %1049 = vmatprep.subr.mxu0 0.0
      %1050 = vmatpush1.msra.mxu0 0.0
      %1051 = vmatprep.subr.mxu0 0.0
      %1052 = vmatpush1.msra.mxu0 0.0
      %1053 = vmatprep.subr.mxu0 0.0
      %1054 = vmatpush1.msra.mxu0 0.0
      %1055 = vmatprep.subr.mxu0 0.0
      %1056 = vmatpush1.msra.mxu0 0.0
      %1057 = vmatprep.subr.mxu0 0.0
      %1058 = vmatpush1.msra.mxu0 0.0
      %1059 = vmatprep.subr.mxu0 0.0
      %1060 = vmatpush1.msra.mxu0 0.0
      %1061 = vmatprep.subr.mxu0 0.0
      %1062 = vmatpush1.msra.mxu0 0.0
      %1063 = vmatprep.subr.mxu0 0.0
      %1064 = vmatpush1.msra.mxu0 0.0
      %1065 = vmatprep.subr.mxu0 0.0
      %1066 = vmatpush1.msra.mxu0 0.0
      %1067 = vmatprep.subr.mxu0 0.0
      %1068 = vmatpush1.msra.mxu0 0.0
      %1069 = vmatprep.subr.mxu0 0.0
      %1070 = vmatpush1.msra.mxu0 0.0
      %1071 = vmatprep.subr.mxu0 0.0
      %1072 = vmatpush1.msra.mxu0 0.0
      %1073 = vmatprep.subr.mxu0 0.0
      %1074 = vmatpush1.msra.mxu0 0.0
      %1075 = vmatprep.subr.mxu0 0.0
      %1076 = vmatpush1.msra.mxu0 0.0
      %1077 = vmatprep.subr.mxu0 0.0
      %1078 = vmatpush1.msra.mxu0 0.0
      %1079 = vmatprep.subr.mxu0 0.0
      %1080 = vmatpush1.msra.mxu0 0.0
      %1081 = vmatprep.subr.mxu0 0.0
      %1082 = vmatpush1.msra.mxu0 0.0
      %1083 = vmatprep.subr.mxu0 0.0
      %1084 = vmatpush1.msra.mxu0 0.0
      %1085 = vmatprep.mubr.f32.mxu0 0.0
      %1086 = vmatmul.mubr.f32.gmra.mrb[0].mxu0 %v1019
      %v1087 = vpop.f32.mrb[0].mxu0
      %v1088 = vadd.f32 0.0, %v1087
      %v1089 = vpop.f32.mrb[0].mxu0
      %1090 = vdwg.mxu0
      %v1091 = vmul.f32 %v1088, %v795
      %v1092 = vmul.f32 %v1015, %v1091
      %v1093 = vsub.f32 %v796, %v1092
      %v1094 = vlaneseq
      %v1095 = vshrl.u32 %v1094, 7
      %v1096 = vsub.s32 0, %v1095
      %v1097 = vrot.slane %v1091, %v1096
      %v1098 = vmul.f32 %v640, %v1097
      %v1099 = vmul.f32 %v641, %v1097
      %v1100 = vmul.f32 %v642, %v1097
      %v1101 = vmul.f32 %v643, %v1097
      %v1102 = vmul.f32 %v644, %v1097
      %v1103 = vmul.f32 %v645, %v1097
      %v1104 = vmul.f32 %v646, %v1097
      %v1105 = vmul.f32 %v647, %v1097
      %v1106 = vmul.f32 %v648, %v1097
      %v1107 = vmul.f32 %v649, %v1097
      %v1108 = vmul.f32 %v650, %v1097
      %v1109 = vmul.f32 %v651, %v1097
      %v1110 = vmul.f32 %v652, %v1097
      %v1111 = vmul.f32 %v653, %v1097
      %v1112 = vmul.f32 %v654, %v1097
      %v1113 = vmul.f32 %v655, %v1097
      %v1114 = vmul.f32 %v656, %v1097
      %v1115 = vmul.f32 %v657, %v1097
      %v1116 = vmul.f32 %v658, %v1097
      %v1117 = vmul.f32 %v659, %v1097
      %v1118 = vmul.f32 %v660, %v1097
      %v1119 = vmul.f32 %v661, %v1097
      %v1120 = vmul.f32 %v662, %v1097
      %v1121 = vmul.f32 %v663, %v1097
      %v1122 = vmul.f32 %v664, %v1097
      %v1123 = vmul.f32 %v665, %v1097
      %v1124 = vmul.f32 %v666, %v1097
      %v1125 = vmul.f32 %v667, %v1097
      %v1126 = vmul.f32 %v668, %v1097
      %v1127 = vmul.f32 %v669, %v1097
      %v1128 = vmul.f32 %v670, %v1097
      %v1129 = vmul.f32 %v671, %v1097
      %v1131 = vlaneseq
      %v1132 = vshrl.u32 %v1131, 7
      %v1133 = vsub.s32 0, %v1132
      %v1134 = vrot.slane %v1093, %v1133
      %v1136 = vadd.f32 %v1098, %v1134
      %v1137 = vadd.f32 %v1099, %v1134
      %v1138 = vadd.f32 %v1100, %v1134
      %v1139 = vadd.f32 %v1101, %v1134
      %v1140 = vadd.f32 %v1102, %v1134
      %v1141 = vadd.f32 %v1103, %v1134
      %v1142 = vadd.f32 %v1104, %v1134
      %v1143 = vadd.f32 %v1105, %v1134
      %v1144 = vadd.f32 %v1106, %v1134
      %v1145 = vadd.f32 %v1107, %v1134
      %v1146 = vadd.f32 %v1108, %v1134
      %v1147 = vadd.f32 %v1109, %v1134
      %v1148 = vadd.f32 %v1110, %v1134
      %v1149 = vadd.f32 %v1111, %v1134
      %v1150 = vadd.f32 %v1112, %v1134
      %v1151 = vadd.f32 %v1113, %v1134
      %v1152 = vadd.f32 %v1114, %v1134
      %v1153 = vadd.f32 %v1115, %v1134
      %v1154 = vadd.f32 %v1116, %v1134
      %v1155 = vadd.f32 %v1117, %v1134
      %v1156 = vadd.f32 %v1118, %v1134
      %v1157 = vadd.f32 %v1119, %v1134
      %v1158 = vadd.f32 %v1120, %v1134
      %v1159 = vadd.f32 %v1121, %v1134
      %v1160 = vadd.f32 %v1122, %v1134
      %v1161 = vadd.f32 %v1123, %v1134
      %v1162 = vadd.f32 %v1124, %v1134
      %v1163 = vadd.f32 %v1125, %v1134
      %v1164 = vadd.f32 %v1126, %v1134
      %v1165 = vadd.f32 %v1127, %v1134
      %v1166 = vadd.f32 %v1128, %v1134
      %v1167 = vadd.f32 %v1129, %v1134
      %1168 = vst [vmem:[%s278] sm:$0xf] 0
      %1169 = vst [vmem:[%s278 + $0x4] sm:$0xf] 0
      %1170 = vst [vmem:[%s278 + $0x8] sm:$0x1] 0
      %s1171 = scalar_lea.vmem %s278, 204
      %1172 = vst [vmem:[%s1171] sm:$0xf] 0
      %1173 = vst [vmem:[%s1171 + $0x4] sm:$0xf] 0
      %1174 = vst [vmem:[%s1171 + $0x8] sm:$0x1] 0
      %s1175 = scalar_lea.vmem %s278, 12
      %vm1176 = vcmask 1040384
      %vm1177 = vsmask.f32 256
      %vm1178 = vmand %vm1176, %vm1177
      %v1179 = vld [vmem:[%s1175] sm:$0x1]
      %v1180 = vsel %vm1178, 0, %v1179
      %1181 = vst [vmem:[%s1175] sm:$0x1] %v1180
      %v1182 = vld [vmem:[%s1175 + $0xc] sm:$0x1]
      %v1183 = vsel %vm1178, 0, %v1182
      %1184 = vst [vmem:[%s1175 + $0xc] sm:$0x1] %v1183
      %v1185 = vld [vmem:[%s1175 + $0x18] sm:$0x1]
      %v1186 = vsel %vm1178, 0, %v1185
      %1187 = vst [vmem:[%s1175 + $0x18] sm:$0x1] %v1186
      %v1188 = vld [vmem:[%s1175 + $0x24] sm:$0x1]
      %v1189 = vsel %vm1178, 0, %v1188
      %1190 = vst [vmem:[%s1175 + $0x24] sm:$0x1] %v1189
      %v1191 = vld [vmem:[%s1175 + $0x30] sm:$0x1]
      %v1192 = vsel %vm1178, 0, %v1191
      %1193 = vst [vmem:[%s1175 + $0x30] sm:$0x1] %v1192
      %v1194 = vld [vmem:[%s1175 + $0x3c] sm:$0x1]
      %v1195 = vsel %vm1178, 0, %v1194
      %1196 = vst [vmem:[%s1175 + $0x3c] sm:$0x1] %v1195
      %v1197 = vld [vmem:[%s1175 + $0x48] sm:$0x1]
      %v1198 = vsel %vm1178, 0, %v1197
      %1199 = vst [vmem:[%s1175 + $0x48] sm:$0x1] %v1198
      %v1200 = vld [vmem:[%s1175 + $0x54] sm:$0x1]
      %v1201 = vsel %vm1178, 0, %v1200
      %1202 = vst [vmem:[%s1175 + $0x54] sm:$0x1] %v1201
      %v1203 = vld [vmem:[%s1175 + $0x60] sm:$0x1]
      %v1204 = vsel %vm1178, 0, %v1203
      %1205 = vst [vmem:[%s1175 + $0x60] sm:$0x1] %v1204
      %v1206 = vld [vmem:[%s1175 + $0x6c] sm:$0x1]
      %v1207 = vsel %vm1178, 0, %v1206
      %1208 = vst [vmem:[%s1175 + $0x6c] sm:$0x1] %v1207
      %v1209 = vld [vmem:[%s1175 + $0x78] sm:$0x1]
      %v1210 = vsel %vm1178, 0, %v1209
      %1211 = vst [vmem:[%s1175 + $0x78] sm:$0x1] %v1210
      %v1212 = vld [vmem:[%s1175 + $0x84] sm:$0x1]
      %v1213 = vsel %vm1178, 0, %v1212
      %1214 = vst [vmem:[%s1175 + $0x84] sm:$0x1] %v1213
      %v1215 = vld [vmem:[%s1175 + $0x90] sm:$0x1]
      %v1216 = vsel %vm1178, 0, %v1215
      %1217 = vst [vmem:[%s1175 + $0x90] sm:$0x1] %v1216
      %v1218 = vld [vmem:[%s1175 + $0x9c] sm:$0x1]
      %v1219 = vsel %vm1178, 0, %v1218
      %1220 = vst [vmem:[%s1175 + $0x9c] sm:$0x1] %v1219
      %v1221 = vld [vmem:[%s1175 + $0xa8] sm:$0x1]
      %v1222 = vsel %vm1178, 0, %v1221
      %1223 = vst [vmem:[%s1175 + $0xa8] sm:$0x1] %v1222
      %v1224 = vld [vmem:[%s1175 + $0xb4] sm:$0x1]
      %v1225 = vsel %vm1178, 0, %v1224
      %1226 = vst [vmem:[%s1175 + $0xb4] sm:$0x1] %v1225
      %vm1227 = vsmask.f32 7938
      %vm1228 = vmand %vm1176, %vm1227
      %v1229 = vld [vmem:[%s1175 + $0x8] sm:$0x1]
      %v1230 = vsel %vm1228, 0, %v1229
      %1231 = vst [vmem:[%s1175 + $0x8] sm:$0x1] %v1230
      %v1232 = vld [vmem:[%s1175 + $0x14] sm:$0x1]
      %v1233 = vsel %vm1228, 0, %v1232
      %1234 = vst [vmem:[%s1175 + $0x14] sm:$0x1] %v1233
      %v1235 = vld [vmem:[%s1175 + $0x20] sm:$0x1]
      %v1236 = vsel %vm1228, 0, %v1235
      %1237 = vst [vmem:[%s1175 + $0x20] sm:$0x1] %v1236
      %v1238 = vld [vmem:[%s1175 + $0x2c] sm:$0x1]
      %v1239 = vsel %vm1228, 0, %v1238
      %1240 = vst [vmem:[%s1175 + $0x2c] sm:$0x1] %v1239
      %v1241 = vld [vmem:[%s1175 + $0x38] sm:$0x1]
      %v1242 = vsel %vm1228, 0, %v1241
      %1243 = vst [vmem:[%s1175 + $0x38] sm:$0x1] %v1242
      %v1244 = vld [vmem:[%s1175 + $0x44] sm:$0x1]
      %v1245 = vsel %vm1228, 0, %v1244
      %1246 = vst [vmem:[%s1175 + $0x44] sm:$0x1] %v1245
      %v1247 = vld [vmem:[%s1175 + $0x50] sm:$0x1]
      %v1248 = vsel %vm1228, 0, %v1247
      %1249 = vst [vmem:[%s1175 + $0x50] sm:$0x1] %v1248
      %v1250 = vld [vmem:[%s1175 + $0x5c] sm:$0x1]
      %v1251 = vsel %vm1228, 0, %v1250
      %1252 = vst [vmem:[%s1175 + $0x5c] sm:$0x1] %v1251
      %v1253 = vld [vmem:[%s1175 + $0x68] sm:$0x1]
      %v1254 = vsel %vm1228, 0, %v1253
      %1255 = vst [vmem:[%s1175 + $0x68] sm:$0x1] %v1254
      %v1256 = vld [vmem:[%s1175 + $0x74] sm:$0x1]
      %v1257 = vsel %vm1228, 0, %v1256
      %1258 = vst [vmem:[%s1175 + $0x74] sm:$0x1] %v1257
      %v1259 = vld [vmem:[%s1175 + $0x80] sm:$0x1]
      %v1260 = vsel %vm1228, 0, %v1259
      %1261 = vst [vmem:[%s1175 + $0x80] sm:$0x1] %v1260
      %v1262 = vld [vmem:[%s1175 + $0x8c] sm:$0x1]
      %v1263 = vsel %vm1228, 0, %v1262
      %1264 = vst [vmem:[%s1175 + $0x8c] sm:$0x1] %v1263
      %v1265 = vld [vmem:[%s1175 + $0x98] sm:$0x1]
      %v1266 = vsel %vm1228, 0, %v1265
      %1267 = vst [vmem:[%s1175 + $0x98] sm:$0x1] %v1266
      %v1268 = vld [vmem:[%s1175 + $0xa4] sm:$0x1]
      %v1269 = vsel %vm1228, 0, %v1268
      %1270 = vst [vmem:[%s1175 + $0xa4] sm:$0x1] %v1269
      %v1271 = vld [vmem:[%s1175 + $0xb0] sm:$0x1]
      %v1272 = vsel %vm1228, 0, %v1271
      %1273 = vst [vmem:[%s1175 + $0xb0] sm:$0x1] %v1272
      %v1274 = vld [vmem:[%s1175 + $0xbc] sm:$0x1]
      %v1275 = vsel %vm1228, 0, %v1274
      %1276 = vst [vmem:[%s1175 + $0xbc] sm:$0x1] %v1275
      %v1277 = vpack.c.bf16 %v1137, %v1136
      %v1278 = vpack.c.bf16 %v1139, %v1138
      %v1279 = vpack.c.bf16 %v1141, %v1140
      %v1280 = vpack.c.bf16 %v1143, %v1142
      %v1281 = vpack.c.bf16 %v1145, %v1144
      %v1282 = vpack.c.bf16 %v1147, %v1146
      %v1283 = vpack.c.bf16 %v1149, %v1148
      %v1284 = vpack.c.bf16 %v1151, %v1150
      %v1285 = vpack.c.bf16 %v1153, %v1152
      %v1286 = vpack.c.bf16 %v1155, %v1154
      %v1287 = vpack.c.bf16 %v1157, %v1156
      %v1288 = vpack.c.bf16 %v1159, %v1158
      %v1289 = vpack.c.bf16 %v1161, %v1160
      %v1290 = vpack.c.bf16 %v1163, %v1162
      %v1291 = vpack.c.bf16 %v1165, %v1164
      %v1292 = vpack.c.bf16 %v1167, %v1166
      %v1309 = vunpack.c.l.b16 %v1277
      %v1310 = vunpack.c.h.b16 %v1277
      %v1311 = vunpack.c.l.b16 %v1278
      %v1312 = vunpack.c.h.b16 %v1278
      %v1313 = vunpack.c.l.b16 %v1279
      %v1314 = vunpack.c.h.b16 %v1279
      %v1315 = vunpack.c.l.b16 %v1280
      %v1316 = vunpack.c.h.b16 %v1280
      %v1317 = vunpack.c.l.b16 %v1281
      %v1318 = vunpack.c.h.b16 %v1281
      %v1319 = vunpack.c.l.b16 %v1282
      %v1320 = vunpack.c.h.b16 %v1282
      %v1321 = vunpack.c.l.b16 %v1283
      %v1322 = vunpack.c.h.b16 %v1283
      %v1323 = vunpack.c.l.b16 %v1284
      %v1324 = vunpack.c.h.b16 %v1284
      %v1325 = vunpack.c.l.b16 %v1285
      %v1326 = vunpack.c.h.b16 %v1285
      %v1327 = vunpack.c.l.b16 %v1286
      %v1328 = vunpack.c.h.b16 %v1286
      %v1329 = vunpack.c.l.b16 %v1287
      %v1330 = vunpack.c.h.b16 %v1287
      %v1331 = vunpack.c.l.b16 %v1288
      %v1332 = vunpack.c.h.b16 %v1288
      %v1333 = vunpack.c.l.b16 %v1289
      %v1334 = vunpack.c.h.b16 %v1289
      %v1335 = vunpack.c.l.b16 %v1290
      %v1336 = vunpack.c.h.b16 %v1290
      %v1337 = vunpack.c.l.b16 %v1291
      %v1338 = vunpack.c.h.b16 %v1291
      %v1339 = vunpack.c.l.b16 %v1292
      %v1340 = vunpack.c.h.b16 %v1292
      %v1341 = vpack.c.b16 %v1309, %v1309
      %v1342 = vpack.c.b16 %v1310, %v1310
      %v1343 = vpack.c.b16 %v1311, %v1311
      %v1344 = vpack.c.b16 %v1312, %v1312
      %v1345 = vpack.c.b16 %v1313, %v1313
      %v1346 = vpack.c.b16 %v1314, %v1314
      %v1347 = vpack.c.b16 %v1315, %v1315
      %v1348 = vpack.c.b16 %v1316, %v1316
      %v1349 = vpack.c.b16 %v1317, %v1317
      %v1350 = vpack.c.b16 %v1318, %v1318
      %v1351 = vpack.c.b16 %v1319, %v1319
      %v1352 = vpack.c.b16 %v1320, %v1320
      %v1353 = vpack.c.b16 %v1321, %v1321
      %v1354 = vpack.c.b16 %v1322, %v1322
      %v1355 = vpack.c.b16 %v1323, %v1323
      %v1356 = vpack.c.b16 %v1324, %v1324
      %v1357 = vpack.c.b16 %v1325, %v1325
      %v1358 = vpack.c.b16 %v1326, %v1326
      %v1359 = vpack.c.b16 %v1327, %v1327
      %v1360 = vpack.c.b16 %v1328, %v1328
      %v1361 = vpack.c.b16 %v1329, %v1329
      %v1362 = vpack.c.b16 %v1330, %v1330
      %v1363 = vpack.c.b16 %v1331, %v1331
      %v1364 = vpack.c.b16 %v1332, %v1332
      %v1365 = vpack.c.b16 %v1333, %v1333
      %v1366 = vpack.c.b16 %v1334, %v1334
      %v1367 = vpack.c.b16 %v1335, %v1335
      %v1368 = vpack.c.b16 %v1336, %v1336
      %v1369 = vpack.c.b16 %v1337, %v1337
      %v1370 = vpack.c.b16 %v1338, %v1338
      %v1371 = vpack.c.b16 %v1339, %v1339
      %v1372 = vpack.c.b16 %v1340, %v1340
      %vm1373 = vsmask.f32 4368
      %vm1374 = vmor %vm1177, %vm1373
      %v1376 = vshrl.u32 %v1341, 16
      %v1378 = vrot.slane %v1376, 7
      %v1379 = vshll.u32 %v1341, 16
      %v1381 = vor.u32 %v1378, %v1379
      %v1382 = vrot.slane %v1378, 4
      %v1384 = vshrl.u32 %v1342, 16
      %v1386 = vrot.slane %v1384, 7
      %v1387 = vshll.u32 %v1342, 16
      %v1389 = vor.u32 %v1386, %v1387
      %v1390 = vsel %vm1374, %v1382, %v1389
      %v1391 = vrot.slane %v1386, 4
      %v1393 = vshrl.u32 %v1343, 16
      %v1395 = vrot.slane %v1393, 7
      %v1396 = vshll.u32 %v1343, 16
      %v1398 = vor.u32 %v1395, %v1396
      %v1399 = vrot.slane %v1395, 4
      %v1401 = vshrl.u32 %v1344, 16
      %v1403 = vrot.slane %v1401, 7
      %v1404 = vshll.u32 %v1344, 16
      %v1406 = vor.u32 %v1403, %v1404
      %v1407 = vsel %vm1374, %v1399, %v1406
      %v1408 = vrot.slane %v1403, 4
      %v1410 = vshrl.u32 %v1345, 16
      %v1412 = vrot.slane %v1410, 7
      %v1413 = vshll.u32 %v1345, 16
      %v1415 = vor.u32 %v1412, %v1413
      %v1416 = vrot.slane %v1412, 4
      %v1418 = vshrl.u32 %v1346, 16
      %v1420 = vrot.slane %v1418, 7
      %v1421 = vshll.u32 %v1346, 16
      %v1423 = vor.u32 %v1420, %v1421
      %v1424 = vsel %vm1374, %v1416, %v1423
      %v1425 = vrot.slane %v1420, 4
      %v1427 = vshrl.u32 %v1347, 16
      %v1429 = vrot.slane %v1427, 7
      %v1430 = vshll.u32 %v1347, 16
      %v1432 = vor.u32 %v1429, %v1430
      %v1433 = vrot.slane %v1429, 4
      %v1435 = vshrl.u32 %v1348, 16
      %v1437 = vrot.slane %v1435, 7
      %v1438 = vshll.u32 %v1348, 16
      %v1440 = vor.u32 %v1437, %v1438
      %v1441 = vsel %vm1374, %v1433, %v1440
      %v1442 = vrot.slane %v1437, 4
      %v1444 = vshrl.u32 %v1349, 16
      %v1446 = vrot.slane %v1444, 7
      %v1447 = vshll.u32 %v1349, 16
      %v1449 = vor.u32 %v1446, %v1447
      %v1450 = vrot.slane %v1446, 4
      %v1452 = vshrl.u32 %v1350, 16
      %v1454 = vrot.slane %v1452, 7
      %v1455 = vshll.u32 %v1350, 16
      %v1457 = vor.u32 %v1454, %v1455
      %v1458 = vsel %vm1374, %v1450, %v1457
      %v1459 = vrot.slane %v1454, 4
      %v1461 = vshrl.u32 %v1351, 16
      %v1463 = vrot.slane %v1461, 7
      %v1464 = vshll.u32 %v1351, 16
      %v1466 = vor.u32 %v1463, %v1464
      %v1467 = vrot.slane %v1463, 4
      %v1469 = vshrl.u32 %v1352, 16
      %v1471 = vrot.slane %v1469, 7
      %v1472 = vshll.u32 %v1352, 16
      %v1474 = vor.u32 %v1471, %v1472
      %v1475 = vsel %vm1374, %v1467, %v1474
      %v1476 = vrot.slane %v1471, 4
      %v1478 = vshrl.u32 %v1353, 16
      %v1480 = vrot.slane %v1478, 7
      %v1481 = vshll.u32 %v1353, 16
      %v1483 = vor.u32 %v1480, %v1481
      %v1484 = vrot.slane %v1480, 4
      %v1486 = vshrl.u32 %v1354, 16
      %v1488 = vrot.slane %v1486, 7
      %v1489 = vshll.u32 %v1354, 16
      %v1491 = vor.u32 %v1488, %v1489
      %v1492 = vsel %vm1374, %v1484, %v1491
      %v1493 = vrot.slane %v1488, 4
      %v1495 = vshrl.u32 %v1355, 16
      %v1497 = vrot.slane %v1495, 7
      %v1498 = vshll.u32 %v1355, 16
      %v1500 = vor.u32 %v1497, %v1498
      %v1501 = vrot.slane %v1497, 4
      %v1503 = vshrl.u32 %v1356, 16
      %v1505 = vrot.slane %v1503, 7
      %v1506 = vshll.u32 %v1356, 16
      %v1508 = vor.u32 %v1505, %v1506
      %v1509 = vsel %vm1374, %v1501, %v1508
      %v1510 = vrot.slane %v1505, 4
      %v1512 = vshrl.u32 %v1357, 16
      %v1514 = vrot.slane %v1512, 7
      %v1515 = vshll.u32 %v1357, 16
      %v1517 = vor.u32 %v1514, %v1515
      %v1518 = vrot.slane %v1514, 4
      %v1520 = vshrl.u32 %v1358, 16
      %v1522 = vrot.slane %v1520, 7
      %v1523 = vshll.u32 %v1358, 16
      %v1525 = vor.u32 %v1522, %v1523
      %v1526 = vsel %vm1374, %v1518, %v1525
      %v1527 = vrot.slane %v1522, 4
      %v1529 = vshrl.u32 %v1359, 16
      %v1531 = vrot.slane %v1529, 7
      %v1532 = vshll.u32 %v1359, 16
      %v1534 = vor.u32 %v1531, %v1532
      %v1535 = vrot.slane %v1531, 4
      %v1537 = vshrl.u32 %v1360, 16
      %v1539 = vrot.slane %v1537, 7
      %v1540 = vshll.u32 %v1360, 16
      %v1542 = vor.u32 %v1539, %v1540
      %v1543 = vsel %vm1374, %v1535, %v1542
      %v1544 = vrot.slane %v1539, 4
      %v1546 = vshrl.u32 %v1361, 16
      %v1548 = vrot.slane %v1546, 7
      %v1549 = vshll.u32 %v1361, 16
      %v1551 = vor.u32 %v1548, %v1549
      %v1552 = vrot.slane %v1548, 4
      %v1554 = vshrl.u32 %v1362, 16
      %v1556 = vrot.slane %v1554, 7
      %v1557 = vshll.u32 %v1362, 16
      %v1559 = vor.u32 %v1556, %v1557
      %v1560 = vsel %vm1374, %v1552, %v1559
      %v1561 = vrot.slane %v1556, 4
      %v1563 = vshrl.u32 %v1363, 16
      %v1565 = vrot.slane %v1563, 7
      %v1566 = vshll.u32 %v1363, 16
      %v1568 = vor.u32 %v1565, %v1566
      %v1569 = vrot.slane %v1565, 4
      %v1571 = vshrl.u32 %v1364, 16
      %v1573 = vrot.slane %v1571, 7
      %v1574 = vshll.u32 %v1364, 16
      %v1576 = vor.u32 %v1573, %v1574
      %v1577 = vsel %vm1374, %v1569, %v1576
      %v1578 = vrot.slane %v1573, 4
      %v1580 = vshrl.u32 %v1365, 16
      %v1582 = vrot.slane %v1580, 7
      %v1583 = vshll.u32 %v1365, 16
      %v1585 = vor.u32 %v1582, %v1583
      %v1586 = vrot.slane %v1582, 4
      %v1588 = vshrl.u32 %v1366, 16
      %v1590 = vrot.slane %v1588, 7
      %v1591 = vshll.u32 %v1366, 16
      %v1593 = vor.u32 %v1590, %v1591
      %v1594 = vsel %vm1374, %v1586, %v1593
      %v1595 = vrot.slane %v1590, 4
      %v1597 = vshrl.u32 %v1367, 16
      %v1599 = vrot.slane %v1597, 7
      %v1600 = vshll.u32 %v1367, 16
      %v1602 = vor.u32 %v1599, %v1600
      %v1603 = vrot.slane %v1599, 4
      %v1605 = vshrl.u32 %v1368, 16
      %v1607 = vrot.slane %v1605, 7
      %v1608 = vshll.u32 %v1368, 16
      %v1610 = vor.u32 %v1607, %v1608
      %v1611 = vsel %vm1374, %v1603, %v1610
      %v1612 = vrot.slane %v1607, 4
      %v1614 = vshrl.u32 %v1369, 16
      %v1616 = vrot.slane %v1614, 7
      %v1617 = vshll.u32 %v1369, 16
      %v1619 = vor.u32 %v1616, %v1617
      %v1620 = vrot.slane %v1616, 4
      %v1622 = vshrl.u32 %v1370, 16
      %v1624 = vrot.slane %v1622, 7
      %v1625 = vshll.u32 %v1370, 16
      %v1627 = vor.u32 %v1624, %v1625
      %v1628 = vsel %vm1374, %v1620, %v1627
      %v1629 = vrot.slane %v1624, 4
      %v1631 = vshrl.u32 %v1371, 16
      %v1633 = vrot.slane %v1631, 7
      %v1634 = vshll.u32 %v1371, 16
      %v1636 = vor.u32 %v1633, %v1634
      %v1637 = vrot.slane %v1633, 4
      %v1639 = vshrl.u32 %v1372, 16
      %v1641 = vrot.slane %v1639, 7
      %v1642 = vshll.u32 %v1372, 16
      %v1644 = vor.u32 %v1641, %v1642
      %v1645 = vsel %vm1374, %v1637, %v1644
      %v1646 = vrot.slane %v1641, 4
      %vm1695 = vcmask 1043456
      %vm1696 = vmand %vm1695, %vm1227
      %v1697 = vld [vmem:[%s1175] sm:$0xf]
      %v1698 = vsel %vm1696, %v1381, %v1697
      %1699 = vst [vmem:[%s1175] sm:$0xf] %v1698
      %1700 = vst [vmem:[%s1175 + $0x4] sm:$0xf] %v1390
      %v1701 = vld [vmem:[%s1175 + $0x8] sm:$0x1]
      %v1702 = vsel %vm1178, %v1391, %v1701
      %1703 = vst [vmem:[%s1175 + $0x8] sm:$0x1] %v1702
      %v1704 = vld [vmem:[%s1175 + $0xc] sm:$0xf]
      %v1705 = vsel %vm1696, %v1398, %v1704
      %1706 = vst [vmem:[%s1175 + $0xc] sm:$0xf] %v1705
      %1707 = vst [vmem:[%s1175 + $0x10] sm:$0xf] %v1407
      %v1708 = vld [vmem:[%s1175 + $0x14] sm:$0x1]
      %v1709 = vsel %vm1178, %v1408, %v1708
      %1710 = vst [vmem:[%s1175 + $0x14] sm:$0x1] %v1709
      %v1711 = vld [vmem:[%s1175 + $0x18] sm:$0xf]
      %v1712 = vsel %vm1696, %v1415, %v1711
      %1713 = vst [vmem:[%s1175 + $0x18] sm:$0xf] %v1712
      %1714 = vst [vmem:[%s1175 + $0x1c] sm:$0xf] %v1424
      %v1715 = vld [vmem:[%s1175 + $0x20] sm:$0x1]
      %v1716 = vsel %vm1178, %v1425, %v1715
      %1717 = vst [vmem:[%s1175 + $0x20] sm:$0x1] %v1716
      %v1718 = vld [vmem:[%s1175 + $0x24] sm:$0xf]
      %v1719 = vsel %vm1696, %v1432, %v1718
      %1720 = vst [vmem:[%s1175 + $0x24] sm:$0xf] %v1719
      %1721 = vst [vmem:[%s1175 + $0x28] sm:$0xf] %v1441
      %v1722 = vld [vmem:[%s1175 + $0x2c] sm:$0x1]
      %v1723 = vsel %vm1178, %v1442, %v1722
      %1724 = vst [vmem:[%s1175 + $0x2c] sm:$0x1] %v1723
      %v1725 = vld [vmem:[%s1175 + $0x30] sm:$0xf]
      %v1726 = vsel %vm1696, %v1449, %v1725
      %1727 = vst [vmem:[%s1175 + $0x30] sm:$0xf] %v1726
      %1728 = vst [vmem:[%s1175 + $0x34] sm:$0xf] %v1458
      %v1729 = vld [vmem:[%s1175 + $0x38] sm:$0x1]
      %v1730 = vsel %vm1178, %v1459, %v1729
      %1731 = vst [vmem:[%s1175 + $0x38] sm:$0x1] %v1730
      %v1732 = vld [vmem:[%s1175 + $0x3c] sm:$0xf]
      %v1733 = vsel %vm1696, %v1466, %v1732
      %1734 = vst [vmem:[%s1175 + $0x3c] sm:$0xf] %v1733
      %1735 = vst [vmem:[%s1175 + $0x40] sm:$0xf] %v1475
      %v1736 = vld [vmem:[%s1175 + $0x44] sm:$0x1]
      %v1737 = vsel %vm1178, %v1476, %v1736
      %1738 = vst [vmem:[%s1175 + $0x44] sm:$0x1] %v1737
      %v1739 = vld [vmem:[%s1175 + $0x48] sm:$0xf]
      %v1740 = vsel %vm1696, %v1483, %v1739
      %1741 = vst [vmem:[%s1175 + $0x48] sm:$0xf] %v1740
      %1742 = vst [vmem:[%s1175 + $0x4c] sm:$0xf] %v1492
      %v1743 = vld [vmem:[%s1175 + $0x50] sm:$0x1]
      %v1744 = vsel %vm1178, %v1493, %v1743
      %1745 = vst [vmem:[%s1175 + $0x50] sm:$0x1] %v1744
      %v1746 = vld [vmem:[%s1175 + $0x54] sm:$0xf]
      %v1747 = vsel %vm1696, %v1500, %v1746
      %1748 = vst [vmem:[%s1175 + $0x54] sm:$0xf] %v1747
      %1749 = vst [vmem:[%s1175 + $0x58] sm:$0xf] %v1509
      %v1750 = vld [vmem:[%s1175 + $0x5c] sm:$0x1]
      %v1751 = vsel %vm1178, %v1510, %v1750
      %1752 = vst [vmem:[%s1175 + $0x5c] sm:$0x1] %v1751
      %v1753 = vld [vmem:[%s1175 + $0x60] sm:$0xf]
      %v1754 = vsel %vm1696, %v1517, %v1753
      %1755 = vst [vmem:[%s1175 + $0x60] sm:$0xf] %v1754
      %1756 = vst [vmem:[%s1175 + $0x64] sm:$0xf] %v1526
      %v1757 = vld [vmem:[%s1175 + $0x68] sm:$0x1]
      %v1758 = vsel %vm1178, %v1527, %v1757
      %1759 = vst [vmem:[%s1175 + $0x68] sm:$0x1] %v1758
      %v1760 = vld [vmem:[%s1175 + $0x6c] sm:$0xf]
      %v1761 = vsel %vm1696, %v1534, %v1760
      %1762 = vst [vmem:[%s1175 + $0x6c] sm:$0xf] %v1761
      %1763 = vst [vmem:[%s1175 + $0x70] sm:$0xf] %v1543
      %v1764 = vld [vmem:[%s1175 + $0x74] sm:$0x1]
      %v1765 = vsel %vm1178, %v1544, %v1764
      %1766 = vst [vmem:[%s1175 + $0x74] sm:$0x1] %v1765
      %v1767 = vld [vmem:[%s1175 + $0x78] sm:$0xf]
      %v1768 = vsel %vm1696, %v1551, %v1767
      %1769 = vst [vmem:[%s1175 + $0x78] sm:$0xf] %v1768
      %1770 = vst [vmem:[%s1175 + $0x7c] sm:$0xf] %v1560
      %v1771 = vld [vmem:[%s1175 + $0x80] sm:$0x1]
      %v1772 = vsel %vm1178, %v1561, %v1771
      %1773 = vst [vmem:[%s1175 + $0x80] sm:$0x1] %v1772
      %v1774 = vld [vmem:[%s1175 + $0x84] sm:$0xf]
      %v1775 = vsel %vm1696, %v1568, %v1774
      %1776 = vst [vmem:[%s1175 + $0x84] sm:$0xf] %v1775
      %1777 = vst [vmem:[%s1175 + $0x88] sm:$0xf] %v1577
      %v1778 = vld [vmem:[%s1175 + $0x8c] sm:$0x1]
      %v1779 = vsel %vm1178, %v1578, %v1778
      %1780 = vst [vmem:[%s1175 + $0x8c] sm:$0x1] %v1779
      %v1781 = vld [vmem:[%s1175 + $0x90] sm:$0xf]
      %v1782 = vsel %vm1696, %v1585, %v1781
      %1783 = vst [vmem:[%s1175 + $0x90] sm:$0xf] %v1782
      %1784 = vst [vmem:[%s1175 + $0x94] sm:$0xf] %v1594
      %v1785 = vld [vmem:[%s1175 + $0x98] sm:$0x1]
      %v1786 = vsel %vm1178, %v1595, %v1785
      %1787 = vst [vmem:[%s1175 + $0x98] sm:$0x1] %v1786
      %v1788 = vld [vmem:[%s1175 + $0x9c] sm:$0xf]
      %v1789 = vsel %vm1696, %v1602, %v1788
      %1790 = vst [vmem:[%s1175 + $0x9c] sm:$0xf] %v1789
      %1791 = vst [vmem:[%s1175 + $0xa0] sm:$0xf] %v1611
      %v1792 = vld [vmem:[%s1175 + $0xa4] sm:$0x1]
      %v1793 = vsel %vm1178, %v1612, %v1792
      %1794 = vst [vmem:[%s1175 + $0xa4] sm:$0x1] %v1793
      %v1795 = vld [vmem:[%s1175 + $0xa8] sm:$0xf]
      %v1796 = vsel %vm1696, %v1619, %v1795
      %1797 = vst [vmem:[%s1175 + $0xa8] sm:$0xf] %v1796
      %1798 = vst [vmem:[%s1175 + $0xac] sm:$0xf] %v1628
      %v1799 = vld [vmem:[%s1175 + $0xb0] sm:$0x1]
      %v1800 = vsel %vm1178, %v1629, %v1799
      %1801 = vst [vmem:[%s1175 + $0xb0] sm:$0x1] %v1800
      %v1802 = vld [vmem:[%s1175 + $0xb4] sm:$0xf]
      %v1803 = vsel %vm1696, %v1636, %v1802
      %1804 = vst [vmem:[%s1175 + $0xb4] sm:$0xf] %v1803
      %1805 = vst [vmem:[%s1175 + $0xb8] sm:$0xf] %v1645
      %v1806 = vld [vmem:[%s1175 + $0xbc] sm:$0x1]
      %v1807 = vsel %vm1178, %v1646, %v1806
      %1808 = vst [vmem:[%s1175 + $0xbc] sm:$0x1] %v1807
      %p1809 = scmp.lt.s32.totalorder %s18, 1
      %s1810 = scalar_select %p1809, %s18, 1
      %s1811 = smul.addr %s1810, 54
      %s1812 = smul.addr %s1811, 4
      %s1813 = scalar_lea.vmem %s7, %s1812
      // Predicated region
      $region49: #{mnist_cnn_forward.4} parent=47 // pred_check
        %p1814 = pneg %p188
      $region50: #{mnist_cnn_forward.4} parent=47 // pred_check_branch
        %1816 = sbr.rel (%p1814) target = $region52
      $region51: #{mnist_cnn_forward.4} parent=47 // pred_region
        _
      $region52: #{mnist_cnn_forward.4} parent=47 // pred_fallthru
        _
    $region48: #{mnist_cnn_forward.4} parent=5 // pred_fallthru
      _
    %p1817 = scmp.le.s32.totalorder 2, %s13
    // Predicated region
    $region53: #{mnist_cnn_forward.4} parent=5 // pred_check
      %p1818 = pneg %p1817
    $region54: #{mnist_cnn_forward.4} parent=5 // pred_check_branch
      %1820 = sbr.rel (%p1818) target = $region56
    $region55: #{mnist_cnn_forward.4} parent=5 // pred_region
      %s1821 = ssub.s32 %s13, 2
      // Predicated region
      $region57: #{mnist_cnn_forward.4} parent=55 // pred_check
        %p1822 = pneg %p194
      $region58: #{mnist_cnn_forward.4} parent=55 // pred_check_branch
        %1824 = sbr.rel (%p1822) target = $region60
      $region59: #{mnist_cnn_forward.4} parent=55 // pred_region
        %p1825 = scmp.lt.s32.totalorder %s19, 1
        %s1826 = scalar_select %p1825, %s19, 1
        %s1827 = smul.addr %s1826, 54
        %s1828 = smul.addr %s1827, 4
        %s1829 = scalar_lea.vmem %s7, %s1828
      $region60: #{mnist_cnn_forward.4} parent=55 // pred_fallthru
        _
    $region56: #{mnist_cnn_forward.4} parent=5 // pred_fallthru
      _
  $region6: #{mnist_cnn_forward.4} parent=0 // loop_footer
    %s17 = sadd.s32 1, %s13
  $region7: #{mnist_cnn_forward.4} parent=0 // loop_footer_branch
    %12 = sbr.rel target = $region3
  $region8: #{mnist_cnn_forward.4} parent=0 // loop_exit
    _

// kernel: mnist_cnn_forward.5
$region0: #{mnist_cnn_forward.5}
  #allocation0 [shape = 'u32[]', space=smem, size = 0x4, offset = 0x4, fixed_abs, tag = 'smem constant byte address 0x4 - core index']
  #allocation1 [shape = 'u32[144,128]{1,0:T(1,128)}', space=vmem, size = 0x12000, scoped, tag = 'internal scratch']
  #allocation2 [shape = 'bf16[64,1152]{1,0:T(16,128)(2,1)}', space=vmem, size = 0x24000, scoped, tag = 'scratch operand']
  %s0 = inlined_call_operand.vmem [shape: bf16[2,9,2,9,256], index: 0, kind: input, shape index: {}]
  %s1 = inlined_call_operand.vmem [shape: bf16[1152,128], index: 1, kind: input, shape index: {}]
  %s2 = inlined_call_operand.vmem [shape: f32[1,128], index: 2, kind: input, shape index: {}]
  %s3 = inlined_call_operand.vmem [shape: f32[1,128], index: 3, kind: input, shape index: {}]
  %s4 = inlined_call_operand.vmem [shape: f32[1,128], index: 4, kind: input, shape index: {}]
  %s5 = inlined_call_operand.vmem [shape: f32[8,128], index: 5, kind: input, shape index: {}]
  %s6 = inlined_call_operand.vmem [shape: f32[128,8], index: 6, kind: input, shape index: {}]
  %s7 = inlined_call_operand.vmem [shape: bf16[2,10,10,128], index: 7, kind: output, shape index: {}]
  %s8 = sld [smem:[#allocation0]]
  $region61: #{mnist_cnn_forward.5} parent=0
    _
  %s10 = ssub.s32 1, %s8
  %s11 = scalar_select 0, %s10, %s8
  loop: start=0, step=1, limit=4
  $region2: #{mnist_cnn_forward.5} parent=0 // loop_pre_header
    _
  $region3: #{mnist_cnn_forward.5} parent=0 // loop_header
    %s13 = sphi 0, %s17
    %p14 = scmp.ge.s32.totalorder %s13, 4
    %s23 = sphi 0, %s25
    %s26 = sphi 0, %s23
    %s27 = sphi 0, %s26
    %s43 = sphi 0, %s27
    %s47 = sphi 0, %s47
    %s49 = sphi 0, %s47
    %s50 = sphi 0, %s49
    %s64 = sphi 0, %s50
    %s68 = sphi 0, %s68
    %s70 = sphi 0, %s68
    %s71 = sphi 0, %s70
    %s85 = sphi 0, %s71
    %s89 = sphi 0, %s89
    %s91 = sphi 0, %s89
    %s92 = sphi 0, %s91
    %s106 = sphi 0, %s92
    %s110 = sphi 0, %s110
    %s112 = sphi 0, %s110
    %s113 = sphi 0, %s112
    %s127 = sphi 0, %s113
    %s131 = sphi 0, %s131
    %s133 = sphi 0, %s131
    %s134 = sphi 0, %s133
    %s148 = sphi 0, %s134
    %s152 = sphi 0, %s152
    %s154 = sphi 0, %s152
    %s155 = sphi 0, %s154
    %s169 = sphi 0, %s155
    %s175 = sphi 0, %s177
    %s178 = sphi 0, %s175
    %s179 = sphi 0, %s178
    %s195 = sphi 0, %s179
  $region4: #{mnist_cnn_forward.5} parent=0 // loop_header_branch
    %16 = sbr.rel (%p14) target = $region8
  $region5: #{mnist_cnn_forward.5} parent=0 // loop_body
    %s18 = ssub.s32 %s13, 1
    %s19 = ssub.s32 %s13, 2
    %s20 = sadd.s32 %s13, 1
    %s21 = ssub.s32 %s13, %s20
    %p22 = scmp.eq.s32.totalorder %s21, 0
    %s24 = sadd.s32 %s23, 1
    %s25 = scalar_select %p22, %s23, %s24
    %p28 = pneg %p22
    %p29 = scmp.eq.s32.totalorder %s13, 1
    %p30 = por %p28, %p29
    %p31 = scmp.ne.s32.totalorder %s23, %s26
    %p32 = scmp.eq.s32.totalorder %s13, 0
    %p33 = por %p31, %p32
    %p34 = scmp.ne.s32.totalorder %s23, %s26
    %p35 = scmp.eq.s32.totalorder %s18, 1
    %p36 = por %p34, %p35
    %p37 = scmp.ne.s32.totalorder %s26, %s27
    %p38 = scmp.eq.s32.totalorder %s18, 0
    %p39 = por %p37, %p38
    %p40 = scmp.ne.s32.totalorder %s26, %s27
    %p41 = scmp.eq.s32.totalorder %s19, 1
    %p42 = por %p40, %p41
    %p44 = scmp.ne.s32.totalorder %s27, %s43
    %p45 = scmp.eq.s32.totalorder %s19, 0
    %p46 = por %p44, %p45
    %s48 = sadd.s32 %s47, 1
    %p51 = scmp.eq.s32.totalorder %s13, 1
    %p52 = scmp.ne.s32.totalorder %s47, %s49
    %p53 = scmp.eq.s32.totalorder %s13, 0
    %p54 = por %p52, %p53
    %p55 = scmp.ne.s32.totalorder %s47, %s49
    %p56 = scmp.eq.s32.totalorder %s18, 1
    %p57 = por %p55, %p56
    %p58 = scmp.ne.s32.totalorder %s49, %s50
    %p59 = scmp.eq.s32.totalorder %s18, 0
    %p60 = por %p58, %p59
    %p61 = scmp.ne.s32.totalorder %s49, %s50
    %p62 = scmp.eq.s32.totalorder %s19, 1
    %p63 = por %p61, %p62
    %p65 = scmp.ne.s32.totalorder %s50, %s64
    %p66 = scmp.eq.s32.totalorder %s19, 0
    %p67 = por %p65, %p66
    %s69 = sadd.s32 %s68, 1
    %p72 = scmp.eq.s32.totalorder %s13, 1
    %p73 = scmp.ne.s32.totalorder %s68, %s70
    %p74 = scmp.eq.s32.totalorder %s13, 0
    %p75 = por %p73, %p74
    %p76 = scmp.ne.s32.totalorder %s68, %s70
    %p77 = scmp.eq.s32.totalorder %s18, 1
    %p78 = por %p76, %p77
    %p79 = scmp.ne.s32.totalorder %s70, %s71
    %p80 = scmp.eq.s32.totalorder %s18, 0
    %p81 = por %p79, %p80
    %p82 = scmp.ne.s32.totalorder %s70, %s71
    %p83 = scmp.eq.s32.totalorder %s19, 1
    %p84 = por %p82, %p83
    %p86 = scmp.ne.s32.totalorder %s71, %s85
    %p87 = scmp.eq.s32.totalorder %s19, 0
    %p88 = por %p86, %p87
    %s90 = sadd.s32 %s89, 1
    %p93 = scmp.eq.s32.totalorder %s13, 1
    %p94 = scmp.ne.s32.totalorder %s89, %s91
    %p95 = scmp.eq.s32.totalorder %s13, 0
    %p96 = por %p94, %p95
    %p97 = scmp.ne.s32.totalorder %s89, %s91
    %p98 = scmp.eq.s32.totalorder %s18, 1
    %p99 = por %p97, %p98
    %p100 = scmp.ne.s32.totalorder %s91, %s92
    %p101 = scmp.eq.s32.totalorder %s18, 0
    %p102 = por %p100, %p101
    %p103 = scmp.ne.s32.totalorder %s91, %s92
    %p104 = scmp.eq.s32.totalorder %s19, 1
    %p105 = por %p103, %p104
    %p107 = scmp.ne.s32.totalorder %s92, %s106
    %p108 = scmp.eq.s32.totalorder %s19, 0
    %p109 = por %p107, %p108
    %s111 = sadd.s32 %s110, 1
    %p114 = scmp.eq.s32.totalorder %s13, 1
    %p115 = scmp.ne.s32.totalorder %s110, %s112
    %p116 = scmp.eq.s32.totalorder %s13, 0
    %p117 = por %p115, %p116
    %p118 = scmp.ne.s32.totalorder %s110, %s112
    %p119 = scmp.eq.s32.totalorder %s18, 1
    %p120 = por %p118, %p119
    %p121 = scmp.ne.s32.totalorder %s112, %s113
    %p122 = scmp.eq.s32.totalorder %s18, 0
    %p123 = por %p121, %p122
    %p124 = scmp.ne.s32.totalorder %s112, %s113
    %p125 = scmp.eq.s32.totalorder %s19, 1
    %p126 = por %p124, %p125
    %p128 = scmp.ne.s32.totalorder %s113, %s127
    %p129 = scmp.eq.s32.totalorder %s19, 0
    %p130 = por %p128, %p129
    %s132 = sadd.s32 %s131, 1
    %p135 = scmp.eq.s32.totalorder %s13, 1
    %p136 = scmp.ne.s32.totalorder %s131, %s133
    %p137 = scmp.eq.s32.totalorder %s13, 0
    %p138 = por %p136, %p137
    %p139 = scmp.ne.s32.totalorder %s131, %s133
    %p140 = scmp.eq.s32.totalorder %s18, 1
    %p141 = por %p139, %p140
    %p142 = scmp.ne.s32.totalorder %s133, %s134
    %p143 = scmp.eq.s32.totalorder %s18, 0
    %p144 = por %p142, %p143
    %p145 = scmp.ne.s32.totalorder %s133, %s134
    %p146 = scmp.eq.s32.totalorder %s19, 1
    %p147 = por %p145, %p146
    %p149 = scmp.ne.s32.totalorder %s134, %s148
    %p150 = scmp.eq.s32.totalorder %s19, 0
    %p151 = por %p149, %p150
    %s153 = sadd.s32 %s152, 1
    %p156 = scmp.eq.s32.totalorder %s13, 1
    %p157 = scmp.ne.s32.totalorder %s152, %s154
    %p158 = scmp.eq.s32.totalorder %s13, 0
    %p159 = por %p157, %p158
    %p160 = scmp.ne.s32.totalorder %s152, %s154
    %p161 = scmp.eq.s32.totalorder %s18, 1
    %p162 = por %p160, %p161
    %p163 = scmp.ne.s32.totalorder %s154, %s155
    %p164 = scmp.eq.s32.totalorder %s18, 0
    %p165 = por %p163, %p164
    %p166 = scmp.ne.s32.totalorder %s154, %s155
    %p167 = scmp.eq.s32.totalorder %s19, 1
    %p168 = por %p166, %p167
    %p170 = scmp.ne.s32.totalorder %s155, %s169
    %p171 = scmp.eq.s32.totalorder %s19, 0
    %p172 = por %p170, %p171
    %s173 = ssub.s32 %s13, %s20
    %p174 = scmp.eq.s32.totalorder %s173, 0
    %s176 = sadd.s32 %s175, 1
    %s177 = scalar_select %p174, %s175, %s176
    %p180 = pneg %p174
    %p181 = scmp.eq.s32.totalorder %s13, 1
    %p182 = por %p180, %p181
    %p183 = scmp.ne.s32.totalorder %s175, %s178
    %p184 = scmp.eq.s32.totalorder %s13, 0
    %p185 = por %p183, %p184
    %p186 = scmp.ne.s32.totalorder %s175, %s178
    %p187 = scmp.eq.s32.totalorder %s18, 1
    %p188 = por %p186, %p187
    %p189 = scmp.ne.s32.totalorder %s178, %s179
    %p190 = scmp.eq.s32.totalorder %s18, 0
    %p191 = por %p189, %p190
    %p192 = scmp.ne.s32.totalorder %s178, %s179
    %p193 = scmp.eq.s32.totalorder %s19, 1
    %p194 = por %p192, %p193
    %p196 = scmp.ne.s32.totalorder %s179, %s195
    %p197 = scmp.eq.s32.totalorder %s19, 0
    %p198 = por %p196, %p197
    %p199 = scmp.le.s32.totalorder 1, %s13
    %p200 = scmp.lt.s32.totalorder %s13, 3
    %p201 = pnand %p199, %p200
    %p202 = pneg %p201
    // Predicated region
    $region9: #{mnist_cnn_forward.5} parent=5 // pred_check
      _
    $region10: #{mnist_cnn_forward.5} parent=5 // pred_check_branch
      %204 = sbr.rel (%p201) target = $region12
    $region11: #{mnist_cnn_forward.5} parent=5 // pred_region
      %s205 = ssub.s32 %s13, 1
      // Predicated region
      $region13: #{mnist_cnn_forward.5} parent=11 // pred_check
        %p206 = pneg %p60
      $region14: #{mnist_cnn_forward.5} parent=11 // pred_check_branch
        %208 = sbr.rel (%p206) target = $region16
      $region15: #{mnist_cnn_forward.5} parent=11 // pred_region
        _
      $region16: #{mnist_cnn_forward.5} parent=11 // pred_fallthru
        _
      // Predicated region
      $region17: #{mnist_cnn_forward.5} parent=11 // pred_check
        %p209 = pneg %p81
      $region18: #{mnist_cnn_forward.5} parent=11 // pred_check_branch
        %211 = sbr.rel (%p209) target = $region20
      $region19: #{mnist_cnn_forward.5} parent=11 // pred_region
        _
      $region20: #{mnist_cnn_forward.5} parent=11 // pred_fallthru
        _
      // Predicated region
      $region21: #{mnist_cnn_forward.5} parent=11 // pred_check
        %p212 = pneg %p102
      $region22: #{mnist_cnn_forward.5} parent=11 // pred_check_branch
        %214 = sbr.rel (%p212) target = $region24
      $region23: #{mnist_cnn_forward.5} parent=11 // pred_region
        _
      $region24: #{mnist_cnn_forward.5} parent=11 // pred_fallthru
        _
      // Predicated region
      $region25: #{mnist_cnn_forward.5} parent=11 // pred_check
        %p215 = pneg %p123
      $region26: #{mnist_cnn_forward.5} parent=11 // pred_check_branch
        %217 = sbr.rel (%p215) target = $region28
      $region27: #{mnist_cnn_forward.5} parent=11 // pred_region
        _
      $region28: #{mnist_cnn_forward.5} parent=11 // pred_fallthru
        _
      // Predicated region
      $region29: #{mnist_cnn_forward.5} parent=11 // pred_check
        %p218 = pneg %p144
      $region30: #{mnist_cnn_forward.5} parent=11 // pred_check_branch
        %220 = sbr.rel (%p218) target = $region32
      $region31: #{mnist_cnn_forward.5} parent=11 // pred_region
        _
      $region32: #{mnist_cnn_forward.5} parent=11 // pred_fallthru
        _
      // Predicated region
      $region33: #{mnist_cnn_forward.5} parent=11 // pred_check
        %p221 = pneg %p165
      $region34: #{mnist_cnn_forward.5} parent=11 // pred_check_branch
        %223 = sbr.rel (%p221) target = $region36
      $region35: #{mnist_cnn_forward.5} parent=11 // pred_region
        _
      $region36: #{mnist_cnn_forward.5} parent=11 // pred_fallthru
        _
    $region12: #{mnist_cnn_forward.5} parent=5 // pred_fallthru
      _
    %p224 = scmp.lt.s32.totalorder %s13, 2
    // Predicated region
    $region37: #{mnist_cnn_forward.5} parent=5 // pred_check
      %p225 = pneg %p224
    $region38: #{mnist_cnn_forward.5} parent=5 // pred_check_branch
      %227 = sbr.rel (%p225) target = $region40
    $region39: #{mnist_cnn_forward.5} parent=5 // pred_region
      // Predicated region
      $region41: #{mnist_cnn_forward.5} parent=39 // pred_check
        %p228 = pneg %p33
      $region42: #{mnist_cnn_forward.5} parent=39 // pred_check_branch
        %230 = sbr.rel (%p228) target = $region44
      $region43: #{mnist_cnn_forward.5} parent=39 // pred_region
        %p231 = scmp.lt.s32.totalorder %s13, 1
        %s232 = scalar_select %p231, %s13, 1
        %s233 = smul.addr %s232, 72
        %s234 = smul.addr %s233, 4
        %s235 = scalar_lea.vmem %s0, %s234
      $region44: #{mnist_cnn_forward.5} parent=39 // pred_fallthru
        _
    $region40: #{mnist_cnn_forward.5} parent=5 // pred_fallthru
      _
    %p236 = scmp.le.s32.totalorder 1, %s13
    %p237 = scmp.lt.s32.totalorder %s13, 3
    %p238 = pnand %p236, %p237
    %p239 = pneg %p238
    // Predicated region
    $region45: #{mnist_cnn_forward.5} parent=5 // pred_check
      _
    $region46: #{mnist_cnn_forward.5} parent=5 // pred_check_branch
      %241 = sbr.rel (%p238) target = $region48
    $region47: #{mnist_cnn_forward.5} parent=5 // pred_region
      %s242 = ssub.s32 %s13, 1
      %p243 = scmp.lt.s32.totalorder %s18, 1
      %s244 = scalar_select %p243, %s18, 1
      %s245 = smul.addr %s244, 72
      %s246 = smul.addr %s245, 4
      %s247 = scalar_lea.vmem %s0, %s246
      %p248 = pneg %p39
      %p249 = pneg %p36
      %p250 = pneg %p60
      %p251 = pneg %p57
      %p252 = pneg %p81
      %p253 = pneg %p78
      %p254 = pneg %p102
      %p255 = pneg %p99
      %p256 = pneg %p123
      %p257 = pneg %p120
      %p258 = pneg %p144
      %p259 = pneg %p141
      %p260 = pneg %p165
      %p261 = pneg %p162
      %p262 = pneg %p191
      %p263 = pneg %p188
      %p264 = scmp.lt.s32.totalorder %s18, 1
      %s265 = scalar_select %p264, %s18, 1
      %s266 = smul.addr %s265, 20
      %s267 = smul.addr %s266, 4
      %s268 = scalar_lea.vmem %s7, %s267
      %p269 = scmp.lt.s32.totalorder %s18, 1
      %s270 = scalar_select %p269, %s18, 1
      %s271 = smul.addr %s270, 72
      %s272 = smul.addr %s271, 4
      %s273 = scalar_lea.vmem %s0, %s272
      %p274 = scmp.lt.s32.totalorder %s18, 1
      %s275 = scalar_select %p274, %s18, 1
      %s276 = smul.addr %s275, 20
      %s277 = smul.addr %s276, 4
      %s278 = scalar_lea.vmem %s7, %s277
      %v280 = vld [vmem:[%s273] sm:$0xf]
      %v281 = vld [vmem:[%s273 + $0x20] sm:$0xf]
      %v282 = vld [vmem:[%s273 + $0x40] sm:$0xf]
      %v283 = vld [vmem:[%s273 + $0x60] sm:$0xf]
      %v284 = vld [vmem:[%s273 + $0x80] sm:$0xf]
      %v285 = vld [vmem:[%s273 + $0xa0] sm:$0xf]
      %v286 = vld [vmem:[%s273 + $0xc0] sm:$0xf]
      %v287 = vld [vmem:[%s273 + $0xe0] sm:$0xf]
      %v296 = vunpack.c.l.b16 %v280
      %v297 = vunpack.c.l.b16 %v281
      %v298 = vunpack.c.l.b16 %v282
      %v299 = vunpack.c.l.b16 %v283
      %v300 = vunpack.c.l.b16 %v284
      %v301 = vunpack.c.l.b16 %v285
      %v302 = vunpack.c.l.b16 %v286
      %v303 = vunpack.c.l.b16 %v287
      %v304 = vpack.c.b16 %v297, %v296
      %v305 = vpack.c.b16 %v299, %v298
      %v306 = vpack.c.b16 %v301, %v300
      %v307 = vpack.c.b16 %v303, %v302
      %312 = vst [vmem:[#allocation2] sm:$0xff] %v304
      %313 = vst [vmem:[#allocation2 + $0x48] sm:$0xff] %v305
      %314 = vst [vmem:[#allocation2 + $0x90] sm:$0xff] %v306
      %315 = vst [vmem:[#allocation2 + $0xd8] sm:$0xff] %v307
      %v316 = vld [vmem:[%s273 + $0x4] sm:$0xf]
      %v317 = vld [vmem:[%s273 + $0x24] sm:$0xf]
      %v318 = vld [vmem:[%s273 + $0x44] sm:$0xf]
      %v319 = vld [vmem:[%s273 + $0x64] sm:$0xf]
      %v320 = vld [vmem:[%s273 + $0x84] sm:$0xf]
      %v321 = vld [vmem:[%s273 + $0xa4] sm:$0xf]
      %v322 = vld [vmem:[%s273 + $0xc4] sm:$0xf]
      %v323 = vld [vmem:[%s273 + $0xe4] sm:$0xf]
      %v332 = vunpack.c.l.b16 %v316
      %v333 = vunpack.c.l.b16 %v317
      %v334 = vunpack.c.l.b16 %v318
      %v335 = vunpack.c.l.b16 %v319
      %v336 = vunpack.c.l.b16 %v320
      %v337 = vunpack.c.l.b16 %v321
      %v338 = vunpack.c.l.b16 %v322
      %v339 = vunpack.c.l.b16 %v323
      %v340 = vpack.c.b16 %v333, %v332
      %v341 = vpack.c.b16 %v335, %v334
      %v342 = vpack.c.b16 %v337, %v336
      %v343 = vpack.c.b16 %v339, %v338
      %348 = vst [vmem:[#allocation2 + $0x8] sm:$0xff] %v340
      %349 = vst [vmem:[#allocation2 + $0x50] sm:$0xff] %v341
      %350 = vst [vmem:[#allocation2 + $0x98] sm:$0xff] %v342
      %351 = vst [vmem:[#allocation2 + $0xe0] sm:$0xff] %v343
      %v352 = vld [vmem:[%s273] sm:$0xf]
      %v353 = vld [vmem:[%s273 + $0x8] sm:$0x1]
      %v354 = vld [vmem:[%s273 + $0x20] sm:$0xf]
      %v355 = vld [vmem:[%s273 + $0x28] sm:$0x1]
      %v356 = vld [vmem:[%s273 + $0x40] sm:$0xf]
      %v357 = vld [vmem:[%s273 + $0x48] sm:$0x1]
      %v358 = vld [vmem:[%s273 + $0x60] sm:$0xf]
      %v359 = vld [vmem:[%s273 + $0x68] sm:$0x1]
      %v360 = vld [vmem:[%s273 + $0x80] sm:$0xf]
      %v361 = vld [vmem:[%s273 + $0x88] sm:$0x1]
      %v362 = vld [vmem:[%s273 + $0xa0] sm:$0xf]
      %v363 = vld [vmem:[%s273 + $0xa8] sm:$0x1]
      %v364 = vld [vmem:[%s273 + $0xc0] sm:$0xf]
      %v365 = vld [vmem:[%s273 + $0xc8] sm:$0x1]
      %v366 = vld [vmem:[%s273 + $0xe0] sm:$0xf]
      %v367 = vld [vmem:[%s273 + $0xe8] sm:$0x1]
      %vm368 = vsmask.f32 3328
      %vm369 = vsmask.f32 7440
      %vm370 = vmor %vm368, %vm369
      %v372 = vshrl.u32 %v352, 16
      %v374 = vrot.slane %v372, 4
      %v375 = vshll.u32 %v352, 16
      %v377 = vrot.slane %v375, 5
      %v378 = vor.u32 %v374, %v377
      %v379 = vrot.slane %v378, 4
      %v381 = vshll.u32 %v353, 16
      %v383 = vrot.slane %v381, 5
      %v384 = vsel %vm370, %v379, %v383
      %v386 = vshrl.u32 %v354, 16
      %v388 = vrot.slane %v386, 4
      %v389 = vshll.u32 %v354, 16
      %v391 = vrot.slane %v389, 5
      %v392 = vor.u32 %v388, %v391
      %v393 = vrot.slane %v392, 4
      %v395 = vshll.u32 %v355, 16
      %v397 = vrot.slane %v395, 5
      %v398 = vsel %vm370, %v393, %v397
      %v400 = vshrl.u32 %v356, 16
      %v402 = vrot.slane %v400, 4
      %v403 = vshll.u32 %v356, 16
      %v405 = vrot.slane %v403, 5
      %v406 = vor.u32 %v402, %v405
      %v407 = vrot.slane %v406, 4
      %v409 = vshll.u32 %v357, 16
      %v411 = vrot.slane %v409, 5
      %v412 = vsel %vm370, %v407, %v411
      %v414 = vshrl.u32 %v358, 16
      %v416 = vrot.slane %v414, 4
      %v417 = vshll.u32 %v358, 16
      %v419 = vrot.slane %v417, 5
      %v420 = vor.u32 %v416, %v419
      %v421 = vrot.slane %v420, 4
      %v423 = vshll.u32 %v359, 16
      %v425 = vrot.slane %v423, 5
      %v426 = vsel %vm370, %v421, %v425
      %v428 = vshrl.u32 %v360, 16
      %v430 = vrot.slane %v428, 4
      %v431 = vshll.u32 %v360, 16
      %v433 = vrot.slane %v431, 5
      %v434 = vor.u32 %v430, %v433
      %v435 = vrot.slane %v434, 4
      %v437 = vshll.u32 %v361, 16
      %v439 = vrot.slane %v437, 5
      %v440 = vsel %vm370, %v435, %v439
      %v442 = vshrl.u32 %v362, 16
      %v444 = vrot.slane %v442, 4
      %v445 = vshll.u32 %v362, 16
      %v447 = vrot.slane %v445, 5
      %v448 = vor.u32 %v444, %v447
      %v449 = vrot.slane %v448, 4
      %v451 = vshll.u32 %v363, 16
      %v453 = vrot.slane %v451, 5
      %v454 = vsel %vm370, %v449, %v453
      %v456 = vshrl.u32 %v364, 16
      %v458 = vrot.slane %v456, 4
      %v459 = vshll.u32 %v364, 16
      %v461 = vrot.slane %v459, 5
      %v462 = vor.u32 %v458, %v461
      %v463 = vrot.slane %v462, 4
      %v465 = vshll.u32 %v365, 16
      %v467 = vrot.slane %v465, 5
      %v468 = vsel %vm370, %v463, %v467
      %v470 = vshrl.u32 %v366, 16
      %v472 = vrot.slane %v470, 4
      %v473 = vshll.u32 %v366, 16
      %v475 = vrot.slane %v473, 5
      %v476 = vor.u32 %v472, %v475
      %v477 = vrot.slane %v476, 4
      %v479 = vshll.u32 %v367, 16
      %v481 = vrot.slane %v479, 5
      %v482 = vsel %vm370, %v477, %v481
      %v483 = vunpack.c.l.b16 %v384
      %v484 = vunpack.c.l.b16 %v398
      %v485 = vunpack.c.l.b16 %v412
      %v486 = vunpack.c.l.b16 %v426
      %v487 = vunpack.c.l.b16 %v440
      %v488 = vunpack.c.l.b16 %v454
      %v489 = vunpack.c.l.b16 %v468
      %v490 = vunpack.c.l.b16 %v482
      %v491 = vpack.c.b16 %v484, %v483
      %v492 = vpack.c.b16 %v486, %v485
      %v493 = vpack.c.b16 %v488, %v487
      %v494 = vpack.c.b16 %v490, %v489
      %499 = vst [vmem:[#allocation2 + $0x10] sm:$0xff] %v491
      %500 = vst [vmem:[#allocation2 + $0x58] sm:$0xff] %v492
      %501 = vst [vmem:[#allocation2 + $0xa0] sm:$0xff] %v493
      %502 = vst [vmem:[#allocation2 + $0xe8] sm:$0xff] %v494
      %s503 = scalar_lea.vmem %s273, 16
      %v504 = vld [vmem:[%s503] sm:$0xf]
      %v505 = vld [vmem:[%s503 + $0x20] sm:$0xf]
      %v506 = vld [vmem:[%s503 + $0x40] sm:$0xf]
      %v507 = vld [vmem:[%s503 + $0x60] sm:$0xf]
      %v508 = vld [vmem:[%s503 + $0x80] sm:$0xf]
      %v509 = vld [vmem:[%s503 + $0xa0] sm:$0xf]
      %v510 = vld [vmem:[%s503 + $0xc0] sm:$0xf]
      %v511 = vld [vmem:[%s503 + $0xe0] sm:$0xf]
      %v520 = vunpack.c.l.b16 %v504
      %v521 = vunpack.c.l.b16 %v505
      %v522 = vunpack.c.l.b16 %v506
      %v523 = vunpack.c.l.b16 %v507
      %v524 = vunpack.c.l.b16 %v508
      %v525 = vunpack.c.l.b16 %v509
      %v526 = vunpack.c.l.b16 %v510
      %v527 = vunpack.c.l.b16 %v511
      %v528 = vpack.c.b16 %v521, %v520
      %v529 = vpack.c.b16 %v523, %v522
      %v530 = vpack.c.b16 %v525, %v524
      %v531 = vpack.c.b16 %v527, %v526
      %536 = vst [vmem:[#allocation2 + $0x18] sm:$0xff] %v528
      %537 = vst [vmem:[#allocation2 + $0x60] sm:$0xff] %v529
      %538 = vst [vmem:[#allocation2 + $0xa8] sm:$0xff] %v530
      %539 = vst [vmem:[#allocation2 + $0xf0] sm:$0xff] %v531
      %v540 = vld [vmem:[%s503 + $0x4] sm:$0xf]
      %v541 = vld [vmem:[%s503 + $0x24] sm:$0xf]
      %v542 = vld [vmem:[%s503 + $0x44] sm:$0xf]
      %v543 = vld [vmem:[%s503 + $0x64] sm:$0xf]
      %v544 = vld [vmem:[%s503 + $0x84] sm:$0xf]
      %v545 = vld [vmem:[%s503 + $0xa4] sm:$0xf]
      %v546 = vld [vmem:[%s503 + $0xc4] sm:$0xf]
      %v547 = vld [vmem:[%s503 + $0xe4] sm:$0xf]
      %v556 = vunpack.c.l.b16 %v540
      %v557 = vunpack.c.l.b16 %v541
      %v558 = vunpack.c.l.b16 %v542
      %v559 = vunpack.c.l.b16 %v543
      %v560 = vunpack.c.l.b16 %v544
      %v561 = vunpack.c.l.b16 %v545
      %v562 = vunpack.c.l.b16 %v546
      %v563 = vunpack.c.l.b16 %v547
      %v564 = vpack.c.b16 %v557, %v556
      %v565 = vpack.c.b16 %v559, %v558
      %v566 = vpack.c.b16 %v561, %v560
      %v567 = vpack.c.b16 %v563, %v562
      %572 = vst [vmem:[#allocation2 + $0x20] sm:$0xff] %v564
      %573 = vst [vmem:[#allocation2 + $0x68] sm:$0xff] %v565
      %574 = vst [vmem:[#allocation2 + $0xb0] sm:$0xff] %v566
      %575 = vst [vmem:[#allocation2 + $0xf8] sm:$0xff] %v567
      %v576 = vld [vmem:[%s503] sm:$0xf]
      %v577 = vld [vmem:[%s503 + $0x8] sm:$0x1]
      %v578 = vld [vmem:[%s503 + $0x20] sm:$0xf]
      %v579 = vld [vmem:[%s503 + $0x28] sm:$0x1]
      %v580 = vld [vmem:[%s503 + $0x40] sm:$0xf]
      %v581 = vld [vmem:[%s503 + $0x48] sm:$0x1]
      %v582 = vld [vmem:[%s503 + $0x60] sm:$0xf]
      %v583 = vld [vmem:[%s503 + $0x68] sm:$0x1]
      %v584 = vld [vmem:[%s503 + $0x80] sm:$0xf]
      %v585 = vld [vmem:[%s503 + $0x88] sm:$0x1]
      %v586 = vld [vmem:[%s503 + $0xa0] sm:$0xf]
      %v587 = vld [vmem:[%s503 + $0xa8] sm:$0x1]
      %v588 = vld [vmem:[%s503 + $0xc0] sm:$0xf]
      %v589 = vld [vmem:[%s503 + $0xc8] sm:$0x1]
      %v590 = vld [vmem:[%s503 + $0xe0] sm:$0xf]
      %v591 = vld [vmem:[%s503 + $0xe8] sm:$0x1]
      %v593 = vshrl.u32 %v576, 16
      %v595 = vrot.slane %v593, 4
      %v596 = vshll.u32 %v576, 16
      %v598 = vrot.slane %v596, 5
      %v599 = vor.u32 %v595, %v598
      %v600 = vrot.slane %v599, 4
      %v602 = vshll.u32 %v577, 16
      %v604 = vrot.slane %v602, 5
      %v605 = vsel %vm370, %v600, %v604
      %v607 = vshrl.u32 %v578, 16
      %v609 = vrot.slane %v607, 4
      %v610 = vshll.u32 %v578, 16
      %v612 = vrot.slane %v610, 5
      %v613 = vor.u32 %v609, %v612
      %v614 = vrot.slane %v613, 4
      %v616 = vshll.u32 %v579, 16
      %v618 = vrot.slane %v616, 5
      %v619 = vsel %vm370, %v614, %v618
      %v621 = vshrl.u32 %v580, 16
      %v623 = vrot.slane %v621, 4
      %v624 = vshll.u32 %v580, 16
      %v626 = vrot.slane %v624, 5
      %v627 = vor.u32 %v623, %v626
      %v628 = vrot.slane %v627, 4
      %v630 = vshll.u32 %v581, 16
      %v632 = vrot.slane %v630, 5
      %v633 = vsel %vm370, %v628, %v632
      %v635 = vshrl.u32 %v582, 16
      %v637 = vrot.slane %v635, 4
      %v638 = vshll.u32 %v582, 16
      %v640 = vrot.slane %v638, 5
      %v641 = vor.u32 %v637, %v640
      %v642 = vrot.slane %v641, 4
      %v644 = vshll.u32 %v583, 16
      %v646 = vrot.slane %v644, 5
      %v647 = vsel %vm370, %v642, %v646
      %v649 = vshrl.u32 %v584, 16
      %v651 = vrot.slane %v649, 4
      %v652 = vshll.u32 %v584, 16
      %v654 = vrot.slane %v652, 5
      %v655 = vor.u32 %v651, %v654
      %v656 = vrot.slane %v655, 4
      %v658 = vshll.u32 %v585, 16
      %v660 = vrot.slane %v658, 5
      %v661 = vsel %vm370, %v656, %v660
      %v663 = vshrl.u32 %v586, 16
      %v665 = vrot.slane %v663, 4
      %v666 = vshll.u32 %v586, 16
      %v668 = vrot.slane %v666, 5
      %v669 = vor.u32 %v665, %v668
      %v670 = vrot.slane %v669, 4
      %v672 = vshll.u32 %v587, 16
      %v674 = vrot.slane %v672, 5
      %v675 = vsel %vm370, %v670, %v674
      %v677 = vshrl.u32 %v588, 16
      %v679 = vrot.slane %v677, 4
      %v680 = vshll.u32 %v588, 16
      %v682 = vrot.slane %v680, 5
      %v683 = vor.u32 %v679, %v682
      %v684 = vrot.slane %v683, 4
      %v686 = vshll.u32 %v589, 16
      %v688 = vrot.slane %v686, 5
      %v689 = vsel %vm370, %v684, %v688
      %v691 = vshrl.u32 %v590, 16
      %v693 = vrot.slane %v691, 4
      %v694 = vshll.u32 %v590, 16
      %v696 = vrot.slane %v694, 5
      %v697 = vor.u32 %v693, %v696
      %v698 = vrot.slane %v697, 4
      %v700 = vshll.u32 %v591, 16
      %v702 = vrot.slane %v700, 5
      %v703 = vsel %vm370, %v698, %v702
      %v704 = vunpack.c.l.b16 %v605
      %v705 = vunpack.c.l.b16 %v619
      %v706 = vunpack.c.l.b16 %v633
      %v707 = vunpack.c.l.b16 %v647
      %v708 = vunpack.c.l.b16 %v661
      %v709 = vunpack.c.l.b16 %v675
      %v710 = vunpack.c.l.b16 %v689
      %v711 = vunpack.c.l.b16 %v703
      %v712 = vpack.c.b16 %v705, %v704
      %v713 = vpack.c.b16 %v707, %v706
      %v714 = vpack.c.b16 %v709, %v708
      %v715 = vpack.c.b16 %v711, %v710
      %720 = vst [vmem:[#allocation2 + $0x28] sm:$0xff] %v712
      %721 = vst [vmem:[#allocation2 + $0x70] sm:$0xff] %v713
      %722 = vst [vmem:[#allocation2 + $0xb8] sm:$0xff] %v714
      %723 = vst [vmem:[#allocation2 + $0x100] sm:$0xff] %v715
      %s724 = scalar_lea.vmem %s273, 32
      %v725 = vld [vmem:[%s724] sm:$0xf]
      %v726 = vld [vmem:[%s724 + $0x20] sm:$0xf]
      %v727 = vld [vmem:[%s724 + $0x40] sm:$0xf]
      %v728 = vld [vmem:[%s724 + $0x60] sm:$0xf]
      %v729 = vld [vmem:[%s724 + $0x80] sm:$0xf]
      %v730 = vld [vmem:[%s724 + $0xa0] sm:$0xf]
      %v731 = vld [vmem:[%s724 + $0xc0] sm:$0xf]
      %v732 = vld [vmem:[%s724 + $0xe0] sm:$0xf]
      %v741 = vunpack.c.l.b16 %v725
      %v742 = vunpack.c.l.b16 %v726
      %v743 = vunpack.c.l.b16 %v727
      %v744 = vunpack.c.l.b16 %v728
      %v745 = vunpack.c.l.b16 %v729
      %v746 = vunpack.c.l.b16 %v730
      %v747 = vunpack.c.l.b16 %v731
      %v748 = vunpack.c.l.b16 %v732
      %v749 = vpack.c.b16 %v742, %v741
      %v750 = vpack.c.b16 %v744, %v743
      %v751 = vpack.c.b16 %v746, %v745
      %v752 = vpack.c.b16 %v748, %v747
      %757 = vst [vmem:[#allocation2 + $0x30] sm:$0xff] %v749
      %758 = vst [vmem:[#allocation2 + $0x78] sm:$0xff] %v750
      %759 = vst [vmem:[#allocation2 + $0xc0] sm:$0xff] %v751
      %760 = vst [vmem:[#allocation2 + $0x108] sm:$0xff] %v752
      %v761 = vld [vmem:[%s724 + $0x4] sm:$0xf]
      %v762 = vld [vmem:[%s724 + $0x24] sm:$0xf]
      %v763 = vld [vmem:[%s724 + $0x44] sm:$0xf]
      %v764 = vld [vmem:[%s724 + $0x64] sm:$0xf]
      %v765 = vld [vmem:[%s724 + $0x84] sm:$0xf]
      %v766 = vld [vmem:[%s724 + $0xa4] sm:$0xf]
      %v767 = vld [vmem:[%s724 + $0xc4] sm:$0xf]
      %v768 = vld [vmem:[%s724 + $0xe4] sm:$0xf]
      %v777 = vunpack.c.l.b16 %v761
      %v778 = vunpack.c.l.b16 %v762
      %v779 = vunpack.c.l.b16 %v763
      %v780 = vunpack.c.l.b16 %v764
      %v781 = vunpack.c.l.b16 %v765
      %v782 = vunpack.c.l.b16 %v766
      %v783 = vunpack.c.l.b16 %v767
      %v784 = vunpack.c.l.b16 %v768
      %v785 = vpack.c.b16 %v778, %v777
      %v786 = vpack.c.b16 %v780, %v779
      %v787 = vpack.c.b16 %v782, %v781
      %v788 = vpack.c.b16 %v784, %v783
      %793 = vst [vmem:[#allocation2 + $0x38] sm:$0xff] %v785
      %794 = vst [vmem:[#allocation2 + $0x80] sm:$0xff] %v786
      %795 = vst [vmem:[#allocation2 + $0xc8] sm:$0xff] %v787
      %796 = vst [vmem:[#allocation2 + $0x110] sm:$0xff] %v788
      %v797 = vld [vmem:[%s724] sm:$0xf]
      %v798 = vld [vmem:[%s724 + $0x8] sm:$0x1]
      %v799 = vld [vmem:[%s724 + $0x20] sm:$0xf]
      %v800 = vld [vmem:[%s724 + $0x28] sm:$0x1]
      %v801 = vld [vmem:[%s724 + $0x40] sm:$0xf]
      %v802 = vld [vmem:[%s724 + $0x48] sm:$0x1]
      %v803 = vld [vmem:[%s724 + $0x60] sm:$0xf]
      %v804 = vld [vmem:[%s724 + $0x68] sm:$0x1]
      %v805 = vld [vmem:[%s724 + $0x80] sm:$0xf]
      %v806 = vld [vmem:[%s724 + $0x88] sm:$0x1]
      %v807 = vld [vmem:[%s724 + $0xa0] sm:$0xf]
      %v808 = vld [vmem:[%s724 + $0xa8] sm:$0x1]
      %v809 = vld [vmem:[%s724 + $0xc0] sm:$0xf]
      %v810 = vld [vmem:[%s724 + $0xc8] sm:$0x1]
      %v811 = vld [vmem:[%s724 + $0xe0] sm:$0xf]
      %v812 = vld [vmem:[%s724 + $0xe8] sm:$0x1]
      %v814 = vshrl.u32 %v797, 16
      %v816 = vrot.slane %v814, 4
      %v817 = vshll.u32 %v797, 16
      %v819 = vrot.slane %v817, 5
      %v820 = vor.u32 %v816, %v819
      %v821 = vrot.slane %v820, 4
      %v823 = vshll.u32 %v798, 16
      %v825 = vrot.slane %v823, 5
      %v826 = vsel %vm370, %v821, %v825
      %v828 = vshrl.u32 %v799, 16
      %v830 = vrot.slane %v828, 4
      %v831 = vshll.u32 %v799, 16
      %v833 = vrot.slane %v831, 5
      %v834 = vor.u32 %v830, %v833
      %v835 = vrot.slane %v834, 4
      %v837 = vshll.u32 %v800, 16
      %v839 = vrot.slane %v837, 5
      %v840 = vsel %vm370, %v835, %v839
      %v842 = vshrl.u32 %v801, 16
      %v844 = vrot.slane %v842, 4
      %v845 = vshll.u32 %v801, 16
      %v847 = vrot.slane %v845, 5
      %v848 = vor.u32 %v844, %v847
      %v849 = vrot.slane %v848, 4
      %v851 = vshll.u32 %v802, 16
      %v853 = vrot.slane %v851, 5
      %v854 = vsel %vm370, %v849, %v853
      %v856 = vshrl.u32 %v803, 16
      %v858 = vrot.slane %v856, 4
      %v859 = vshll.u32 %v803, 16
      %v861 = vrot.slane %v859, 5
      %v862 = vor.u32 %v858, %v861
      %v863 = vrot.slane %v862, 4
      %v865 = vshll.u32 %v804, 16
      %v867 = vrot.slane %v865, 5
      %v868 = vsel %vm370, %v863, %v867
      %v870 = vshrl.u32 %v805, 16
      %v872 = vrot.slane %v870, 4
      %v873 = vshll.u32 %v805, 16
      %v875 = vrot.slane %v873, 5
      %v876 = vor.u32 %v872, %v875
      %v877 = vrot.slane %v876, 4
      %v879 = vshll.u32 %v806, 16
      %v881 = vrot.slane %v879, 5
      %v882 = vsel %vm370, %v877, %v881
      %v884 = vshrl.u32 %v807, 16
      %v886 = vrot.slane %v884, 4
      %v887 = vshll.u32 %v807, 16
      %v889 = vrot.slane %v887, 5
      %v890 = vor.u32 %v886, %v889
      %v891 = vrot.slane %v890, 4
      %v893 = vshll.u32 %v808, 16
      %v895 = vrot.slane %v893, 5
      %v896 = vsel %vm370, %v891, %v895
      %v898 = vshrl.u32 %v809, 16
      %v900 = vrot.slane %v898, 4
      %v901 = vshll.u32 %v809, 16
      %v903 = vrot.slane %v901, 5
      %v904 = vor.u32 %v900, %v903
      %v905 = vrot.slane %v904, 4
      %v907 = vshll.u32 %v810, 16
      %v909 = vrot.slane %v907, 5
      %v910 = vsel %vm370, %v905, %v909
      %v912 = vshrl.u32 %v811, 16
      %v914 = vrot.slane %v912, 4
      %v915 = vshll.u32 %v811, 16
      %v917 = vrot.slane %v915, 5
      %v918 = vor.u32 %v914, %v917
      %v919 = vrot.slane %v918, 4
      %v921 = vshll.u32 %v812, 16
      %v923 = vrot.slane %v921, 5
      %v924 = vsel %vm370, %v919, %v923
      %v925 = vunpack.c.l.b16 %v826
      %v926 = vunpack.c.l.b16 %v840
      %v927 = vunpack.c.l.b16 %v854
      %v928 = vunpack.c.l.b16 %v868
      %v929 = vunpack.c.l.b16 %v882
      %v930 = vunpack.c.l.b16 %v896
      %v931 = vunpack.c.l.b16 %v910
      %v932 = vunpack.c.l.b16 %v924
      %v933 = vpack.c.b16 %v926, %v925
      %v934 = vpack.c.b16 %v928, %v927
      %v935 = vpack.c.b16 %v930, %v929
      %v936 = vpack.c.b16 %v932, %v931
      %941 = vst [vmem:[#allocation2 + $0x40] sm:$0xff] %v933
      %942 = vst [vmem:[#allocation2 + $0x88] sm:$0xff] %v934
      %943 = vst [vmem:[#allocation2 + $0xd0] sm:$0xff] %v935
      %944 = vst [vmem:[#allocation2 + $0x118] sm:$0xff] %v936
      %v945 = vld [vmem:[#allocation2] sm:$0xff]
      %v946 = vld [vmem:[#allocation2 + $0x8] sm:$0xff]
      %v947 = vld [vmem:[#allocation2 + $0x10] sm:$0xff]
      %v948 = vld [vmem:[#allocation2 + $0x18] sm:$0xff]
      %v949 = vld [vmem:[#allocation2 + $0x20] sm:$0xff]
      %v950 = vld [vmem:[#allocation2 + $0x28] sm:$0xff]
      %v951 = vld [vmem:[#allocation2 + $0x30] sm:$0xff]
      %v952 = vld [vmem:[#allocation2 + $0x38] sm:$0xff]
      %v953 = vld [vmem:[#allocation2 + $0x40] sm:$0xff]
      %v954 = vld [vmem:[#allocation2 + $0x48] sm:$0xff]
      %v955 = vld [vmem:[#allocation2 + $0x50] sm:$0xff]
      %v956 = vld [vmem:[#allocation2 + $0x58] sm:$0xff]
      %v957 = vld [vmem:[#allocation2 + $0x60] sm:$0xff]
      %v958 = vld [vmem:[#allocation2 + $0x68] sm:$0xff]
      %v959 = vld [vmem:[#allocation2 + $0x70] sm:$0xff]
      %v960 = vld [vmem:[#allocation2 + $0x78] sm:$0xff]
      %v961 = vld [vmem:[#allocation2 + $0x80] sm:$0xff]
      %v962 = vld [vmem:[#allocation2 + $0x88] sm:$0xff]
      %v963 = vld [vmem:[#allocation2 + $0x90] sm:$0xff]
      %v964 = vld [vmem:[#allocation2 + $0x98] sm:$0xff]
      %v965 = vld [vmem:[#allocation2 + $0xa0] sm:$0xff]
      %v966 = vld [vmem:[#allocation2 + $0xa8] sm:$0xff]
      %v967 = vld [vmem:[#allocation2 + $0xb0] sm:$0xff]
      %v968 = vld [vmem:[#allocation2 + $0xb8] sm:$0xff]
      %v969 = vld [vmem:[#allocation2 + $0xc0] sm:$0xff]
      %v970 = vld [vmem:[#allocation2 + $0xc8] sm:$0xff]
      %v971 = vld [vmem:[#allocation2 + $0xd0] sm:$0xff]
      %v972 = vld [vmem:[#allocation2 + $0xd8] sm:$0xff]
      %v973 = vld [vmem:[#allocation2 + $0xe0] sm:$0xff]
      %v974 = vld [vmem:[#allocation2 + $0xe8] sm:$0xff]
      %v975 = vld [vmem:[#allocation2 + $0xf0] sm:$0xff]
      %v976 = vld [vmem:[#allocation2 + $0xf8] sm:$0xff]
      %v977 = vld [vmem:[#allocation2 + $0x100] sm:$0xff]
      %v978 = vld [vmem:[#allocation2 + $0x108] sm:$0xff]
      %v979 = vld [vmem:[#allocation2 + $0x110] sm:$0xff]
      %v980 = vld [vmem:[#allocation2 + $0x118] sm:$0xff]
      %v981 = vld [vmem:[%s1] sm:$0xf]
      %v982 = vld [vmem:[%s1 + $0x4] sm:$0xf]
      %v983 = vld [vmem:[%s1 + $0x8] sm:$0xf]
      %v984 = vld [vmem:[%s1 + $0xc] sm:$0xf]
      %v985 = vld [vmem:[%s1 + $0x10] sm:$0xf]
      %v986 = vld [vmem:[%s1 + $0x14] sm:$0xf]
      %v987 = vld [vmem:[%s1 + $0x18] sm:$0xf]
      %v988 = vld [vmem:[%s1 + $0x1c] sm:$0xf]
      %v989 = vld [vmem:[%s1 + $0x20] sm:$0xf]
      %v990 = vld [vmem:[%s1 + $0x24] sm:$0xf]
      %v991 = vld [vmem:[%s1 + $0x28] sm:$0xf]
      %v992 = vld [vmem:[%s1 + $0x2c] sm:$0xf]
      %v993 = vld [vmem:[%s1 + $0x30] sm:$0xf]
      %v994 = vld [vmem:[%s1 + $0x34] sm:$0xf]
      %v995 = vld [vmem:[%s1 + $0x38] sm:$0xf]
      %v996 = vld [vmem:[%s1 + $0x3c] sm:$0xf]
      %v997 = vld [vmem:[%s1 + $0x40] sm:$0xf]
      %v998 = vld [vmem:[%s1 + $0x44] sm:$0xf]
      %v999 = vld [vmem:[%s1 + $0x48] sm:$0xf]
      %v1000 = vld [vmem:[%s1 + $0x4c] sm:$0xf]
      %v1001 = vld [vmem:[%s1 + $0x50] sm:$0xf]
      %v1002 = vld [vmem:[%s1 + $0x54] sm:$0xf]
      %v1003 = vld [vmem:[%s1 + $0x58] sm:$0xf]
      %v1004 = vld [vmem:[%s1 + $0x5c] sm:$0xf]
      %v1005 = vld [vmem:[%s1 + $0x60] sm:$0xf]
      %v1006 = vld [vmem:[%s1 + $0x64] sm:$0xf]
      %v1007 = vld [vmem:[%s1 + $0x68] sm:$0xf]
      %v1008 = vld [vmem:[%s1 + $0x6c] sm:$0xf]
      %v1009 = vld [vmem:[%s1 + $0x70] sm:$0xf]
      %v1010 = vld [vmem:[%s1 + $0x74] sm:$0xf]
      %v1011 = vld [vmem:[%s1 + $0x78] sm:$0xf]
      %v1012 = vld [vmem:[%s1 + $0x7c] sm:$0xf]
      %v1013 = vld [vmem:[%s1 + $0x80] sm:$0xf]
      %v1014 = vld [vmem:[%s1 + $0x84] sm:$0xf]
      %v1015 = vld [vmem:[%s1 + $0x88] sm:$0xf]
      %v1016 = vld [vmem:[%s1 + $0x8c] sm:$0xf]
      %v1017 = vld [vmem:[%s1 + $0x90] sm:$0xf]
      %v1018 = vld [vmem:[%s1 + $0x94] sm:$0xf]
      %v1019 = vld [vmem:[%s1 + $0x98] sm:$0xf]
      %v1020 = vld [vmem:[%s1 + $0x9c] sm:$0xf]
      %v1021 = vld [vmem:[%s1 + $0xa0] sm:$0xf]
      %v1022 = vld [vmem:[%s1 + $0xa4] sm:$0xf]
      %v1023 = vld [vmem:[%s1 + $0xa8] sm:$0xf]
      %v1024 = vld [vmem:[%s1 + $0xac] sm:$0xf]
      %v1025 = vld [vmem:[%s1 + $0xb0] sm:$0xf]
      %v1026 = vld [vmem:[%s1 + $0xb4] sm:$0xf]
      %v1027 = vld [vmem:[%s1 + $0xb8] sm:$0xf]
      %v1028 = vld [vmem:[%s1 + $0xbc] sm:$0xf]
      %v1029 = vld [vmem:[%s1 + $0xc0] sm:$0xf]
      %v1030 = vld [vmem:[%s1 + $0xc4] sm:$0xf]
      %v1031 = vld [vmem:[%s1 + $0xc8] sm:$0xf]
      %v1032 = vld [vmem:[%s1 + $0xcc] sm:$0xf]
      %v1033 = vld [vmem:[%s1 + $0xd0] sm:$0xf]
      %v1034 = vld [vmem:[%s1 + $0xd4] sm:$0xf]
      %v1035 = vld [vmem:[%s1 + $0xd8] sm:$0xf]
      %v1036 = vld [vmem:[%s1 + $0xdc] sm:$0xf]
      %v1037 = vld [vmem:[%s1 + $0xe0] sm:$0xf]
      %v1038 = vld [vmem:[%s1 + $0xe4] sm:$0xf]
      %v1039 = vld [vmem:[%s1 + $0xe8] sm:$0xf]
      %v1040 = vld [vmem:[%s1 + $0xec] sm:$0xf]
      %v1041 = vld [vmem:[%s1 + $0xf0] sm:$0xf]
      %v1042 = vld [vmem:[%s1 + $0xf4] sm:$0xf]
      %v1043 = vld [vmem:[%s1 + $0xf8] sm:$0xf]
      %v1044 = vld [vmem:[%s1 + $0xfc] sm:$0xf]
      %v1045 = vld [vmem:[%s1 + $0x100] sm:$0xf]
      %v1046 = vld [vmem:[%s1 + $0x104] sm:$0xf]
      %v1047 = vld [vmem:[%s1 + $0x108] sm:$0xf]
      %v1048 = vld [vmem:[%s1 + $0x10c] sm:$0xf]
      %v1049 = vld [vmem:[%s1 + $0x110] sm:$0xf]
      %v1050 = vld [vmem:[%s1 + $0x114] sm:$0xf]
      %v1051 = vld [vmem:[%s1 + $0x118] sm:$0xf]
      %v1052 = vld [vmem:[%s1 + $0x11c] sm:$0xf]
      %v1053 = vld [vmem:[%s1 + $0x120] sm:$0xf]
      %v1054 = vld [vmem:[%s1 + $0x124] sm:$0xf]
      %v1055 = vld [vmem:[%s1 + $0x128] sm:$0xf]
      %v1056 = vld [vmem:[%s1 + $0x12c] sm:$0xf]
      %v1057 = vld [vmem:[%s1 + $0x130] sm:$0xf]
      %v1058 = vld [vmem:[%s1 + $0x134] sm:$0xf]
      %v1059 = vld [vmem:[%s1 + $0x138] sm:$0xf]
      %v1060 = vld [vmem:[%s1 + $0x13c] sm:$0xf]
      %v1061 = vld [vmem:[%s1 + $0x140] sm:$0xf]
      %v1062 = vld [vmem:[%s1 + $0x144] sm:$0xf]
      %v1063 = vld [vmem:[%s1 + $0x148] sm:$0xf]
      %v1064 = vld [vmem:[%s1 + $0x14c] sm:$0xf]
      %v1065 = vld [vmem:[%s1 + $0x150] sm:$0xf]
      %v1066 = vld [vmem:[%s1 + $0x154] sm:$0xf]
      %v1067 = vld [vmem:[%s1 + $0x158] sm:$0xf]
      %v1068 = vld [vmem:[%s1 + $0x15c] sm:$0xf]
      %v1069 = vld [vmem:[%s1 + $0x160] sm:$0xf]
      %v1070 = vld [vmem:[%s1 + $0x164] sm:$0xf]
      %v1071 = vld [vmem:[%s1 + $0x168] sm:$0xf]
      %v1072 = vld [vmem:[%s1 + $0x16c] sm:$0xf]
      %v1073 = vld [vmem:[%s1 + $0x170] sm:$0xf]
      %v1074 = vld [vmem:[%s1 + $0x174] sm:$0xf]
      %v1075 = vld [vmem:[%s1 + $0x178] sm:$0xf]
      %v1076 = vld [vmem:[%s1 + $0x17c] sm:$0xf]
      %v1077 = vld [vmem:[%s1 + $0x180] sm:$0xf]
      %v1078 = vld [vmem:[%s1 + $0x184] sm:$0xf]
      %v1079 = vld [vmem:[%s1 + $0x188] sm:$0xf]
      %v1080 = vld [vmem:[%s1 + $0x18c] sm:$0xf]
      %v1081 = vld [vmem:[%s1 + $0x190] sm:$0xf]
      %v1082 = vld [vmem:[%s1 + $0x194] sm:$0xf]
      %v1083 = vld [vmem:[%s1 + $0x198] sm:$0xf]
      %v1084 = vld [vmem:[%s1 + $0x19c] sm:$0xf]
      %v1085 = vld [vmem:[%s1 + $0x1a0] sm:$0xf]
      %v1086 = vld [vmem:[%s1 + $0x1a4] sm:$0xf]
      %v1087 = vld [vmem:[%s1 + $0x1a8] sm:$0xf]
      %v1088 = vld [vmem:[%s1 + $0x1ac] sm:$0xf]
      %v1089 = vld [vmem:[%s1 + $0x1b0] sm:$0xf]
      %v1090 = vld [vmem:[%s1 + $0x1b4] sm:$0xf]
      %v1091 = vld [vmem:[%s1 + $0x1b8] sm:$0xf]
      %v1092 = vld [vmem:[%s1 + $0x1bc] sm:$0xf]
      %v1093 = vld [vmem:[%s1 + $0x1c0] sm:$0xf]
      %v1094 = vld [vmem:[%s1 + $0x1c4] sm:$0xf]
      %v1095 = vld [vmem:[%s1 + $0x1c8] sm:$0xf]
      %v1096 = vld [vmem:[%s1 + $0x1cc] sm:$0xf]
      %v1097 = vld [vmem:[%s1 + $0x1d0] sm:$0xf]
      %v1098 = vld [vmem:[%s1 + $0x1d4] sm:$0xf]
      %v1099 = vld [vmem:[%s1 + $0x1d8] sm:$0xf]
      %v1100 = vld [vmem:[%s1 + $0x1dc] sm:$0xf]
      %v1101 = vld [vmem:[%s1 + $0x1e0] sm:$0xf]
      %v1102 = vld [vmem:[%s1 + $0x1e4] sm:$0xf]
      %v1103 = vld [vmem:[%s1 + $0x1e8] sm:$0xf]
      %v1104 = vld [vmem:[%s1 + $0x1ec] sm:$0xf]
      %v1105 = vld [vmem:[%s1 + $0x1f0] sm:$0xf]
      %v1106 = vld [vmem:[%s1 + $0x1f4] sm:$0xf]
      %v1107 = vld [vmem:[%s1 + $0x1f8] sm:$0xf]
      %v1108 = vld [vmem:[%s1 + $0x1fc] sm:$0xf]
      %v1109 = vld [vmem:[%s1 + $0x200] sm:$0xf]
      %v1110 = vld [vmem:[%s1 + $0x204] sm:$0xf]
      %v1111 = vld [vmem:[%s1 + $0x208] sm:$0xf]
      %v1112 = vld [vmem:[%s1 + $0x20c] sm:$0xf]
      %v1113 = vld [vmem:[%s1 + $0x210] sm:$0xf]
      %v1114 = vld [vmem:[%s1 + $0x214] sm:$0xf]
      %v1115 = vld [vmem:[%s1 + $0x218] sm:$0xf]
      %v1116 = vld [vmem:[%s1 + $0x21c] sm:$0xf]
      %v1117 = vld [vmem:[%s1 + $0x220] sm:$0xf]
      %v1118 = vld [vmem:[%s1 + $0x224] sm:$0xf]
      %v1119 = vld [vmem:[%s1 + $0x228] sm:$0xf]
      %v1120 = vld [vmem:[%s1 + $0x22c] sm:$0xf]
      %v1121 = vld [vmem:[%s1 + $0x230] sm:$0xf]
      %v1122 = vld [vmem:[%s1 + $0x234] sm:$0xf]
      %v1123 = vld [vmem:[%s1 + $0x238] sm:$0xf]
      %v1124 = vld [vmem:[%s1 + $0x23c] sm:$0xf]
      %v1125 = vld [vmem:[%s2] sm:$0x1]
      %v1127 = vlaneseq
      %v1128 = vshrl.u32 %v1127, 7
      %v1129 = vsub.s32 0, %v1128
      %v1130 = vrot.slane %v1125, %v1129
      %v1276 = vunpack.c.l.b16 %v981
      %v1277 = vunpack.c.l.b16 %v982
      %v1278 = vunpack.c.l.b16 %v983
      %v1279 = vunpack.c.l.b16 %v984
      %v1280 = vunpack.c.l.b16 %v985
      %v1281 = vunpack.c.l.b16 %v986
      %v1282 = vunpack.c.l.b16 %v987
      %v1283 = vunpack.c.l.b16 %v988
      %v1284 = vunpack.c.l.b16 %v989
      %v1285 = vunpack.c.l.b16 %v990
      %v1286 = vunpack.c.l.b16 %v991
      %v1287 = vunpack.c.l.b16 %v992
      %v1288 = vunpack.c.l.b16 %v993
      %v1289 = vunpack.c.l.b16 %v994
      %v1290 = vunpack.c.l.b16 %v995
      %v1291 = vunpack.c.l.b16 %v996
      %v1292 = vunpack.c.l.b16 %v997
      %v1293 = vunpack.c.l.b16 %v998
      %v1294 = vunpack.c.l.b16 %v999
      %v1295 = vunpack.c.l.b16 %v1000
      %v1296 = vunpack.c.l.b16 %v1001
      %v1297 = vunpack.c.l.b16 %v1002
      %v1298 = vunpack.c.l.b16 %v1003
      %v1299 = vunpack.c.l.b16 %v1004
      %v1300 = vunpack.c.l.b16 %v1005
      %v1301 = vunpack.c.l.b16 %v1006
      %v1302 = vunpack.c.l.b16 %v1007
      %v1303 = vunpack.c.l.b16 %v1008
      %v1304 = vunpack.c.l.b16 %v1009
      %v1305 = vunpack.c.l.b16 %v1010
      %v1306 = vunpack.c.l.b16 %v1011
      %v1307 = vunpack.c.l.b16 %v1012
      %v1308 = vunpack.c.l.b16 %v1013
      %v1309 = vunpack.c.l.b16 %v1014
      %v1310 = vunpack.c.l.b16 %v1015
      %v1311 = vunpack.c.l.b16 %v1016
      %v1312 = vunpack.c.l.b16 %v1017
      %v1313 = vunpack.c.l.b16 %v1018
      %v1314 = vunpack.c.l.b16 %v1019
      %v1315 = vunpack.c.l.b16 %v1020
      %v1316 = vunpack.c.l.b16 %v1021
      %v1317 = vunpack.c.l.b16 %v1022
      %v1318 = vunpack.c.l.b16 %v1023
      %v1319 = vunpack.c.l.b16 %v1024
      %v1320 = vunpack.c.l.b16 %v1025
      %v1321 = vunpack.c.l.b16 %v1026
      %v1322 = vunpack.c.l.b16 %v1027
      %v1323 = vunpack.c.l.b16 %v1028
      %v1324 = vunpack.c.l.b16 %v1029
      %v1325 = vunpack.c.l.b16 %v1030
      %v1326 = vunpack.c.l.b16 %v1031
      %v1327 = vunpack.c.l.b16 %v1032
      %v1328 = vunpack.c.l.b16 %v1033
      %v1329 = vunpack.c.l.b16 %v1034
      %v1330 = vunpack.c.l.b16 %v1035
      %v1331 = vunpack.c.l.b16 %v1036
      %v1332 = vunpack.c.l.b16 %v1037
      %v1333 = vunpack.c.l.b16 %v1038
      %v1334 = vunpack.c.l.b16 %v1039
      %v1335 = vunpack.c.l.b16 %v1040
      %v1336 = vunpack.c.l.b16 %v1041
      %v1337 = vunpack.c.l.b16 %v1042
      %v1338 = vunpack.c.l.b16 %v1043
      %v1339 = vunpack.c.l.b16 %v1044
      %v1340 = vunpack.c.l.b16 %v1045
      %v1341 = vunpack.c.l.b16 %v1046
      %v1342 = vunpack.c.l.b16 %v1047
      %v1343 = vunpack.c.l.b16 %v1048
      %v1344 = vunpack.c.l.b16 %v1049
      %v1345 = vunpack.c.l.b16 %v1050
      %v1346 = vunpack.c.l.b16 %v1051
      %v1347 = vunpack.c.l.b16 %v1052
      %v1348 = vunpack.c.l.b16 %v1053
      %v1349 = vunpack.c.l.b16 %v1054
      %v1350 = vunpack.c.l.b16 %v1055
      %v1351 = vunpack.c.l.b16 %v1056
      %v1352 = vunpack.c.l.b16 %v1057
      %v1353 = vunpack.c.l.b16 %v1058
      %v1354 = vunpack.c.l.b16 %v1059
      %v1355 = vunpack.c.l.b16 %v1060
      %v1356 = vunpack.c.l.b16 %v1061
      %v1357 = vunpack.c.l.b16 %v1062
      %v1358 = vunpack.c.l.b16 %v1063
      %v1359 = vunpack.c.l.b16 %v1064
      %v1360 = vunpack.c.l.b16 %v1065
      %v1361 = vunpack.c.l.b16 %v1066
      %v1362 = vunpack.c.l.b16 %v1067
      %v1363 = vunpack.c.l.b16 %v1068
      %v1364 = vunpack.c.l.b16 %v1069
      %v1365 = vunpack.c.l.b16 %v1070
      %v1366 = vunpack.c.l.b16 %v1071
      %v1367 = vunpack.c.l.b16 %v1072
      %v1368 = vunpack.c.l.b16 %v1073
      %v1369 = vunpack.c.l.b16 %v1074
      %v1370 = vunpack.c.l.b16 %v1075
      %v1371 = vunpack.c.l.b16 %v1076
      %v1372 = vunpack.c.l.b16 %v1077
      %v1373 = vunpack.c.l.b16 %v1078
      %v1374 = vunpack.c.l.b16 %v1079
      %v1375 = vunpack.c.l.b16 %v1080
      %v1376 = vunpack.c.l.b16 %v1081
      %v1377 = vunpack.c.l.b16 %v1082
      %v1378 = vunpack.c.l.b16 %v1083
      %v1379 = vunpack.c.l.b16 %v1084
      %v1380 = vunpack.c.l.b16 %v1085
      %v1381 = vunpack.c.l.b16 %v1086
      %v1382 = vunpack.c.l.b16 %v1087
      %v1383 = vunpack.c.l.b16 %v1088
      %v1384 = vunpack.c.l.b16 %v1089
      %v1385 = vunpack.c.l.b16 %v1090
      %v1386 = vunpack.c.l.b16 %v1091
      %v1387 = vunpack.c.l.b16 %v1092
      %v1388 = vunpack.c.l.b16 %v1093
      %v1389 = vunpack.c.l.b16 %v1094
      %v1390 = vunpack.c.l.b16 %v1095
      %v1391 = vunpack.c.l.b16 %v1096
      %v1392 = vunpack.c.l.b16 %v1097
      %v1393 = vunpack.c.l.b16 %v1098
      %v1394 = vunpack.c.l.b16 %v1099
      %v1395 = vunpack.c.l.b16 %v1100
      %v1396 = vunpack.c.l.b16 %v1101
      %v1397 = vunpack.c.l.b16 %v1102
      %v1398 = vunpack.c.l.b16 %v1103
      %v1399 = vunpack.c.l.b16 %v1104
      %v1400 = vunpack.c.l.b16 %v1105
      %v1401 = vunpack.c.l.b16 %v1106
      %v1402 = vunpack.c.l.b16 %v1107
      %v1403 = vunpack.c.l.b16 %v1108
      %v1404 = vunpack.c.l.b16 %v1109
      %v1405 = vunpack.c.l.b16 %v1110
      %v1406 = vunpack.c.l.b16 %v1111
      %v1407 = vunpack.c.l.b16 %v1112
      %v1408 = vunpack.c.l.b16 %v1113
      %v1409 = vunpack.c.l.b16 %v1114
      %v1410 = vunpack.c.l.b16 %v1115
      %v1411 = vunpack.c.l.b16 %v1116
      %v1412 = vunpack.c.l.b16 %v1117
      %v1413 = vunpack.c.l.b16 %v1118
      %v1414 = vunpack.c.l.b16 %v1119
      %v1415 = vunpack.c.l.b16 %v1120
      %v1416 = vunpack.c.l.b16 %v1121
      %v1417 = vunpack.c.l.b16 %v1122
      %v1418 = vunpack.c.l.b16 %v1123
      %v1419 = vunpack.c.l.b16 %v1124
      %v1420 = vpack.c.b16 %v1277, %v1276
      %v1421 = vpack.c.b16 %v1279, %v1278
      %v1422 = vpack.c.b16 %v1281, %v1280
      %v1423 = vpack.c.b16 %v1283, %v1282
      %v1424 = vpack.c.b16 %v1285, %v1284
      %v1425 = vpack.c.b16 %v1287, %v1286
      %v1426 = vpack.c.b16 %v1289, %v1288
      %v1427 = vpack.c.b16 %v1291, %v1290
      %v1428 = vpack.c.b16 %v1293, %v1292
      %v1429 = vpack.c.b16 %v1295, %v1294
      %v1430 = vpack.c.b16 %v1297, %v1296
      %v1431 = vpack.c.b16 %v1299, %v1298
      %v1432 = vpack.c.b16 %v1301, %v1300
      %v1433 = vpack.c.b16 %v1303, %v1302
      %v1434 = vpack.c.b16 %v1305, %v1304
      %v1435 = vpack.c.b16 %v1307, %v1306
      %v1436 = vpack.c.b16 %v1309, %v1308
      %v1437 = vpack.c.b16 %v1311, %v1310
      %v1438 = vpack.c.b16 %v1313, %v1312
      %v1439 = vpack.c.b16 %v1315, %v1314
      %v1440 = vpack.c.b16 %v1317, %v1316
      %v1441 = vpack.c.b16 %v1319, %v1318
      %v1442 = vpack.c.b16 %v1321, %v1320
      %v1443 = vpack.c.b16 %v1323, %v1322
      %v1444 = vpack.c.b16 %v1325, %v1324
      %v1445 = vpack.c.b16 %v1327, %v1326
      %v1446 = vpack.c.b16 %v1329, %v1328
      %v1447 = vpack.c.b16 %v1331, %v1330
      %v1448 = vpack.c.b16 %v1333, %v1332
      %v1449 = vpack.c.b16 %v1335, %v1334
      %v1450 = vpack.c.b16 %v1337, %v1336
      %v1451 = vpack.c.b16 %v1339, %v1338
      %v1452 = vpack.c.b16 %v1341, %v1340
      %v1453 = vpack.c.b16 %v1343, %v1342
      %v1454 = vpack.c.b16 %v1345, %v1344
      %v1455 = vpack.c.b16 %v1347, %v1346
      %v1456 = vpack.c.b16 %v1349, %v1348
      %v1457 = vpack.c.b16 %v1351, %v1350
      %v1458 = vpack.c.b16 %v1353, %v1352
      %v1459 = vpack.c.b16 %v1355, %v1354
      %v1460 = vpack.c.b16 %v1357, %v1356
      %v1461 = vpack.c.b16 %v1359, %v1358
      %v1462 = vpack.c.b16 %v1361, %v1360
      %v1463 = vpack.c.b16 %v1363, %v1362
      %v1464 = vpack.c.b16 %v1365, %v1364
      %v1465 = vpack.c.b16 %v1367, %v1366
      %v1466 = vpack.c.b16 %v1369, %v1368
      %v1467 = vpack.c.b16 %v1371, %v1370
      %v1468 = vpack.c.b16 %v1373, %v1372
      %v1469 = vpack.c.b16 %v1375, %v1374
      %v1470 = vpack.c.b16 %v1377, %v1376
      %v1471 = vpack.c.b16 %v1379, %v1378
      %v1472 = vpack.c.b16 %v1381, %v1380
      %v1473 = vpack.c.b16 %v1383, %v1382
      %v1474 = vpack.c.b16 %v1385, %v1384
      %v1475 = vpack.c.b16 %v1387, %v1386
      %v1476 = vpack.c.b16 %v1389, %v1388
      %v1477 = vpack.c.b16 %v1391, %v1390
      %v1478 = vpack.c.b16 %v1393, %v1392
      %v1479 = vpack.c.b16 %v1395, %v1394
      %v1480 = vpack.c.b16 %v1397, %v1396
      %v1481 = vpack.c.b16 %v1399, %v1398
      %v1482 = vpack.c.b16 %v1401, %v1400
      %v1483 = vpack.c.b16 %v1403, %v1402
      %v1484 = vpack.c.b16 %v1405, %v1404
      %v1485 = vpack.c.b16 %v1407, %v1406
      %v1486 = vpack.c.b16 %v1409, %v1408
      %v1487 = vpack.c.b16 %v1411, %v1410
      %v1488 = vpack.c.b16 %v1413, %v1412
      %v1489 = vpack.c.b16 %v1415, %v1414
      %v1490 = vpack.c.b16 %v1417, %v1416
      %v1491 = vpack.c.b16 %v1419, %v1418
      %1564 = vmatprep.subr.bf16.mxu0 0
      %1565 = vmatpush1.bf16.msra.mxu0 %v1420
      %1566 = vmatprep.subr.bf16.mxu0 0
      %1567 = vmatpush1.bf16.msra.mxu0 %v1421
      %1568 = vmatprep.subr.bf16.mxu0 0
      %1569 = vmatpush1.bf16.msra.mxu0 %v1422
      %1570 = vmatprep.subr.bf16.mxu0 0
      %1571 = vmatpush1.bf16.msra.mxu0 %v1423
      %1572 = vmatprep.subr.bf16.mxu0 0
      %1573 = vmatpush1.bf16.msra.mxu0 %v1424
      %1574 = vmatprep.subr.bf16.mxu0 0
      %1575 = vmatpush1.bf16.msra.mxu0 %v1425
      %1576 = vmatprep.subr.bf16.mxu0 0
      %1577 = vmatpush1.bf16.msra.mxu0 %v1426
      %1578 = vmatprep.subr.bf16.mxu0 0
      %1579 = vmatpush1.bf16.msra.mxu0 %v1427
      %1580 = vmatprep.subr.bf16.mxu0 0
      %1581 = vmatpush1.bf16.msra.mxu0 %v1428
      %1582 = vmatprep.subr.bf16.mxu0 0
      %1583 = vmatpush1.bf16.msra.mxu0 %v1429
      %1584 = vmatprep.subr.bf16.mxu0 0
      %1585 = vmatpush1.bf16.msra.mxu0 %v1430
      %1586 = vmatprep.subr.bf16.mxu0 0
      %1587 = vmatpush1.bf16.msra.mxu0 %v1431
      %1588 = vmatprep.subr.bf16.mxu0 0
      %1589 = vmatpush1.bf16.msra.mxu0 %v1432
      %1590 = vmatprep.subr.bf16.mxu0 0
      %1591 = vmatpush1.bf16.msra.mxu0 %v1433
      %1592 = vmatprep.subr.bf16.mxu0 0
      %1593 = vmatpush1.bf16.msra.mxu0 %v1434
      %1594 = vmatprep.subr.bf16.mxu0 0
      %1595 = vmatpush1.bf16.msra.mxu0 %v1435
      %1596 = vmatprep.mubr.bf16.mxu0 %v946
      %1597 = vmatmul.mubr.bf16.gmra.mrb[0].mxu0 %v945
      %v1598 = vpop.f32.mrb[0].mxu0
      %v1599 = vadd.f32 %v1130, %v1598
      %v1600 = vpop.f32.mrb[0].mxu0
      %v1601 = vpop.f32.mrb[0].mxu0
      %v1602 = vadd.f32 %v1130, %v1601
      %v1603 = vpop.f32.mrb[0].mxu0
      %1604 = vmatprep.mubr.bf16.mxu0 %v955
      %1605 = vmatmul.mubr.bf16.gmra.mrb[0].mxu0 %v954
      %v1606 = vpop.f32.mrb[0].mxu0
      %v1607 = vadd.f32 %v1130, %v1606
      %v1608 = vpop.f32.mrb[0].mxu0
      %v1609 = vpop.f32.mrb[0].mxu0
      %v1610 = vadd.f32 %v1130, %v1609
      %v1611 = vpop.f32.mrb[0].mxu0
      %1612 = vmatprep.mubr.bf16.mxu0 %v964
      %1613 = vmatmul.mubr.bf16.gmra.mrb[0].mxu0 %v963
      %v1614 = vpop.f32.mrb[0].mxu0
      %v1615 = vadd.f32 %v1130, %v1614
      %v1616 = vpop.f32.mrb[0].mxu0
      %v1617 = vpop.f32.mrb[0].mxu0
      %v1618 = vadd.f32 %v1130, %v1617
      %v1619 = vpop.f32.mrb[0].mxu0
      %1620 = vmatprep.mubr.bf16.mxu0 %v973
      %1621 = vmatmul.mubr.bf16.gmra.mrb[0].mxu0 %v972
      %v1622 = vpop.f32.mrb[0].mxu0
      %v1623 = vadd.f32 %v1130, %v1622
      %v1624 = vpop.f32.mrb[0].mxu0
      %v1625 = vpop.f32.mrb[0].mxu0
      %v1626 = vadd.f32 %v1130, %v1625
      %v1627 = vpop.f32.mrb[0].mxu0
      %1628 = vdwg.mxu0
      %1629 = vmatprep.subr.bf16.mxu0 0
      %1630 = vmatpush1.bf16.msra.mxu0 %v1436
      %1631 = vmatprep.subr.bf16.mxu0 0
      %1632 = vmatpush1.bf16.msra.mxu0 %v1437
      %1633 = vmatprep.subr.bf16.mxu0 0
      %1634 = vmatpush1.bf16.msra.mxu0 %v1438
      %1635 = vmatprep.subr.bf16.mxu0 0
      %1636 = vmatpush1.bf16.msra.mxu0 %v1439
      %1637 = vmatprep.subr.bf16.mxu0 0
      %1638 = vmatpush1.bf16.msra.mxu0 %v1440
      %1639 = vmatprep.subr.bf16.mxu0 0
      %1640 = vmatpush1.bf16.msra.mxu0 %v1441
      %1641 = vmatprep.subr.bf16.mxu0 0
      %1642 = vmatpush1.bf16.msra.mxu0 %v1442
      %1643 = vmatprep.subr.bf16.mxu0 0
      %1644 = vmatpush1.bf16.msra.mxu0 %v1443
      %1645 = vmatprep.subr.bf16.mxu0 0
      %1646 = vmatpush1.bf16.msra.mxu0 %v1444
      %1647 = vmatprep.subr.bf16.mxu0 0
      %1648 = vmatpush1.bf16.msra.mxu0 %v1445
      %1649 = vmatprep.subr.bf16.mxu0 0
      %1650 = vmatpush1.bf16.msra.mxu0 %v1446
      %1651 = vmatprep.subr.bf16.mxu0 0
      %1652 = vmatpush1.bf16.msra.mxu0 %v1447
      %1653 = vmatprep.subr.bf16.mxu0 0
      %1654 = vmatpush1.bf16.msra.mxu0 %v1448
      %1655 = vmatprep.subr.bf16.mxu0 0
      %1656 = vmatpush1.bf16.msra.mxu0 %v1449
      %1657 = vmatprep.subr.bf16.mxu0 0
      %1658 = vmatpush1.bf16.msra.mxu0 %v1450
      %1659 = vmatprep.subr.bf16.mxu0 0
      %1660 = vmatpush1.bf16.msra.mxu0 %v1451
      %1661 = vmatprep.mubr.bf16.mxu0 %v948
      %1662 = vmatmul.mubr.bf16.gmra.mrb[0].mxu0 %v947
      %v1663 = vpop.f32.mrb[0].mxu0
      %v1664 = vadd.f32 %v1599, %v1663
      %v1665 = vpop.f32.mrb[0].mxu0
      %v1666 = vpop.f32.mrb[0].mxu0
      %v1667 = vadd.f32 %v1602, %v1666
      %v1668 = vpop.f32.mrb[0].mxu0
      %1669 = vmatprep.mubr.bf16.mxu0 %v957
      %1670 = vmatmul.mubr.bf16.gmra.mrb[0].mxu0 %v956
      %v1671 = vpop.f32.mrb[0].mxu0
      %v1672 = vadd.f32 %v1607, %v1671
      %v1673 = vpop.f32.mrb[0].mxu0
      %v1674 = vpop.f32.mrb[0].mxu0
      %v1675 = vadd.f32 %v1610, %v1674
      %v1676 = vpop.f32.mrb[0].mxu0
      %1677 = vmatprep.mubr.bf16.mxu0 %v966
      %1678 = vmatmul.mubr.bf16.gmra.mrb[0].mxu0 %v965
      %v1679 = vpop.f32.mrb[0].mxu0
      %v1680 = vadd.f32 %v1615, %v1679
      %v1681 = vpop.f32.mrb[0].mxu0
      %v1682 = vpop.f32.mrb[0].mxu0
      %v1683 = vadd.f32 %v1618, %v1682
      %v1684 = vpop.f32.mrb[0].mxu0
      %1685 = vmatprep.mubr.bf16.mxu0 %v975
      %1686 = vmatmul.mubr.bf16.gmra.mrb[0].mxu0 %v974
      %v1687 = vpop.f32.mrb[0].mxu0
      %v1688 = vadd.f32 %v1623, %v1687
      %v1689 = vpop.f32.mrb[0].mxu0
      %v1690 = vpop.f32.mrb[0].mxu0
      %v1691 = vadd.f32 %v1626, %v1690
      %v1692 = vpop.f32.mrb[0].mxu0
      %1693 = vdwg.mxu0
      %1694 = vmatprep.subr.bf16.mxu0 0
      %1695 = vmatpush1.bf16.msra.mxu0 %v1452
      %1696 = vmatprep.subr.bf16.mxu0 0
      %1697 = vmatpush1.bf16.msra.mxu0 %v1453
      %1698 = vmatprep.subr.bf16.mxu0 0
      %1699 = vmatpush1.bf16.msra.mxu0 %v1454
      %1700 = vmatprep.subr.bf16.mxu0 0
      %1701 = vmatpush1.bf16.msra.mxu0 %v1455
      %1702 = vmatprep.subr.bf16.mxu0 0
      %1703 = vmatpush1.bf16.msra.mxu0 %v1456
      %1704 = vmatprep.subr.bf16.mxu0 0
      %1705 = vmatpush1.bf16.msra.mxu0 %v1457
      %1706 = vmatprep.subr.bf16.mxu0 0
      %1707 = vmatpush1.bf16.msra.mxu0 %v1458
      %1708 = vmatprep.subr.bf16.mxu0 0
      %1709 = vmatpush1.bf16.msra.mxu0 %v1459
      %1710 = vmatprep.subr.bf16.mxu0 0
      %1711 = vmatpush1.bf16.msra.mxu0 %v1460
      %1712 = vmatprep.subr.bf16.mxu0 0
      %1713 = vmatpush1.bf16.msra.mxu0 %v1461
      %1714 = vmatprep.subr.bf16.mxu0 0
      %1715 = vmatpush1.bf16.msra.mxu0 %v1462
      %1716 = vmatprep.subr.bf16.mxu0 0
      %1717 = vmatpush1.bf16.msra.mxu0 %v1463
      %1718 = vmatprep.subr.bf16.mxu0 0
      %1719 = vmatpush1.bf16.msra.mxu0 %v1464
      %1720 = vmatprep.subr.bf16.mxu0 0
      %1721 = vmatpush1.bf16.msra.mxu0 %v1465
      %1722 = vmatprep.subr.bf16.mxu0 0
      %1723 = vmatpush1.bf16.msra.mxu0 %v1466
      %1724 = vmatprep.subr.bf16.mxu0 0
      %1725 = vmatpush1.bf16.msra.mxu0 %v1467
      %1726 = vmatprep.mubr.bf16.mxu0 %v950
      %1727 = vmatmul.mubr.bf16.gmra.mrb[0].mxu0 %v949
      %v1728 = vpop.f32.mrb[0].mxu0
      %v1729 = vadd.f32 %v1664, %v1728
      %v1730 = vpop.f32.mrb[0].mxu0
      %v1731 = vpop.f32.mrb[0].mxu0
      %v1732 = vadd.f32 %v1667, %v1731
      %v1733 = vpop.f32.mrb[0].mxu0
      %1734 = vmatprep.mubr.bf16.mxu0 %v959
      %1735 = vmatmul.mubr.bf16.gmra.mrb[0].mxu0 %v958
      %v1736 = vpop.f32.mrb[0].mxu0
      %v1737 = vadd.f32 %v1672, %v1736
      %v1738 = vpop.f32.mrb[0].mxu0
      %v1739 = vpop.f32.mrb[0].mxu0
      %v1740 = vadd.f32 %v1675, %v1739
      %v1741 = vpop.f32.mrb[0].mxu0
      %1742 = vmatprep.mubr.bf16.mxu0 %v968
      %1743 = vmatmul.mubr.bf16.gmra.mrb[0].mxu0 %v967
      %v1744 = vpop.f32.mrb[0].mxu0
      %v1745 = vadd.f32 %v1680, %v1744
      %v1746 = vpop.f32.mrb[0].mxu0
      %v1747 = vpop.f32.mrb[0].mxu0
      %v1748 = vadd.f32 %v1683, %v1747
      %v1749 = vpop.f32.mrb[0].mxu0
      %1750 = vmatprep.mubr.bf16.mxu0 %v977
      %1751 = vmatmul.mubr.bf16.gmra.mrb[0].mxu0 %v976
      %v1752 = vpop.f32.mrb[0].mxu0
      %v1753 = vadd.f32 %v1688, %v1752
      %v1754 = vpop.f32.mrb[0].mxu0
      %v1755 = vpop.f32.mrb[0].mxu0
      %v1756 = vadd.f32 %v1691, %v1755
      %v1757 = vpop.f32.mrb[0].mxu0
      %1758 = vdwg.mxu0
      %1759 = vmatprep.subr.bf16.mxu0 0
      %1760 = vmatpush1.bf16.msra.mxu0 %v1468
      %1761 = vmatprep.subr.bf16.mxu0 0
      %1762 = vmatpush1.bf16.msra.mxu0 %v1469
      %1763 = vmatprep.subr.bf16.mxu0 0
      %1764 = vmatpush1.bf16.msra.mxu0 %v1470
      %1765 = vmatprep.subr.bf16.mxu0 0
      %1766 = vmatpush1.bf16.msra.mxu0 %v1471
      %1767 = vmatprep.subr.bf16.mxu0 0
      %1768 = vmatpush1.bf16.msra.mxu0 %v1472
      %1769 = vmatprep.subr.bf16.mxu0 0
      %1770 = vmatpush1.bf16.msra.mxu0 %v1473
      %1771 = vmatprep.subr.bf16.mxu0 0
      %1772 = vmatpush1.bf16.msra.mxu0 %v1474
      %1773 = vmatprep.subr.bf16.mxu0 0
      %1774 = vmatpush1.bf16.msra.mxu0 %v1475
      %1775 = vmatprep.subr.bf16.mxu0 0
      %1776 = vmatpush1.bf16.msra.mxu0 %v1476
      %1777 = vmatprep.subr.bf16.mxu0 0
      %1778 = vmatpush1.bf16.msra.mxu0 %v1477
      %1779 = vmatprep.subr.bf16.mxu0 0
      %1780 = vmatpush1.bf16.msra.mxu0 %v1478
      %1781 = vmatprep.subr.bf16.mxu0 0
      %1782 = vmatpush1.bf16.msra.mxu0 %v1479
      %1783 = vmatprep.subr.bf16.mxu0 0
      %1784 = vmatpush1.bf16.msra.mxu0 %v1480
      %1785 = vmatprep.subr.bf16.mxu0 0
      %1786 = vmatpush1.bf16.msra.mxu0 %v1481
      %1787 = vmatprep.subr.bf16.mxu0 0
      %1788 = vmatpush1.bf16.msra.mxu0 %v1482
      %1789 = vmatprep.subr.bf16.mxu0 0
      %1790 = vmatpush1.bf16.msra.mxu0 %v1483
      %1791 = vmatprep.mubr.bf16.mxu0 %v952
      %1792 = vmatmul.mubr.bf16.gmra.mrb[0].mxu0 %v951
      %v1793 = vpop.f32.mrb[0].mxu0
      %v1794 = vadd.f32 %v1729, %v1793
      %v1795 = vpop.f32.mrb[0].mxu0
      %v1796 = vpop.f32.mrb[0].mxu0
      %v1797 = vadd.f32 %v1732, %v1796
      %v1798 = vpop.f32.mrb[0].mxu0
      %1799 = vmatprep.mubr.bf16.mxu0 %v961
      %1800 = vmatmul.mubr.bf16.gmra.mrb[0].mxu0 %v960
      %v1801 = vpop.f32.mrb[0].mxu0
      %v1802 = vadd.f32 %v1737, %v1801
      %v1803 = vpop.f32.mrb[0].mxu0
      %v1804 = vpop.f32.mrb[0].mxu0
      %v1805 = vadd.f32 %v1740, %v1804
      %v1806 = vpop.f32.mrb[0].mxu0
      %1807 = vmatprep.mubr.bf16.mxu0 %v970
      %1808 = vmatmul.mubr.bf16.gmra.mrb[0].mxu0 %v969
      %v1809 = vpop.f32.mrb[0].mxu0
      %v1810 = vadd.f32 %v1745, %v1809
      %v1811 = vpop.f32.mrb[0].mxu0
      %v1812 = vpop.f32.mrb[0].mxu0
      %v1813 = vadd.f32 %v1748, %v1812
      %v1814 = vpop.f32.mrb[0].mxu0
      %1815 = vmatprep.mubr.bf16.mxu0 %v979
      %1816 = vmatmul.mubr.bf16.gmra.mrb[0].mxu0 %v978
      %v1817 = vpop.f32.mrb[0].mxu0
      %v1818 = vadd.f32 %v1753, %v1817
      %v1819 = vpop.f32.mrb[0].mxu0
      %v1820 = vpop.f32.mrb[0].mxu0
      %v1821 = vadd.f32 %v1756, %v1820
      %v1822 = vpop.f32.mrb[0].mxu0
      %1823 = vdwg.mxu0
      %1824 = vmatprep.subr.bf16.mxu0 0
      %1825 = vmatpush1.bf16.msra.mxu0 %v1484
      %1826 = vmatprep.subr.bf16.mxu0 0
      %1827 = vmatpush1.bf16.msra.mxu0 %v1485
      %1828 = vmatprep.subr.bf16.mxu0 0
      %1829 = vmatpush1.bf16.msra.mxu0 %v1486
      %1830 = vmatprep.subr.bf16.mxu0 0
      %1831 = vmatpush1.bf16.msra.mxu0 %v1487
      %1832 = vmatprep.subr.bf16.mxu0 0
      %1833 = vmatpush1.bf16.msra.mxu0 %v1488
      %1834 = vmatprep.subr.bf16.mxu0 0
      %1835 = vmatpush1.bf16.msra.mxu0 %v1489
      %1836 = vmatprep.subr.bf16.mxu0 0
      %1837 = vmatpush1.bf16.msra.mxu0 %v1490
      %1838 = vmatprep.subr.bf16.mxu0 0
      %1839 = vmatpush1.bf16.msra.mxu0 %v1491
      %1840 = vmatprep.subr.bf16.mxu0 0
      %1841 = vmatpush1.bf16.msra.mxu0 0
      %1842 = vmatprep.subr.bf16.mxu0 0
      %1843 = vmatpush1.bf16.msra.mxu0 0
      %1844 = vmatprep.subr.bf16.mxu0 0
      %1845 = vmatpush1.bf16.msra.mxu0 0
      %1846 = vmatprep.subr.bf16.mxu0 0
      %1847 = vmatpush1.bf16.msra.mxu0 0
      %1848 = vmatprep.subr.bf16.mxu0 0
      %1849 = vmatpush1.bf16.msra.mxu0 0
      %1850 = vmatprep.subr.bf16.mxu0 0
      %1851 = vmatpush1.bf16.msra.mxu0 0
      %1852 = vmatprep.subr.bf16.mxu0 0
      %1853 = vmatpush1.bf16.msra.mxu0 0
      %1854 = vmatprep.subr.bf16.mxu0 0
      %1855 = vmatpush1.bf16.msra.mxu0 0
      %1856 = vmatprep.mubr.bf16.mxu0 0
      %1857 = vmatmul.mubr.bf16.gmra.mrb[0].mxu0 %v953
      %v1858 = vpop.f32.mrb[0].mxu0
      %v1859 = vadd.f32 %v1794, %v1858
      %v1860 = vpop.f32.mrb[0].mxu0
      %v1861 = vpop.f32.mrb[0].mxu0
      %v1862 = vadd.f32 %v1797, %v1861
      %v1863 = vpop.f32.mrb[0].mxu0
      %1864 = vmatprep.mubr.bf16.mxu0 0
      %1865 = vmatmul.mubr.bf16.gmra.mrb[0].mxu0 %v962
      %v1866 = vpop.f32.mrb[0].mxu0
      %v1867 = vadd.f32 %v1802, %v1866
      %v1868 = vpop.f32.mrb[0].mxu0
      %v1869 = vpop.f32.mrb[0].mxu0
      %v1870 = vadd.f32 %v1805, %v1869
      %v1871 = vpop.f32.mrb[0].mxu0
      %1872 = vmatprep.mubr.bf16.mxu0 0
      %1873 = vmatmul.mubr.bf16.gmra.mrb[0].mxu0 %v971
      %v1874 = vpop.f32.mrb[0].mxu0
      %v1875 = vadd.f32 %v1810, %v1874
      %v1876 = vpop.f32.mrb[0].mxu0
      %v1877 = vpop.f32.mrb[0].mxu0
      %v1878 = vadd.f32 %v1813, %v1877
      %v1879 = vpop.f32.mrb[0].mxu0
      %1880 = vmatprep.mubr.bf16.mxu0 0
      %1881 = vmatmul.mubr.bf16.gmra.mrb[0].mxu0 %v980
      %v1882 = vpop.f32.mrb[0].mxu0
      %v1883 = vadd.f32 %v1818, %v1882
      %v1884 = vpop.f32.mrb[0].mxu0
      %v1885 = vpop.f32.mrb[0].mxu0
      %v1886 = vadd.f32 %v1821, %v1885
      %v1887 = vpop.f32.mrb[0].mxu0
      %1888 = vdwg.mxu0
      %v1889 = vmax.f32 %v1859, 0.0
      %v1890 = vmax.f32 %v1862, 0.0
      %v1891 = vmax.f32 %v1867, 0.0
      %v1892 = vmax.f32 %v1870, 0.0
      %v1893 = vmax.f32 %v1875, 0.0
      %v1894 = vmax.f32 %v1878, 0.0
      %v1895 = vmax.f32 %v1883, 0.0
      %v1896 = vmax.f32 %v1886, 0.0
      %v1897 = vadd.f32 %v1889, %v1890
      %v1898 = vadd.f32 %v1897, %v1891
      %v1899 = vadd.f32 %v1898, %v1892
      %v1900 = vadd.f32 %v1899, %v1893
      %v1901 = vadd.f32 %v1900, %v1894
      %v1902 = vadd.f32 %v1901, %v1895
      %v1903 = vadd.f32 %v1902, %v1896
      %v1904 = vrot.slane %v1903, 4
      %v1905 = vadd.f32 %v1903, %v1904
      %v1906 = vrot.slane %v1905, 2
      %v1907 = vadd.f32 %v1905, %v1906
      %v1908 = vrot.slane %v1907, 1
      %v1909 = vadd.f32 %v1907, %v1908
      %v1910 = vmul.f32 %v1889, %v1889
      %v1911 = vmul.f32 %v1890, %v1890
      %v1912 = vmul.f32 %v1891, %v1891
      %v1913 = vmul.f32 %v1892, %v1892
      %v1914 = vmul.f32 %v1893, %v1893
      %v1915 = vmul.f32 %v1894, %v1894
      %v1916 = vmul.f32 %v1895, %v1895
      %v1917 = vmul.f32 %v1896, %v1896
      %v1918 = vadd.f32 %v1910, %v1911
      %v1919 = vadd.f32 %v1918, %v1912
      %v1920 = vadd.f32 %v1919, %v1913
      %v1921 = vadd.f32 %v1920, %v1914
      %v1922 = vadd.f32 %v1921, %v1915
      %v1923 = vadd.f32 %v1922, %v1916
      %v1924 = vadd.f32 %v1923, %v1917
      %v1925 = vrot.slane %v1924, 4
      %v1926 = vadd.f32 %v1924, %v1925
      %v1927 = vrot.slane %v1926, 2
      %v1928 = vadd.f32 %v1926, %v1927
      %v1929 = vrot.slane %v1928, 1
      %v1930 = vadd.f32 %v1928, %v1929
      %v1931 = vld [vmem:[%s5] sm:$0xff]
      %v1932 = vld [vmem:[%s6] sm:$0xff]
      %v1933 = vld [vmem:[%s6 + $0x8] sm:$0xff]
      %v1934 = vld [vmem:[%s6 + $0x10] sm:$0xff]
      %v1935 = vld [vmem:[%s6 + $0x18] sm:$0xff]
      %v1936 = vld [vmem:[%s6 + $0x20] sm:$0xff]
      %v1937 = vld [vmem:[%s6 + $0x28] sm:$0xff]
      %v1938 = vld [vmem:[%s6 + $0x30] sm:$0xff]
      %v1939 = vld [vmem:[%s6 + $0x38] sm:$0xff]
      %v1940 = vld [vmem:[%s6 + $0x40] sm:$0xff]
      %v1941 = vld [vmem:[%s6 + $0x48] sm:$0xff]
      %v1942 = vld [vmem:[%s6 + $0x50] sm:$0xff]
      %v1943 = vld [vmem:[%s6 + $0x58] sm:$0xff]
      %v1944 = vld [vmem:[%s6 + $0x60] sm:$0xff]
      %v1945 = vld [vmem:[%s6 + $0x68] sm:$0xff]
      %v1946 = vld [vmem:[%s6 + $0x70] sm:$0xff]
      %v1947 = vld [vmem:[%s6 + $0x78] sm:$0xff]
      %v1948 = vld [vmem:[%s3] sm:$0x1]
      %v1949 = vld [vmem:[%s4] sm:$0x1]
      %1950 = vmatprep.subr.mxu0 0.0
      %1951 = vmatpush1.msra.mxu0 %v1932
      %1952 = vmatprep.subr.mxu0 0.0
      %1953 = vmatpush1.msra.mxu0 %v1933
      %1954 = vmatprep.subr.mxu0 0.0
      %1955 = vmatpush1.msra.mxu0 %v1934
      %1956 = vmatprep.subr.mxu0 0.0
      %1957 = vmatpush1.msra.mxu0 %v1935
      %1958 = vmatprep.subr.mxu0 0.0
      %1959 = vmatpush1.msra.mxu0 %v1936
      %1960 = vmatprep.subr.mxu0 0.0
      %1961 = vmatpush1.msra.mxu0 %v1937
      %1962 = vmatprep.subr.mxu0 0.0
      %1963 = vmatpush1.msra.mxu0 %v1938
      %1964 = vmatprep.subr.mxu0 0.0
      %1965 = vmatpush1.msra.mxu0 %v1939
      %1966 = vmatprep.subr.mxu0 0.0
      %1967 = vmatpush1.msra.mxu0 %v1940
      %1968 = vmatprep.subr.mxu0 0.0
      %1969 = vmatpush1.msra.mxu0 %v1941
      %1970 = vmatprep.subr.mxu0 0.0
      %1971 = vmatpush1.msra.mxu0 %v1942
      %1972 = vmatprep.subr.mxu0 0.0
      %1973 = vmatpush1.msra.mxu0 %v1943
      %1974 = vmatprep.subr.mxu0 0.0
      %1975 = vmatpush1.msra.mxu0 %v1944
      %1976 = vmatprep.subr.mxu0 0.0
      %1977 = vmatpush1.msra.mxu0 %v1945
      %1978 = vmatprep.subr.mxu0 0.0
      %1979 = vmatpush1.msra.mxu0 %v1946
      %1980 = vmatprep.subr.mxu0 0.0
      %1981 = vmatpush1.msra.mxu0 %v1947
      %1982 = vmatprep.subr.mxu0 0.0
      %1983 = vmatpush1.msra.mxu0 0.0
      %1984 = vmatprep.subr.mxu0 0.0
      %1985 = vmatpush1.msra.mxu0 0.0
      %1986 = vmatprep.subr.mxu0 0.0
      %1987 = vmatpush1.msra.mxu0 0.0
      %1988 = vmatprep.subr.mxu0 0.0
      %1989 = vmatpush1.msra.mxu0 0.0
      %1990 = vmatprep.subr.mxu0 0.0
      %1991 = vmatpush1.msra.mxu0 0.0
      %1992 = vmatprep.subr.mxu0 0.0
      %1993 = vmatpush1.msra.mxu0 0.0
      %1994 = vmatprep.subr.mxu0 0.0
      %1995 = vmatpush1.msra.mxu0 0.0
      %1996 = vmatprep.subr.mxu0 0.0
      %1997 = vmatpush1.msra.mxu0 0.0
      %1998 = vmatprep.subr.mxu0 0.0
      %1999 = vmatpush1.msra.mxu0 0.0
      %2000 = vmatprep.subr.mxu0 0.0
      %2001 = vmatpush1.msra.mxu0 0.0
      %2002 = vmatprep.subr.mxu0 0.0
      %2003 = vmatpush1.msra.mxu0 0.0
      %2004 = vmatprep.subr.mxu0 0.0
      %2005 = vmatpush1.msra.mxu0 0.0
      %2006 = vmatprep.subr.mxu0 0.0
      %2007 = vmatpush1.msra.mxu0 0.0
      %2008 = vmatprep.subr.mxu0 0.0
      %2009 = vmatpush1.msra.mxu0 0.0
      %2010 = vmatprep.subr.mxu0 0.0
      %2011 = vmatpush1.msra.mxu0 0.0
      %2012 = vmatprep.subr.mxu0 0.0
      %2013 = vmatpush1.msra.mxu0 0.0
      %2014 = vmatprep.mubr.f32.mxu0 0.0
      %2015 = vmatmul.mubr.f32.gmra.mrb[0].mxu0 %v1909
      %v2016 = vpop.f32.mrb[0].mxu0
      %v2017 = vadd.f32 0.0, %v2016
      %v2018 = vpop.f32.mrb[0].mxu0
      %2019 = vdwg.mxu0
      %v2020 = vmul.f32 %v2017, 0.0009765625
      %2021 = vmatprep.subr.mxu0 0.0
      %2022 = vmatpush1.msra.mxu0 %v1932
      %2023 = vmatprep.subr.mxu0 0.0
      %2024 = vmatpush1.msra.mxu0 %v1933
      %2025 = vmatprep.subr.mxu0 0.0
      %2026 = vmatpush1.msra.mxu0 %v1934
      %2027 = vmatprep.subr.mxu0 0.0
      %2028 = vmatpush1.msra.mxu0 %v1935
      %2029 = vmatprep.subr.mxu0 0.0
      %2030 = vmatpush1.msra.mxu0 %v1936
      %2031 = vmatprep.subr.mxu0 0.0
      %2032 = vmatpush1.msra.mxu0 %v1937
      %2033 = vmatprep.subr.mxu0 0.0
      %2034 = vmatpush1.msra.mxu0 %v1938
      %2035 = vmatprep.subr.mxu0 0.0
      %2036 = vmatpush1.msra.mxu0 %v1939
      %2037 = vmatprep.subr.mxu0 0.0
      %2038 = vmatpush1.msra.mxu0 %v1940
      %2039 = vmatprep.subr.mxu0 0.0
      %2040 = vmatpush1.msra.mxu0 %v1941
      %2041 = vmatprep.subr.mxu0 0.0
      %2042 = vmatpush1.msra.mxu0 %v1942
      %2043 = vmatprep.subr.mxu0 0.0
      %2044 = vmatpush1.msra.mxu0 %v1943
      %2045 = vmatprep.subr.mxu0 0.0
      %2046 = vmatpush1.msra.mxu0 %v1944
      %2047 = vmatprep.subr.mxu0 0.0
      %2048 = vmatpush1.msra.mxu0 %v1945
      %2049 = vmatprep.subr.mxu0 0.0
      %2050 = vmatpush1.msra.mxu0 %v1946
      %2051 = vmatprep.subr.mxu0 0.0
      %2052 = vmatpush1.msra.mxu0 %v1947
      %2053 = vmatprep.subr.mxu0 0.0
      %2054 = vmatpush1.msra.mxu0 0.0
      %2055 = vmatprep.subr.mxu0 0.0
      %2056 = vmatpush1.msra.mxu0 0.0
      %2057 = vmatprep.subr.mxu0 0.0
      %2058 = vmatpush1.msra.mxu0 0.0
      %2059 = vmatprep.subr.mxu0 0.0
      %2060 = vmatpush1.msra.mxu0 0.0
      %2061 = vmatprep.subr.mxu0 0.0
      %2062 = vmatpush1.msra.mxu0 0.0
      %2063 = vmatprep.subr.mxu0 0.0
      %2064 = vmatpush1.msra.mxu0 0.0
      %2065 = vmatprep.subr.mxu0 0.0
      %2066 = vmatpush1.msra.mxu0 0.0
      %2067 = vmatprep.subr.mxu0 0.0
      %2068 = vmatpush1.msra.mxu0 0.0
      %2069 = vmatprep.subr.mxu0 0.0
      %2070 = vmatpush1.msra.mxu0 0.0
      %2071 = vmatprep.subr.mxu0 0.0
      %2072 = vmatpush1.msra.mxu0 0.0
      %2073 = vmatprep.subr.mxu0 0.0
      %2074 = vmatpush1.msra.mxu0 0.0
      %2075 = vmatprep.subr.mxu0 0.0
      %2076 = vmatpush1.msra.mxu0 0.0
      %2077 = vmatprep.subr.mxu0 0.0
      %2078 = vmatpush1.msra.mxu0 0.0
      %2079 = vmatprep.subr.mxu0 0.0
      %2080 = vmatpush1.msra.mxu0 0.0
      %2081 = vmatprep.subr.mxu0 0.0
      %2082 = vmatpush1.msra.mxu0 0.0
      %2083 = vmatprep.subr.mxu0 0.0
      %2084 = vmatpush1.msra.mxu0 0.0
      %2085 = vmatprep.mubr.f32.mxu0 0.0
      %2086 = vmatmul.mubr.f32.gmra.mrb[0].mxu0 %v1930
      %v2087 = vpop.f32.mrb[0].mxu0
      %v2088 = vadd.f32 0.0, %v2087
      %v2089 = vpop.f32.mrb[0].mxu0
      %2090 = vdwg.mxu0
      %v2091 = vmul.f32 %v2088, 0.0009765625
      %v2092 = vmul.f32 %v2020, %v2020
      %v2093 = vsub.f32 %v2091, %v2092
      %v2094 = vmax.f32 %v2093, 0.0
      %v2095 = vadd.f32 %v2094, 1e-05
      %v2096 = vrsqrt.pop %v2095
      %vm2097 = vcmask 64512
      %v2099 = vsel %vm2097, %v2020, 0
      %2101 = vmatprep.subr.mxu0 0.0
      %2102 = vmatpush1.msra.mxu0 %v1931
      %2103 = vmatprep.subr.mxu0 0.0
      %2104 = vmatpush1.msra.mxu0 0.0
      %2105 = vmatprep.subr.mxu0 0.0
      %2106 = vmatpush1.msra.mxu0 0.0
      %2107 = vmatprep.subr.mxu0 0.0
      %2108 = vmatpush1.msra.mxu0 0.0
      %2109 = vmatprep.subr.mxu0 0.0
      %2110 = vmatpush1.msra.mxu0 0.0
      %2111 = vmatprep.subr.mxu0 0.0
      %2112 = vmatpush1.msra.mxu0 0.0
      %2113 = vmatprep.subr.mxu0 0.0
      %2114 = vmatpush1.msra.mxu0 0.0
      %2115 = vmatprep.subr.mxu0 0.0
      %2116 = vmatpush1.msra.mxu0 0.0
      %2117 = vmatprep.subr.mxu0 0.0
      %2118 = vmatpush1.msra.mxu0 0.0
      %2119 = vmatprep.subr.mxu0 0.0
      %2120 = vmatpush1.msra.mxu0 0.0
      %2121 = vmatprep.subr.mxu0 0.0
      %2122 = vmatpush1.msra.mxu0 0.0
      %2123 = vmatprep.subr.mxu0 0.0
      %2124 = vmatpush1.msra.mxu0 0.0
      %2125 = vmatprep.subr.mxu0 0.0
      %2126 = vmatpush1.msra.mxu0 0.0
      %2127 = vmatprep.subr.mxu0 0.0
      %2128 = vmatpush1.msra.mxu0 0.0
      %2129 = vmatprep.subr.mxu0 0.0
      %2130 = vmatpush1.msra.mxu0 0.0
      %2131 = vmatprep.subr.mxu0 0.0
      %2132 = vmatpush1.msra.mxu0 0.0
      %2133 = vmatprep.subr.mxu0 0.0
      %2134 = vmatpush1.msra.mxu0 0.0
      %2135 = vmatprep.subr.mxu0 0.0
      %2136 = vmatpush1.msra.mxu0 0.0
      %2137 = vmatprep.subr.mxu0 0.0
      %2138 = vmatpush1.msra.mxu0 0.0
      %2139 = vmatprep.subr.mxu0 0.0
      %2140 = vmatpush1.msra.mxu0 0.0
      %2141 = vmatprep.subr.mxu0 0.0
      %2142 = vmatpush1.msra.mxu0 0.0
      %2143 = vmatprep.subr.mxu0 0.0
      %2144 = vmatpush1.msra.mxu0 0.0
      %2145 = vmatprep.subr.mxu0 0.0
      %2146 = vmatpush1.msra.mxu0 0.0
      %2147 = vmatprep.subr.mxu0 0.0
      %2148 = vmatpush1.msra.mxu0 0.0
      %2149 = vmatprep.subr.mxu0 0.0
      %2150 = vmatpush1.msra.mxu0 0.0
      %2151 = vmatprep.subr.mxu0 0.0
      %2152 = vmatpush1.msra.mxu0 0.0
      %2153 = vmatprep.subr.mxu0 0.0
      %2154 = vmatpush1.msra.mxu0 0.0
      %2155 = vmatprep.subr.mxu0 0.0
      %2156 = vmatpush1.msra.mxu0 0.0
      %2157 = vmatprep.subr.mxu0 0.0
      %2158 = vmatpush1.msra.mxu0 0.0
      %2159 = vmatprep.subr.mxu0 0.0
      %2160 = vmatpush1.msra.mxu0 0.0
      %2161 = vmatprep.subr.mxu0 0.0
      %2162 = vmatpush1.msra.mxu0 0.0
      %2163 = vmatprep.subr.mxu0 0.0
      %2164 = vmatpush1.msra.mxu0 0.0
      %2165 = vmatprep.mubr.f32.mxu0 0.0
      %2166 = vmatmul.mubr.f32.gmra.mrb[0].mxu0 %v2099
      %v2167 = vpop.f32.mrb[0].mxu0
      %v2168 = vadd.f32 0.0, %v2167
      %v2169 = vpop.f32.mrb[0].mxu0
      %2170 = vdwg.mxu0
      %v2172 = vsel %vm2097, %v2096, 0
      %2174 = vmatprep.subr.mxu0 0.0
      %2175 = vmatpush1.msra.mxu0 %v1931
      %2176 = vmatprep.subr.mxu0 0.0
      %2177 = vmatpush1.msra.mxu0 0.0
      %2178 = vmatprep.subr.mxu0 0.0
      %2179 = vmatpush1.msra.mxu0 0.0
      %2180 = vmatprep.subr.mxu0 0.0
      %2181 = vmatpush1.msra.mxu0 0.0
      %2182 = vmatprep.subr.mxu0 0.0
      %2183 = vmatpush1.msra.mxu0 0.0
      %2184 = vmatprep.subr.mxu0 0.0
      %2185 = vmatpush1.msra.mxu0 0.0
      %2186 = vmatprep.subr.mxu0 0.0
      %2187 = vmatpush1.msra.mxu0 0.0
      %2188 = vmatprep.subr.mxu0 0.0
      %2189 = vmatpush1.msra.mxu0 0.0
      %2190 = vmatprep.subr.mxu0 0.0
      %2191 = vmatpush1.msra.mxu0 0.0
      %2192 = vmatprep.subr.mxu0 0.0
      %2193 = vmatpush1.msra.mxu0 0.0
      %2194 = vmatprep.subr.mxu0 0.0
      %2195 = vmatpush1.msra.mxu0 0.0
      %2196 = vmatprep.subr.mxu0 0.0
      %2197 = vmatpush1.msra.mxu0 0.0
      %2198 = vmatprep.subr.mxu0 0.0
      %2199 = vmatpush1.msra.mxu0 0.0
      %2200 = vmatprep.subr.mxu0 0.0
      %2201 = vmatpush1.msra.mxu0 0.0
      %2202 = vmatprep.subr.mxu0 0.0
      %2203 = vmatpush1.msra.mxu0 0.0
      %2204 = vmatprep.subr.mxu0 0.0
      %2205 = vmatpush1.msra.mxu0 0.0
      %2206 = vmatprep.subr.mxu0 0.0
      %2207 = vmatpush1.msra.mxu0 0.0
      %2208 = vmatprep.subr.mxu0 0.0
      %2209 = vmatpush1.msra.mxu0 0.0
      %2210 = vmatprep.subr.mxu0 0.0
      %2211 = vmatpush1.msra.mxu0 0.0
      %2212 = vmatprep.subr.mxu0 0.0
      %2213 = vmatpush1.msra.mxu0 0.0
      %2214 = vmatprep.subr.mxu0 0.0
      %2215 = vmatpush1.msra.mxu0 0.0
      %2216 = vmatprep.subr.mxu0 0.0
      %2217 = vmatpush1.msra.mxu0 0.0
      %2218 = vmatprep.subr.mxu0 0.0
      %2219 = vmatpush1.msra.mxu0 0.0
      %2220 = vmatprep.subr.mxu0 0.0
      %2221 = vmatpush1.msra.mxu0 0.0
      %2222 = vmatprep.subr.mxu0 0.0
      %2223 = vmatpush1.msra.mxu0 0.0
      %2224 = vmatprep.subr.mxu0 0.0
      %2225 = vmatpush1.msra.mxu0 0.0
      %2226 = vmatprep.subr.mxu0 0.0
      %2227 = vmatpush1.msra.mxu0 0.0
      %2228 = vmatprep.subr.mxu0 0.0
      %2229 = vmatpush1.msra.mxu0 0.0
      %2230 = vmatprep.subr.mxu0 0.0
      %2231 = vmatpush1.msra.mxu0 0.0
      %2232 = vmatprep.subr.mxu0 0.0
      %2233 = vmatpush1.msra.mxu0 0.0
      %2234 = vmatprep.subr.mxu0 0.0
      %2235 = vmatpush1.msra.mxu0 0.0
      %2236 = vmatprep.subr.mxu0 0.0
      %2237 = vmatpush1.msra.mxu0 0.0
      %2238 = vmatprep.mubr.f32.mxu0 0.0
      %2239 = vmatmul.mubr.f32.gmra.mrb[0].mxu0 %v2172
      %v2240 = vpop.f32.mrb[0].mxu0
      %v2241 = vadd.f32 0.0, %v2240
      %v2242 = vpop.f32.mrb[0].mxu0
      %2243 = vdwg.mxu0
      %v2244 = vmul.f32 %v2241, %v1948
      %v2245 = vmul.f32 %v2168, %v2244
      %v2246 = vsub.f32 %v1949, %v2245
      %v2247 = vlaneseq
      %v2248 = vshrl.u32 %v2247, 7
      %v2249 = vsub.s32 0, %v2248
      %v2250 = vrot.slane %v2244, %v2249
      %v2251 = vmul.f32 %v1889, %v2250
      %v2252 = vmul.f32 %v1890, %v2250
      %v2253 = vmul.f32 %v1891, %v2250
      %v2254 = vmul.f32 %v1892, %v2250
      %v2255 = vmul.f32 %v1893, %v2250
      %v2256 = vmul.f32 %v1894, %v2250
      %v2257 = vmul.f32 %v1895, %v2250
      %v2258 = vmul.f32 %v1896, %v2250
      %v2260 = vlaneseq
      %v2261 = vshrl.u32 %v2260, 7
      %v2262 = vsub.s32 0, %v2261
      %v2263 = vrot.slane %v2246, %v2262
      %v2265 = vadd.f32 %v2251, %v2263
      %v2266 = vadd.f32 %v2252, %v2263
      %v2267 = vadd.f32 %v2253, %v2263
      %v2268 = vadd.f32 %v2254, %v2263
      %v2269 = vadd.f32 %v2255, %v2263
      %v2270 = vadd.f32 %v2256, %v2263
      %v2271 = vadd.f32 %v2257, %v2263
      %v2272 = vadd.f32 %v2258, %v2263
      %2273 = vst [vmem:[%s278] sm:$0xf] 0
      %2274 = vst [vmem:[%s278 + $0x4] sm:$0x1] 0
      %s2275 = scalar_lea.vmem %s278, 72
      %2276 = vst [vmem:[%s2275] sm:$0xf] 0
      %2277 = vst [vmem:[%s2275 + $0x4] sm:$0x1] 0
      %s2278 = scalar_lea.vmem %s278, 8
      %vm2279 = vcmask 1040384
      %vm2280 = vsmask.f32 256
      %vm2281 = vmand %vm2279, %vm2280
      %v2282 = vld [vmem:[%s2278] sm:$0x1]
      %v2283 = vsel %vm2281, 0, %v2282
      %2284 = vst [vmem:[%s2278] sm:$0x1] %v2283
      %v2285 = vld [vmem:[%s2278 + $0x8] sm:$0x1]
      %v2286 = vsel %vm2281, 0, %v2285
      %2287 = vst [vmem:[%s2278 + $0x8] sm:$0x1] %v2286
      %v2288 = vld [vmem:[%s2278 + $0x10] sm:$0x1]
      %v2289 = vsel %vm2281, 0, %v2288
      %2290 = vst [vmem:[%s2278 + $0x10] sm:$0x1] %v2289
      %v2291 = vld [vmem:[%s2278 + $0x18] sm:$0x1]
      %v2292 = vsel %vm2281, 0, %v2291
      %2293 = vst [vmem:[%s2278 + $0x18] sm:$0x1] %v2292
      %v2294 = vld [vmem:[%s2278 + $0x20] sm:$0x1]
      %v2295 = vsel %vm2281, 0, %v2294
      %2296 = vst [vmem:[%s2278 + $0x20] sm:$0x1] %v2295
      %v2297 = vld [vmem:[%s2278 + $0x28] sm:$0x1]
      %v2298 = vsel %vm2281, 0, %v2297
      %2299 = vst [vmem:[%s2278 + $0x28] sm:$0x1] %v2298
      %v2300 = vld [vmem:[%s2278 + $0x30] sm:$0x1]
      %v2301 = vsel %vm2281, 0, %v2300
      %2302 = vst [vmem:[%s2278 + $0x30] sm:$0x1] %v2301
      %v2303 = vld [vmem:[%s2278 + $0x38] sm:$0x1]
      %v2304 = vsel %vm2281, 0, %v2303
      %2305 = vst [vmem:[%s2278 + $0x38] sm:$0x1] %v2304
      %vm2306 = vsmask.f32 7938
      %vm2307 = vmand %vm2279, %vm2306
      %v2308 = vld [vmem:[%s2278 + $0x4] sm:$0x1]
      %v2309 = vsel %vm2307, 0, %v2308
      %2310 = vst [vmem:[%s2278 + $0x4] sm:$0x1] %v2309
      %v2311 = vld [vmem:[%s2278 + $0xc] sm:$0x1]
      %v2312 = vsel %vm2307, 0, %v2311
      %2313 = vst [vmem:[%s2278 + $0xc] sm:$0x1] %v2312
      %v2314 = vld [vmem:[%s2278 + $0x14] sm:$0x1]
      %v2315 = vsel %vm2307, 0, %v2314
      %2316 = vst [vmem:[%s2278 + $0x14] sm:$0x1] %v2315
      %v2317 = vld [vmem:[%s2278 + $0x1c] sm:$0x1]
      %v2318 = vsel %vm2307, 0, %v2317
      %2319 = vst [vmem:[%s2278 + $0x1c] sm:$0x1] %v2318
      %v2320 = vld [vmem:[%s2278 + $0x24] sm:$0x1]
      %v2321 = vsel %vm2307, 0, %v2320
      %2322 = vst [vmem:[%s2278 + $0x24] sm:$0x1] %v2321
      %v2323 = vld [vmem:[%s2278 + $0x2c] sm:$0x1]
      %v2324 = vsel %vm2307, 0, %v2323
      %2325 = vst [vmem:[%s2278 + $0x2c] sm:$0x1] %v2324
      %v2326 = vld [vmem:[%s2278 + $0x34] sm:$0x1]
      %v2327 = vsel %vm2307, 0, %v2326
      %2328 = vst [vmem:[%s2278 + $0x34] sm:$0x1] %v2327
      %v2329 = vld [vmem:[%s2278 + $0x3c] sm:$0x1]
      %v2330 = vsel %vm2307, 0, %v2329
      %2331 = vst [vmem:[%s2278 + $0x3c] sm:$0x1] %v2330
      %v2332 = vpack.c.bf16 %v2265, %v2265
      %v2333 = vpack.c.bf16 %v2266, %v2266
      %v2334 = vpack.c.bf16 %v2267, %v2267
      %v2335 = vpack.c.bf16 %v2268, %v2268
      %v2336 = vpack.c.bf16 %v2269, %v2269
      %v2337 = vpack.c.bf16 %v2270, %v2270
      %v2338 = vpack.c.bf16 %v2271, %v2271
      %v2339 = vpack.c.bf16 %v2272, %v2272
      %v2348 = vunpack.c.l.b16 %v2332
      %v2349 = vunpack.c.l.b16 %v2333
      %v2350 = vunpack.c.l.b16 %v2334
      %v2351 = vunpack.c.l.b16 %v2335
      %v2352 = vunpack.c.l.b16 %v2336
      %v2353 = vunpack.c.l.b16 %v2337
      %v2354 = vunpack.c.l.b16 %v2338
      %v2355 = vunpack.c.l.b16 %v2339
      %v2356 = vpack.c.b16 %v2348, %v2348
      %v2357 = vpack.c.b16 %v2349, %v2349
      %v2358 = vpack.c.b16 %v2350, %v2350
      %v2359 = vpack.c.b16 %v2351, %v2351
      %v2360 = vpack.c.b16 %v2352, %v2352
      %v2361 = vpack.c.b16 %v2353, %v2353
      %v2362 = vpack.c.b16 %v2354, %v2354
      %v2363 = vpack.c.b16 %v2355, %v2355
      %v2365 = vshrl.u32 %v2356, 16
      %v2367 = vrot.slane %v2365, 7
      %v2368 = vshll.u32 %v2356, 16
      %v2370 = vor.u32 %v2367, %v2368
      %v2371 = vrot.slane %v2367, 4
      %v2373 = vshrl.u32 %v2357, 16
      %v2375 = vrot.slane %v2373, 7
      %v2376 = vshll.u32 %v2357, 16
      %v2378 = vor.u32 %v2375, %v2376
      %v2379 = vrot.slane %v2375, 4
      %v2381 = vshrl.u32 %v2358, 16
      %v2383 = vrot.slane %v2381, 7
      %v2384 = vshll.u32 %v2358, 16
      %v2386 = vor.u32 %v2383, %v2384
      %v2387 = vrot.slane %v2383, 4
      %v2389 = vshrl.u32 %v2359, 16
      %v2391 = vrot.slane %v2389, 7
      %v2392 = vshll.u32 %v2359, 16
      %v2394 = vor.u32 %v2391, %v2392
      %v2395 = vrot.slane %v2391, 4
      %v2397 = vshrl.u32 %v2360, 16
      %v2399 = vrot.slane %v2397, 7
      %v2400 = vshll.u32 %v2360, 16
      %v2402 = vor.u32 %v2399, %v2400
      %v2403 = vrot.slane %v2399, 4
      %v2405 = vshrl.u32 %v2361, 16
      %v2407 = vrot.slane %v2405, 7
      %v2408 = vshll.u32 %v2361, 16
      %v2410 = vor.u32 %v2407, %v2408
      %v2411 = vrot.slane %v2407, 4
      %v2413 = vshrl.u32 %v2362, 16
      %v2415 = vrot.slane %v2413, 7
      %v2416 = vshll.u32 %v2362, 16
      %v2418 = vor.u32 %v2415, %v2416
      %v2419 = vrot.slane %v2415, 4
      %v2421 = vshrl.u32 %v2363, 16
      %v2423 = vrot.slane %v2421, 7
      %v2424 = vshll.u32 %v2363, 16
      %v2426 = vor.u32 %v2423, %v2424
      %v2427 = vrot.slane %v2423, 4
      %vm2444 = vcmask 1043456
      %vm2445 = vmand %vm2444, %vm2306
      %v2446 = vld [vmem:[%s2278] sm:$0xf]
      %v2447 = vsel %vm2445, %v2370, %v2446
      %2448 = vst [vmem:[%s2278] sm:$0xf] %v2447
      %v2449 = vld [vmem:[%s2278 + $0x4] sm:$0x1]
      %v2450 = vsel %vm2281, %v2371, %v2449
      %2451 = vst [vmem:[%s2278 + $0x4] sm:$0x1] %v2450
      %v2452 = vld [vmem:[%s2278 + $0x8] sm:$0xf]
      %v2453 = vsel %vm2445, %v2378, %v2452
      %2454 = vst [vmem:[%s2278 + $0x8] sm:$0xf] %v2453
      %v2455 = vld [vmem:[%s2278 + $0xc] sm:$0x1]
      %v2456 = vsel %vm2281, %v2379, %v2455
      %2457 = vst [vmem:[%s2278 + $0xc] sm:$0x1] %v2456
      %v2458 = vld [vmem:[%s2278 + $0x10] sm:$0xf]
      %v2459 = vsel %vm2445, %v2386, %v2458
      %2460 = vst [vmem:[%s2278 + $0x10] sm:$0xf] %v2459
      %v2461 = vld [vmem:[%s2278 + $0x14] sm:$0x1]
      %v2462 = vsel %vm2281, %v2387, %v2461
      %2463 = vst [vmem:[%s2278 + $0x14] sm:$0x1] %v2462
      %v2464 = vld [vmem:[%s2278 + $0x18] sm:$0xf]
      %v2465 = vsel %vm2445, %v2394, %v2464
      %2466 = vst [vmem:[%s2278 + $0x18] sm:$0xf] %v2465
      %v2467 = vld [vmem:[%s2278 + $0x1c] sm:$0x1]
      %v2468 = vsel %vm2281, %v2395, %v2467
      %2469 = vst [vmem:[%s2278 + $0x1c] sm:$0x1] %v2468
      %v2470 = vld [vmem:[%s2278 + $0x20] sm:$0xf]
      %v2471 = vsel %vm2445, %v2402, %v2470
      %2472 = vst [vmem:[%s2278 + $0x20] sm:$0xf] %v2471
      %v2473 = vld [vmem:[%s2278 + $0x24] sm:$0x1]
      %v2474 = vsel %vm2281, %v2403, %v2473
      %2475 = vst [vmem:[%s2278 + $0x24] sm:$0x1] %v2474
      %v2476 = vld [vmem:[%s2278 + $0x28] sm:$0xf]
      %v2477 = vsel %vm2445, %v2410, %v2476
      %2478 = vst [vmem:[%s2278 + $0x28] sm:$0xf] %v2477
      %v2479 = vld [vmem:[%s2278 + $0x2c] sm:$0x1]
      %v2480 = vsel %vm2281, %v2411, %v2479
      %2481 = vst [vmem:[%s2278 + $0x2c] sm:$0x1] %v2480
      %v2482 = vld [vmem:[%s2278 + $0x30] sm:$0xf]
      %v2483 = vsel %vm2445, %v2418, %v2482
      %2484 = vst [vmem:[%s2278 + $0x30] sm:$0xf] %v2483
      %v2485 = vld [vmem:[%s2278 + $0x34] sm:$0x1]
      %v2486 = vsel %vm2281, %v2419, %v2485
      %2487 = vst [vmem:[%s2278 + $0x34] sm:$0x1] %v2486
      %v2488 = vld [vmem:[%s2278 + $0x38] sm:$0xf]
      %v2489 = vsel %vm2445, %v2426, %v2488
      %2490 = vst [vmem:[%s2278 + $0x38] sm:$0xf] %v2489
      %v2491 = vld [vmem:[%s2278 + $0x3c] sm:$0x1]
      %v2492 = vsel %vm2281, %v2427, %v2491
      %2493 = vst [vmem:[%s2278 + $0x3c] sm:$0x1] %v2492
      %p2494 = scmp.lt.s32.totalorder %s18, 1
      %s2495 = scalar_select %p2494, %s18, 1
      %s2496 = smul.addr %s2495, 20
      %s2497 = smul.addr %s2496, 4
      %s2498 = scalar_lea.vmem %s7, %s2497
      // Predicated region
      $region49: #{mnist_cnn_forward.5} parent=47 // pred_check
        %p2499 = pneg %p188
      $region50: #{mnist_cnn_forward.5} parent=47 // pred_check_branch
        %2501 = sbr.rel (%p2499) target = $region52
      $region51: #{mnist_cnn_forward.5} parent=47 // pred_region
        _
      $region52: #{mnist_cnn_forward.5} parent=47 // pred_fallthru
        _
    $region48: #{mnist_cnn_forward.5} parent=5 // pred_fallthru
      _
    %p2502 = scmp.le.s32.totalorder 2, %s13
    // Predicated region
    $region53: #{mnist_cnn_forward.5} parent=5 // pred_check
      %p2503 = pneg %p2502
    $region54: #{mnist_cnn_forward.5} parent=5 // pred_check_branch
      %2505 = sbr.rel (%p2503) target = $region56
    $region55: #{mnist_cnn_forward.5} parent=5 // pred_region
      %s2506 = ssub.s32 %s13, 2
      // Predicated region
      $region57: #{mnist_cnn_forward.5} parent=55 // pred_check
        %p2507 = pneg %p194
      $region58: #{mnist_cnn_forward.5} parent=55 // pred_check_branch
        %2509 = sbr.rel (%p2507) target = $region60
      $region59: #{mnist_cnn_forward.5} parent=55 // pred_region
        %p2510 = scmp.lt.s32.totalorder %s19, 1
        %s2511 = scalar_select %p2510, %s19, 1
        %s2512 = smul.addr %s2511, 20
        %s2513 = smul.addr %s2512, 4
        %s2514 = scalar_lea.vmem %s7, %s2513
      $region60: #{mnist_cnn_forward.5} parent=55 // pred_fallthru
        _
    $region56: #{mnist_cnn_forward.5} parent=5 // pred_fallthru
      _
  $region6: #{mnist_cnn_forward.5} parent=0 // loop_footer
    %s17 = sadd.s32 1, %s13
  $region7: #{mnist_cnn_forward.5} parent=0 // loop_footer_branch
    %12 = sbr.rel target = $region3
  $region8: #{mnist_cnn_forward.5} parent=0 // loop_exit
    _

// kernel: mnist_cnn_forward.7
$region0: #{mnist_cnn_forward.7}
  #allocation0 [shape = 'u32[]', space=smem, size = 0x4, offset = 0x4, fixed_abs, tag = 'smem constant byte address 0x4 - core index']
  #allocation1 [shape = 'u32[144,128]{1,0:T(1,128)}', space=vmem, size = 0x12000, scoped, tag = 'internal scratch']
  #allocation2 [shape = 'bf16[64,1152]{1,0:T(16,128)(2,1)}', space=vmem, size = 0x24000, scoped, tag = 'scratch operand']
  %s0 = inlined_call_operand.vmem [shape: bf16[2,10,10,128], index: 0, kind: input, shape index: {}]
  %s1 = inlined_call_operand.vmem [shape: bf16[1152,128], index: 1, kind: input, shape index: {}]
  %s2 = inlined_call_operand.vmem [shape: f32[1,128], index: 2, kind: input, shape index: {}]
  %s3 = inlined_call_operand.vmem [shape: f32[1,128], index: 3, kind: input, shape index: {}]
  %s4 = inlined_call_operand.vmem [shape: f32[1,128], index: 4, kind: input, shape index: {}]
  %s5 = inlined_call_operand.vmem [shape: f32[8,128], index: 5, kind: input, shape index: {}]
  %s6 = inlined_call_operand.vmem [shape: f32[128,8], index: 6, kind: input, shape index: {}]
  %s7 = inlined_call_operand.vmem [shape: f32[128,128], index: 7, kind: input, shape index: {}]
  %s8 = inlined_call_operand.vmem [shape: f32[1,128], index: 8, kind: input, shape index: {}]
  %s9 = inlined_call_operand.hbm [shape: f32[2,1,128], index: 9, kind: output, shape index: {}]
  %s10 = sld [smem:[#allocation0]]
  $region69: #{mnist_cnn_forward.7} parent=0
    _
  %s12 = ssub.s32 1, %s10
  %s13 = scalar_select 0, %s12, %s10
  $region1: #{mnist_cnn_forward.7} parent=0
    #allocation3 [shape = 'u8[1024]{0}', space=vmem, size = 0x400, scoped, tag = 'output window, operand 0']
    #allocation4 [shape = 's32[2]{0}', space=sflag, size = 0x8, scoped, tag = 'scoped memory for mnist_cnn_forward.7']
    %14 = vsyncpa [#allocation4], 0
    %s15 = scalar_lea.sflag [#allocation4], 1
    %16 = vsyncpa %s15, 0
    loop: start=0, step=1, limit=4
    $region2: #{mnist_cnn_forward.7} parent=1 // loop_pre_header
      _
    $region3: #{mnist_cnn_forward.7} parent=1 // loop_header
      %s18 = sphi 0, %s22
      %p19 = scmp.ge.s32.totalorder %s18, 4
      %s28 = sphi 0, %s30
      %s31 = sphi 0, %s28
      %s32 = sphi 0, %s31
      %s48 = sphi 0, %s32
      %s52 = sphi 0, %s52
      %s54 = sphi 0, %s52
      %s55 = sphi 0, %s54
      %s69 = sphi 0, %s55
      %s73 = sphi 0, %s73
      %s75 = sphi 0, %s73
      %s76 = sphi 0, %s75
      %s90 = sphi 0, %s76
      %s94 = sphi 0, %s94
      %s96 = sphi 0, %s94
      %s97 = sphi 0, %s96
      %s111 = sphi 0, %s97
      %s115 = sphi 0, %s115
      %s117 = sphi 0, %s115
      %s118 = sphi 0, %s117
      %s132 = sphi 0, %s118
      %s136 = sphi 0, %s136
      %s138 = sphi 0, %s136
      %s139 = sphi 0, %s138
      %s153 = sphi 0, %s139
      %s157 = sphi 0, %s157
      %s159 = sphi 0, %s157
      %s160 = sphi 0, %s159
      %s174 = sphi 0, %s160
      %s178 = sphi 0, %s178
      %s180 = sphi 0, %s178
      %s181 = sphi 0, %s180
      %s195 = sphi 0, %s181
      %s199 = sphi 0, %s199
      %s201 = sphi 0, %s199
      %s202 = sphi 0, %s201
      %s216 = sphi 0, %s202
      %s222 = sphi 0, %s224
      %s225 = sphi 0, %s222
      %s226 = sphi 0, %s225
      %s242 = sphi 0, %s226
    $region4: #{mnist_cnn_forward.7} parent=1 // loop_header_branch
      %21 = sbr.rel (%p19) target = $region8
    $region5: #{mnist_cnn_forward.7} parent=1 // loop_body
      %s23 = ssub.s32 %s18, 1
      %s24 = ssub.s32 %s18, 2
      %s25 = sadd.s32 %s18, 1
      %s26 = ssub.s32 %s18, %s25
      %p27 = scmp.eq.s32.totalorder %s26, 0
      %s29 = sadd.s32 %s28, 1
      %s30 = scalar_select %p27, %s28, %s29
      %p33 = pneg %p27
      %p34 = scmp.eq.s32.totalorder %s18, 1
      %p35 = por %p33, %p34
      %p36 = scmp.ne.s32.totalorder %s28, %s31
      %p37 = scmp.eq.s32.totalorder %s18, 0
      %p38 = por %p36, %p37
      %p39 = scmp.ne.s32.totalorder %s28, %s31
      %p40 = scmp.eq.s32.totalorder %s23, 1
      %p41 = por %p39, %p40
      %p42 = scmp.ne.s32.totalorder %s31, %s32
      %p43 = scmp.eq.s32.totalorder %s23, 0
      %p44 = por %p42, %p43
      %p45 = scmp.ne.s32.totalorder %s31, %s32
      %p46 = scmp.eq.s32.totalorder %s24, 1
      %p47 = por %p45, %p46
      %p49 = scmp.ne.s32.totalorder %s32, %s48
      %p50 = scmp.eq.s32.totalorder %s24, 0
      %p51 = por %p49, %p50
      %s53 = sadd.s32 %s52, 1
      %p56 = scmp.eq.s32.totalorder %s18, 1
      %p57 = scmp.ne.s32.totalorder %s52, %s54
      %p58 = scmp.eq.s32.totalorder %s18, 0
      %p59 = por %p57, %p58
      %p60 = scmp.ne.s32.totalorder %s52, %s54
      %p61 = scmp.eq.s32.totalorder %s23, 1
      %p62 = por %p60, %p61
      %p63 = scmp.ne.s32.totalorder %s54, %s55
      %p64 = scmp.eq.s32.totalorder %s23, 0
      %p65 = por %p63, %p64
      %p66 = scmp.ne.s32.totalorder %s54, %s55
      %p67 = scmp.eq.s32.totalorder %s24, 1
      %p68 = por %p66, %p67
      %p70 = scmp.ne.s32.totalorder %s55, %s69
      %p71 = scmp.eq.s32.totalorder %s24, 0
      %p72 = por %p70, %p71
      %s74 = sadd.s32 %s73, 1
      %p77 = scmp.eq.s32.totalorder %s18, 1
      %p78 = scmp.ne.s32.totalorder %s73, %s75
      %p79 = scmp.eq.s32.totalorder %s18, 0
      %p80 = por %p78, %p79
      %p81 = scmp.ne.s32.totalorder %s73, %s75
      %p82 = scmp.eq.s32.totalorder %s23, 1
      %p83 = por %p81, %p82
      %p84 = scmp.ne.s32.totalorder %s75, %s76
      %p85 = scmp.eq.s32.totalorder %s23, 0
      %p86 = por %p84, %p85
      %p87 = scmp.ne.s32.totalorder %s75, %s76
      %p88 = scmp.eq.s32.totalorder %s24, 1
      %p89 = por %p87, %p88
      %p91 = scmp.ne.s32.totalorder %s76, %s90
      %p92 = scmp.eq.s32.totalorder %s24, 0
      %p93 = por %p91, %p92
      %s95 = sadd.s32 %s94, 1
      %p98 = scmp.eq.s32.totalorder %s18, 1
      %p99 = scmp.ne.s32.totalorder %s94, %s96
      %p100 = scmp.eq.s32.totalorder %s18, 0
      %p101 = por %p99, %p100
      %p102 = scmp.ne.s32.totalorder %s94, %s96
      %p103 = scmp.eq.s32.totalorder %s23, 1
      %p104 = por %p102, %p103
      %p105 = scmp.ne.s32.totalorder %s96, %s97
      %p106 = scmp.eq.s32.totalorder %s23, 0
      %p107 = por %p105, %p106
      %p108 = scmp.ne.s32.totalorder %s96, %s97
      %p109 = scmp.eq.s32.totalorder %s24, 1
      %p110 = por %p108, %p109
      %p112 = scmp.ne.s32.totalorder %s97, %s111
      %p113 = scmp.eq.s32.totalorder %s24, 0
      %p114 = por %p112, %p113
      %s116 = sadd.s32 %s115, 1
      %p119 = scmp.eq.s32.totalorder %s18, 1
      %p120 = scmp.ne.s32.totalorder %s115, %s117
      %p121 = scmp.eq.s32.totalorder %s18, 0
      %p122 = por %p120, %p121
      %p123 = scmp.ne.s32.totalorder %s115, %s117
      %p124 = scmp.eq.s32.totalorder %s23, 1
      %p125 = por %p123, %p124
      %p126 = scmp.ne.s32.totalorder %s117, %s118
      %p127 = scmp.eq.s32.totalorder %s23, 0
      %p128 = por %p126, %p127
      %p129 = scmp.ne.s32.totalorder %s117, %s118
      %p130 = scmp.eq.s32.totalorder %s24, 1
      %p131 = por %p129, %p130
      %p133 = scmp.ne.s32.totalorder %s118, %s132
      %p134 = scmp.eq.s32.totalorder %s24, 0
      %p135 = por %p133, %p134
      %s137 = sadd.s32 %s136, 1
      %p140 = scmp.eq.s32.totalorder %s18, 1
      %p141 = scmp.ne.s32.totalorder %s136, %s138
      %p142 = scmp.eq.s32.totalorder %s18, 0
      %p143 = por %p141, %p142
      %p144 = scmp.ne.s32.totalorder %s136, %s138
      %p145 = scmp.eq.s32.totalorder %s23, 1
      %p146 = por %p144, %p145
      %p147 = scmp.ne.s32.totalorder %s138, %s139
      %p148 = scmp.eq.s32.totalorder %s23, 0
      %p149 = por %p147, %p148
      %p150 = scmp.ne.s32.totalorder %s138, %s139
      %p151 = scmp.eq.s32.totalorder %s24, 1
      %p152 = por %p150, %p151
      %p154 = scmp.ne.s32.totalorder %s139, %s153
      %p155 = scmp.eq.s32.totalorder %s24, 0
      %p156 = por %p154, %p155
      %s158 = sadd.s32 %s157, 1
      %p161 = scmp.eq.s32.totalorder %s18, 1
      %p162 = scmp.ne.s32.totalorder %s157, %s159
      %p163 = scmp.eq.s32.totalorder %s18, 0
      %p164 = por %p162, %p163
      %p165 = scmp.ne.s32.totalorder %s157, %s159
      %p166 = scmp.eq.s32.totalorder %s23, 1
      %p167 = por %p165, %p166
      %p168 = scmp.ne.s32.totalorder %s159, %s160
      %p169 = scmp.eq.s32.totalorder %s23, 0
      %p170 = por %p168, %p169
      %p171 = scmp.ne.s32.totalorder %s159, %s160
      %p172 = scmp.eq.s32.totalorder %s24, 1
      %p173 = por %p171, %p172
      %p175 = scmp.ne.s32.totalorder %s160, %s174
      %p176 = scmp.eq.s32.totalorder %s24, 0
      %p177 = por %p175, %p176
      %s179 = sadd.s32 %s178, 1
      %p182 = scmp.eq.s32.totalorder %s18, 1
      %p183 = scmp.ne.s32.totalorder %s178, %s180
      %p184 = scmp.eq.s32.totalorder %s18, 0
      %p185 = por %p183, %p184
      %p186 = scmp.ne.s32.totalorder %s178, %s180
      %p187 = scmp.eq.s32.totalorder %s23, 1
      %p188 = por %p186, %p187
      %p189 = scmp.ne.s32.totalorder %s180, %s181
      %p190 = scmp.eq.s32.totalorder %s23, 0
      %p191 = por %p189, %p190
      %p192 = scmp.ne.s32.totalorder %s180, %s181
      %p193 = scmp.eq.s32.totalorder %s24, 1
      %p194 = por %p192, %p193
      %p196 = scmp.ne.s32.totalorder %s181, %s195
      %p197 = scmp.eq.s32.totalorder %s24, 0
      %p198 = por %p196, %p197
      %s200 = sadd.s32 %s199, 1
      %p203 = scmp.eq.s32.totalorder %s18, 1
      %p204 = scmp.ne.s32.totalorder %s199, %s201
      %p205 = scmp.eq.s32.totalorder %s18, 0
      %p206 = por %p204, %p205
      %p207 = scmp.ne.s32.totalorder %s199, %s201
      %p208 = scmp.eq.s32.totalorder %s23, 1
      %p209 = por %p207, %p208
      %p210 = scmp.ne.s32.totalorder %s201, %s202
      %p211 = scmp.eq.s32.totalorder %s23, 0
      %p212 = por %p210, %p211
      %p213 = scmp.ne.s32.totalorder %s201, %s202
      %p214 = scmp.eq.s32.totalorder %s24, 1
      %p215 = por %p213, %p214
      %p217 = scmp.ne.s32.totalorder %s202, %s216
      %p218 = scmp.eq.s32.totalorder %s24, 0
      %p219 = por %p217, %p218
      %s220 = ssub.s32 %s18, %s25
      %p221 = scmp.eq.s32.totalorder %s220, 0
      %s223 = sadd.s32 %s222, 1
      %s224 = scalar_select %p221, %s222, %s223
      %p227 = pneg %p221
      %p228 = scmp.eq.s32.totalorder %s18, 1
      %p229 = por %p227, %p228
      %p230 = scmp.ne.s32.totalorder %s222, %s225
      %p231 = scmp.eq.s32.totalorder %s18, 0
      %p232 = por %p230, %p231
      %p233 = scmp.ne.s32.totalorder %s222, %s225
      %p234 = scmp.eq.s32.totalorder %s23, 1
      %p235 = por %p233, %p234
      %p236 = scmp.ne.s32.totalorder %s225, %s226
      %p237 = scmp.eq.s32.totalorder %s23, 0
      %p238 = por %p236, %p237
      %p239 = scmp.ne.s32.totalorder %s225, %s226
      %p240 = scmp.eq.s32.totalorder %s24, 1
      %p241 = por %p239, %p240
      %p243 = scmp.ne.s32.totalorder %s226, %s242
      %p244 = scmp.eq.s32.totalorder %s24, 0
      %p245 = por %p243, %p244
      %p246 = scmp.le.s32.totalorder 1, %s18
      %p247 = scmp.lt.s32.totalorder %s18, 3
      %p248 = pnand %p246, %p247
      %p249 = pneg %p248
      // Predicated region
      $region9: #{mnist_cnn_forward.7} parent=5 // pred_check
        _
      $region10: #{mnist_cnn_forward.7} parent=5 // pred_check_branch
        %251 = sbr.rel (%p248) target = $region12
      $region11: #{mnist_cnn_forward.7} parent=5 // pred_region
        %s252 = ssub.s32 %s18, 1
        // Predicated region
        $region13: #{mnist_cnn_forward.7} parent=11 // pred_check
          %p253 = pneg %p65
        $region14: #{mnist_cnn_forward.7} parent=11 // pred_check_branch
          %255 = sbr.rel (%p253) target = $region16
        $region15: #{mnist_cnn_forward.7} parent=11 // pred_region
          _
        $region16: #{mnist_cnn_forward.7} parent=11 // pred_fallthru
          _
        // Predicated region
        $region17: #{mnist_cnn_forward.7} parent=11 // pred_check
          %p256 = pneg %p86
        $region18: #{mnist_cnn_forward.7} parent=11 // pred_check_branch
          %258 = sbr.rel (%p256) target = $region20
        $region19: #{mnist_cnn_forward.7} parent=11 // pred_region
          _
        $region20: #{mnist_cnn_forward.7} parent=11 // pred_fallthru
          _
        // Predicated region
        $region21: #{mnist_cnn_forward.7} parent=11 // pred_check
          %p259 = pneg %p107
        $region22: #{mnist_cnn_forward.7} parent=11 // pred_check_branch
          %261 = sbr.rel (%p259) target = $region24
        $region23: #{mnist_cnn_forward.7} parent=11 // pred_region
          _
        $region24: #{mnist_cnn_forward.7} parent=11 // pred_fallthru
          _
        // Predicated region
        $region25: #{mnist_cnn_forward.7} parent=11 // pred_check
          %p262 = pneg %p128
        $region26: #{mnist_cnn_forward.7} parent=11 // pred_check_branch
          %264 = sbr.rel (%p262) target = $region28
        $region27: #{mnist_cnn_forward.7} parent=11 // pred_region
          _
        $region28: #{mnist_cnn_forward.7} parent=11 // pred_fallthru
          _
        // Predicated region
        $region29: #{mnist_cnn_forward.7} parent=11 // pred_check
          %p265 = pneg %p149
        $region30: #{mnist_cnn_forward.7} parent=11 // pred_check_branch
          %267 = sbr.rel (%p265) target = $region32
        $region31: #{mnist_cnn_forward.7} parent=11 // pred_region
          _
        $region32: #{mnist_cnn_forward.7} parent=11 // pred_fallthru
          _
        // Predicated region
        $region33: #{mnist_cnn_forward.7} parent=11 // pred_check
          %p268 = pneg %p170
        $region34: #{mnist_cnn_forward.7} parent=11 // pred_check_branch
          %270 = sbr.rel (%p268) target = $region36
        $region35: #{mnist_cnn_forward.7} parent=11 // pred_region
          _
        $region36: #{mnist_cnn_forward.7} parent=11 // pred_fallthru
          _
        // Predicated region
        $region37: #{mnist_cnn_forward.7} parent=11 // pred_check
          %p271 = pneg %p191
        $region38: #{mnist_cnn_forward.7} parent=11 // pred_check_branch
          %273 = sbr.rel (%p271) target = $region40
        $region39: #{mnist_cnn_forward.7} parent=11 // pred_region
          _
        $region40: #{mnist_cnn_forward.7} parent=11 // pred_fallthru
          _
        // Predicated region
        $region41: #{mnist_cnn_forward.7} parent=11 // pred_check
          %p274 = pneg %p212
        $region42: #{mnist_cnn_forward.7} parent=11 // pred_check_branch
          %276 = sbr.rel (%p274) target = $region44
        $region43: #{mnist_cnn_forward.7} parent=11 // pred_region
          _
        $region44: #{mnist_cnn_forward.7} parent=11 // pred_fallthru
          _
      $region12: #{mnist_cnn_forward.7} parent=5 // pred_fallthru
        _
      %p277 = scmp.lt.s32.totalorder %s18, 2
      // Predicated region
      $region45: #{mnist_cnn_forward.7} parent=5 // pred_check
        %p278 = pneg %p277
      $region46: #{mnist_cnn_forward.7} parent=5 // pred_check_branch
        %280 = sbr.rel (%p278) target = $region48
      $region47: #{mnist_cnn_forward.7} parent=5 // pred_region
        // Predicated region
        $region49: #{mnist_cnn_forward.7} parent=47 // pred_check
          %p281 = pneg %p38
        $region50: #{mnist_cnn_forward.7} parent=47 // pred_check_branch
          %283 = sbr.rel (%p281) target = $region52
        $region51: #{mnist_cnn_forward.7} parent=47 // pred_region
          %p284 = scmp.lt.s32.totalorder %s18, 1
          %s285 = scalar_select %p284, %s18, 1
          %s286 = smul.addr %s285, 20
          %s287 = smul.addr %s286, 4
          %s288 = scalar_lea.vmem %s0, %s287
        $region52: #{mnist_cnn_forward.7} parent=47 // pred_fallthru
          _
      $region48: #{mnist_cnn_forward.7} parent=5 // pred_fallthru
        _
      %p289 = scmp.le.s32.totalorder 1, %s18
      %p290 = scmp.lt.s32.totalorder %s18, 3
      %p291 = pnand %p289, %p290
      %p292 = pneg %p291
      // Predicated region
      $region53: #{mnist_cnn_forward.7} parent=5 // pred_check
        _
      $region54: #{mnist_cnn_forward.7} parent=5 // pred_check_branch
        %294 = sbr.rel (%p291) target = $region56
      $region55: #{mnist_cnn_forward.7} parent=5 // pred_region
        %s295 = ssub.s32 %s18, 1
        %p296 = scmp.lt.s32.totalorder %s23, 1
        %s297 = scalar_select %p296, %s23, 1
        %s298 = smul.addr %s297, 20
        %s299 = smul.addr %s298, 4
        %s300 = scalar_lea.vmem %s0, %s299
        %p301 = pneg %p44
        %p302 = pneg %p41
        %p303 = pneg %p65
        %p304 = pneg %p62
        %p305 = pneg %p86
        %p306 = pneg %p83
        %p307 = pneg %p107
        %p308 = pneg %p104
        %p309 = pneg %p128
        %p310 = pneg %p125
        %p311 = pneg %p149
        %p312 = pneg %p146
        %p313 = pneg %p170
        %p314 = pneg %p167
        %p315 = pneg %p191
        %p316 = pneg %p188
        %p317 = pneg %p212
        %p318 = pneg %p209
        %p319 = pneg %p238
        %p320 = pneg %p235
        %s321 = sand.u32 %s225, 1
        %s322 = scalar_lea.sflag [#allocation4], %s321
        %s323 = sand.u32 %s225, 1
        %s324 = scalar_lea.vmem [#allocation3], %s323
        %p325 = scmp.lt.s32.totalorder %s23, 1
        %s326 = scalar_select %p325, %s23, 1
        %s327 = smul.addr %s326, 20
        %s328 = smul.addr %s327, 4
        %s329 = scalar_lea.vmem %s0, %s328
        %v331 = vld [vmem:[%s329] sm:$0xf]
        %v332 = vld [vmem:[%s329 + $0x8] sm:$0xf]
        %v333 = vld [vmem:[%s329 + $0x10] sm:$0xf]
        %v334 = vld [vmem:[%s329 + $0x18] sm:$0xf]
        %v335 = vld [vmem:[%s329 + $0x20] sm:$0xf]
        %v336 = vld [vmem:[%s329 + $0x28] sm:$0xf]
        %v337 = vld [vmem:[%s329 + $0x30] sm:$0xf]
        %v338 = vld [vmem:[%s329 + $0x38] sm:$0xf]
        %v347 = vunpack.c.l.b16 %v331
        %v348 = vunpack.c.l.b16 %v332
        %v349 = vunpack.c.l.b16 %v333
        %v350 = vunpack.c.l.b16 %v334
        %v351 = vunpack.c.l.b16 %v335
        %v352 = vunpack.c.l.b16 %v336
        %v353 = vunpack.c.l.b16 %v337
        %v354 = vunpack.c.l.b16 %v338
        %v355 = vpack.c.b16 %v348, %v347
        %v356 = vpack.c.b16 %v350, %v349
        %v357 = vpack.c.b16 %v352, %v351
        %v358 = vpack.c.b16 %v354, %v353
        %363 = vst [vmem:[#allocation2] sm:$0xff] %v355
        %364 = vst [vmem:[#allocation2 + $0x48] sm:$0xff] %v356
        %365 = vst [vmem:[#allocation2 + $0x90] sm:$0xff] %v357
        %366 = vst [vmem:[#allocation2 + $0xd8] sm:$0xff] %v358
        %v367 = vld [vmem:[%s329] sm:$0xf]
        %v368 = vld [vmem:[%s329 + $0x4] sm:$0x1]
        %v369 = vld [vmem:[%s329 + $0x8] sm:$0xf]
        %v370 = vld [vmem:[%s329 + $0xc] sm:$0x1]
        %v371 = vld [vmem:[%s329 + $0x10] sm:$0xf]
        %v372 = vld [vmem:[%s329 + $0x14] sm:$0x1]
        %v373 = vld [vmem:[%s329 + $0x18] sm:$0xf]
        %v374 = vld [vmem:[%s329 + $0x1c] sm:$0x1]
        %v375 = vld [vmem:[%s329 + $0x20] sm:$0xf]
        %v376 = vld [vmem:[%s329 + $0x24] sm:$0x1]
        %v377 = vld [vmem:[%s329 + $0x28] sm:$0xf]
        %v378 = vld [vmem:[%s329 + $0x2c] sm:$0x1]
        %v379 = vld [vmem:[%s329 + $0x30] sm:$0xf]
        %v380 = vld [vmem:[%s329 + $0x34] sm:$0x1]
        %v381 = vld [vmem:[%s329 + $0x38] sm:$0xf]
        %v382 = vld [vmem:[%s329 + $0x3c] sm:$0x1]
        %vm383 = vsmask.f32 3328
        %vm384 = vsmask.f32 7440
        %vm385 = vmor %vm383, %vm384
        %v387 = vshrl.u32 %v367, 16
        %v389 = vrot.slane %v387, 4
        %v390 = vshll.u32 %v367, 16
        %v392 = vrot.slane %v390, 5
        %v393 = vor.u32 %v389, %v392
        %v394 = vrot.slane %v393, 4
        %v396 = vshll.u32 %v368, 16
        %v398 = vrot.slane %v396, 5
        %v399 = vsel %vm385, %v394, %v398
        %v401 = vshrl.u32 %v369, 16
        %v403 = vrot.slane %v401, 4
        %v404 = vshll.u32 %v369, 16
        %v406 = vrot.slane %v404, 5
        %v407 = vor.u32 %v403, %v406
        %v408 = vrot.slane %v407, 4
        %v410 = vshll.u32 %v370, 16
        %v412 = vrot.slane %v410, 5
        %v413 = vsel %vm385, %v408, %v412
        %v415 = vshrl.u32 %v371, 16
        %v417 = vrot.slane %v415, 4
        %v418 = vshll.u32 %v371, 16
        %v420 = vrot.slane %v418, 5
        %v421 = vor.u32 %v417, %v420
        %v422 = vrot.slane %v421, 4
        %v424 = vshll.u32 %v372, 16
        %v426 = vrot.slane %v424, 5
        %v427 = vsel %vm385, %v422, %v426
        %v429 = vshrl.u32 %v373, 16
        %v431 = vrot.slane %v429, 4
        %v432 = vshll.u32 %v373, 16
        %v434 = vrot.slane %v432, 5
        %v435 = vor.u32 %v431, %v434
        %v436 = vrot.slane %v435, 4
        %v438 = vshll.u32 %v374, 16
        %v440 = vrot.slane %v438, 5
        %v441 = vsel %vm385, %v436, %v440
        %v443 = vshrl.u32 %v375, 16
        %v445 = vrot.slane %v443, 4
        %v446 = vshll.u32 %v375, 16
        %v448 = vrot.slane %v446, 5
        %v449 = vor.u32 %v445, %v448
        %v450 = vrot.slane %v449, 4
        %v452 = vshll.u32 %v376, 16
        %v454 = vrot.slane %v452, 5
        %v455 = vsel %vm385, %v450, %v454
        %v457 = vshrl.u32 %v377, 16
        %v459 = vrot.slane %v457, 4
        %v460 = vshll.u32 %v377, 16
        %v462 = vrot.slane %v460, 5
        %v463 = vor.u32 %v459, %v462
        %v464 = vrot.slane %v463, 4
        %v466 = vshll.u32 %v378, 16
        %v468 = vrot.slane %v466, 5
        %v469 = vsel %vm385, %v464, %v468
        %v471 = vshrl.u32 %v379, 16
        %v473 = vrot.slane %v471, 4
        %v474 = vshll.u32 %v379, 16
        %v476 = vrot.slane %v474, 5
        %v477 = vor.u32 %v473, %v476
        %v478 = vrot.slane %v477, 4
        %v480 = vshll.u32 %v380, 16
        %v482 = vrot.slane %v480, 5
        %v483 = vsel %vm385, %v478, %v482
        %v485 = vshrl.u32 %v381, 16
        %v487 = vrot.slane %v485, 4
        %v488 = vshll.u32 %v381, 16
        %v490 = vrot.slane %v488, 5
        %v491 = vor.u32 %v487, %v490
        %v492 = vrot.slane %v491, 4
        %v494 = vshll.u32 %v382, 16
        %v496 = vrot.slane %v494, 5
        %v497 = vsel %vm385, %v492, %v496
        %v498 = vunpack.c.l.b16 %v399
        %v499 = vunpack.c.l.b16 %v413
        %v500 = vunpack.c.l.b16 %v427
        %v501 = vunpack.c.l.b16 %v441
        %v502 = vunpack.c.l.b16 %v455
        %v503 = vunpack.c.l.b16 %v469
        %v504 = vunpack.c.l.b16 %v483
        %v505 = vunpack.c.l.b16 %v497
        %v506 = vpack.c.b16 %v499, %v498
        %v507 = vpack.c.b16 %v501, %v500
        %v508 = vpack.c.b16 %v503, %v502
        %v509 = vpack.c.b16 %v505, %v504
        %514 = vst [vmem:[#allocation2 + $0x8] sm:$0xff] %v506
        %515 = vst [vmem:[#allocation2 + $0x50] sm:$0xff] %v507
        %516 = vst [vmem:[#allocation2 + $0x98] sm:$0xff] %v508
        %517 = vst [vmem:[#allocation2 + $0xe0] sm:$0xff] %v509
        %v518 = vld [vmem:[%s329] sm:$0xe]
        %v519 = vld [vmem:[%s329 + $0x4] sm:$0x1]
        %v520 = vld [vmem:[%s329 + $0x8] sm:$0xe]
        %v521 = vld [vmem:[%s329 + $0xc] sm:$0x1]
        %v522 = vld [vmem:[%s329 + $0x10] sm:$0xe]
        %v523 = vld [vmem:[%s329 + $0x14] sm:$0x1]
        %v524 = vld [vmem:[%s329 + $0x18] sm:$0xe]
        %v525 = vld [vmem:[%s329 + $0x1c] sm:$0x1]
        %v526 = vld [vmem:[%s329 + $0x20] sm:$0xe]
        %v527 = vld [vmem:[%s329 + $0x24] sm:$0x1]
        %v528 = vld [vmem:[%s329 + $0x28] sm:$0xe]
        %v529 = vld [vmem:[%s329 + $0x2c] sm:$0x1]
        %v530 = vld [vmem:[%s329 + $0x30] sm:$0xe]
        %v531 = vld [vmem:[%s329 + $0x34] sm:$0x1]
        %v532 = vld [vmem:[%s329 + $0x38] sm:$0xe]
        %v533 = vld [vmem:[%s329 + $0x3c] sm:$0x1]
        %vm550 = vcmask 1042432
        %vm551 = vcmask 1046532
        %vm552 = vmor %vm550, %vm551
        %v553 = vrot.slane %v518, 5
        %v554 = vrot.slane %v553, 4
        %v555 = vrot.slane %v519, 5
        %v556 = vsel %vm552, %v554, %v555
        %v557 = vrot.slane %v520, 5
        %v558 = vrot.slane %v557, 4
        %v559 = vrot.slane %v521, 5
        %v560 = vsel %vm552, %v558, %v559
        %v561 = vrot.slane %v522, 5
        %v562 = vrot.slane %v561, 4
        %v563 = vrot.slane %v523, 5
        %v564 = vsel %vm552, %v562, %v563
        %v565 = vrot.slane %v524, 5
        %v566 = vrot.slane %v565, 4
        %v567 = vrot.slane %v525, 5
        %v568 = vsel %vm552, %v566, %v567
        %v569 = vrot.slane %v526, 5
        %v570 = vrot.slane %v569, 4
        %v571 = vrot.slane %v527, 5
        %v572 = vsel %vm552, %v570, %v571
        %v573 = vrot.slane %v528, 5
        %v574 = vrot.slane %v573, 4
        %v575 = vrot.slane %v529, 5
        %v576 = vsel %vm552, %v574, %v575
        %v577 = vrot.slane %v530, 5
        %v578 = vrot.slane %v577, 4
        %v579 = vrot.slane %v531, 5
        %v580 = vsel %vm552, %v578, %v579
        %v581 = vrot.slane %v532, 5
        %v582 = vrot.slane %v581, 4
        %v583 = vrot.slane %v533, 5
        %v584 = vsel %vm552, %v582, %v583
        %v585 = vunpack.c.l.b16 %v556
        %v586 = vunpack.c.l.b16 %v560
        %v587 = vunpack.c.l.b16 %v564
        %v588 = vunpack.c.l.b16 %v568
        %v589 = vunpack.c.l.b16 %v572
        %v590 = vunpack.c.l.b16 %v576
        %v591 = vunpack.c.l.b16 %v580
        %v592 = vunpack.c.l.b16 %v584
        %v593 = vpack.c.b16 %v586, %v585
        %v594 = vpack.c.b16 %v588, %v587
        %v595 = vpack.c.b16 %v590, %v589
        %v596 = vpack.c.b16 %v592, %v591
        %601 = vst [vmem:[#allocation2 + $0x10] sm:$0xff] %v593
        %602 = vst [vmem:[#allocation2 + $0x58] sm:$0xff] %v594
        %603 = vst [vmem:[#allocation2 + $0xa0] sm:$0xff] %v595
        %604 = vst [vmem:[#allocation2 + $0xe8] sm:$0xff] %v596
        %s605 = scalar_lea.vmem %s329, 8
        %v606 = vld [vmem:[%s605] sm:$0xf]
        %v607 = vld [vmem:[%s605 + $0x8] sm:$0xf]
        %v608 = vld [vmem:[%s605 + $0x10] sm:$0xf]
        %v609 = vld [vmem:[%s605 + $0x18] sm:$0xf]
        %v610 = vld [vmem:[%s605 + $0x20] sm:$0xf]
        %v611 = vld [vmem:[%s605 + $0x28] sm:$0xf]
        %v612 = vld [vmem:[%s605 + $0x30] sm:$0xf]
        %v613 = vld [vmem:[%s605 + $0x38] sm:$0xf]
        %v622 = vunpack.c.l.b16 %v606
        %v623 = vunpack.c.l.b16 %v607
        %v624 = vunpack.c.l.b16 %v608
        %v625 = vunpack.c.l.b16 %v609
        %v626 = vunpack.c.l.b16 %v610
        %v627 = vunpack.c.l.b16 %v611
        %v628 = vunpack.c.l.b16 %v612
        %v629 = vunpack.c.l.b16 %v613
        %v630 = vpack.c.b16 %v623, %v622
        %v631 = vpack.c.b16 %v625, %v624
        %v632 = vpack.c.b16 %v627, %v626
        %v633 = vpack.c.b16 %v629, %v628
        %638 = vst [vmem:[#allocation2 + $0x18] sm:$0xff] %v630
        %639 = vst [vmem:[#allocation2 + $0x60] sm:$0xff] %v631
        %640 = vst [vmem:[#allocation2 + $0xa8] sm:$0xff] %v632
        %641 = vst [vmem:[#allocation2 + $0xf0] sm:$0xff] %v633
        %v642 = vld [vmem:[%s605] sm:$0xf]
        %v643 = vld [vmem:[%s605 + $0x4] sm:$0x1]
        %v644 = vld [vmem:[%s605 + $0x8] sm:$0xf]
        %v645 = vld [vmem:[%s605 + $0xc] sm:$0x1]
        %v646 = vld [vmem:[%s605 + $0x10] sm:$0xf]
        %v647 = vld [vmem:[%s605 + $0x14] sm:$0x1]
        %v648 = vld [vmem:[%s605 + $0x18] sm:$0xf]
        %v649 = vld [vmem:[%s605 + $0x1c] sm:$0x1]
        %v650 = vld [vmem:[%s605 + $0x20] sm:$0xf]
        %v651 = vld [vmem:[%s605 + $0x24] sm:$0x1]
        %v652 = vld [vmem:[%s605 + $0x28] sm:$0xf]
        %v653 = vld [vmem:[%s605 + $0x2c] sm:$0x1]
        %v654 = vld [vmem:[%s605 + $0x30] sm:$0xf]
        %v655 = vld [vmem:[%s605 + $0x34] sm:$0x1]
        %v656 = vld [vmem:[%s605 + $0x38] sm:$0xf]
        %v657 = vld [vmem:[%s605 + $0x3c] sm:$0x1]
        %v659 = vshrl.u32 %v642, 16
        %v661 = vrot.slane %v659, 4
        %v662 = vshll.u32 %v642, 16
        %v664 = vrot.slane %v662, 5
        %v665 = vor.u32 %v661, %v664
        %v666 = vrot.slane %v665, 4
        %v668 = vshll.u32 %v643, 16
        %v670 = vrot.slane %v668, 5
        %v671 = vsel %vm385, %v666, %v670
        %v673 = vshrl.u32 %v644, 16
        %v675 = vrot.slane %v673, 4
        %v676 = vshll.u32 %v644, 16
        %v678 = vrot.slane %v676, 5
        %v679 = vor.u32 %v675, %v678
        %v680 = vrot.slane %v679, 4
        %v682 = vshll.u32 %v645, 16
        %v684 = vrot.slane %v682, 5
        %v685 = vsel %vm385, %v680, %v684
        %v687 = vshrl.u32 %v646, 16
        %v689 = vrot.slane %v687, 4
        %v690 = vshll.u32 %v646, 16
        %v692 = vrot.slane %v690, 5
        %v693 = vor.u32 %v689, %v692
        %v694 = vrot.slane %v693, 4
        %v696 = vshll.u32 %v647, 16
        %v698 = vrot.slane %v696, 5
        %v699 = vsel %vm385, %v694, %v698
        %v701 = vshrl.u32 %v648, 16
        %v703 = vrot.slane %v701, 4
        %v704 = vshll.u32 %v648, 16
        %v706 = vrot.slane %v704, 5
        %v707 = vor.u32 %v703, %v706
        %v708 = vrot.slane %v707, 4
        %v710 = vshll.u32 %v649, 16
        %v712 = vrot.slane %v710, 5
        %v713 = vsel %vm385, %v708, %v712
        %v715 = vshrl.u32 %v650, 16
        %v717 = vrot.slane %v715, 4
        %v718 = vshll.u32 %v650, 16
        %v720 = vrot.slane %v718, 5
        %v721 = vor.u32 %v717, %v720
        %v722 = vrot.slane %v721, 4
        %v724 = vshll.u32 %v651, 16
        %v726 = vrot.slane %v724, 5
        %v727 = vsel %vm385, %v722, %v726
        %v729 = vshrl.u32 %v652, 16
        %v731 = vrot.slane %v729, 4
        %v732 = vshll.u32 %v652, 16
        %v734 = vrot.slane %v732, 5
        %v735 = vor.u32 %v731, %v734
        %v736 = vrot.slane %v735, 4
        %v738 = vshll.u32 %v653, 16
        %v740 = vrot.slane %v738, 5
        %v741 = vsel %vm385, %v736, %v740
        %v743 = vshrl.u32 %v654, 16
        %v745 = vrot.slane %v743, 4
        %v746 = vshll.u32 %v654, 16
        %v748 = vrot.slane %v746, 5
        %v749 = vor.u32 %v745, %v748
        %v750 = vrot.slane %v749, 4
        %v752 = vshll.u32 %v655, 16
        %v754 = vrot.slane %v752, 5
        %v755 = vsel %vm385, %v750, %v754
        %v757 = vshrl.u32 %v656, 16
        %v759 = vrot.slane %v757, 4
        %v760 = vshll.u32 %v656, 16
        %v762 = vrot.slane %v760, 5
        %v763 = vor.u32 %v759, %v762
        %v764 = vrot.slane %v763, 4
        %v766 = vshll.u32 %v657, 16
        %v768 = vrot.slane %v766, 5
        %v769 = vsel %vm385, %v764, %v768
        %v770 = vunpack.c.l.b16 %v671
        %v771 = vunpack.c.l.b16 %v685
        %v772 = vunpack.c.l.b16 %v699
        %v773 = vunpack.c.l.b16 %v713
        %v774 = vunpack.c.l.b16 %v727
        %v775 = vunpack.c.l.b16 %v741
        %v776 = vunpack.c.l.b16 %v755
        %v777 = vunpack.c.l.b16 %v769
        %v778 = vpack.c.b16 %v771, %v770
        %v779 = vpack.c.b16 %v773, %v772
        %v780 = vpack.c.b16 %v775, %v774
        %v781 = vpack.c.b16 %v777, %v776
        %786 = vst [vmem:[#allocation2 + $0x20] sm:$0xff] %v778
        %787 = vst [vmem:[#allocation2 + $0x68] sm:$0xff] %v779
        %788 = vst [vmem:[#allocation2 + $0xb0] sm:$0xff] %v780
        %789 = vst [vmem:[#allocation2 + $0xf8] sm:$0xff] %v781
        %v790 = vld [vmem:[%s605] sm:$0xe]
        %v791 = vld [vmem:[%s605 + $0x4] sm:$0x1]
        %v792 = vld [vmem:[%s605 + $0x8] sm:$0xe]
        %v793 = vld [vmem:[%s605 + $0xc] sm:$0x1]
        %v794 = vld [vmem:[%s605 + $0x10] sm:$0xe]
        %v795 = vld [vmem:[%s605 + $0x14] sm:$0x1]
        %v796 = vld [vmem:[%s605 + $0x18] sm:$0xe]
        %v797 = vld [vmem:[%s605 + $0x1c] sm:$0x1]
        %v798 = vld [vmem:[%s605 + $0x20] sm:$0xe]
        %v799 = vld [vmem:[%s605 + $0x24] sm:$0x1]
        %v800 = vld [vmem:[%s605 + $0x28] sm:$0xe]
        %v801 = vld [vmem:[%s605 + $0x2c] sm:$0x1]
        %v802 = vld [vmem:[%s605 + $0x30] sm:$0xe]
        %v803 = vld [vmem:[%s605 + $0x34] sm:$0x1]
        %v804 = vld [vmem:[%s605 + $0x38] sm:$0xe]
        %v805 = vld [vmem:[%s605 + $0x3c] sm:$0x1]
        %v822 = vrot.slane %v790, 5
        %v823 = vrot.slane %v822, 4
        %v824 = vrot.slane %v791, 5
        %v825 = vsel %vm552, %v823, %v824
        %v826 = vrot.slane %v792, 5
        %v827 = vrot.slane %v826, 4
        %v828 = vrot.slane %v793, 5
        %v829 = vsel %vm552, %v827, %v828
        %v830 = vrot.slane %v794, 5
        %v831 = vrot.slane %v830, 4
        %v832 = vrot.slane %v795, 5
        %v833 = vsel %vm552, %v831, %v832
        %v834 = vrot.slane %v796, 5
        %v835 = vrot.slane %v834, 4
        %v836 = vrot.slane %v797, 5
        %v837 = vsel %vm552, %v835, %v836
        %v838 = vrot.slane %v798, 5
        %v839 = vrot.slane %v838, 4
        %v840 = vrot.slane %v799, 5
        %v841 = vsel %vm552, %v839, %v840
        %v842 = vrot.slane %v800, 5
        %v843 = vrot.slane %v842, 4
        %v844 = vrot.slane %v801, 5
        %v845 = vsel %vm552, %v843, %v844
        %v846 = vrot.slane %v802, 5
        %v847 = vrot.slane %v846, 4
        %v848 = vrot.slane %v803, 5
        %v849 = vsel %vm552, %v847, %v848
        %v850 = vrot.slane %v804, 5
        %v851 = vrot.slane %v850, 4
        %v852 = vrot.slane %v805, 5
        %v853 = vsel %vm552, %v851, %v852
        %v854 = vunpack.c.l.b16 %v825
        %v855 = vunpack.c.l.b16 %v829
        %v856 = vunpack.c.l.b16 %v833
        %v857 = vunpack.c.l.b16 %v837
        %v858 = vunpack.c.l.b16 %v841
        %v859 = vunpack.c.l.b16 %v845
        %v860 = vunpack.c.l.b16 %v849
        %v861 = vunpack.c.l.b16 %v853
        %v862 = vpack.c.b16 %v855, %v854
        %v863 = vpack.c.b16 %v857, %v856
        %v864 = vpack.c.b16 %v859, %v858
        %v865 = vpack.c.b16 %v861, %v860
        %870 = vst [vmem:[#allocation2 + $0x28] sm:$0xff] %v862
        %871 = vst [vmem:[#allocation2 + $0x70] sm:$0xff] %v863
        %872 = vst [vmem:[#allocation2 + $0xb8] sm:$0xff] %v864
        %873 = vst [vmem:[#allocation2 + $0x100] sm:$0xff] %v865
        %s874 = scalar_lea.vmem %s329, 16
        %v875 = vld [vmem:[%s874] sm:$0xf]
        %v876 = vld [vmem:[%s874 + $0x8] sm:$0xf]
        %v877 = vld [vmem:[%s874 + $0x10] sm:$0xf]
        %v878 = vld [vmem:[%s874 + $0x18] sm:$0xf]
        %v879 = vld [vmem:[%s874 + $0x20] sm:$0xf]
        %v880 = vld [vmem:[%s874 + $0x28] sm:$0xf]
        %v881 = vld [vmem:[%s874 + $0x30] sm:$0xf]
        %v882 = vld [vmem:[%s874 + $0x38] sm:$0xf]
        %v891 = vunpack.c.l.b16 %v875
        %v892 = vunpack.c.l.b16 %v876
        %v893 = vunpack.c.l.b16 %v877
        %v894 = vunpack.c.l.b16 %v878
        %v895 = vunpack.c.l.b16 %v879
        %v896 = vunpack.c.l.b16 %v880
        %v897 = vunpack.c.l.b16 %v881
        %v898 = vunpack.c.l.b16 %v882
        %v899 = vpack.c.b16 %v892, %v891
        %v900 = vpack.c.b16 %v894, %v893
        %v901 = vpack.c.b16 %v896, %v895
        %v902 = vpack.c.b16 %v898, %v897
        %907 = vst [vmem:[#allocation2 + $0x30] sm:$0xff] %v899
        %908 = vst [vmem:[#allocation2 + $0x78] sm:$0xff] %v900
        %909 = vst [vmem:[#allocation2 + $0xc0] sm:$0xff] %v901
        %910 = vst [vmem:[#allocation2 + $0x108] sm:$0xff] %v902
        %v911 = vld [vmem:[%s874] sm:$0xf]
        %v912 = vld [vmem:[%s874 + $0x4] sm:$0x1]
        %v913 = vld [vmem:[%s874 + $0x8] sm:$0xf]
        %v914 = vld [vmem:[%s874 + $0xc] sm:$0x1]
        %v915 = vld [vmem:[%s874 + $0x10] sm:$0xf]
        %v916 = vld [vmem:[%s874 + $0x14] sm:$0x1]
        %v917 = vld [vmem:[%s874 + $0x18] sm:$0xf]
        %v918 = vld [vmem:[%s874 + $0x1c] sm:$0x1]
        %v919 = vld [vmem:[%s874 + $0x20] sm:$0xf]
        %v920 = vld [vmem:[%s874 + $0x24] sm:$0x1]
        %v921 = vld [vmem:[%s874 + $0x28] sm:$0xf]
        %v922 = vld [vmem:[%s874 + $0x2c] sm:$0x1]
        %v923 = vld [vmem:[%s874 + $0x30] sm:$0xf]
        %v924 = vld [vmem:[%s874 + $0x34] sm:$0x1]
        %v925 = vld [vmem:[%s874 + $0x38] sm:$0xf]
        %v926 = vld [vmem:[%s874 + $0x3c] sm:$0x1]
        %v928 = vshrl.u32 %v911, 16
        %v930 = vrot.slane %v928, 4
        %v931 = vshll.u32 %v911, 16
        %v933 = vrot.slane %v931, 5
        %v934 = vor.u32 %v930, %v933
        %v935 = vrot.slane %v934, 4
        %v937 = vshll.u32 %v912, 16
        %v939 = vrot.slane %v937, 5
        %v940 = vsel %vm385, %v935, %v939
        %v942 = vshrl.u32 %v913, 16
        %v944 = vrot.slane %v942, 4
        %v945 = vshll.u32 %v913, 16
        %v947 = vrot.slane %v945, 5
        %v948 = vor.u32 %v944, %v947
        %v949 = vrot.slane %v948, 4
        %v951 = vshll.u32 %v914, 16
        %v953 = vrot.slane %v951, 5
        %v954 = vsel %vm385, %v949, %v953
        %v956 = vshrl.u32 %v915, 16
        %v958 = vrot.slane %v956, 4
        %v959 = vshll.u32 %v915, 16
        %v961 = vrot.slane %v959, 5
        %v962 = vor.u32 %v958, %v961
        %v963 = vrot.slane %v962, 4
        %v965 = vshll.u32 %v916, 16
        %v967 = vrot.slane %v965, 5
        %v968 = vsel %vm385, %v963, %v967
        %v970 = vshrl.u32 %v917, 16
        %v972 = vrot.slane %v970, 4
        %v973 = vshll.u32 %v917, 16
        %v975 = vrot.slane %v973, 5
        %v976 = vor.u32 %v972, %v975
        %v977 = vrot.slane %v976, 4
        %v979 = vshll.u32 %v918, 16
        %v981 = vrot.slane %v979, 5
        %v982 = vsel %vm385, %v977, %v981
        %v984 = vshrl.u32 %v919, 16
        %v986 = vrot.slane %v984, 4
        %v987 = vshll.u32 %v919, 16
        %v989 = vrot.slane %v987, 5
        %v990 = vor.u32 %v986, %v989
        %v991 = vrot.slane %v990, 4
        %v993 = vshll.u32 %v920, 16
        %v995 = vrot.slane %v993, 5
        %v996 = vsel %vm385, %v991, %v995
        %v998 = vshrl.u32 %v921, 16
        %v1000 = vrot.slane %v998, 4
        %v1001 = vshll.u32 %v921, 16
        %v1003 = vrot.slane %v1001, 5
        %v1004 = vor.u32 %v1000, %v1003
        %v1005 = vrot.slane %v1004, 4
        %v1007 = vshll.u32 %v922, 16
        %v1009 = vrot.slane %v1007, 5
        %v1010 = vsel %vm385, %v1005, %v1009
        %v1012 = vshrl.u32 %v923, 16
        %v1014 = vrot.slane %v1012, 4
        %v1015 = vshll.u32 %v923, 16
        %v1017 = vrot.slane %v1015, 5
        %v1018 = vor.u32 %v1014, %v1017
        %v1019 = vrot.slane %v1018, 4
        %v1021 = vshll.u32 %v924, 16
        %v1023 = vrot.slane %v1021, 5
        %v1024 = vsel %vm385, %v1019, %v1023
        %v1026 = vshrl.u32 %v925, 16
        %v1028 = vrot.slane %v1026, 4
        %v1029 = vshll.u32 %v925, 16
        %v1031 = vrot.slane %v1029, 5
        %v1032 = vor.u32 %v1028, %v1031
        %v1033 = vrot.slane %v1032, 4
        %v1035 = vshll.u32 %v926, 16
        %v1037 = vrot.slane %v1035, 5
        %v1038 = vsel %vm385, %v1033, %v1037
        %v1039 = vunpack.c.l.b16 %v940
        %v1040 = vunpack.c.l.b16 %v954
        %v1041 = vunpack.c.l.b16 %v968
        %v1042 = vunpack.c.l.b16 %v982
        %v1043 = vunpack.c.l.b16 %v996
        %v1044 = vunpack.c.l.b16 %v1010
        %v1045 = vunpack.c.l.b16 %v1024
        %v1046 = vunpack.c.l.b16 %v1038
        %v1047 = vpack.c.b16 %v1040, %v1039
        %v1048 = vpack.c.b16 %v1042, %v1041
        %v1049 = vpack.c.b16 %v1044, %v1043
        %v1050 = vpack.c.b16 %v1046, %v1045
        %1055 = vst [vmem:[#allocation2 + $0x38] sm:$0xff] %v1047
        %1056 = vst [vmem:[#allocation2 + $0x80] sm:$0xff] %v1048
        %1057 = vst [vmem:[#allocation2 + $0xc8] sm:$0xff] %v1049
        %1058 = vst [vmem:[#allocation2 + $0x110] sm:$0xff] %v1050
        %v1059 = vld [vmem:[%s874] sm:$0xe]
        %v1060 = vld [vmem:[%s874 + $0x4] sm:$0x1]
        %v1061 = vld [vmem:[%s874 + $0x8] sm:$0xe]
        %v1062 = vld [vmem:[%s874 + $0xc] sm:$0x1]
        %v1063 = vld [vmem:[%s874 + $0x10] sm:$0xe]
        %v1064 = vld [vmem:[%s874 + $0x14] sm:$0x1]
        %v1065 = vld [vmem:[%s874 + $0x18] sm:$0xe]
        %v1066 = vld [vmem:[%s874 + $0x1c] sm:$0x1]
        %v1067 = vld [vmem:[%s874 + $0x20] sm:$0xe]
        %v1068 = vld [vmem:[%s874 + $0x24] sm:$0x1]
        %v1069 = vld [vmem:[%s874 + $0x28] sm:$0xe]
        %v1070 = vld [vmem:[%s874 + $0x2c] sm:$0x1]
        %v1071 = vld [vmem:[%s874 + $0x30] sm:$0xe]
        %v1072 = vld [vmem:[%s874 + $0x34] sm:$0x1]
        %v1073 = vld [vmem:[%s874 + $0x38] sm:$0xe]
        %v1074 = vld [vmem:[%s874 + $0x3c] sm:$0x1]
        %v1091 = vrot.slane %v1059, 5
        %v1092 = vrot.slane %v1091, 4
        %v1093 = vrot.slane %v1060, 5
        %v1094 = vsel %vm552, %v1092, %v1093
        %v1095 = vrot.slane %v1061, 5
        %v1096 = vrot.slane %v1095, 4
        %v1097 = vrot.slane %v1062, 5
        %v1098 = vsel %vm552, %v1096, %v1097
        %v1099 = vrot.slane %v1063, 5
        %v1100 = vrot.slane %v1099, 4
        %v1101 = vrot.slane %v1064, 5
        %v1102 = vsel %vm552, %v1100, %v1101
        %v1103 = vrot.slane %v1065, 5
        %v1104 = vrot.slane %v1103, 4
        %v1105 = vrot.slane %v1066, 5
        %v1106 = vsel %vm552, %v1104, %v1105
        %v1107 = vrot.slane %v1067, 5
        %v1108 = vrot.slane %v1107, 4
        %v1109 = vrot.slane %v1068, 5
        %v1110 = vsel %vm552, %v1108, %v1109
        %v1111 = vrot.slane %v1069, 5
        %v1112 = vrot.slane %v1111, 4
        %v1113 = vrot.slane %v1070, 5
        %v1114 = vsel %vm552, %v1112, %v1113
        %v1115 = vrot.slane %v1071, 5
        %v1116 = vrot.slane %v1115, 4
        %v1117 = vrot.slane %v1072, 5
        %v1118 = vsel %vm552, %v1116, %v1117
        %v1119 = vrot.slane %v1073, 5
        %v1120 = vrot.slane %v1119, 4
        %v1121 = vrot.slane %v1074, 5
        %v1122 = vsel %vm552, %v1120, %v1121
        %v1123 = vunpack.c.l.b16 %v1094
        %v1124 = vunpack.c.l.b16 %v1098
        %v1125 = vunpack.c.l.b16 %v1102
        %v1126 = vunpack.c.l.b16 %v1106
        %v1127 = vunpack.c.l.b16 %v1110
        %v1128 = vunpack.c.l.b16 %v1114
        %v1129 = vunpack.c.l.b16 %v1118
        %v1130 = vunpack.c.l.b16 %v1122
        %v1131 = vpack.c.b16 %v1124, %v1123
        %v1132 = vpack.c.b16 %v1126, %v1125
        %v1133 = vpack.c.b16 %v1128, %v1127
        %v1134 = vpack.c.b16 %v1130, %v1129
        %1139 = vst [vmem:[#allocation2 + $0x40] sm:$0xff] %v1131
        %1140 = vst [vmem:[#allocation2 + $0x88] sm:$0xff] %v1132
        %1141 = vst [vmem:[#allocation2 + $0xd0] sm:$0xff] %v1133
        %1142 = vst [vmem:[#allocation2 + $0x118] sm:$0xff] %v1134
        %v1143 = vld [vmem:[#allocation2] sm:$0xff]
        %v1144 = vld [vmem:[#allocation2 + $0x8] sm:$0xff]
        %v1145 = vld [vmem:[#allocation2 + $0x10] sm:$0xff]
        %v1146 = vld [vmem:[#allocation2 + $0x18] sm:$0xff]
        %v1147 = vld [vmem:[#allocation2 + $0x20] sm:$0xff]
        %v1148 = vld [vmem:[#allocation2 + $0x28] sm:$0xff]
        %v1149 = vld [vmem:[#allocation2 + $0x30] sm:$0xff]
        %v1150 = vld [vmem:[#allocation2 + $0x38] sm:$0xff]
        %v1151 = vld [vmem:[#allocation2 + $0x40] sm:$0xff]
        %v1152 = vld [vmem:[#allocation2 + $0x48] sm:$0xff]
        %v1153 = vld [vmem:[#allocation2 + $0x50] sm:$0xff]
        %v1154 = vld [vmem:[#allocation2 + $0x58] sm:$0xff]
        %v1155 = vld [vmem:[#allocation2 + $0x60] sm:$0xff]
        %v1156 = vld [vmem:[#allocation2 + $0x68] sm:$0xff]
        %v1157 = vld [vmem:[#allocation2 + $0x70] sm:$0xff]
        %v1158 = vld [vmem:[#allocation2 + $0x78] sm:$0xff]
        %v1159 = vld [vmem:[#allocation2 + $0x80] sm:$0xff]
        %v1160 = vld [vmem:[#allocation2 + $0x88] sm:$0xff]
        %v1161 = vld [vmem:[#allocation2 + $0x90] sm:$0xff]
        %v1162 = vld [vmem:[#allocation2 + $0x98] sm:$0xff]
        %v1163 = vld [vmem:[#allocation2 + $0xa0] sm:$0xff]
        %v1164 = vld [vmem:[#allocation2 + $0xa8] sm:$0xff]
        %v1165 = vld [vmem:[#allocation2 + $0xb0] sm:$0xff]
        %v1166 = vld [vmem:[#allocation2 + $0xb8] sm:$0xff]
        %v1167 = vld [vmem:[#allocation2 + $0xc0] sm:$0xff]
        %v1168 = vld [vmem:[#allocation2 + $0xc8] sm:$0xff]
        %v1169 = vld [vmem:[#allocation2 + $0xd0] sm:$0xff]
        %v1170 = vld [vmem:[#allocation2 + $0xd8] sm:$0xff]
        %v1171 = vld [vmem:[#allocation2 + $0xe0] sm:$0xff]
        %v1172 = vld [vmem:[#allocation2 + $0xe8] sm:$0xff]
        %v1173 = vld [vmem:[#allocation2 + $0xf0] sm:$0xff]
        %v1174 = vld [vmem:[#allocation2 + $0xf8] sm:$0xff]
        %v1175 = vld [vmem:[#allocation2 + $0x100] sm:$0xff]
        %v1176 = vld [vmem:[#allocation2 + $0x108] sm:$0xff]
        %v1177 = vld [vmem:[#allocation2 + $0x110] sm:$0xff]
        %v1178 = vld [vmem:[#allocation2 + $0x118] sm:$0xff]
        %v1179 = vld [vmem:[%s1] sm:$0xf]
        %v1180 = vld [vmem:[%s1 + $0x4] sm:$0xf]
        %v1181 = vld [vmem:[%s1 + $0x8] sm:$0xf]
        %v1182 = vld [vmem:[%s1 + $0xc] sm:$0xf]
        %v1183 = vld [vmem:[%s1 + $0x10] sm:$0xf]
        %v1184 = vld [vmem:[%s1 + $0x14] sm:$0xf]
        %v1185 = vld [vmem:[%s1 + $0x18] sm:$0xf]
        %v1186 = vld [vmem:[%s1 + $0x1c] sm:$0xf]
        %v1187 = vld [vmem:[%s1 + $0x20] sm:$0xf]
        %v1188 = vld [vmem:[%s1 + $0x24] sm:$0xf]
        %v1189 = vld [vmem:[%s1 + $0x28] sm:$0xf]
        %v1190 = vld [vmem:[%s1 + $0x2c] sm:$0xf]
        %v1191 = vld [vmem:[%s1 + $0x30] sm:$0xf]
        %v1192 = vld [vmem:[%s1 + $0x34] sm:$0xf]
        %v1193 = vld [vmem:[%s1 + $0x38] sm:$0xf]
        %v1194 = vld [vmem:[%s1 + $0x3c] sm:$0xf]
        %v1195 = vld [vmem:[%s1 + $0x40] sm:$0xf]
        %v1196 = vld [vmem:[%s1 + $0x44] sm:$0xf]
        %v1197 = vld [vmem:[%s1 + $0x48] sm:$0xf]
        %v1198 = vld [vmem:[%s1 + $0x4c] sm:$0xf]
        %v1199 = vld [vmem:[%s1 + $0x50] sm:$0xf]
        %v1200 = vld [vmem:[%s1 + $0x54] sm:$0xf]
        %v1201 = vld [vmem:[%s1 + $0x58] sm:$0xf]
        %v1202 = vld [vmem:[%s1 + $0x5c] sm:$0xf]
        %v1203 = vld [vmem:[%s1 + $0x60] sm:$0xf]
        %v1204 = vld [vmem:[%s1 + $0x64] sm:$0xf]
        %v1205 = vld [vmem:[%s1 + $0x68] sm:$0xf]
        %v1206 = vld [vmem:[%s1 + $0x6c] sm:$0xf]
        %v1207 = vld [vmem:[%s1 + $0x70] sm:$0xf]
        %v1208 = vld [vmem:[%s1 + $0x74] sm:$0xf]
        %v1209 = vld [vmem:[%s1 + $0x78] sm:$0xf]
        %v1210 = vld [vmem:[%s1 + $0x7c] sm:$0xf]
        %v1211 = vld [vmem:[%s1 + $0x80] sm:$0xf]
        %v1212 = vld [vmem:[%s1 + $0x84] sm:$0xf]
        %v1213 = vld [vmem:[%s1 + $0x88] sm:$0xf]
        %v1214 = vld [vmem:[%s1 + $0x8c] sm:$0xf]
        %v1215 = vld [vmem:[%s1 + $0x90] sm:$0xf]
        %v1216 = vld [vmem:[%s1 + $0x94] sm:$0xf]
        %v1217 = vld [vmem:[%s1 + $0x98] sm:$0xf]
        %v1218 = vld [vmem:[%s1 + $0x9c] sm:$0xf]
        %v1219 = vld [vmem:[%s1 + $0xa0] sm:$0xf]
        %v1220 = vld [vmem:[%s1 + $0xa4] sm:$0xf]
        %v1221 = vld [vmem:[%s1 + $0xa8] sm:$0xf]
        %v1222 = vld [vmem:[%s1 + $0xac] sm:$0xf]
        %v1223 = vld [vmem:[%s1 + $0xb0] sm:$0xf]
        %v1224 = vld [vmem:[%s1 + $0xb4] sm:$0xf]
        %v1225 = vld [vmem:[%s1 + $0xb8] sm:$0xf]
        %v1226 = vld [vmem:[%s1 + $0xbc] sm:$0xf]
        %v1227 = vld [vmem:[%s1 + $0xc0] sm:$0xf]
        %v1228 = vld [vmem:[%s1 + $0xc4] sm:$0xf]
        %v1229 = vld [vmem:[%s1 + $0xc8] sm:$0xf]
        %v1230 = vld [vmem:[%s1 + $0xcc] sm:$0xf]
        %v1231 = vld [vmem:[%s1 + $0xd0] sm:$0xf]
        %v1232 = vld [vmem:[%s1 + $0xd4] sm:$0xf]
        %v1233 = vld [vmem:[%s1 + $0xd8] sm:$0xf]
        %v1234 = vld [vmem:[%s1 + $0xdc] sm:$0xf]
        %v1235 = vld [vmem:[%s1 + $0xe0] sm:$0xf]
        %v1236 = vld [vmem:[%s1 + $0xe4] sm:$0xf]
        %v1237 = vld [vmem:[%s1 + $0xe8] sm:$0xf]
        %v1238 = vld [vmem:[%s1 + $0xec] sm:$0xf]
        %v1239 = vld [vmem:[%s1 + $0xf0] sm:$0xf]
        %v1240 = vld [vmem:[%s1 + $0xf4] sm:$0xf]
        %v1241 = vld [vmem:[%s1 + $0xf8] sm:$0xf]
        %v1242 = vld [vmem:[%s1 + $0xfc] sm:$0xf]
        %v1243 = vld [vmem:[%s1 + $0x100] sm:$0xf]
        %v1244 = vld [vmem:[%s1 + $0x104] sm:$0xf]
        %v1245 = vld [vmem:[%s1 + $0x108] sm:$0xf]
        %v1246 = vld [vmem:[%s1 + $0x10c] sm:$0xf]
        %v1247 = vld [vmem:[%s1 + $0x110] sm:$0xf]
        %v1248 = vld [vmem:[%s1 + $0x114] sm:$0xf]
        %v1249 = vld [vmem:[%s1 + $0x118] sm:$0xf]
        %v1250 = vld [vmem:[%s1 + $0x11c] sm:$0xf]
        %v1251 = vld [vmem:[%s1 + $0x120] sm:$0xf]
        %v1252 = vld [vmem:[%s1 + $0x124] sm:$0xf]
        %v1253 = vld [vmem:[%s1 + $0x128] sm:$0xf]
        %v1254 = vld [vmem:[%s1 + $0x12c] sm:$0xf]
        %v1255 = vld [vmem:[%s1 + $0x130] sm:$0xf]
        %v1256 = vld [vmem:[%s1 + $0x134] sm:$0xf]
        %v1257 = vld [vmem:[%s1 + $0x138] sm:$0xf]
        %v1258 = vld [vmem:[%s1 + $0x13c] sm:$0xf]
        %v1259 = vld [vmem:[%s1 + $0x140] sm:$0xf]
        %v1260 = vld [vmem:[%s1 + $0x144] sm:$0xf]
        %v1261 = vld [vmem:[%s1 + $0x148] sm:$0xf]
        %v1262 = vld [vmem:[%s1 + $0x14c] sm:$0xf]
        %v1263 = vld [vmem:[%s1 + $0x150] sm:$0xf]
        %v1264 = vld [vmem:[%s1 + $0x154] sm:$0xf]
        %v1265 = vld [vmem:[%s1 + $0x158] sm:$0xf]
        %v1266 = vld [vmem:[%s1 + $0x15c] sm:$0xf]
        %v1267 = vld [vmem:[%s1 + $0x160] sm:$0xf]
        %v1268 = vld [vmem:[%s1 + $0x164] sm:$0xf]
        %v1269 = vld [vmem:[%s1 + $0x168] sm:$0xf]
        %v1270 = vld [vmem:[%s1 + $0x16c] sm:$0xf]
        %v1271 = vld [vmem:[%s1 + $0x170] sm:$0xf]
        %v1272 = vld [vmem:[%s1 + $0x174] sm:$0xf]
        %v1273 = vld [vmem:[%s1 + $0x178] sm:$0xf]
        %v1274 = vld [vmem:[%s1 + $0x17c] sm:$0xf]
        %v1275 = vld [vmem:[%s1 + $0x180] sm:$0xf]
        %v1276 = vld [vmem:[%s1 + $0x184] sm:$0xf]
        %v1277 = vld [vmem:[%s1 + $0x188] sm:$0xf]
        %v1278 = vld [vmem:[%s1 + $0x18c] sm:$0xf]
        %v1279 = vld [vmem:[%s1 + $0x190] sm:$0xf]
        %v1280 = vld [vmem:[%s1 + $0x194] sm:$0xf]
        %v1281 = vld [vmem:[%s1 + $0x198] sm:$0xf]
        %v1282 = vld [vmem:[%s1 + $0x19c] sm:$0xf]
        %v1283 = vld [vmem:[%s1 + $0x1a0] sm:$0xf]
        %v1284 = vld [vmem:[%s1 + $0x1a4] sm:$0xf]
        %v1285 = vld [vmem:[%s1 + $0x1a8] sm:$0xf]
        %v1286 = vld [vmem:[%s1 + $0x1ac] sm:$0xf]
        %v1287 = vld [vmem:[%s1 + $0x1b0] sm:$0xf]
        %v1288 = vld [vmem:[%s1 + $0x1b4] sm:$0xf]
        %v1289 = vld [vmem:[%s1 + $0x1b8] sm:$0xf]
        %v1290 = vld [vmem:[%s1 + $0x1bc] sm:$0xf]
        %v1291 = vld [vmem:[%s1 + $0x1c0] sm:$0xf]
        %v1292 = vld [vmem:[%s1 + $0x1c4] sm:$0xf]
        %v1293 = vld [vmem:[%s1 + $0x1c8] sm:$0xf]
        %v1294 = vld [vmem:[%s1 + $0x1cc] sm:$0xf]
        %v1295 = vld [vmem:[%s1 + $0x1d0] sm:$0xf]
        %v1296 = vld [vmem:[%s1 + $0x1d4] sm:$0xf]
        %v1297 = vld [vmem:[%s1 + $0x1d8] sm:$0xf]
        %v1298 = vld [vmem:[%s1 + $0x1dc] sm:$0xf]
        %v1299 = vld [vmem:[%s1 + $0x1e0] sm:$0xf]
        %v1300 = vld [vmem:[%s1 + $0x1e4] sm:$0xf]
        %v1301 = vld [vmem:[%s1 + $0x1e8] sm:$0xf]
        %v1302 = vld [vmem:[%s1 + $0x1ec] sm:$0xf]
        %v1303 = vld [vmem:[%s1 + $0x1f0] sm:$0xf]
        %v1304 = vld [vmem:[%s1 + $0x1f4] sm:$0xf]
        %v1305 = vld [vmem:[%s1 + $0x1f8] sm:$0xf]
        %v1306 = vld [vmem:[%s1 + $0x1fc] sm:$0xf]
        %v1307 = vld [vmem:[%s1 + $0x200] sm:$0xf]
        %v1308 = vld [vmem:[%s1 + $0x204] sm:$0xf]
        %v1309 = vld [vmem:[%s1 + $0x208] sm:$0xf]
        %v1310 = vld [vmem:[%s1 + $0x20c] sm:$0xf]
        %v1311 = vld [vmem:[%s1 + $0x210] sm:$0xf]
        %v1312 = vld [vmem:[%s1 + $0x214] sm:$0xf]
        %v1313 = vld [vmem:[%s1 + $0x218] sm:$0xf]
        %v1314 = vld [vmem:[%s1 + $0x21c] sm:$0xf]
        %v1315 = vld [vmem:[%s1 + $0x220] sm:$0xf]
        %v1316 = vld [vmem:[%s1 + $0x224] sm:$0xf]
        %v1317 = vld [vmem:[%s1 + $0x228] sm:$0xf]
        %v1318 = vld [vmem:[%s1 + $0x22c] sm:$0xf]
        %v1319 = vld [vmem:[%s1 + $0x230] sm:$0xf]
        %v1320 = vld [vmem:[%s1 + $0x234] sm:$0xf]
        %v1321 = vld [vmem:[%s1 + $0x238] sm:$0xf]
        %v1322 = vld [vmem:[%s1 + $0x23c] sm:$0xf]
        %v1323 = vld [vmem:[%s2] sm:$0x1]
        %v1325 = vlaneseq
        %v1326 = vshrl.u32 %v1325, 7
        %v1327 = vsub.s32 0, %v1326
        %v1328 = vrot.slane %v1323, %v1327
        %v1474 = vunpack.c.l.b16 %v1179
        %v1475 = vunpack.c.l.b16 %v1180
        %v1476 = vunpack.c.l.b16 %v1181
        %v1477 = vunpack.c.l.b16 %v1182
        %v1478 = vunpack.c.l.b16 %v1183
        %v1479 = vunpack.c.l.b16 %v1184
        %v1480 = vunpack.c.l.b16 %v1185
        %v1481 = vunpack.c.l.b16 %v1186
        %v1482 = vunpack.c.l.b16 %v1187
        %v1483 = vunpack.c.l.b16 %v1188
        %v1484 = vunpack.c.l.b16 %v1189
        %v1485 = vunpack.c.l.b16 %v1190
        %v1486 = vunpack.c.l.b16 %v1191
        %v1487 = vunpack.c.l.b16 %v1192
        %v1488 = vunpack.c.l.b16 %v1193
        %v1489 = vunpack.c.l.b16 %v1194
        %v1490 = vunpack.c.l.b16 %v1195
        %v1491 = vunpack.c.l.b16 %v1196
        %v1492 = vunpack.c.l.b16 %v1197
        %v1493 = vunpack.c.l.b16 %v1198
        %v1494 = vunpack.c.l.b16 %v1199
        %v1495 = vunpack.c.l.b16 %v1200
        %v1496 = vunpack.c.l.b16 %v1201
        %v1497 = vunpack.c.l.b16 %v1202
        %v1498 = vunpack.c.l.b16 %v1203
        %v1499 = vunpack.c.l.b16 %v1204
        %v1500 = vunpack.c.l.b16 %v1205
        %v1501 = vunpack.c.l.b16 %v1206
        %v1502 = vunpack.c.l.b16 %v1207
        %v1503 = vunpack.c.l.b16 %v1208
        %v1504 = vunpack.c.l.b16 %v1209
        %v1505 = vunpack.c.l.b16 %v1210
        %v1506 = vunpack.c.l.b16 %v1211
        %v1507 = vunpack.c.l.b16 %v1212
        %v1508 = vunpack.c.l.b16 %v1213
        %v1509 = vunpack.c.l.b16 %v1214
        %v1510 = vunpack.c.l.b16 %v1215
        %v1511 = vunpack.c.l.b16 %v1216
        %v1512 = vunpack.c.l.b16 %v1217
        %v1513 = vunpack.c.l.b16 %v1218
        %v1514 = vunpack.c.l.b16 %v1219
        %v1515 = vunpack.c.l.b16 %v1220
        %v1516 = vunpack.c.l.b16 %v1221
        %v1517 = vunpack.c.l.b16 %v1222
        %v1518 = vunpack.c.l.b16 %v1223
        %v1519 = vunpack.c.l.b16 %v1224
        %v1520 = vunpack.c.l.b16 %v1225
        %v1521 = vunpack.c.l.b16 %v1226
        %v1522 = vunpack.c.l.b16 %v1227
        %v1523 = vunpack.c.l.b16 %v1228
        %v1524 = vunpack.c.l.b16 %v1229
        %v1525 = vunpack.c.l.b16 %v1230
        %v1526 = vunpack.c.l.b16 %v1231
        %v1527 = vunpack.c.l.b16 %v1232
        %v1528 = vunpack.c.l.b16 %v1233
        %v1529 = vunpack.c.l.b16 %v1234
        %v1530 = vunpack.c.l.b16 %v1235
        %v1531 = vunpack.c.l.b16 %v1236
        %v1532 = vunpack.c.l.b16 %v1237
        %v1533 = vunpack.c.l.b16 %v1238
        %v1534 = vunpack.c.l.b16 %v1239
        %v1535 = vunpack.c.l.b16 %v1240
        %v1536 = vunpack.c.l.b16 %v1241
        %v1537 = vunpack.c.l.b16 %v1242
        %v1538 = vunpack.c.l.b16 %v1243
        %v1539 = vunpack.c.l.b16 %v1244
        %v1540 = vunpack.c.l.b16 %v1245
        %v1541 = vunpack.c.l.b16 %v1246
        %v1542 = vunpack.c.l.b16 %v1247
        %v1543 = vunpack.c.l.b16 %v1248
        %v1544 = vunpack.c.l.b16 %v1249
        %v1545 = vunpack.c.l.b16 %v1250
        %v1546 = vunpack.c.l.b16 %v1251
        %v1547 = vunpack.c.l.b16 %v1252
        %v1548 = vunpack.c.l.b16 %v1253
        %v1549 = vunpack.c.l.b16 %v1254
        %v1550 = vunpack.c.l.b16 %v1255
        %v1551 = vunpack.c.l.b16 %v1256
        %v1552 = vunpack.c.l.b16 %v1257
        %v1553 = vunpack.c.l.b16 %v1258
        %v1554 = vunpack.c.l.b16 %v1259
        %v1555 = vunpack.c.l.b16 %v1260
        %v1556 = vunpack.c.l.b16 %v1261
        %v1557 = vunpack.c.l.b16 %v1262
        %v1558 = vunpack.c.l.b16 %v1263
        %v1559 = vunpack.c.l.b16 %v1264
        %v1560 = vunpack.c.l.b16 %v1265
        %v1561 = vunpack.c.l.b16 %v1266
        %v1562 = vunpack.c.l.b16 %v1267
        %v1563 = vunpack.c.l.b16 %v1268
        %v1564 = vunpack.c.l.b16 %v1269
        %v1565 = vunpack.c.l.b16 %v1270
        %v1566 = vunpack.c.l.b16 %v1271
        %v1567 = vunpack.c.l.b16 %v1272
        %v1568 = vunpack.c.l.b16 %v1273
        %v1569 = vunpack.c.l.b16 %v1274
        %v1570 = vunpack.c.l.b16 %v1275
        %v1571 = vunpack.c.l.b16 %v1276
        %v1572 = vunpack.c.l.b16 %v1277
        %v1573 = vunpack.c.l.b16 %v1278
        %v1574 = vunpack.c.l.b16 %v1279
        %v1575 = vunpack.c.l.b16 %v1280
        %v1576 = vunpack.c.l.b16 %v1281
        %v1577 = vunpack.c.l.b16 %v1282
        %v1578 = vunpack.c.l.b16 %v1283
        %v1579 = vunpack.c.l.b16 %v1284
        %v1580 = vunpack.c.l.b16 %v1285
        %v1581 = vunpack.c.l.b16 %v1286
        %v1582 = vunpack.c.l.b16 %v1287
        %v1583 = vunpack.c.l.b16 %v1288
        %v1584 = vunpack.c.l.b16 %v1289
        %v1585 = vunpack.c.l.b16 %v1290
        %v1586 = vunpack.c.l.b16 %v1291
        %v1587 = vunpack.c.l.b16 %v1292
        %v1588 = vunpack.c.l.b16 %v1293
        %v1589 = vunpack.c.l.b16 %v1294
        %v1590 = vunpack.c.l.b16 %v1295
        %v1591 = vunpack.c.l.b16 %v1296
        %v1592 = vunpack.c.l.b16 %v1297
        %v1593 = vunpack.c.l.b16 %v1298
        %v1594 = vunpack.c.l.b16 %v1299
        %v1595 = vunpack.c.l.b16 %v1300
        %v1596 = vunpack.c.l.b16 %v1301
        %v1597 = vunpack.c.l.b16 %v1302
        %v1598 = vunpack.c.l.b16 %v1303
        %v1599 = vunpack.c.l.b16 %v1304
        %v1600 = vunpack.c.l.b16 %v1305
        %v1601 = vunpack.c.l.b16 %v1306
        %v1602 = vunpack.c.l.b16 %v1307
        %v1603 = vunpack.c.l.b16 %v1308
        %v1604 = vunpack.c.l.b16 %v1309
        %v1605 = vunpack.c.l.b16 %v1310
        %v1606 = vunpack.c.l.b16 %v1311
        %v1607 = vunpack.c.l.b16 %v1312
        %v1608 = vunpack.c.l.b16 %v1313
        %v1609 = vunpack.c.l.b16 %v1314
        %v1610 = vunpack.c.l.b16 %v1315
        %v1611 = vunpack.c.l.b16 %v1316
        %v1612 = vunpack.c.l.b16 %v1317
        %v1613 = vunpack.c.l.b16 %v1318
        %v1614 = vunpack.c.l.b16 %v1319
        %v1615 = vunpack.c.l.b16 %v1320
        %v1616 = vunpack.c.l.b16 %v1321
        %v1617 = vunpack.c.l.b16 %v1322
        %v1618 = vpack.c.b16 %v1475, %v1474
        %v1619 = vpack.c.b16 %v1477, %v1476
        %v1620 = vpack.c.b16 %v1479, %v1478
        %v1621 = vpack.c.b16 %v1481, %v1480
        %v1622 = vpack.c.b16 %v1483, %v1482
        %v1623 = vpack.c.b16 %v1485, %v1484
        %v1624 = vpack.c.b16 %v1487, %v1486
        %v1625 = vpack.c.b16 %v1489, %v1488
        %v1626 = vpack.c.b16 %v1491, %v1490
        %v1627 = vpack.c.b16 %v1493, %v1492
        %v1628 = vpack.c.b16 %v1495, %v1494
        %v1629 = vpack.c.b16 %v1497, %v1496
        %v1630 = vpack.c.b16 %v1499, %v1498
        %v1631 = vpack.c.b16 %v1501, %v1500
        %v1632 = vpack.c.b16 %v1503, %v1502
        %v1633 = vpack.c.b16 %v1505, %v1504
        %v1634 = vpack.c.b16 %v1507, %v1506
        %v1635 = vpack.c.b16 %v1509, %v1508
        %v1636 = vpack.c.b16 %v1511, %v1510
        %v1637 = vpack.c.b16 %v1513, %v1512
        %v1638 = vpack.c.b16 %v1515, %v1514
        %v1639 = vpack.c.b16 %v1517, %v1516
        %v1640 = vpack.c.b16 %v1519, %v1518
        %v1641 = vpack.c.b16 %v1521, %v1520
        %v1642 = vpack.c.b16 %v1523, %v1522
        %v1643 = vpack.c.b16 %v1525, %v1524
        %v1644 = vpack.c.b16 %v1527, %v1526
        %v1645 = vpack.c.b16 %v1529, %v1528
        %v1646 = vpack.c.b16 %v1531, %v1530
        %v1647 = vpack.c.b16 %v1533, %v1532
        %v1648 = vpack.c.b16 %v1535, %v1534
        %v1649 = vpack.c.b16 %v1537, %v1536
        %v1650 = vpack.c.b16 %v1539, %v1538
        %v1651 = vpack.c.b16 %v1541, %v1540
        %v1652 = vpack.c.b16 %v1543, %v1542
        %v1653 = vpack.c.b16 %v1545, %v1544
        %v1654 = vpack.c.b16 %v1547, %v1546
        %v1655 = vpack.c.b16 %v1549, %v1548
        %v1656 = vpack.c.b16 %v1551, %v1550
        %v1657 = vpack.c.b16 %v1553, %v1552
        %v1658 = vpack.c.b16 %v1555, %v1554
        %v1659 = vpack.c.b16 %v1557, %v1556
        %v1660 = vpack.c.b16 %v1559, %v1558
        %v1661 = vpack.c.b16 %v1561, %v1560
        %v1662 = vpack.c.b16 %v1563, %v1562
        %v1663 = vpack.c.b16 %v1565, %v1564
        %v1664 = vpack.c.b16 %v1567, %v1566
        %v1665 = vpack.c.b16 %v1569, %v1568
        %v1666 = vpack.c.b16 %v1571, %v1570
        %v1667 = vpack.c.b16 %v1573, %v1572
        %v1668 = vpack.c.b16 %v1575, %v1574
        %v1669 = vpack.c.b16 %v1577, %v1576
        %v1670 = vpack.c.b16 %v1579, %v1578
        %v1671 = vpack.c.b16 %v1581, %v1580
        %v1672 = vpack.c.b16 %v1583, %v1582
        %v1673 = vpack.c.b16 %v1585, %v1584
        %v1674 = vpack.c.b16 %v1587, %v1586
        %v1675 = vpack.c.b16 %v1589, %v1588
        %v1676 = vpack.c.b16 %v1591, %v1590
        %v1677 = vpack.c.b16 %v1593, %v1592
        %v1678 = vpack.c.b16 %v1595, %v1594
        %v1679 = vpack.c.b16 %v1597, %v1596
        %v1680 = vpack.c.b16 %v1599, %v1598
        %v1681 = vpack.c.b16 %v1601, %v1600
        %v1682 = vpack.c.b16 %v1603, %v1602
        %v1683 = vpack.c.b16 %v1605, %v1604
        %v1684 = vpack.c.b16 %v1607, %v1606
        %v1685 = vpack.c.b16 %v1609, %v1608
        %v1686 = vpack.c.b16 %v1611, %v1610
        %v1687 = vpack.c.b16 %v1613, %v1612
        %v1688 = vpack.c.b16 %v1615, %v1614
        %v1689 = vpack.c.b16 %v1617, %v1616
        %1762 = vmatprep.subr.bf16.mxu0 0
        %1763 = vmatpush1.bf16.msra.mxu0 %v1618
        %1764 = vmatprep.subr.bf16.mxu0 0
        %1765 = vmatpush1.bf16.msra.mxu0 %v1619
        %1766 = vmatprep.subr.bf16.mxu0 0
        %1767 = vmatpush1.bf16.msra.mxu0 %v1620
        %1768 = vmatprep.subr.bf16.mxu0 0
        %1769 = vmatpush1.bf16.msra.mxu0 %v1621
        %1770 = vmatprep.subr.bf16.mxu0 0
        %1771 = vmatpush1.bf16.msra.mxu0 %v1622
        %1772 = vmatprep.subr.bf16.mxu0 0
        %1773 = vmatpush1.bf16.msra.mxu0 %v1623
        %1774 = vmatprep.subr.bf16.mxu0 0
        %1775 = vmatpush1.bf16.msra.mxu0 %v1624
        %1776 = vmatprep.subr.bf16.mxu0 0
        %1777 = vmatpush1.bf16.msra.mxu0 %v1625
        %1778 = vmatprep.subr.bf16.mxu0 0
        %1779 = vmatpush1.bf16.msra.mxu0 %v1626
        %1780 = vmatprep.subr.bf16.mxu0 0
        %1781 = vmatpush1.bf16.msra.mxu0 %v1627
        %1782 = vmatprep.subr.bf16.mxu0 0
        %1783 = vmatpush1.bf16.msra.mxu0 %v1628
        %1784 = vmatprep.subr.bf16.mxu0 0
        %1785 = vmatpush1.bf16.msra.mxu0 %v1629
        %1786 = vmatprep.subr.bf16.mxu0 0
        %1787 = vmatpush1.bf16.msra.mxu0 %v1630
        %1788 = vmatprep.subr.bf16.mxu0 0
        %1789 = vmatpush1.bf16.msra.mxu0 %v1631
        %1790 = vmatprep.subr.bf16.mxu0 0
        %1791 = vmatpush1.bf16.msra.mxu0 %v1632
        %1792 = vmatprep.subr.bf16.mxu0 0
        %1793 = vmatpush1.bf16.msra.mxu0 %v1633
        %1794 = vmatprep.mubr.bf16.mxu0 %v1144
        %1795 = vmatmul.mubr.bf16.gmra.mrb[0].mxu0 %v1143
        %v1796 = vpop.f32.mrb[0].mxu0
        %v1797 = vadd.f32 %v1328, %v1796
        %v1798 = vpop.f32.mrb[0].mxu0
        %v1799 = vpop.f32.mrb[0].mxu0
        %v1800 = vadd.f32 %v1328, %v1799
        %v1801 = vpop.f32.mrb[0].mxu0
        %1802 = vmatprep.mubr.bf16.mxu0 %v1153
        %1803 = vmatmul.mubr.bf16.gmra.mrb[0].mxu0 %v1152
        %v1804 = vpop.f32.mrb[0].mxu0
        %v1805 = vadd.f32 %v1328, %v1804
        %v1806 = vpop.f32.mrb[0].mxu0
        %v1807 = vpop.f32.mrb[0].mxu0
        %v1808 = vadd.f32 %v1328, %v1807
        %v1809 = vpop.f32.mrb[0].mxu0
        %1810 = vmatprep.mubr.bf16.mxu0 %v1162
        %1811 = vmatmul.mubr.bf16.gmra.mrb[0].mxu0 %v1161
        %v1812 = vpop.f32.mrb[0].mxu0
        %v1813 = vadd.f32 %v1328, %v1812
        %v1814 = vpop.f32.mrb[0].mxu0
        %v1815 = vpop.f32.mrb[0].mxu0
        %v1816 = vadd.f32 %v1328, %v1815
        %v1817 = vpop.f32.mrb[0].mxu0
        %1818 = vmatprep.mubr.bf16.mxu0 %v1171
        %1819 = vmatmul.mubr.bf16.gmra.mrb[0].mxu0 %v1170
        %v1820 = vpop.f32.mrb[0].mxu0
        %v1821 = vadd.f32 %v1328, %v1820
        %v1822 = vpop.f32.mrb[0].mxu0
        %v1823 = vpop.f32.mrb[0].mxu0
        %v1824 = vadd.f32 %v1328, %v1823
        %v1825 = vpop.f32.mrb[0].mxu0
        %1826 = vdwg.mxu0
        %1827 = vmatprep.subr.bf16.mxu0 0
        %1828 = vmatpush1.bf16.msra.mxu0 %v1634
        %1829 = vmatprep.subr.bf16.mxu0 0
        %1830 = vmatpush1.bf16.msra.mxu0 %v1635
        %1831 = vmatprep.subr.bf16.mxu0 0
        %1832 = vmatpush1.bf16.msra.mxu0 %v1636
        %1833 = vmatprep.subr.bf16.mxu0 0
        %1834 = vmatpush1.bf16.msra.mxu0 %v1637
        %1835 = vmatprep.subr.bf16.mxu0 0
        %1836 = vmatpush1.bf16.msra.mxu0 %v1638
        %1837 = vmatprep.subr.bf16.mxu0 0
        %1838 = vmatpush1.bf16.msra.mxu0 %v1639
        %1839 = vmatprep.subr.bf16.mxu0 0
        %1840 = vmatpush1.bf16.msra.mxu0 %v1640
        %1841 = vmatprep.subr.bf16.mxu0 0
        %1842 = vmatpush1.bf16.msra.mxu0 %v1641
        %1843 = vmatprep.subr.bf16.mxu0 0
        %1844 = vmatpush1.bf16.msra.mxu0 %v1642
        %1845 = vmatprep.subr.bf16.mxu0 0
        %1846 = vmatpush1.bf16.msra.mxu0 %v1643
        %1847 = vmatprep.subr.bf16.mxu0 0
        %1848 = vmatpush1.bf16.msra.mxu0 %v1644
        %1849 = vmatprep.subr.bf16.mxu0 0
        %1850 = vmatpush1.bf16.msra.mxu0 %v1645
        %1851 = vmatprep.subr.bf16.mxu0 0
        %1852 = vmatpush1.bf16.msra.mxu0 %v1646
        %1853 = vmatprep.subr.bf16.mxu0 0
        %1854 = vmatpush1.bf16.msra.mxu0 %v1647
        %1855 = vmatprep.subr.bf16.mxu0 0
        %1856 = vmatpush1.bf16.msra.mxu0 %v1648
        %1857 = vmatprep.subr.bf16.mxu0 0
        %1858 = vmatpush1.bf16.msra.mxu0 %v1649
        %1859 = vmatprep.mubr.bf16.mxu0 %v1146
        %1860 = vmatmul.mubr.bf16.gmra.mrb[0].mxu0 %v1145
        %v1861 = vpop.f32.mrb[0].mxu0
        %v1862 = vadd.f32 %v1797, %v1861
        %v1863 = vpop.f32.mrb[0].mxu0
        %v1864 = vpop.f32.mrb[0].mxu0
        %v1865 = vadd.f32 %v1800, %v1864
        %v1866 = vpop.f32.mrb[0].mxu0
        %1867 = vmatprep.mubr.bf16.mxu0 %v1155
        %1868 = vmatmul.mubr.bf16.gmra.mrb[0].mxu0 %v1154
        %v1869 = vpop.f32.mrb[0].mxu0
        %v1870 = vadd.f32 %v1805, %v1869
        %v1871 = vpop.f32.mrb[0].mxu0
        %v1872 = vpop.f32.mrb[0].mxu0
        %v1873 = vadd.f32 %v1808, %v1872
        %v1874 = vpop.f32.mrb[0].mxu0
        %1875 = vmatprep.mubr.bf16.mxu0 %v1164
        %1876 = vmatmul.mubr.bf16.gmra.mrb[0].mxu0 %v1163
        %v1877 = vpop.f32.mrb[0].mxu0
        %v1878 = vadd.f32 %v1813, %v1877
        %v1879 = vpop.f32.mrb[0].mxu0
        %v1880 = vpop.f32.mrb[0].mxu0
        %v1881 = vadd.f32 %v1816, %v1880
        %v1882 = vpop.f32.mrb[0].mxu0
        %1883 = vmatprep.mubr.bf16.mxu0 %v1173
        %1884 = vmatmul.mubr.bf16.gmra.mrb[0].mxu0 %v1172
        %v1885 = vpop.f32.mrb[0].mxu0
        %v1886 = vadd.f32 %v1821, %v1885
        %v1887 = vpop.f32.mrb[0].mxu0
        %v1888 = vpop.f32.mrb[0].mxu0
        %v1889 = vadd.f32 %v1824, %v1888
        %v1890 = vpop.f32.mrb[0].mxu0
        %1891 = vdwg.mxu0
        %1892 = vmatprep.subr.bf16.mxu0 0
        %1893 = vmatpush1.bf16.msra.mxu0 %v1650
        %1894 = vmatprep.subr.bf16.mxu0 0
        %1895 = vmatpush1.bf16.msra.mxu0 %v1651
        %1896 = vmatprep.subr.bf16.mxu0 0
        %1897 = vmatpush1.bf16.msra.mxu0 %v1652
        %1898 = vmatprep.subr.bf16.mxu0 0
        %1899 = vmatpush1.bf16.msra.mxu0 %v1653
        %1900 = vmatprep.subr.bf16.mxu0 0
        %1901 = vmatpush1.bf16.msra.mxu0 %v1654
        %1902 = vmatprep.subr.bf16.mxu0 0
        %1903 = vmatpush1.bf16.msra.mxu0 %v1655
        %1904 = vmatprep.subr.bf16.mxu0 0
        %1905 = vmatpush1.bf16.msra.mxu0 %v1656
        %1906 = vmatprep.subr.bf16.mxu0 0
        %1907 = vmatpush1.bf16.msra.mxu0 %v1657
        %1908 = vmatprep.subr.bf16.mxu0 0
        %1909 = vmatpush1.bf16.msra.mxu0 %v1658
        %1910 = vmatprep.subr.bf16.mxu0 0
        %1911 = vmatpush1.bf16.msra.mxu0 %v1659
        %1912 = vmatprep.subr.bf16.mxu0 0
        %1913 = vmatpush1.bf16.msra.mxu0 %v1660
        %1914 = vmatprep.subr.bf16.mxu0 0
        %1915 = vmatpush1.bf16.msra.mxu0 %v1661
        %1916 = vmatprep.subr.bf16.mxu0 0
        %1917 = vmatpush1.bf16.msra.mxu0 %v1662
        %1918 = vmatprep.subr.bf16.mxu0 0
        %1919 = vmatpush1.bf16.msra.mxu0 %v1663
        %1920 = vmatprep.subr.bf16.mxu0 0
        %1921 = vmatpush1.bf16.msra.mxu0 %v1664
        %1922 = vmatprep.subr.bf16.mxu0 0
        %1923 = vmatpush1.bf16.msra.mxu0 %v1665
        %1924 = vmatprep.mubr.bf16.mxu0 %v1148
        %1925 = vmatmul.mubr.bf16.gmra.mrb[0].mxu0 %v1147
        %v1926 = vpop.f32.mrb[0].mxu0
        %v1927 = vadd.f32 %v1862, %v1926
        %v1928 = vpop.f32.mrb[0].mxu0
        %v1929 = vpop.f32.mrb[0].mxu0
        %v1930 = vadd.f32 %v1865, %v1929
        %v1931 = vpop.f32.mrb[0].mxu0
        %1932 = vmatprep.mubr.bf16.mxu0 %v1157
        %1933 = vmatmul.mubr.bf16.gmra.mrb[0].mxu0 %v1156
        %v1934 = vpop.f32.mrb[0].mxu0
        %v1935 = vadd.f32 %v1870, %v1934
        %v1936 = vpop.f32.mrb[0].mxu0
        %v1937 = vpop.f32.mrb[0].mxu0
        %v1938 = vadd.f32 %v1873, %v1937
        %v1939 = vpop.f32.mrb[0].mxu0
        %1940 = vmatprep.mubr.bf16.mxu0 %v1166
        %1941 = vmatmul.mubr.bf16.gmra.mrb[0].mxu0 %v1165
        %v1942 = vpop.f32.mrb[0].mxu0
        %v1943 = vadd.f32 %v1878, %v1942
        %v1944 = vpop.f32.mrb[0].mxu0
        %v1945 = vpop.f32.mrb[0].mxu0
        %v1946 = vadd.f32 %v1881, %v1945
        %v1947 = vpop.f32.mrb[0].mxu0
        %1948 = vmatprep.mubr.bf16.mxu0 %v1175
        %1949 = vmatmul.mubr.bf16.gmra.mrb[0].mxu0 %v1174
        %v1950 = vpop.f32.mrb[0].mxu0
        %v1951 = vadd.f32 %v1886, %v1950
        %v1952 = vpop.f32.mrb[0].mxu0
        %v1953 = vpop.f32.mrb[0].mxu0
        %v1954 = vadd.f32 %v1889, %v1953
        %v1955 = vpop.f32.mrb[0].mxu0
        %1956 = vdwg.mxu0
        %1957 = vmatprep.subr.bf16.mxu0 0
        %1958 = vmatpush1.bf16.msra.mxu0 %v1666
        %1959 = vmatprep.subr.bf16.mxu0 0
        %1960 = vmatpush1.bf16.msra.mxu0 %v1667
        %1961 = vmatprep.subr.bf16.mxu0 0
        %1962 = vmatpush1.bf16.msra.mxu0 %v1668
        %1963 = vmatprep.subr.bf16.mxu0 0
        %1964 = vmatpush1.bf16.msra.mxu0 %v1669
        %1965 = vmatprep.subr.bf16.mxu0 0
        %1966 = vmatpush1.bf16.msra.mxu0 %v1670
        %1967 = vmatprep.subr.bf16.mxu0 0
        %1968 = vmatpush1.bf16.msra.mxu0 %v1671
        %1969 = vmatprep.subr.bf16.mxu0 0
        %1970 = vmatpush1.bf16.msra.mxu0 %v1672
        %1971 = vmatprep.subr.bf16.mxu0 0
        %1972 = vmatpush1.bf16.msra.mxu0 %v1673
        %1973 = vmatprep.subr.bf16.mxu0 0
        %1974 = vmatpush1.bf16.msra.mxu0 %v1674
        %1975 = vmatprep.subr.bf16.mxu0 0
        %1976 = vmatpush1.bf16.msra.mxu0 %v1675
        %1977 = vmatprep.subr.bf16.mxu0 0
        %1978 = vmatpush1.bf16.msra.mxu0 %v1676
        %1979 = vmatprep.subr.bf16.mxu0 0
        %1980 = vmatpush1.bf16.msra.mxu0 %v1677
        %1981 = vmatprep.subr.bf16.mxu0 0
        %1982 = vmatpush1.bf16.msra.mxu0 %v1678
        %1983 = vmatprep.subr.bf16.mxu0 0
        %1984 = vmatpush1.bf16.msra.mxu0 %v1679
        %1985 = vmatprep.subr.bf16.mxu0 0
        %1986 = vmatpush1.bf16.msra.mxu0 %v1680
        %1987 = vmatprep.subr.bf16.mxu0 0
        %1988 = vmatpush1.bf16.msra.mxu0 %v1681
        %1989 = vmatprep.mubr.bf16.mxu0 %v1150
        %1990 = vmatmul.mubr.bf16.gmra.mrb[0].mxu0 %v1149
        %v1991 = vpop.f32.mrb[0].mxu0
        %v1992 = vadd.f32 %v1927, %v1991
        %v1993 = vpop.f32.mrb[0].mxu0
        %v1994 = vpop.f32.mrb[0].mxu0
        %v1995 = vadd.f32 %v1930, %v1994
        %v1996 = vpop.f32.mrb[0].mxu0
        %1997 = vmatprep.mubr.bf16.mxu0 %v1159
        %1998 = vmatmul.mubr.bf16.gmra.mrb[0].mxu0 %v1158
        %v1999 = vpop.f32.mrb[0].mxu0
        %v2000 = vadd.f32 %v1935, %v1999
        %v2001 = vpop.f32.mrb[0].mxu0
        %v2002 = vpop.f32.mrb[0].mxu0
        %v2003 = vadd.f32 %v1938, %v2002
        %v2004 = vpop.f32.mrb[0].mxu0
        %2005 = vmatprep.mubr.bf16.mxu0 %v1168
        %2006 = vmatmul.mubr.bf16.gmra.mrb[0].mxu0 %v1167
        %v2007 = vpop.f32.mrb[0].mxu0
        %v2008 = vadd.f32 %v1943, %v2007
        %v2009 = vpop.f32.mrb[0].mxu0
        %v2010 = vpop.f32.mrb[0].mxu0
        %v2011 = vadd.f32 %v1946, %v2010
        %v2012 = vpop.f32.mrb[0].mxu0
        %2013 = vmatprep.mubr.bf16.mxu0 %v1177
        %2014 = vmatmul.mubr.bf16.gmra.mrb[0].mxu0 %v1176
        %v2015 = vpop.f32.mrb[0].mxu0
        %v2016 = vadd.f32 %v1951, %v2015
        %v2017 = vpop.f32.mrb[0].mxu0
        %v2018 = vpop.f32.mrb[0].mxu0
        %v2019 = vadd.f32 %v1954, %v2018
        %v2020 = vpop.f32.mrb[0].mxu0
        %2021 = vdwg.mxu0
        %2022 = vmatprep.subr.bf16.mxu0 0
        %2023 = vmatpush1.bf16.msra.mxu0 %v1682
        %2024 = vmatprep.subr.bf16.mxu0 0
        %2025 = vmatpush1.bf16.msra.mxu0 %v1683
        %2026 = vmatprep.subr.bf16.mxu0 0
        %2027 = vmatpush1.bf16.msra.mxu0 %v1684
        %2028 = vmatprep.subr.bf16.mxu0 0
        %2029 = vmatpush1.bf16.msra.mxu0 %v1685
        %2030 = vmatprep.subr.bf16.mxu0 0
        %2031 = vmatpush1.bf16.msra.mxu0 %v1686
        %2032 = vmatprep.subr.bf16.mxu0 0
        %2033 = vmatpush1.bf16.msra.mxu0 %v1687
        %2034 = vmatprep.subr.bf16.mxu0 0
        %2035 = vmatpush1.bf16.msra.mxu0 %v1688
        %2036 = vmatprep.subr.bf16.mxu0 0
        %2037 = vmatpush1.bf16.msra.mxu0 %v1689
        %2038 = vmatprep.subr.bf16.mxu0 0
        %2039 = vmatpush1.bf16.msra.mxu0 0
        %2040 = vmatprep.subr.bf16.mxu0 0
        %2041 = vmatpush1.bf16.msra.mxu0 0
        %2042 = vmatprep.subr.bf16.mxu0 0
        %2043 = vmatpush1.bf16.msra.mxu0 0
        %2044 = vmatprep.subr.bf16.mxu0 0
        %2045 = vmatpush1.bf16.msra.mxu0 0
        %2046 = vmatprep.subr.bf16.mxu0 0
        %2047 = vmatpush1.bf16.msra.mxu0 0
        %2048 = vmatprep.subr.bf16.mxu0 0
        %2049 = vmatpush1.bf16.msra.mxu0 0
        %2050 = vmatprep.subr.bf16.mxu0 0
        %2051 = vmatpush1.bf16.msra.mxu0 0
        %2052 = vmatprep.subr.bf16.mxu0 0
        %2053 = vmatpush1.bf16.msra.mxu0 0
        %2054 = vmatprep.mubr.bf16.mxu0 0
        %2055 = vmatmul.mubr.bf16.gmra.mrb[0].mxu0 %v1151
        %v2056 = vpop.f32.mrb[0].mxu0
        %v2057 = vadd.f32 %v1992, %v2056
        %v2058 = vpop.f32.mrb[0].mxu0
        %v2059 = vpop.f32.mrb[0].mxu0
        %v2060 = vadd.f32 %v1995, %v2059
        %v2061 = vpop.f32.mrb[0].mxu0
        %2062 = vmatprep.mubr.bf16.mxu0 0
        %2063 = vmatmul.mubr.bf16.gmra.mrb[0].mxu0 %v1160
        %v2064 = vpop.f32.mrb[0].mxu0
        %v2065 = vadd.f32 %v2000, %v2064
        %v2066 = vpop.f32.mrb[0].mxu0
        %v2067 = vpop.f32.mrb[0].mxu0
        %v2068 = vadd.f32 %v2003, %v2067
        %v2069 = vpop.f32.mrb[0].mxu0
        %2070 = vmatprep.mubr.bf16.mxu0 0
        %2071 = vmatmul.mubr.bf16.gmra.mrb[0].mxu0 %v1169
        %v2072 = vpop.f32.mrb[0].mxu0
        %v2073 = vadd.f32 %v2008, %v2072
        %v2074 = vpop.f32.mrb[0].mxu0
        %v2075 = vpop.f32.mrb[0].mxu0
        %v2076 = vadd.f32 %v2011, %v2075
        %v2077 = vpop.f32.mrb[0].mxu0
        %2078 = vmatprep.mubr.bf16.mxu0 0
        %2079 = vmatmul.mubr.bf16.gmra.mrb[0].mxu0 %v1178
        %v2080 = vpop.f32.mrb[0].mxu0
        %v2081 = vadd.f32 %v2016, %v2080
        %v2082 = vpop.f32.mrb[0].mxu0
        %v2083 = vpop.f32.mrb[0].mxu0
        %v2084 = vadd.f32 %v2019, %v2083
        %v2085 = vpop.f32.mrb[0].mxu0
        %2086 = vdwg.mxu0
        %v2087 = vmax.f32 %v2057, 0.0
        %v2088 = vmax.f32 %v2060, 0.0
        %v2089 = vmax.f32 %v2065, 0.0
        %v2090 = vmax.f32 %v2068, 0.0
        %v2091 = vmax.f32 %v2073, 0.0
        %v2092 = vmax.f32 %v2076, 0.0
        %v2093 = vmax.f32 %v2081, 0.0
        %v2094 = vmax.f32 %v2084, 0.0
        %v2095 = vadd.f32 %v2087, %v2088
        %v2096 = vadd.f32 %v2095, %v2089
        %v2097 = vadd.f32 %v2096, %v2090
        %v2098 = vadd.f32 %v2097, %v2091
        %v2099 = vadd.f32 %v2098, %v2092
        %v2100 = vadd.f32 %v2099, %v2093
        %v2101 = vadd.f32 %v2100, %v2094
        %v2102 = vrot.slane %v2101, 4
        %v2103 = vadd.f32 %v2101, %v2102
        %v2104 = vrot.slane %v2103, 2
        %v2105 = vadd.f32 %v2103, %v2104
        %v2106 = vrot.slane %v2105, 1
        %v2107 = vadd.f32 %v2105, %v2106
        %v2108 = vmul.f32 %v2087, %v2087
        %v2109 = vmul.f32 %v2088, %v2088
        %v2110 = vmul.f32 %v2089, %v2089
        %v2111 = vmul.f32 %v2090, %v2090
        %v2112 = vmul.f32 %v2091, %v2091
        %v2113 = vmul.f32 %v2092, %v2092
        %v2114 = vmul.f32 %v2093, %v2093
        %v2115 = vmul.f32 %v2094, %v2094
        %v2116 = vadd.f32 %v2108, %v2109
        %v2117 = vadd.f32 %v2116, %v2110
        %v2118 = vadd.f32 %v2117, %v2111
        %v2119 = vadd.f32 %v2118, %v2112
        %v2120 = vadd.f32 %v2119, %v2113
        %v2121 = vadd.f32 %v2120, %v2114
        %v2122 = vadd.f32 %v2121, %v2115
        %v2123 = vrot.slane %v2122, 4
        %v2124 = vadd.f32 %v2122, %v2123
        %v2125 = vrot.slane %v2124, 2
        %v2126 = vadd.f32 %v2124, %v2125
        %v2127 = vrot.slane %v2126, 1
        %v2128 = vadd.f32 %v2126, %v2127
        %v2129 = vld [vmem:[%s5] sm:$0xff]
        %v2130 = vld [vmem:[%s6] sm:$0xff]
        %v2131 = vld [vmem:[%s6 + $0x8] sm:$0xff]
        %v2132 = vld [vmem:[%s6 + $0x10] sm:$0xff]
        %v2133 = vld [vmem:[%s6 + $0x18] sm:$0xff]
        %v2134 = vld [vmem:[%s6 + $0x20] sm:$0xff]
        %v2135 = vld [vmem:[%s6 + $0x28] sm:$0xff]
        %v2136 = vld [vmem:[%s6 + $0x30] sm:$0xff]
        %v2137 = vld [vmem:[%s6 + $0x38] sm:$0xff]
        %v2138 = vld [vmem:[%s6 + $0x40] sm:$0xff]
        %v2139 = vld [vmem:[%s6 + $0x48] sm:$0xff]
        %v2140 = vld [vmem:[%s6 + $0x50] sm:$0xff]
        %v2141 = vld [vmem:[%s6 + $0x58] sm:$0xff]
        %v2142 = vld [vmem:[%s6 + $0x60] sm:$0xff]
        %v2143 = vld [vmem:[%s6 + $0x68] sm:$0xff]
        %v2144 = vld [vmem:[%s6 + $0x70] sm:$0xff]
        %v2145 = vld [vmem:[%s6 + $0x78] sm:$0xff]
        %v2146 = vld [vmem:[%s3] sm:$0x1]
        %v2147 = vld [vmem:[%s4] sm:$0x1]
        %2148 = vmatprep.subr.mxu0 0.0
        %2149 = vmatpush1.msra.mxu0 %v2130
        %2150 = vmatprep.subr.mxu0 0.0
        %2151 = vmatpush1.msra.mxu0 %v2131
        %2152 = vmatprep.subr.mxu0 0.0
        %2153 = vmatpush1.msra.mxu0 %v2132
        %2154 = vmatprep.subr.mxu0 0.0
        %2155 = vmatpush1.msra.mxu0 %v2133
        %2156 = vmatprep.subr.mxu0 0.0
        %2157 = vmatpush1.msra.mxu0 %v2134
        %2158 = vmatprep.subr.mxu0 0.0
        %2159 = vmatpush1.msra.mxu0 %v2135
        %2160 = vmatprep.subr.mxu0 0.0
        %2161 = vmatpush1.msra.mxu0 %v2136
        %2162 = vmatprep.subr.mxu0 0.0
        %2163 = vmatpush1.msra.mxu0 %v2137
        %2164 = vmatprep.subr.mxu0 0.0
        %2165 = vmatpush1.msra.mxu0 %v2138
        %2166 = vmatprep.subr.mxu0 0.0
        %2167 = vmatpush1.msra.mxu0 %v2139
        %2168 = vmatprep.subr.mxu0 0.0
        %2169 = vmatpush1.msra.mxu0 %v2140
        %2170 = vmatprep.subr.mxu0 0.0
        %2171 = vmatpush1.msra.mxu0 %v2141
        %2172 = vmatprep.subr.mxu0 0.0
        %2173 = vmatpush1.msra.mxu0 %v2142
        %2174 = vmatprep.subr.mxu0 0.0
        %2175 = vmatpush1.msra.mxu0 %v2143
        %2176 = vmatprep.subr.mxu0 0.0
        %2177 = vmatpush1.msra.mxu0 %v2144
        %2178 = vmatprep.subr.mxu0 0.0
        %2179 = vmatpush1.msra.mxu0 %v2145
        %2180 = vmatprep.subr.mxu0 0.0
        %2181 = vmatpush1.msra.mxu0 0.0
        %2182 = vmatprep.subr.mxu0 0.0
        %2183 = vmatpush1.msra.mxu0 0.0
        %2184 = vmatprep.subr.mxu0 0.0
        %2185 = vmatpush1.msra.mxu0 0.0
        %2186 = vmatprep.subr.mxu0 0.0
        %2187 = vmatpush1.msra.mxu0 0.0
        %2188 = vmatprep.subr.mxu0 0.0
        %2189 = vmatpush1.msra.mxu0 0.0
        %2190 = vmatprep.subr.mxu0 0.0
        %2191 = vmatpush1.msra.mxu0 0.0
        %2192 = vmatprep.subr.mxu0 0.0
        %2193 = vmatpush1.msra.mxu0 0.0
        %2194 = vmatprep.subr.mxu0 0.0
        %2195 = vmatpush1.msra.mxu0 0.0
        %2196 = vmatprep.subr.mxu0 0.0
        %2197 = vmatpush1.msra.mxu0 0.0
        %2198 = vmatprep.subr.mxu0 0.0
        %2199 = vmatpush1.msra.mxu0 0.0
        %2200 = vmatprep.subr.mxu0 0.0
        %2201 = vmatpush1.msra.mxu0 0.0
        %2202 = vmatprep.subr.mxu0 0.0
        %2203 = vmatpush1.msra.mxu0 0.0
        %2204 = vmatprep.subr.mxu0 0.0
        %2205 = vmatpush1.msra.mxu0 0.0
        %2206 = vmatprep.subr.mxu0 0.0
        %2207 = vmatpush1.msra.mxu0 0.0
        %2208 = vmatprep.subr.mxu0 0.0
        %2209 = vmatpush1.msra.mxu0 0.0
        %2210 = vmatprep.subr.mxu0 0.0
        %2211 = vmatpush1.msra.mxu0 0.0
        %2212 = vmatprep.mubr.f32.mxu0 0.0
        %2213 = vmatmul.mubr.f32.gmra.mrb[0].mxu0 %v2107
        %v2214 = vpop.f32.mrb[0].mxu0
        %v2215 = vadd.f32 0.0, %v2214
        %v2216 = vpop.f32.mrb[0].mxu0
        %2217 = vdwg.mxu0
        %v2218 = vmul.f32 %v2215, 0.0009765625
        %2219 = vmatprep.subr.mxu0 0.0
        %2220 = vmatpush1.msra.mxu0 %v2130
        %2221 = vmatprep.subr.mxu0 0.0
        %2222 = vmatpush1.msra.mxu0 %v2131
        %2223 = vmatprep.subr.mxu0 0.0
        %2224 = vmatpush1.msra.mxu0 %v2132
        %2225 = vmatprep.subr.mxu0 0.0
        %2226 = vmatpush1.msra.mxu0 %v2133
        %2227 = vmatprep.subr.mxu0 0.0
        %2228 = vmatpush1.msra.mxu0 %v2134
        %2229 = vmatprep.subr.mxu0 0.0
        %2230 = vmatpush1.msra.mxu0 %v2135
        %2231 = vmatprep.subr.mxu0 0.0
        %2232 = vmatpush1.msra.mxu0 %v2136
        %2233 = vmatprep.subr.mxu0 0.0
        %2234 = vmatpush1.msra.mxu0 %v2137
        %2235 = vmatprep.subr.mxu0 0.0
        %2236 = vmatpush1.msra.mxu0 %v2138
        %2237 = vmatprep.subr.mxu0 0.0
        %2238 = vmatpush1.msra.mxu0 %v2139
        %2239 = vmatprep.subr.mxu0 0.0
        %2240 = vmatpush1.msra.mxu0 %v2140
        %2241 = vmatprep.subr.mxu0 0.0
        %2242 = vmatpush1.msra.mxu0 %v2141
        %2243 = vmatprep.subr.mxu0 0.0
        %2244 = vmatpush1.msra.mxu0 %v2142
        %2245 = vmatprep.subr.mxu0 0.0
        %2246 = vmatpush1.msra.mxu0 %v2143
        %2247 = vmatprep.subr.mxu0 0.0
        %2248 = vmatpush1.msra.mxu0 %v2144
        %2249 = vmatprep.subr.mxu0 0.0
        %2250 = vmatpush1.msra.mxu0 %v2145
        %2251 = vmatprep.subr.mxu0 0.0
        %2252 = vmatpush1.msra.mxu0 0.0
        %2253 = vmatprep.subr.mxu0 0.0
        %2254 = vmatpush1.msra.mxu0 0.0
        %2255 = vmatprep.subr.mxu0 0.0
        %2256 = vmatpush1.msra.mxu0 0.0
        %2257 = vmatprep.subr.mxu0 0.0
        %2258 = vmatpush1.msra.mxu0 0.0
        %2259 = vmatprep.subr.mxu0 0.0
        %2260 = vmatpush1.msra.mxu0 0.0
        %2261 = vmatprep.subr.mxu0 0.0
        %2262 = vmatpush1.msra.mxu0 0.0
        %2263 = vmatprep.subr.mxu0 0.0
        %2264 = vmatpush1.msra.mxu0 0.0
        %2265 = vmatprep.subr.mxu0 0.0
        %2266 = vmatpush1.msra.mxu0 0.0
        %2267 = vmatprep.subr.mxu0 0.0
        %2268 = vmatpush1.msra.mxu0 0.0
        %2269 = vmatprep.subr.mxu0 0.0
        %2270 = vmatpush1.msra.mxu0 0.0
        %2271 = vmatprep.subr.mxu0 0.0
        %2272 = vmatpush1.msra.mxu0 0.0
        %2273 = vmatprep.subr.mxu0 0.0
        %2274 = vmatpush1.msra.mxu0 0.0
        %2275 = vmatprep.subr.mxu0 0.0
        %2276 = vmatpush1.msra.mxu0 0.0
        %2277 = vmatprep.subr.mxu0 0.0
        %2278 = vmatpush1.msra.mxu0 0.0
        %2279 = vmatprep.subr.mxu0 0.0
        %2280 = vmatpush1.msra.mxu0 0.0
        %2281 = vmatprep.subr.mxu0 0.0
        %2282 = vmatpush1.msra.mxu0 0.0
        %2283 = vmatprep.mubr.f32.mxu0 0.0
        %2284 = vmatmul.mubr.f32.gmra.mrb[0].mxu0 %v2128
        %v2285 = vpop.f32.mrb[0].mxu0
        %v2286 = vadd.f32 0.0, %v2285
        %v2287 = vpop.f32.mrb[0].mxu0
        %2288 = vdwg.mxu0
        %v2289 = vmul.f32 %v2286, 0.0009765625
        %v2290 = vmul.f32 %v2218, %v2218
        %v2291 = vsub.f32 %v2289, %v2290
        %v2292 = vmax.f32 %v2291, 0.0
        %v2293 = vadd.f32 %v2292, 1e-05
        %v2294 = vrsqrt.pop %v2293
        %vm2295 = vcmask 64512
        %v2297 = vsel %vm2295, %v2218, 0
        %2299 = vmatprep.subr.mxu0 0.0
        %2300 = vmatpush1.msra.mxu0 %v2129
        %2301 = vmatprep.subr.mxu0 0.0
        %2302 = vmatpush1.msra.mxu0 0.0
        %2303 = vmatprep.subr.mxu0 0.0
        %2304 = vmatpush1.msra.mxu0 0.0
        %2305 = vmatprep.subr.mxu0 0.0
        %2306 = vmatpush1.msra.mxu0 0.0
        %2307 = vmatprep.subr.mxu0 0.0
        %2308 = vmatpush1.msra.mxu0 0.0
        %2309 = vmatprep.subr.mxu0 0.0
        %2310 = vmatpush1.msra.mxu0 0.0
        %2311 = vmatprep.subr.mxu0 0.0
        %2312 = vmatpush1.msra.mxu0 0.0
        %2313 = vmatprep.subr.mxu0 0.0
        %2314 = vmatpush1.msra.mxu0 0.0
        %2315 = vmatprep.subr.mxu0 0.0
        %2316 = vmatpush1.msra.mxu0 0.0
        %2317 = vmatprep.subr.mxu0 0.0
        %2318 = vmatpush1.msra.mxu0 0.0
        %2319 = vmatprep.subr.mxu0 0.0
        %2320 = vmatpush1.msra.mxu0 0.0
        %2321 = vmatprep.subr.mxu0 0.0
        %2322 = vmatpush1.msra.mxu0 0.0
        %2323 = vmatprep.subr.mxu0 0.0
        %2324 = vmatpush1.msra.mxu0 0.0
        %2325 = vmatprep.subr.mxu0 0.0
        %2326 = vmatpush1.msra.mxu0 0.0
        %2327 = vmatprep.subr.mxu0 0.0
        %2328 = vmatpush1.msra.mxu0 0.0
        %2329 = vmatprep.subr.mxu0 0.0
        %2330 = vmatpush1.msra.mxu0 0.0
        %2331 = vmatprep.subr.mxu0 0.0
        %2332 = vmatpush1.msra.mxu0 0.0
        %2333 = vmatprep.subr.mxu0 0.0
        %2334 = vmatpush1.msra.mxu0 0.0
        %2335 = vmatprep.subr.mxu0 0.0
        %2336 = vmatpush1.msra.mxu0 0.0
        %2337 = vmatprep.subr.mxu0 0.0
        %2338 = vmatpush1.msra.mxu0 0.0
        %2339 = vmatprep.subr.mxu0 0.0
        %2340 = vmatpush1.msra.mxu0 0.0
        %2341 = vmatprep.subr.mxu0 0.0
        %2342 = vmatpush1.msra.mxu0 0.0
        %2343 = vmatprep.subr.mxu0 0.0
        %2344 = vmatpush1.msra.mxu0 0.0
        %2345 = vmatprep.subr.mxu0 0.0
        %2346 = vmatpush1.msra.mxu0 0.0
        %2347 = vmatprep.subr.mxu0 0.0
        %2348 = vmatpush1.msra.mxu0 0.0
        %2349 = vmatprep.subr.mxu0 0.0
        %2350 = vmatpush1.msra.mxu0 0.0
        %2351 = vmatprep.subr.mxu0 0.0
        %2352 = vmatpush1.msra.mxu0 0.0
        %2353 = vmatprep.subr.mxu0 0.0
        %2354 = vmatpush1.msra.mxu0 0.0
        %2355 = vmatprep.subr.mxu0 0.0
        %2356 = vmatpush1.msra.mxu0 0.0
        %2357 = vmatprep.subr.mxu0 0.0
        %2358 = vmatpush1.msra.mxu0 0.0
        %2359 = vmatprep.subr.mxu0 0.0
        %2360 = vmatpush1.msra.mxu0 0.0
        %2361 = vmatprep.subr.mxu0 0.0
        %2362 = vmatpush1.msra.mxu0 0.0
        %2363 = vmatprep.mubr.f32.mxu0 0.0
        %2364 = vmatmul.mubr.f32.gmra.mrb[0].mxu0 %v2297
        %v2365 = vpop.f32.mrb[0].mxu0
        %v2366 = vadd.f32 0.0, %v2365
        %v2367 = vpop.f32.mrb[0].mxu0
        %2368 = vdwg.mxu0
        %v2370 = vsel %vm2295, %v2294, 0
        %2372 = vmatprep.subr.mxu0 0.0
        %2373 = vmatpush1.msra.mxu0 %v2129
        %2374 = vmatprep.subr.mxu0 0.0
        %2375 = vmatpush1.msra.mxu0 0.0
        %2376 = vmatprep.subr.mxu0 0.0
        %2377 = vmatpush1.msra.mxu0 0.0
        %2378 = vmatprep.subr.mxu0 0.0
        %2379 = vmatpush1.msra.mxu0 0.0
        %2380 = vmatprep.subr.mxu0 0.0
        %2381 = vmatpush1.msra.mxu0 0.0
        %2382 = vmatprep.subr.mxu0 0.0
        %2383 = vmatpush1.msra.mxu0 0.0
        %2384 = vmatprep.subr.mxu0 0.0
        %2385 = vmatpush1.msra.mxu0 0.0
        %2386 = vmatprep.subr.mxu0 0.0
        %2387 = vmatpush1.msra.mxu0 0.0
        %2388 = vmatprep.subr.mxu0 0.0
        %2389 = vmatpush1.msra.mxu0 0.0
        %2390 = vmatprep.subr.mxu0 0.0
        %2391 = vmatpush1.msra.mxu0 0.0
        %2392 = vmatprep.subr.mxu0 0.0
        %2393 = vmatpush1.msra.mxu0 0.0
        %2394 = vmatprep.subr.mxu0 0.0
        %2395 = vmatpush1.msra.mxu0 0.0
        %2396 = vmatprep.subr.mxu0 0.0
        %2397 = vmatpush1.msra.mxu0 0.0
        %2398 = vmatprep.subr.mxu0 0.0
        %2399 = vmatpush1.msra.mxu0 0.0
        %2400 = vmatprep.subr.mxu0 0.0
        %2401 = vmatpush1.msra.mxu0 0.0
        %2402 = vmatprep.subr.mxu0 0.0
        %2403 = vmatpush1.msra.mxu0 0.0
        %2404 = vmatprep.subr.mxu0 0.0
        %2405 = vmatpush1.msra.mxu0 0.0
        %2406 = vmatprep.subr.mxu0 0.0
        %2407 = vmatpush1.msra.mxu0 0.0
        %2408 = vmatprep.subr.mxu0 0.0
        %2409 = vmatpush1.msra.mxu0 0.0
        %2410 = vmatprep.subr.mxu0 0.0
        %2411 = vmatpush1.msra.mxu0 0.0
        %2412 = vmatprep.subr.mxu0 0.0
        %2413 = vmatpush1.msra.mxu0 0.0
        %2414 = vmatprep.subr.mxu0 0.0
        %2415 = vmatpush1.msra.mxu0 0.0
        %2416 = vmatprep.subr.mxu0 0.0
        %2417 = vmatpush1.msra.mxu0 0.0
        %2418 = vmatprep.subr.mxu0 0.0
        %2419 = vmatpush1.msra.mxu0 0.0
        %2420 = vmatprep.subr.mxu0 0.0
        %2421 = vmatpush1.msra.mxu0 0.0
        %2422 = vmatprep.subr.mxu0 0.0
        %2423 = vmatpush1.msra.mxu0 0.0
        %2424 = vmatprep.subr.mxu0 0.0
        %2425 = vmatpush1.msra.mxu0 0.0
        %2426 = vmatprep.subr.mxu0 0.0
        %2427 = vmatpush1.msra.mxu0 0.0
        %2428 = vmatprep.subr.mxu0 0.0
        %2429 = vmatpush1.msra.mxu0 0.0
        %2430 = vmatprep.subr.mxu0 0.0
        %2431 = vmatpush1.msra.mxu0 0.0
        %2432 = vmatprep.subr.mxu0 0.0
        %2433 = vmatpush1.msra.mxu0 0.0
        %2434 = vmatprep.subr.mxu0 0.0
        %2435 = vmatpush1.msra.mxu0 0.0
        %2436 = vmatprep.mubr.f32.mxu0 0.0
        %2437 = vmatmul.mubr.f32.gmra.mrb[0].mxu0 %v2370
        %v2438 = vpop.f32.mrb[0].mxu0
        %v2439 = vadd.f32 0.0, %v2438
        %v2440 = vpop.f32.mrb[0].mxu0
        %2441 = vdwg.mxu0
        %v2442 = vmul.f32 %v2439, %v2146
        %v2443 = vmul.f32 %v2366, %v2442
        %v2444 = vsub.f32 %v2147, %v2443
        %v2445 = vmul.f32 %v2107, 0.015625
        %v2446 = vmul.f32 %v2445, %v2442
        %v2447 = vadd.f32 %v2446, %v2444
        %v2448 = vld [vmem:[%s7] sm:$0xff]
        %v2449 = vld [vmem:[%s7 + $0x8] sm:$0xff]
        %v2450 = vld [vmem:[%s7 + $0x10] sm:$0xff]
        %v2451 = vld [vmem:[%s7 + $0x18] sm:$0xff]
        %v2452 = vld [vmem:[%s7 + $0x20] sm:$0xff]
        %v2453 = vld [vmem:[%s7 + $0x28] sm:$0xff]
        %v2454 = vld [vmem:[%s7 + $0x30] sm:$0xff]
        %v2455 = vld [vmem:[%s7 + $0x38] sm:$0xff]
        %v2456 = vld [vmem:[%s7 + $0x40] sm:$0xff]
        %v2457 = vld [vmem:[%s7 + $0x48] sm:$0xff]
        %v2458 = vld [vmem:[%s7 + $0x50] sm:$0xff]
        %v2459 = vld [vmem:[%s7 + $0x58] sm:$0xff]
        %v2460 = vld [vmem:[%s7 + $0x60] sm:$0xff]
        %v2461 = vld [vmem:[%s7 + $0x68] sm:$0xff]
        %v2462 = vld [vmem:[%s7 + $0x70] sm:$0xff]
        %v2463 = vld [vmem:[%s7 + $0x78] sm:$0xff]
        %v2464 = vld [vmem:[%s8] sm:$0x1]
        %2465 = vmatprep.subr.mxu0 0.0
        %2466 = vmatpush1.msra.mxu0 %v2448
        %2467 = vmatprep.subr.mxu0 0.0
        %2468 = vmatpush1.msra.mxu0 %v2449
        %2469 = vmatprep.subr.mxu0 0.0
        %2470 = vmatpush1.msra.mxu0 %v2450
        %2471 = vmatprep.subr.mxu0 0.0
        %2472 = vmatpush1.msra.mxu0 %v2451
        %2473 = vmatprep.subr.mxu0 0.0
        %2474 = vmatpush1.msra.mxu0 %v2452
        %2475 = vmatprep.subr.mxu0 0.0
        %2476 = vmatpush1.msra.mxu0 %v2453
        %2477 = vmatprep.subr.mxu0 0.0
        %2478 = vmatpush1.msra.mxu0 %v2454
        %2479 = vmatprep.subr.mxu0 0.0
        %2480 = vmatpush1.msra.mxu0 %v2455
        %2481 = vmatprep.subr.mxu0 0.0
        %2482 = vmatpush1.msra.mxu0 %v2456
        %2483 = vmatprep.subr.mxu0 0.0
        %2484 = vmatpush1.msra.mxu0 %v2457
        %2485 = vmatprep.subr.mxu0 0.0
        %2486 = vmatpush1.msra.mxu0 %v2458
        %2487 = vmatprep.subr.mxu0 0.0
        %2488 = vmatpush1.msra.mxu0 %v2459
        %2489 = vmatprep.subr.mxu0 0.0
        %2490 = vmatpush1.msra.mxu0 %v2460
        %2491 = vmatprep.subr.mxu0 0.0
        %2492 = vmatpush1.msra.mxu0 %v2461
        %2493 = vmatprep.subr.mxu0 0.0
        %2494 = vmatpush1.msra.mxu0 %v2462
        %2495 = vmatprep.subr.mxu0 0.0
        %2496 = vmatpush1.msra.mxu0 %v2463
        %2497 = vmatprep.subr.mxu0 0.0
        %2498 = vmatpush1.msra.mxu0 0.0
        %2499 = vmatprep.subr.mxu0 0.0
        %2500 = vmatpush1.msra.mxu0 0.0
        %2501 = vmatprep.subr.mxu0 0.0
        %2502 = vmatpush1.msra.mxu0 0.0
        %2503 = vmatprep.subr.mxu0 0.0
        %2504 = vmatpush1.msra.mxu0 0.0
        %2505 = vmatprep.subr.mxu0 0.0
        %2506 = vmatpush1.msra.mxu0 0.0
        %2507 = vmatprep.subr.mxu0 0.0
        %2508 = vmatpush1.msra.mxu0 0.0
        %2509 = vmatprep.subr.mxu0 0.0
        %2510 = vmatpush1.msra.mxu0 0.0
        %2511 = vmatprep.subr.mxu0 0.0
        %2512 = vmatpush1.msra.mxu0 0.0
        %2513 = vmatprep.subr.mxu0 0.0
        %2514 = vmatpush1.msra.mxu0 0.0
        %2515 = vmatprep.subr.mxu0 0.0
        %2516 = vmatpush1.msra.mxu0 0.0
        %2517 = vmatprep.subr.mxu0 0.0
        %2518 = vmatpush1.msra.mxu0 0.0
        %2519 = vmatprep.subr.mxu0 0.0
        %2520 = vmatpush1.msra.mxu0 0.0
        %2521 = vmatprep.subr.mxu0 0.0
        %2522 = vmatpush1.msra.mxu0 0.0
        %2523 = vmatprep.subr.mxu0 0.0
        %2524 = vmatpush1.msra.mxu0 0.0
        %2525 = vmatprep.subr.mxu0 0.0
        %2526 = vmatpush1.msra.mxu0 0.0
        %2527 = vmatprep.subr.mxu0 0.0
        %2528 = vmatpush1.msra.mxu0 0.0
        %2529 = vmatprep.mubr.f32.mxu0 0.0
        %2530 = vmatmul.mubr.f32.gmra.mrb[0].mxu0 %v2447
        %v2531 = vpop.f32.mrb[0].mxu0
        %v2532 = vadd.f32 %v2464, %v2531
        %v2533 = vpop.f32.mrb[0].mxu0
        %2534 = vdwg.mxu0
        %2535 = vst [vmem:[%s324] sm:$0x1] %v2532
        %s2536 = sand.u32 %s225, 1
        %s2537 = scalar_lea.sflag [#allocation4], %s2536
        %s2538 = sand.u32 %s225, 1
        %s2539 = scalar_lea.vmem [#allocation3], %s2538
        // Predicated region
        $region57: #{mnist_cnn_forward.7} parent=55 // pred_check
          %p2540 = pneg %p235
        $region58: #{mnist_cnn_forward.7} parent=55 // pred_check_branch
          %2542 = sbr.rel (%p2540) target = $region60
        $region59: #{mnist_cnn_forward.7} parent=55 // pred_region
          %s2544 = ssub.s32 16, 16
          %2545 = vsyncadd %s2537, %s2544
          %s2546 = smul.addr %s23, 16
          %s2547 = scalar_lea.hbm %s9, %s2546
          %s2549 = sshll.u32 %s2539, 4
          %s2550 = int_to_ptr.vmem [resolvable:$true] %s2549
          %2552 = dma.vmem_to_hbm [thread:$0]  %s2550, 16, %s2547, %s2537
        $region60: #{mnist_cnn_forward.7} parent=55 // pred_fallthru
          _
      $region56: #{mnist_cnn_forward.7} parent=5 // pred_fallthru
        _
      %p2553 = scmp.le.s32.totalorder 2, %s18
      // Predicated region
      $region61: #{mnist_cnn_forward.7} parent=5 // pred_check
        %p2554 = pneg %p2553
      $region62: #{mnist_cnn_forward.7} parent=5 // pred_check_branch
        %2556 = sbr.rel (%p2554) target = $region64
      $region63: #{mnist_cnn_forward.7} parent=5 // pred_region
        %s2557 = ssub.s32 %s18, 2
        // Predicated region
        $region65: #{mnist_cnn_forward.7} parent=63 // pred_check
          %p2558 = pneg %p241
        $region66: #{mnist_cnn_forward.7} parent=63 // pred_check_branch
          %2560 = sbr.rel (%p2558) target = $region68
        $region67: #{mnist_cnn_forward.7} parent=63 // pred_region
          %s2561 = sand.u32 %s226, 1
          %s2562 = scalar_lea.sflag [#allocation4], %s2561
          %s2563 = sand.u32 %s226, 1
          %s2564 = scalar_lea.vmem [#allocation3], %s2563
          %2565 = dma.done %s2562, 16
        $region68: #{mnist_cnn_forward.7} parent=63 // pred_fallthru
          _
      $region64: #{mnist_cnn_forward.7} parent=5 // pred_fallthru
        _
    $region6: #{mnist_cnn_forward.7} parent=1 // loop_footer
      %s22 = sadd.s32 1, %s18
    $region7: #{mnist_cnn_forward.7} parent=1 // loop_footer_branch
      %17 = sbr.rel target = $region3
    $region8: #{mnist_cnn_forward.7} parent=1 // loop_exit
      _
    %2566 = vsyncpa [#allocation4], 1
    %s2567 = scalar_lea.sflag [#allocation4], 1
    %2568 = vsyncpa %s2567, 1

// kernel: mnist_cnn_forward.6
$region0: #{mnist_cnn_forward.6}
  #allocation0 [shape = 'u32[]', space=smem, size = 0x4, offset = 0x4, fixed_abs, tag = 'smem constant byte address 0x4 - core index']
  #allocation1 [shape = 'u32[144,128]{1,0:T(1,128)}', space=vmem, size = 0x12000, scoped, tag = 'internal scratch']
  #allocation2 [shape = 'bf16[64,1152]{1,0:T(16,128)(2,1)}', space=vmem, size = 0x24000, scoped, tag = 'scratch operand']
  %s0 = inlined_call_operand.vmem [shape: bf16[2,10,10,128], index: 0, kind: input, shape index: {}]
  %s1 = inlined_call_operand.vmem [shape: bf16[1152,128], index: 1, kind: input, shape index: {}]
  %s2 = inlined_call_operand.vmem [shape: f32[1,128], index: 2, kind: input, shape index: {}]
  %s3 = inlined_call_operand.vmem [shape: f32[1,128], index: 3, kind: input, shape index: {}]
  %s4 = inlined_call_operand.vmem [shape: f32[1,128], index: 4, kind: input, shape index: {}]
  %s5 = inlined_call_operand.vmem [shape: f32[8,128], index: 5, kind: input, shape index: {}]
  %s6 = inlined_call_operand.vmem [shape: f32[128,8], index: 6, kind: input, shape index: {}]
  %s7 = inlined_call_operand.vmem [shape: bf16[2,10,10,128], index: 7, kind: output, shape index: {}]
  %s8 = sld [smem:[#allocation0]]
  $region61: #{mnist_cnn_forward.6} parent=0
    _
  %s10 = ssub.s32 1, %s8
  %s11 = scalar_select 0, %s10, %s8
  loop: start=0, step=1, limit=4
  $region2: #{mnist_cnn_forward.6} parent=0 // loop_pre_header
    _
  $region3: #{mnist_cnn_forward.6} parent=0 // loop_header
    %s13 = sphi 0, %s17
    %p14 = scmp.ge.s32.totalorder %s13, 4
    %s23 = sphi 0, %s25
    %s26 = sphi 0, %s23
    %s27 = sphi 0, %s26
    %s43 = sphi 0, %s27
    %s47 = sphi 0, %s47
    %s49 = sphi 0, %s47
    %s50 = sphi 0, %s49
    %s64 = sphi 0, %s50
    %s68 = sphi 0, %s68
    %s70 = sphi 0, %s68
    %s71 = sphi 0, %s70
    %s85 = sphi 0, %s71
    %s89 = sphi 0, %s89
    %s91 = sphi 0, %s89
    %s92 = sphi 0, %s91
    %s106 = sphi 0, %s92
    %s110 = sphi 0, %s110
    %s112 = sphi 0, %s110
    %s113 = sphi 0, %s112
    %s127 = sphi 0, %s113
    %s131 = sphi 0, %s131
    %s133 = sphi 0, %s131
    %s134 = sphi 0, %s133
    %s148 = sphi 0, %s134
    %s152 = sphi 0, %s152
    %s154 = sphi 0, %s152
    %s155 = sphi 0, %s154
    %s169 = sphi 0, %s155
    %s175 = sphi 0, %s177
    %s178 = sphi 0, %s175
    %s179 = sphi 0, %s178
    %s195 = sphi 0, %s179
  $region4: #{mnist_cnn_forward.6} parent=0 // loop_header_branch
    %16 = sbr.rel (%p14) target = $region8
  $region5: #{mnist_cnn_forward.6} parent=0 // loop_body
    %s18 = ssub.s32 %s13, 1
    %s19 = ssub.s32 %s13, 2
    %s20 = sadd.s32 %s13, 1
    %s21 = ssub.s32 %s13, %s20
    %p22 = scmp.eq.s32.totalorder %s21, 0
    %s24 = sadd.s32 %s23, 1
    %s25 = scalar_select %p22, %s23, %s24
    %p28 = pneg %p22
    %p29 = scmp.eq.s32.totalorder %s13, 1
    %p30 = por %p28, %p29
    %p31 = scmp.ne.s32.totalorder %s23, %s26
    %p32 = scmp.eq.s32.totalorder %s13, 0
    %p33 = por %p31, %p32
    %p34 = scmp.ne.s32.totalorder %s23, %s26
    %p35 = scmp.eq.s32.totalorder %s18, 1
    %p36 = por %p34, %p35
    %p37 = scmp.ne.s32.totalorder %s26, %s27
    %p38 = scmp.eq.s32.totalorder %s18, 0
    %p39 = por %p37, %p38
    %p40 = scmp.ne.s32.totalorder %s26, %s27
    %p41 = scmp.eq.s32.totalorder %s19, 1
    %p42 = por %p40, %p41
    %p44 = scmp.ne.s32.totalorder %s27, %s43
    %p45 = scmp.eq.s32.totalorder %s19, 0
    %p46 = por %p44, %p45
    %s48 = sadd.s32 %s47, 1
    %p51 = scmp.eq.s32.totalorder %s13, 1
    %p52 = scmp.ne.s32.totalorder %s47, %s49
    %p53 = scmp.eq.s32.totalorder %s13, 0
    %p54 = por %p52, %p53
    %p55 = scmp.ne.s32.totalorder %s47, %s49
    %p56 = scmp.eq.s32.totalorder %s18, 1
    %p57 = por %p55, %p56
    %p58 = scmp.ne.s32.totalorder %s49, %s50
    %p59 = scmp.eq.s32.totalorder %s18, 0
    %p60 = por %p58, %p59
    %p61 = scmp.ne.s32.totalorder %s49, %s50
    %p62 = scmp.eq.s32.totalorder %s19, 1
    %p63 = por %p61, %p62
    %p65 = scmp.ne.s32.totalorder %s50, %s64
    %p66 = scmp.eq.s32.totalorder %s19, 0
    %p67 = por %p65, %p66
    %s69 = sadd.s32 %s68, 1
    %p72 = scmp.eq.s32.totalorder %s13, 1
    %p73 = scmp.ne.s32.totalorder %s68, %s70
    %p74 = scmp.eq.s32.totalorder %s13, 0
    %p75 = por %p73, %p74
    %p76 = scmp.ne.s32.totalorder %s68, %s70
    %p77 = scmp.eq.s32.totalorder %s18, 1
    %p78 = por %p76, %p77
    %p79 = scmp.ne.s32.totalorder %s70, %s71
    %p80 = scmp.eq.s32.totalorder %s18, 0
    %p81 = por %p79, %p80
    %p82 = scmp.ne.s32.totalorder %s70, %s71
    %p83 = scmp.eq.s32.totalorder %s19, 1
    %p84 = por %p82, %p83
    %p86 = scmp.ne.s32.totalorder %s71, %s85
    %p87 = scmp.eq.s32.totalorder %s19, 0
    %p88 = por %p86, %p87
    %s90 = sadd.s32 %s89, 1
    %p93 = scmp.eq.s32.totalorder %s13, 1
    %p94 = scmp.ne.s32.totalorder %s89, %s91
    %p95 = scmp.eq.s32.totalorder %s13, 0
    %p96 = por %p94, %p95
    %p97 = scmp.ne.s32.totalorder %s89, %s91
    %p98 = scmp.eq.s32.totalorder %s18, 1
    %p99 = por %p97, %p98
    %p100 = scmp.ne.s32.totalorder %s91, %s92
    %p101 = scmp.eq.s32.totalorder %s18, 0
    %p102 = por %p100, %p101
    %p103 = scmp.ne.s32.totalorder %s91, %s92
    %p104 = scmp.eq.s32.totalorder %s19, 1
    %p105 = por %p103, %p104
    %p107 = scmp.ne.s32.totalorder %s92, %s106
    %p108 = scmp.eq.s32.totalorder %s19, 0
    %p109 = por %p107, %p108
    %s111 = sadd.s32 %s110, 1
    %p114 = scmp.eq.s32.totalorder %s13, 1
    %p115 = scmp.ne.s32.totalorder %s110, %s112
    %p116 = scmp.eq.s32.totalorder %s13, 0
    %p117 = por %p115, %p116
    %p118 = scmp.ne.s32.totalorder %s110, %s112
    %p119 = scmp.eq.s32.totalorder %s18, 1
    %p120 = por %p118, %p119
    %p121 = scmp.ne.s32.totalorder %s112, %s113
    %p122 = scmp.eq.s32.totalorder %s18, 0
    %p123 = por %p121, %p122
    %p124 = scmp.ne.s32.totalorder %s112, %s113
    %p125 = scmp.eq.s32.totalorder %s19, 1
    %p126 = por %p124, %p125
    %p128 = scmp.ne.s32.totalorder %s113, %s127
    %p129 = scmp.eq.s32.totalorder %s19, 0
    %p130 = por %p128, %p129
    %s132 = sadd.s32 %s131, 1
    %p135 = scmp.eq.s32.totalorder %s13, 1
    %p136 = scmp.ne.s32.totalorder %s131, %s133
    %p137 = scmp.eq.s32.totalorder %s13, 0
    %p138 = por %p136, %p137
    %p139 = scmp.ne.s32.totalorder %s131, %s133
    %p140 = scmp.eq.s32.totalorder %s18, 1
    %p141 = por %p139, %p140
    %p142 = scmp.ne.s32.totalorder %s133, %s134
    %p143 = scmp.eq.s32.totalorder %s18, 0
    %p144 = por %p142, %p143
    %p145 = scmp.ne.s32.totalorder %s133, %s134
    %p146 = scmp.eq.s32.totalorder %s19, 1
    %p147 = por %p145, %p146
    %p149 = scmp.ne.s32.totalorder %s134, %s148
    %p150 = scmp.eq.s32.totalorder %s19, 0
    %p151 = por %p149, %p150
    %s153 = sadd.s32 %s152, 1
    %p156 = scmp.eq.s32.totalorder %s13, 1
    %p157 = scmp.ne.s32.totalorder %s152, %s154
    %p158 = scmp.eq.s32.totalorder %s13, 0
    %p159 = por %p157, %p158
    %p160 = scmp.ne.s32.totalorder %s152, %s154
    %p161 = scmp.eq.s32.totalorder %s18, 1
    %p162 = por %p160, %p161
    %p163 = scmp.ne.s32.totalorder %s154, %s155
    %p164 = scmp.eq.s32.totalorder %s18, 0
    %p165 = por %p163, %p164
    %p166 = scmp.ne.s32.totalorder %s154, %s155
    %p167 = scmp.eq.s32.totalorder %s19, 1
    %p168 = por %p166, %p167
    %p170 = scmp.ne.s32.totalorder %s155, %s169
    %p171 = scmp.eq.s32.totalorder %s19, 0
    %p172 = por %p170, %p171
    %s173 = ssub.s32 %s13, %s20
    %p174 = scmp.eq.s32.totalorder %s173, 0
    %s176 = sadd.s32 %s175, 1
    %s177 = scalar_select %p174, %s175, %s176
    %p180 = pneg %p174
    %p181 = scmp.eq.s32.totalorder %s13, 1
    %p182 = por %p180, %p181
    %p183 = scmp.ne.s32.totalorder %s175, %s178
    %p184 = scmp.eq.s32.totalorder %s13, 0
    %p185 = por %p183, %p184
    %p186 = scmp.ne.s32.totalorder %s175, %s178
    %p187 = scmp.eq.s32.totalorder %s18, 1
    %p188 = por %p186, %p187
    %p189 = scmp.ne.s32.totalorder %s178, %s179
    %p190 = scmp.eq.s32.totalorder %s18, 0
    %p191 = por %p189, %p190
    %p192 = scmp.ne.s32.totalorder %s178, %s179
    %p193 = scmp.eq.s32.totalorder %s19, 1
    %p194 = por %p192, %p193
    %p196 = scmp.ne.s32.totalorder %s179, %s195
    %p197 = scmp.eq.s32.totalorder %s19, 0
    %p198 = por %p196, %p197
    %p199 = scmp.le.s32.totalorder 1, %s13
    %p200 = scmp.lt.s32.totalorder %s13, 3
    %p201 = pnand %p199, %p200
    %p202 = pneg %p201
    // Predicated region
    $region9: #{mnist_cnn_forward.6} parent=5 // pred_check
      _
    $region10: #{mnist_cnn_forward.6} parent=5 // pred_check_branch
      %204 = sbr.rel (%p201) target = $region12
    $region11: #{mnist_cnn_forward.6} parent=5 // pred_region
      %s205 = ssub.s32 %s13, 1
      // Predicated region
      $region13: #{mnist_cnn_forward.6} parent=11 // pred_check
        %p206 = pneg %p60
      $region14: #{mnist_cnn_forward.6} parent=11 // pred_check_branch
        %208 = sbr.rel (%p206) target = $region16
      $region15: #{mnist_cnn_forward.6} parent=11 // pred_region
        _
      $region16: #{mnist_cnn_forward.6} parent=11 // pred_fallthru
        _
      // Predicated region
      $region17: #{mnist_cnn_forward.6} parent=11 // pred_check
        %p209 = pneg %p81
      $region18: #{mnist_cnn_forward.6} parent=11 // pred_check_branch
        %211 = sbr.rel (%p209) target = $region20
      $region19: #{mnist_cnn_forward.6} parent=11 // pred_region
        _
      $region20: #{mnist_cnn_forward.6} parent=11 // pred_fallthru
        _
      // Predicated region
      $region21: #{mnist_cnn_forward.6} parent=11 // pred_check
        %p212 = pneg %p102
      $region22: #{mnist_cnn_forward.6} parent=11 // pred_check_branch
        %214 = sbr.rel (%p212) target = $region24
      $region23: #{mnist_cnn_forward.6} parent=11 // pred_region
        _
      $region24: #{mnist_cnn_forward.6} parent=11 // pred_fallthru
        _
      // Predicated region
      $region25: #{mnist_cnn_forward.6} parent=11 // pred_check
        %p215 = pneg %p123
      $region26: #{mnist_cnn_forward.6} parent=11 // pred_check_branch
        %217 = sbr.rel (%p215) target = $region28
      $region27: #{mnist_cnn_forward.6} parent=11 // pred_region
        _
      $region28: #{mnist_cnn_forward.6} parent=11 // pred_fallthru
        _
      // Predicated region
      $region29: #{mnist_cnn_forward.6} parent=11 // pred_check
        %p218 = pneg %p144
      $region30: #{mnist_cnn_forward.6} parent=11 // pred_check_branch
        %220 = sbr.rel (%p218) target = $region32
      $region31: #{mnist_cnn_forward.6} parent=11 // pred_region
        _
      $region32: #{mnist_cnn_forward.6} parent=11 // pred_fallthru
        _
      // Predicated region
      $region33: #{mnist_cnn_forward.6} parent=11 // pred_check
        %p221 = pneg %p165
      $region34: #{mnist_cnn_forward.6} parent=11 // pred_check_branch
        %223 = sbr.rel (%p221) target = $region36
      $region35: #{mnist_cnn_forward.6} parent=11 // pred_region
        _
      $region36: #{mnist_cnn_forward.6} parent=11 // pred_fallthru
        _
    $region12: #{mnist_cnn_forward.6} parent=5 // pred_fallthru
      _
    %p224 = scmp.lt.s32.totalorder %s13, 2
    // Predicated region
    $region37: #{mnist_cnn_forward.6} parent=5 // pred_check
      %p225 = pneg %p224
    $region38: #{mnist_cnn_forward.6} parent=5 // pred_check_branch
      %227 = sbr.rel (%p225) target = $region40
    $region39: #{mnist_cnn_forward.6} parent=5 // pred_region
      // Predicated region
      $region41: #{mnist_cnn_forward.6} parent=39 // pred_check
        %p228 = pneg %p33
      $region42: #{mnist_cnn_forward.6} parent=39 // pred_check_branch
        %230 = sbr.rel (%p228) target = $region44
      $region43: #{mnist_cnn_forward.6} parent=39 // pred_region
        %p231 = scmp.lt.s32.totalorder %s13, 1
        %s232 = scalar_select %p231, %s13, 1
        %s233 = smul.addr %s232, 20
        %s234 = smul.addr %s233, 4
        %s235 = scalar_lea.vmem %s0, %s234
      $region44: #{mnist_cnn_forward.6} parent=39 // pred_fallthru
        _
    $region40: #{mnist_cnn_forward.6} parent=5 // pred_fallthru
      _
    %p236 = scmp.le.s32.totalorder 1, %s13
    %p237 = scmp.lt.s32.totalorder %s13, 3
    %p238 = pnand %p236, %p237
    %p239 = pneg %p238
    // Predicated region
    $region45: #{mnist_cnn_forward.6} parent=5 // pred_check
      _
    $region46: #{mnist_cnn_forward.6} parent=5 // pred_check_branch
      %241 = sbr.rel (%p238) target = $region48
    $region47: #{mnist_cnn_forward.6} parent=5 // pred_region
      %s242 = ssub.s32 %s13, 1
      %p243 = scmp.lt.s32.totalorder %s18, 1
      %s244 = scalar_select %p243, %s18, 1
      %s245 = smul.addr %s244, 20
      %s246 = smul.addr %s245, 4
      %s247 = scalar_lea.vmem %s0, %s246
      %p248 = pneg %p39
      %p249 = pneg %p36
      %p250 = pneg %p60
      %p251 = pneg %p57
      %p252 = pneg %p81
      %p253 = pneg %p78
      %p254 = pneg %p102
      %p255 = pneg %p99
      %p256 = pneg %p123
      %p257 = pneg %p120
      %p258 = pneg %p144
      %p259 = pneg %p141
      %p260 = pneg %p165
      %p261 = pneg %p162
      %p262 = pneg %p191
      %p263 = pneg %p188
      %p264 = scmp.lt.s32.totalorder %s18, 1
      %s265 = scalar_select %p264, %s18, 1
      %s266 = smul.addr %s265, 20
      %s267 = smul.addr %s266, 4
      %s268 = scalar_lea.vmem %s7, %s267
      %p269 = scmp.lt.s32.totalorder %s18, 1
      %s270 = scalar_select %p269, %s18, 1
      %s271 = smul.addr %s270, 20
      %s272 = smul.addr %s271, 4
      %s273 = scalar_lea.vmem %s0, %s272
      %p274 = scmp.lt.s32.totalorder %s18, 1
      %s275 = scalar_select %p274, %s18, 1
      %s276 = smul.addr %s275, 20
      %s277 = smul.addr %s276, 4
      %s278 = scalar_lea.vmem %s7, %s277
      %v280 = vld [vmem:[%s273] sm:$0xf]
      %v281 = vld [vmem:[%s273 + $0x8] sm:$0xf]
      %v282 = vld [vmem:[%s273 + $0x10] sm:$0xf]
      %v283 = vld [vmem:[%s273 + $0x18] sm:$0xf]
      %v284 = vld [vmem:[%s273 + $0x20] sm:$0xf]
      %v285 = vld [vmem:[%s273 + $0x28] sm:$0xf]
      %v286 = vld [vmem:[%s273 + $0x30] sm:$0xf]
      %v287 = vld [vmem:[%s273 + $0x38] sm:$0xf]
      %v296 = vunpack.c.l.b16 %v280
      %v297 = vunpack.c.l.b16 %v281
      %v298 = vunpack.c.l.b16 %v282
      %v299 = vunpack.c.l.b16 %v283
      %v300 = vunpack.c.l.b16 %v284
      %v301 = vunpack.c.l.b16 %v285
      %v302 = vunpack.c.l.b16 %v286
      %v303 = vunpack.c.l.b16 %v287
      %v304 = vpack.c.b16 %v297, %v296
      %v305 = vpack.c.b16 %v299, %v298
      %v306 = vpack.c.b16 %v301, %v300
      %v307 = vpack.c.b16 %v303, %v302
      %312 = vst [vmem:[#allocation2] sm:$0xff] %v304
      %313 = vst [vmem:[#allocation2 + $0x48] sm:$0xff] %v305
      %314 = vst [vmem:[#allocation2 + $0x90] sm:$0xff] %v306
      %315 = vst [vmem:[#allocation2 + $0xd8] sm:$0xff] %v307
      %v316 = vld [vmem:[%s273] sm:$0xf]
      %v317 = vld [vmem:[%s273 + $0x4] sm:$0x1]
      %v318 = vld [vmem:[%s273 + $0x8] sm:$0xf]
      %v319 = vld [vmem:[%s273 + $0xc] sm:$0x1]
      %v320 = vld [vmem:[%s273 + $0x10] sm:$0xf]
      %v321 = vld [vmem:[%s273 + $0x14] sm:$0x1]
      %v322 = vld [vmem:[%s273 + $0x18] sm:$0xf]
      %v323 = vld [vmem:[%s273 + $0x1c] sm:$0x1]
      %v324 = vld [vmem:[%s273 + $0x20] sm:$0xf]
      %v325 = vld [vmem:[%s273 + $0x24] sm:$0x1]
      %v326 = vld [vmem:[%s273 + $0x28] sm:$0xf]
      %v327 = vld [vmem:[%s273 + $0x2c] sm:$0x1]
      %v328 = vld [vmem:[%s273 + $0x30] sm:$0xf]
      %v329 = vld [vmem:[%s273 + $0x34] sm:$0x1]
      %v330 = vld [vmem:[%s273 + $0x38] sm:$0xf]
      %v331 = vld [vmem:[%s273 + $0x3c] sm:$0x1]
      %vm332 = vsmask.f32 3328
      %vm333 = vsmask.f32 7440
      %vm334 = vmor %vm332, %vm333
      %v336 = vshrl.u32 %v316, 16
      %v338 = vrot.slane %v336, 4
      %v339 = vshll.u32 %v316, 16
      %v341 = vrot.slane %v339, 5
      %v342 = vor.u32 %v338, %v341
      %v343 = vrot.slane %v342, 4
      %v345 = vshll.u32 %v317, 16
      %v347 = vrot.slane %v345, 5
      %v348 = vsel %vm334, %v343, %v347
      %v350 = vshrl.u32 %v318, 16
      %v352 = vrot.slane %v350, 4
      %v353 = vshll.u32 %v318, 16
      %v355 = vrot.slane %v353, 5
      %v356 = vor.u32 %v352, %v355
      %v357 = vrot.slane %v356, 4
      %v359 = vshll.u32 %v319, 16
      %v361 = vrot.slane %v359, 5
      %v362 = vsel %vm334, %v357, %v361
      %v364 = vshrl.u32 %v320, 16
      %v366 = vrot.slane %v364, 4
      %v367 = vshll.u32 %v320, 16
      %v369 = vrot.slane %v367, 5
      %v370 = vor.u32 %v366, %v369
      %v371 = vrot.slane %v370, 4
      %v373 = vshll.u32 %v321, 16
      %v375 = vrot.slane %v373, 5
      %v376 = vsel %vm334, %v371, %v375
      %v378 = vshrl.u32 %v322, 16
      %v380 = vrot.slane %v378, 4
      %v381 = vshll.u32 %v322, 16
      %v383 = vrot.slane %v381, 5
      %v384 = vor.u32 %v380, %v383
      %v385 = vrot.slane %v384, 4
      %v387 = vshll.u32 %v323, 16
      %v389 = vrot.slane %v387, 5
      %v390 = vsel %vm334, %v385, %v389
      %v392 = vshrl.u32 %v324, 16
      %v394 = vrot.slane %v392, 4
      %v395 = vshll.u32 %v324, 16
      %v397 = vrot.slane %v395, 5
      %v398 = vor.u32 %v394, %v397
      %v399 = vrot.slane %v398, 4
      %v401 = vshll.u32 %v325, 16
      %v403 = vrot.slane %v401, 5
      %v404 = vsel %vm334, %v399, %v403
      %v406 = vshrl.u32 %v326, 16
      %v408 = vrot.slane %v406, 4
      %v409 = vshll.u32 %v326, 16
      %v411 = vrot.slane %v409, 5
      %v412 = vor.u32 %v408, %v411
      %v413 = vrot.slane %v412, 4
      %v415 = vshll.u32 %v327, 16
      %v417 = vrot.slane %v415, 5
      %v418 = vsel %vm334, %v413, %v417
      %v420 = vshrl.u32 %v328, 16
      %v422 = vrot.slane %v420, 4
      %v423 = vshll.u32 %v328, 16
      %v425 = vrot.slane %v423, 5
      %v426 = vor.u32 %v422, %v425
      %v427 = vrot.slane %v426, 4
      %v429 = vshll.u32 %v329, 16
      %v431 = vrot.slane %v429, 5
      %v432 = vsel %vm334, %v427, %v431
      %v434 = vshrl.u32 %v330, 16
      %v436 = vrot.slane %v434, 4
      %v437 = vshll.u32 %v330, 16
      %v439 = vrot.slane %v437, 5
      %v440 = vor.u32 %v436, %v439
      %v441 = vrot.slane %v440, 4
      %v443 = vshll.u32 %v331, 16
      %v445 = vrot.slane %v443, 5
      %v446 = vsel %vm334, %v441, %v445
      %v447 = vunpack.c.l.b16 %v348
      %v448 = vunpack.c.l.b16 %v362
      %v449 = vunpack.c.l.b16 %v376
      %v450 = vunpack.c.l.b16 %v390
      %v451 = vunpack.c.l.b16 %v404
      %v452 = vunpack.c.l.b16 %v418
      %v453 = vunpack.c.l.b16 %v432
      %v454 = vunpack.c.l.b16 %v446
      %v455 = vpack.c.b16 %v448, %v447
      %v456 = vpack.c.b16 %v450, %v449
      %v457 = vpack.c.b16 %v452, %v451
      %v458 = vpack.c.b16 %v454, %v453
      %463 = vst [vmem:[#allocation2 + $0x8] sm:$0xff] %v455
      %464 = vst [vmem:[#allocation2 + $0x50] sm:$0xff] %v456
      %465 = vst [vmem:[#allocation2 + $0x98] sm:$0xff] %v457
      %466 = vst [vmem:[#allocation2 + $0xe0] sm:$0xff] %v458
      %v467 = vld [vmem:[%s273] sm:$0xe]
      %v468 = vld [vmem:[%s273 + $0x4] sm:$0x1]
      %v469 = vld [vmem:[%s273 + $0x8] sm:$0xe]
      %v470 = vld [vmem:[%s273 + $0xc] sm:$0x1]
      %v471 = vld [vmem:[%s273 + $0x10] sm:$0xe]
      %v472 = vld [vmem:[%s273 + $0x14] sm:$0x1]
      %v473 = vld [vmem:[%s273 + $0x18] sm:$0xe]
      %v474 = vld [vmem:[%s273 + $0x1c] sm:$0x1]
      %v475 = vld [vmem:[%s273 + $0x20] sm:$0xe]
      %v476 = vld [vmem:[%s273 + $0x24] sm:$0x1]
      %v477 = vld [vmem:[%s273 + $0x28] sm:$0xe]
      %v478 = vld [vmem:[%s273 + $0x2c] sm:$0x1]
      %v479 = vld [vmem:[%s273 + $0x30] sm:$0xe]
      %v480 = vld [vmem:[%s273 + $0x34] sm:$0x1]
      %v481 = vld [vmem:[%s273 + $0x38] sm:$0xe]
      %v482 = vld [vmem:[%s273 + $0x3c] sm:$0x1]
      %vm499 = vcmask 1042432
      %vm500 = vcmask 1046532
      %vm501 = vmor %vm499, %vm500
      %v502 = vrot.slane %v467, 5
      %v503 = vrot.slane %v502, 4
      %v504 = vrot.slane %v468, 5
      %v505 = vsel %vm501, %v503, %v504
      %v506 = vrot.slane %v469, 5
      %v507 = vrot.slane %v506, 4
      %v508 = vrot.slane %v470, 5
      %v509 = vsel %vm501, %v507, %v508
      %v510 = vrot.slane %v471, 5
      %v511 = vrot.slane %v510, 4
      %v512 = vrot.slane %v472, 5
      %v513 = vsel %vm501, %v511, %v512
      %v514 = vrot.slane %v473, 5
      %v515 = vrot.slane %v514, 4
      %v516 = vrot.slane %v474, 5
      %v517 = vsel %vm501, %v515, %v516
      %v518 = vrot.slane %v475, 5
      %v519 = vrot.slane %v518, 4
      %v520 = vrot.slane %v476, 5
      %v521 = vsel %vm501, %v519, %v520
      %v522 = vrot.slane %v477, 5
      %v523 = vrot.slane %v522, 4
      %v524 = vrot.slane %v478, 5
      %v525 = vsel %vm501, %v523, %v524
      %v526 = vrot.slane %v479, 5
      %v527 = vrot.slane %v526, 4
      %v528 = vrot.slane %v480, 5
      %v529 = vsel %vm501, %v527, %v528
      %v530 = vrot.slane %v481, 5
      %v531 = vrot.slane %v530, 4
      %v532 = vrot.slane %v482, 5
      %v533 = vsel %vm501, %v531, %v532
      %v534 = vunpack.c.l.b16 %v505
      %v535 = vunpack.c.l.b16 %v509
      %v536 = vunpack.c.l.b16 %v513
      %v537 = vunpack.c.l.b16 %v517
      %v538 = vunpack.c.l.b16 %v521
      %v539 = vunpack.c.l.b16 %v525
      %v540 = vunpack.c.l.b16 %v529
      %v541 = vunpack.c.l.b16 %v533
      %v542 = vpack.c.b16 %v535, %v534
      %v543 = vpack.c.b16 %v537, %v536
      %v544 = vpack.c.b16 %v539, %v538
      %v545 = vpack.c.b16 %v541, %v540
      %550 = vst [vmem:[#allocation2 + $0x10] sm:$0xff] %v542
      %551 = vst [vmem:[#allocation2 + $0x58] sm:$0xff] %v543
      %552 = vst [vmem:[#allocation2 + $0xa0] sm:$0xff] %v544
      %553 = vst [vmem:[#allocation2 + $0xe8] sm:$0xff] %v545
      %s554 = scalar_lea.vmem %s273, 8
      %v555 = vld [vmem:[%s554] sm:$0xf]
      %v556 = vld [vmem:[%s554 + $0x8] sm:$0xf]
      %v557 = vld [vmem:[%s554 + $0x10] sm:$0xf]
      %v558 = vld [vmem:[%s554 + $0x18] sm:$0xf]
      %v559 = vld [vmem:[%s554 + $0x20] sm:$0xf]
      %v560 = vld [vmem:[%s554 + $0x28] sm:$0xf]
      %v561 = vld [vmem:[%s554 + $0x30] sm:$0xf]
      %v562 = vld [vmem:[%s554 + $0x38] sm:$0xf]
      %v571 = vunpack.c.l.b16 %v555
      %v572 = vunpack.c.l.b16 %v556
      %v573 = vunpack.c.l.b16 %v557
      %v574 = vunpack.c.l.b16 %v558
      %v575 = vunpack.c.l.b16 %v559
      %v576 = vunpack.c.l.b16 %v560
      %v577 = vunpack.c.l.b16 %v561
      %v578 = vunpack.c.l.b16 %v562
      %v579 = vpack.c.b16 %v572, %v571
      %v580 = vpack.c.b16 %v574, %v573
      %v581 = vpack.c.b16 %v576, %v575
      %v582 = vpack.c.b16 %v578, %v577
      %587 = vst [vmem:[#allocation2 + $0x18] sm:$0xff] %v579
      %588 = vst [vmem:[#allocation2 + $0x60] sm:$0xff] %v580
      %589 = vst [vmem:[#allocation2 + $0xa8] sm:$0xff] %v581
      %590 = vst [vmem:[#allocation2 + $0xf0] sm:$0xff] %v582
      %v591 = vld [vmem:[%s554] sm:$0xf]
      %v592 = vld [vmem:[%s554 + $0x4] sm:$0x1]
      %v593 = vld [vmem:[%s554 + $0x8] sm:$0xf]
      %v594 = vld [vmem:[%s554 + $0xc] sm:$0x1]
      %v595 = vld [vmem:[%s554 + $0x10] sm:$0xf]
      %v596 = vld [vmem:[%s554 + $0x14] sm:$0x1]
      %v597 = vld [vmem:[%s554 + $0x18] sm:$0xf]
      %v598 = vld [vmem:[%s554 + $0x1c] sm:$0x1]
      %v599 = vld [vmem:[%s554 + $0x20] sm:$0xf]
      %v600 = vld [vmem:[%s554 + $0x24] sm:$0x1]
      %v601 = vld [vmem:[%s554 + $0x28] sm:$0xf]
      %v602 = vld [vmem:[%s554 + $0x2c] sm:$0x1]
      %v603 = vld [vmem:[%s554 + $0x30] sm:$0xf]
      %v604 = vld [vmem:[%s554 + $0x34] sm:$0x1]
      %v605 = vld [vmem:[%s554 + $0x38] sm:$0xf]
      %v606 = vld [vmem:[%s554 + $0x3c] sm:$0x1]
      %v608 = vshrl.u32 %v591, 16
      %v610 = vrot.slane %v608, 4
      %v611 = vshll.u32 %v591, 16
      %v613 = vrot.slane %v611, 5
      %v614 = vor.u32 %v610, %v613
      %v615 = vrot.slane %v614, 4
      %v617 = vshll.u32 %v592, 16
      %v619 = vrot.slane %v617, 5
      %v620 = vsel %vm334, %v615, %v619
      %v622 = vshrl.u32 %v593, 16
      %v624 = vrot.slane %v622, 4
      %v625 = vshll.u32 %v593, 16
      %v627 = vrot.slane %v625, 5
      %v628 = vor.u32 %v624, %v627
      %v629 = vrot.slane %v628, 4
      %v631 = vshll.u32 %v594, 16
      %v633 = vrot.slane %v631, 5
      %v634 = vsel %vm334, %v629, %v633
      %v636 = vshrl.u32 %v595, 16
      %v638 = vrot.slane %v636, 4
      %v639 = vshll.u32 %v595, 16
      %v641 = vrot.slane %v639, 5
      %v642 = vor.u32 %v638, %v641
      %v643 = vrot.slane %v642, 4
      %v645 = vshll.u32 %v596, 16
      %v647 = vrot.slane %v645, 5
      %v648 = vsel %vm334, %v643, %v647
      %v650 = vshrl.u32 %v597, 16
      %v652 = vrot.slane %v650, 4
      %v653 = vshll.u32 %v597, 16
      %v655 = vrot.slane %v653, 5
      %v656 = vor.u32 %v652, %v655
      %v657 = vrot.slane %v656, 4
      %v659 = vshll.u32 %v598, 16
      %v661 = vrot.slane %v659, 5
      %v662 = vsel %vm334, %v657, %v661
      %v664 = vshrl.u32 %v599, 16
      %v666 = vrot.slane %v664, 4
      %v667 = vshll.u32 %v599, 16
      %v669 = vrot.slane %v667, 5
      %v670 = vor.u32 %v666, %v669
      %v671 = vrot.slane %v670, 4
      %v673 = vshll.u32 %v600, 16
      %v675 = vrot.slane %v673, 5
      %v676 = vsel %vm334, %v671, %v675
      %v678 = vshrl.u32 %v601, 16
      %v680 = vrot.slane %v678, 4
      %v681 = vshll.u32 %v601, 16
      %v683 = vrot.slane %v681, 5
      %v684 = vor.u32 %v680, %v683
      %v685 = vrot.slane %v684, 4
      %v687 = vshll.u32 %v602, 16
      %v689 = vrot.slane %v687, 5
      %v690 = vsel %vm334, %v685, %v689
      %v692 = vshrl.u32 %v603, 16
      %v694 = vrot.slane %v692, 4
      %v695 = vshll.u32 %v603, 16
      %v697 = vrot.slane %v695, 5
      %v698 = vor.u32 %v694, %v697
      %v699 = vrot.slane %v698, 4
      %v701 = vshll.u32 %v604, 16
      %v703 = vrot.slane %v701, 5
      %v704 = vsel %vm334, %v699, %v703
      %v706 = vshrl.u32 %v605, 16
      %v708 = vrot.slane %v706, 4
      %v709 = vshll.u32 %v605, 16
      %v711 = vrot.slane %v709, 5
      %v712 = vor.u32 %v708, %v711
      %v713 = vrot.slane %v712, 4
      %v715 = vshll.u32 %v606, 16
      %v717 = vrot.slane %v715, 5
      %v718 = vsel %vm334, %v713, %v717
      %v719 = vunpack.c.l.b16 %v620
      %v720 = vunpack.c.l.b16 %v634
      %v721 = vunpack.c.l.b16 %v648
      %v722 = vunpack.c.l.b16 %v662
      %v723 = vunpack.c.l.b16 %v676
      %v724 = vunpack.c.l.b16 %v690
      %v725 = vunpack.c.l.b16 %v704
      %v726 = vunpack.c.l.b16 %v718
      %v727 = vpack.c.b16 %v720, %v719
      %v728 = vpack.c.b16 %v722, %v721
      %v729 = vpack.c.b16 %v724, %v723
      %v730 = vpack.c.b16 %v726, %v725
      %735 = vst [vmem:[#allocation2 + $0x20] sm:$0xff] %v727
      %736 = vst [vmem:[#allocation2 + $0x68] sm:$0xff] %v728
      %737 = vst [vmem:[#allocation2 + $0xb0] sm:$0xff] %v729
      %738 = vst [vmem:[#allocation2 + $0xf8] sm:$0xff] %v730
      %v739 = vld [vmem:[%s554] sm:$0xe]
      %v740 = vld [vmem:[%s554 + $0x4] sm:$0x1]
      %v741 = vld [vmem:[%s554 + $0x8] sm:$0xe]
      %v742 = vld [vmem:[%s554 + $0xc] sm:$0x1]
      %v743 = vld [vmem:[%s554 + $0x10] sm:$0xe]
      %v744 = vld [vmem:[%s554 + $0x14] sm:$0x1]
      %v745 = vld [vmem:[%s554 + $0x18] sm:$0xe]
      %v746 = vld [vmem:[%s554 + $0x1c] sm:$0x1]
      %v747 = vld [vmem:[%s554 + $0x20] sm:$0xe]
      %v748 = vld [vmem:[%s554 + $0x24] sm:$0x1]
      %v749 = vld [vmem:[%s554 + $0x28] sm:$0xe]
      %v750 = vld [vmem:[%s554 + $0x2c] sm:$0x1]
      %v751 = vld [vmem:[%s554 + $0x30] sm:$0xe]
      %v752 = vld [vmem:[%s554 + $0x34] sm:$0x1]
      %v753 = vld [vmem:[%s554 + $0x38] sm:$0xe]
      %v754 = vld [vmem:[%s554 + $0x3c] sm:$0x1]
      %v771 = vrot.slane %v739, 5
      %v772 = vrot.slane %v771, 4
      %v773 = vrot.slane %v740, 5
      %v774 = vsel %vm501, %v772, %v773
      %v775 = vrot.slane %v741, 5
      %v776 = vrot.slane %v775, 4
      %v777 = vrot.slane %v742, 5
      %v778 = vsel %vm501, %v776, %v777
      %v779 = vrot.slane %v743, 5
      %v780 = vrot.slane %v779, 4
      %v781 = vrot.slane %v744, 5
      %v782 = vsel %vm501, %v780, %v781
      %v783 = vrot.slane %v745, 5
      %v784 = vrot.slane %v783, 4
      %v785 = vrot.slane %v746, 5
      %v786 = vsel %vm501, %v784, %v785
      %v787 = vrot.slane %v747, 5
      %v788 = vrot.slane %v787, 4
      %v789 = vrot.slane %v748, 5
      %v790 = vsel %vm501, %v788, %v789
      %v791 = vrot.slane %v749, 5
      %v792 = vrot.slane %v791, 4
      %v793 = vrot.slane %v750, 5
      %v794 = vsel %vm501, %v792, %v793
      %v795 = vrot.slane %v751, 5
      %v796 = vrot.slane %v795, 4
      %v797 = vrot.slane %v752, 5
      %v798 = vsel %vm501, %v796, %v797
      %v799 = vrot.slane %v753, 5
      %v800 = vrot.slane %v799, 4
      %v801 = vrot.slane %v754, 5
      %v802 = vsel %vm501, %v800, %v801
      %v803 = vunpack.c.l.b16 %v774
      %v804 = vunpack.c.l.b16 %v778
      %v805 = vunpack.c.l.b16 %v782
      %v806 = vunpack.c.l.b16 %v786
      %v807 = vunpack.c.l.b16 %v790
      %v808 = vunpack.c.l.b16 %v794
      %v809 = vunpack.c.l.b16 %v798
      %v810 = vunpack.c.l.b16 %v802
      %v811 = vpack.c.b16 %v804, %v803
      %v812 = vpack.c.b16 %v806, %v805
      %v813 = vpack.c.b16 %v808, %v807
      %v814 = vpack.c.b16 %v810, %v809
      %819 = vst [vmem:[#allocation2 + $0x28] sm:$0xff] %v811
      %820 = vst [vmem:[#allocation2 + $0x70] sm:$0xff] %v812
      %821 = vst [vmem:[#allocation2 + $0xb8] sm:$0xff] %v813
      %822 = vst [vmem:[#allocation2 + $0x100] sm:$0xff] %v814
      %s823 = scalar_lea.vmem %s273, 16
      %v824 = vld [vmem:[%s823] sm:$0xf]
      %v825 = vld [vmem:[%s823 + $0x8] sm:$0xf]
      %v826 = vld [vmem:[%s823 + $0x10] sm:$0xf]
      %v827 = vld [vmem:[%s823 + $0x18] sm:$0xf]
      %v828 = vld [vmem:[%s823 + $0x20] sm:$0xf]
      %v829 = vld [vmem:[%s823 + $0x28] sm:$0xf]
      %v830 = vld [vmem:[%s823 + $0x30] sm:$0xf]
      %v831 = vld [vmem:[%s823 + $0x38] sm:$0xf]
      %v840 = vunpack.c.l.b16 %v824
      %v841 = vunpack.c.l.b16 %v825
      %v842 = vunpack.c.l.b16 %v826
      %v843 = vunpack.c.l.b16 %v827
      %v844 = vunpack.c.l.b16 %v828
      %v845 = vunpack.c.l.b16 %v829
      %v846 = vunpack.c.l.b16 %v830
      %v847 = vunpack.c.l.b16 %v831
      %v848 = vpack.c.b16 %v841, %v840
      %v849 = vpack.c.b16 %v843, %v842
      %v850 = vpack.c.b16 %v845, %v844
      %v851 = vpack.c.b16 %v847, %v846
      %856 = vst [vmem:[#allocation2 + $0x30] sm:$0xff] %v848
      %857 = vst [vmem:[#allocation2 + $0x78] sm:$0xff] %v849
      %858 = vst [vmem:[#allocation2 + $0xc0] sm:$0xff] %v850
      %859 = vst [vmem:[#allocation2 + $0x108] sm:$0xff] %v851
      %v860 = vld [vmem:[%s823] sm:$0xf]
      %v861 = vld [vmem:[%s823 + $0x4] sm:$0x1]
      %v862 = vld [vmem:[%s823 + $0x8] sm:$0xf]
      %v863 = vld [vmem:[%s823 + $0xc] sm:$0x1]
      %v864 = vld [vmem:[%s823 + $0x10] sm:$0xf]
      %v865 = vld [vmem:[%s823 + $0x14] sm:$0x1]
      %v866 = vld [vmem:[%s823 + $0x18] sm:$0xf]
      %v867 = vld [vmem:[%s823 + $0x1c] sm:$0x1]
      %v868 = vld [vmem:[%s823 + $0x20] sm:$0xf]
      %v869 = vld [vmem:[%s823 + $0x24] sm:$0x1]
      %v870 = vld [vmem:[%s823 + $0x28] sm:$0xf]
      %v871 = vld [vmem:[%s823 + $0x2c] sm:$0x1]
      %v872 = vld [vmem:[%s823 + $0x30] sm:$0xf]
      %v873 = vld [vmem:[%s823 + $0x34] sm:$0x1]
      %v874 = vld [vmem:[%s823 + $0x38] sm:$0xf]
      %v875 = vld [vmem:[%s823 + $0x3c] sm:$0x1]
      %v877 = vshrl.u32 %v860, 16
      %v879 = vrot.slane %v877, 4
      %v880 = vshll.u32 %v860, 16
      %v882 = vrot.slane %v880, 5
      %v883 = vor.u32 %v879, %v882
      %v884 = vrot.slane %v883, 4
      %v886 = vshll.u32 %v861, 16
      %v888 = vrot.slane %v886, 5
      %v889 = vsel %vm334, %v884, %v888
      %v891 = vshrl.u32 %v862, 16
      %v893 = vrot.slane %v891, 4
      %v894 = vshll.u32 %v862, 16
      %v896 = vrot.slane %v894, 5
      %v897 = vor.u32 %v893, %v896
      %v898 = vrot.slane %v897, 4
      %v900 = vshll.u32 %v863, 16
      %v902 = vrot.slane %v900, 5
      %v903 = vsel %vm334, %v898, %v902
      %v905 = vshrl.u32 %v864, 16
      %v907 = vrot.slane %v905, 4
      %v908 = vshll.u32 %v864, 16
      %v910 = vrot.slane %v908, 5
      %v911 = vor.u32 %v907, %v910
      %v912 = vrot.slane %v911, 4
      %v914 = vshll.u32 %v865, 16
      %v916 = vrot.slane %v914, 5
      %v917 = vsel %vm334, %v912, %v916
      %v919 = vshrl.u32 %v866, 16
      %v921 = vrot.slane %v919, 4
      %v922 = vshll.u32 %v866, 16
      %v924 = vrot.slane %v922, 5
      %v925 = vor.u32 %v921, %v924
      %v926 = vrot.slane %v925, 4
      %v928 = vshll.u32 %v867, 16
      %v930 = vrot.slane %v928, 5
      %v931 = vsel %vm334, %v926, %v930
      %v933 = vshrl.u32 %v868, 16
      %v935 = vrot.slane %v933, 4
      %v936 = vshll.u32 %v868, 16
      %v938 = vrot.slane %v936, 5
      %v939 = vor.u32 %v935, %v938
      %v940 = vrot.slane %v939, 4
      %v942 = vshll.u32 %v869, 16
      %v944 = vrot.slane %v942, 5
      %v945 = vsel %vm334, %v940, %v944
      %v947 = vshrl.u32 %v870, 16
      %v949 = vrot.slane %v947, 4
      %v950 = vshll.u32 %v870, 16
      %v952 = vrot.slane %v950, 5
      %v953 = vor.u32 %v949, %v952
      %v954 = vrot.slane %v953, 4
      %v956 = vshll.u32 %v871, 16
      %v958 = vrot.slane %v956, 5
      %v959 = vsel %vm334, %v954, %v958
      %v961 = vshrl.u32 %v872, 16
      %v963 = vrot.slane %v961, 4
      %v964 = vshll.u32 %v872, 16
      %v966 = vrot.slane %v964, 5
      %v967 = vor.u32 %v963, %v966
      %v968 = vrot.slane %v967, 4
      %v970 = vshll.u32 %v873, 16
      %v972 = vrot.slane %v970, 5
      %v973 = vsel %vm334, %v968, %v972
      %v975 = vshrl.u32 %v874, 16
      %v977 = vrot.slane %v975, 4
      %v978 = vshll.u32 %v874, 16
      %v980 = vrot.slane %v978, 5
      %v981 = vor.u32 %v977, %v980
      %v982 = vrot.slane %v981, 4
      %v984 = vshll.u32 %v875, 16
      %v986 = vrot.slane %v984, 5
      %v987 = vsel %vm334, %v982, %v986
      %v988 = vunpack.c.l.b16 %v889
      %v989 = vunpack.c.l.b16 %v903
      %v990 = vunpack.c.l.b16 %v917
      %v991 = vunpack.c.l.b16 %v931
      %v992 = vunpack.c.l.b16 %v945
      %v993 = vunpack.c.l.b16 %v959
      %v994 = vunpack.c.l.b16 %v973
      %v995 = vunpack.c.l.b16 %v987
      %v996 = vpack.c.b16 %v989, %v988
      %v997 = vpack.c.b16 %v991, %v990
      %v998 = vpack.c.b16 %v993, %v992
      %v999 = vpack.c.b16 %v995, %v994
      %1004 = vst [vmem:[#allocation2 + $0x38] sm:$0xff] %v996
      %1005 = vst [vmem:[#allocation2 + $0x80] sm:$0xff] %v997
      %1006 = vst [vmem:[#allocation2 + $0xc8] sm:$0xff] %v998
      %1007 = vst [vmem:[#allocation2 + $0x110] sm:$0xff] %v999
      %v1008 = vld [vmem:[%s823] sm:$0xe]
      %v1009 = vld [vmem:[%s823 + $0x4] sm:$0x1]
      %v1010 = vld [vmem:[%s823 + $0x8] sm:$0xe]
      %v1011 = vld [vmem:[%s823 + $0xc] sm:$0x1]
      %v1012 = vld [vmem:[%s823 + $0x10] sm:$0xe]
      %v1013 = vld [vmem:[%s823 + $0x14] sm:$0x1]
      %v1014 = vld [vmem:[%s823 + $0x18] sm:$0xe]
      %v1015 = vld [vmem:[%s823 + $0x1c] sm:$0x1]
      %v1016 = vld [vmem:[%s823 + $0x20] sm:$0xe]
      %v1017 = vld [vmem:[%s823 + $0x24] sm:$0x1]
      %v1018 = vld [vmem:[%s823 + $0x28] sm:$0xe]
      %v1019 = vld [vmem:[%s823 + $0x2c] sm:$0x1]
      %v1020 = vld [vmem:[%s823 + $0x30] sm:$0xe]
      %v1021 = vld [vmem:[%s823 + $0x34] sm:$0x1]
      %v1022 = vld [vmem:[%s823 + $0x38] sm:$0xe]
      %v1023 = vld [vmem:[%s823 + $0x3c] sm:$0x1]
      %v1040 = vrot.slane %v1008, 5
      %v1041 = vrot.slane %v1040, 4
      %v1042 = vrot.slane %v1009, 5
      %v1043 = vsel %vm501, %v1041, %v1042
      %v1044 = vrot.slane %v1010, 5
      %v1045 = vrot.slane %v1044, 4
      %v1046 = vrot.slane %v1011, 5
      %v1047 = vsel %vm501, %v1045, %v1046
      %v1048 = vrot.slane %v1012, 5
      %v1049 = vrot.slane %v1048, 4
      %v1050 = vrot.slane %v1013, 5
      %v1051 = vsel %vm501, %v1049, %v1050
      %v1052 = vrot.slane %v1014, 5
      %v1053 = vrot.slane %v1052, 4
      %v1054 = vrot.slane %v1015, 5
      %v1055 = vsel %vm501, %v1053, %v1054
      %v1056 = vrot.slane %v1016, 5
      %v1057 = vrot.slane %v1056, 4
      %v1058 = vrot.slane %v1017, 5
      %v1059 = vsel %vm501, %v1057, %v1058
      %v1060 = vrot.slane %v1018, 5
      %v1061 = vrot.slane %v1060, 4
      %v1062 = vrot.slane %v1019, 5
      %v1063 = vsel %vm501, %v1061, %v1062
      %v1064 = vrot.slane %v1020, 5
      %v1065 = vrot.slane %v1064, 4
      %v1066 = vrot.slane %v1021, 5
      %v1067 = vsel %vm501, %v1065, %v1066
      %v1068 = vrot.slane %v1022, 5
      %v1069 = vrot.slane %v1068, 4
      %v1070 = vrot.slane %v1023, 5
      %v1071 = vsel %vm501, %v1069, %v1070
      %v1072 = vunpack.c.l.b16 %v1043
      %v1073 = vunpack.c.l.b16 %v1047
      %v1074 = vunpack.c.l.b16 %v1051
      %v1075 = vunpack.c.l.b16 %v1055
      %v1076 = vunpack.c.l.b16 %v1059
      %v1077 = vunpack.c.l.b16 %v1063
      %v1078 = vunpack.c.l.b16 %v1067
      %v1079 = vunpack.c.l.b16 %v1071
      %v1080 = vpack.c.b16 %v1073, %v1072
      %v1081 = vpack.c.b16 %v1075, %v1074
      %v1082 = vpack.c.b16 %v1077, %v1076
      %v1083 = vpack.c.b16 %v1079, %v1078
      %1088 = vst [vmem:[#allocation2 + $0x40] sm:$0xff] %v1080
      %1089 = vst [vmem:[#allocation2 + $0x88] sm:$0xff] %v1081
      %1090 = vst [vmem:[#allocation2 + $0xd0] sm:$0xff] %v1082
      %1091 = vst [vmem:[#allocation2 + $0x118] sm:$0xff] %v1083
      %v1092 = vld [vmem:[#allocation2] sm:$0xff]
      %v1093 = vld [vmem:[#allocation2 + $0x8] sm:$0xff]
      %v1094 = vld [vmem:[#allocation2 + $0x10] sm:$0xff]
      %v1095 = vld [vmem:[#allocation2 + $0x18] sm:$0xff]
      %v1096 = vld [vmem:[#allocation2 + $0x20] sm:$0xff]
      %v1097 = vld [vmem:[#allocation2 + $0x28] sm:$0xff]
      %v1098 = vld [vmem:[#allocation2 + $0x30] sm:$0xff]
      %v1099 = vld [vmem:[#allocation2 + $0x38] sm:$0xff]
      %v1100 = vld [vmem:[#allocation2 + $0x40] sm:$0xff]
      %v1101 = vld [vmem:[#allocation2 + $0x48] sm:$0xff]
      %v1102 = vld [vmem:[#allocation2 + $0x50] sm:$0xff]
      %v1103 = vld [vmem:[#allocation2 + $0x58] sm:$0xff]
      %v1104 = vld [vmem:[#allocation2 + $0x60] sm:$0xff]
      %v1105 = vld [vmem:[#allocation2 + $0x68] sm:$0xff]
      %v1106 = vld [vmem:[#allocation2 + $0x70] sm:$0xff]
      %v1107 = vld [vmem:[#allocation2 + $0x78] sm:$0xff]
      %v1108 = vld [vmem:[#allocation2 + $0x80] sm:$0xff]
      %v1109 = vld [vmem:[#allocation2 + $0x88] sm:$0xff]
      %v1110 = vld [vmem:[#allocation2 + $0x90] sm:$0xff]
      %v1111 = vld [vmem:[#allocation2 + $0x98] sm:$0xff]
      %v1112 = vld [vmem:[#allocation2 + $0xa0] sm:$0xff]
      %v1113 = vld [vmem:[#allocation2 + $0xa8] sm:$0xff]
      %v1114 = vld [vmem:[#allocation2 + $0xb0] sm:$0xff]
      %v1115 = vld [vmem:[#allocation2 + $0xb8] sm:$0xff]
      %v1116 = vld [vmem:[#allocation2 + $0xc0] sm:$0xff]
      %v1117 = vld [vmem:[#allocation2 + $0xc8] sm:$0xff]
      %v1118 = vld [vmem:[#allocation2 + $0xd0] sm:$0xff]
      %v1119 = vld [vmem:[#allocation2 + $0xd8] sm:$0xff]
      %v1120 = vld [vmem:[#allocation2 + $0xe0] sm:$0xff]
      %v1121 = vld [vmem:[#allocation2 + $0xe8] sm:$0xff]
      %v1122 = vld [vmem:[#allocation2 + $0xf0] sm:$0xff]
      %v1123 = vld [vmem:[#allocation2 + $0xf8] sm:$0xff]
      %v1124 = vld [vmem:[#allocation2 + $0x100] sm:$0xff]
      %v1125 = vld [vmem:[#allocation2 + $0x108] sm:$0xff]
      %v1126 = vld [vmem:[#allocation2 + $0x110] sm:$0xff]
      %v1127 = vld [vmem:[#allocation2 + $0x118] sm:$0xff]
      %v1128 = vld [vmem:[%s1] sm:$0xf]
      %v1129 = vld [vmem:[%s1 + $0x4] sm:$0xf]
      %v1130 = vld [vmem:[%s1 + $0x8] sm:$0xf]
      %v1131 = vld [vmem:[%s1 + $0xc] sm:$0xf]
      %v1132 = vld [vmem:[%s1 + $0x10] sm:$0xf]
      %v1133 = vld [vmem:[%s1 + $0x14] sm:$0xf]
      %v1134 = vld [vmem:[%s1 + $0x18] sm:$0xf]
      %v1135 = vld [vmem:[%s1 + $0x1c] sm:$0xf]
      %v1136 = vld [vmem:[%s1 + $0x20] sm:$0xf]
      %v1137 = vld [vmem:[%s1 + $0x24] sm:$0xf]
      %v1138 = vld [vmem:[%s1 + $0x28] sm:$0xf]
      %v1139 = vld [vmem:[%s1 + $0x2c] sm:$0xf]
      %v1140 = vld [vmem:[%s1 + $0x30] sm:$0xf]
      %v1141 = vld [vmem:[%s1 + $0x34] sm:$0xf]
      %v1142 = vld [vmem:[%s1 + $0x38] sm:$0xf]
      %v1143 = vld [vmem:[%s1 + $0x3c] sm:$0xf]
      %v1144 = vld [vmem:[%s1 + $0x40] sm:$0xf]
      %v1145 = vld [vmem:[%s1 + $0x44] sm:$0xf]
      %v1146 = vld [vmem:[%s1 + $0x48] sm:$0xf]
      %v1147 = vld [vmem:[%s1 + $0x4c] sm:$0xf]
      %v1148 = vld [vmem:[%s1 + $0x50] sm:$0xf]
      %v1149 = vld [vmem:[%s1 + $0x54] sm:$0xf]
      %v1150 = vld [vmem:[%s1 + $0x58] sm:$0xf]
      %v1151 = vld [vmem:[%s1 + $0x5c] sm:$0xf]
      %v1152 = vld [vmem:[%s1 + $0x60] sm:$0xf]
      %v1153 = vld [vmem:[%s1 + $0x64] sm:$0xf]
      %v1154 = vld [vmem:[%s1 + $0x68] sm:$0xf]
      %v1155 = vld [vmem:[%s1 + $0x6c] sm:$0xf]
      %v1156 = vld [vmem:[%s1 + $0x70] sm:$0xf]
      %v1157 = vld [vmem:[%s1 + $0x74] sm:$0xf]
      %v1158 = vld [vmem:[%s1 + $0x78] sm:$0xf]
      %v1159 = vld [vmem:[%s1 + $0x7c] sm:$0xf]
      %v1160 = vld [vmem:[%s1 + $0x80] sm:$0xf]
      %v1161 = vld [vmem:[%s1 + $0x84] sm:$0xf]
      %v1162 = vld [vmem:[%s1 + $0x88] sm:$0xf]
      %v1163 = vld [vmem:[%s1 + $0x8c] sm:$0xf]
      %v1164 = vld [vmem:[%s1 + $0x90] sm:$0xf]
      %v1165 = vld [vmem:[%s1 + $0x94] sm:$0xf]
      %v1166 = vld [vmem:[%s1 + $0x98] sm:$0xf]
      %v1167 = vld [vmem:[%s1 + $0x9c] sm:$0xf]
      %v1168 = vld [vmem:[%s1 + $0xa0] sm:$0xf]
      %v1169 = vld [vmem:[%s1 + $0xa4] sm:$0xf]
      %v1170 = vld [vmem:[%s1 + $0xa8] sm:$0xf]
      %v1171 = vld [vmem:[%s1 + $0xac] sm:$0xf]
      %v1172 = vld [vmem:[%s1 + $0xb0] sm:$0xf]
      %v1173 = vld [vmem:[%s1 + $0xb4] sm:$0xf]
      %v1174 = vld [vmem:[%s1 + $0xb8] sm:$0xf]
      %v1175 = vld [vmem:[%s1 + $0xbc] sm:$0xf]
      %v1176 = vld [vmem:[%s1 + $0xc0] sm:$0xf]
      %v1177 = vld [vmem:[%s1 + $0xc4] sm:$0xf]
      %v1178 = vld [vmem:[%s1 + $0xc8] sm:$0xf]
      %v1179 = vld [vmem:[%s1 + $0xcc] sm:$0xf]
      %v1180 = vld [vmem:[%s1 + $0xd0] sm:$0xf]
      %v1181 = vld [vmem:[%s1 + $0xd4] sm:$0xf]
      %v1182 = vld [vmem:[%s1 + $0xd8] sm:$0xf]
      %v1183 = vld [vmem:[%s1 + $0xdc] sm:$0xf]
      %v1184 = vld [vmem:[%s1 + $0xe0] sm:$0xf]
      %v1185 = vld [vmem:[%s1 + $0xe4] sm:$0xf]
      %v1186 = vld [vmem:[%s1 + $0xe8] sm:$0xf]
      %v1187 = vld [vmem:[%s1 + $0xec] sm:$0xf]
      %v1188 = vld [vmem:[%s1 + $0xf0] sm:$0xf]
      %v1189 = vld [vmem:[%s1 + $0xf4] sm:$0xf]
      %v1190 = vld [vmem:[%s1 + $0xf8] sm:$0xf]
      %v1191 = vld [vmem:[%s1 + $0xfc] sm:$0xf]
      %v1192 = vld [vmem:[%s1 + $0x100] sm:$0xf]
      %v1193 = vld [vmem:[%s1 + $0x104] sm:$0xf]
      %v1194 = vld [vmem:[%s1 + $0x108] sm:$0xf]
      %v1195 = vld [vmem:[%s1 + $0x10c] sm:$0xf]
      %v1196 = vld [vmem:[%s1 + $0x110] sm:$0xf]
      %v1197 = vld [vmem:[%s1 + $0x114] sm:$0xf]
      %v1198 = vld [vmem:[%s1 + $0x118] sm:$0xf]
      %v1199 = vld [vmem:[%s1 + $0x11c] sm:$0xf]
      %v1200 = vld [vmem:[%s1 + $0x120] sm:$0xf]
      %v1201 = vld [vmem:[%s1 + $0x124] sm:$0xf]
      %v1202 = vld [vmem:[%s1 + $0x128] sm:$0xf]
      %v1203 = vld [vmem:[%s1 + $0x12c] sm:$0xf]
      %v1204 = vld [vmem:[%s1 + $0x130] sm:$0xf]
      %v1205 = vld [vmem:[%s1 + $0x134] sm:$0xf]
      %v1206 = vld [vmem:[%s1 + $0x138] sm:$0xf]
      %v1207 = vld [vmem:[%s1 + $0x13c] sm:$0xf]
      %v1208 = vld [vmem:[%s1 + $0x140] sm:$0xf]
      %v1209 = vld [vmem:[%s1 + $0x144] sm:$0xf]
      %v1210 = vld [vmem:[%s1 + $0x148] sm:$0xf]
      %v1211 = vld [vmem:[%s1 + $0x14c] sm:$0xf]
      %v1212 = vld [vmem:[%s1 + $0x150] sm:$0xf]
      %v1213 = vld [vmem:[%s1 + $0x154] sm:$0xf]
      %v1214 = vld [vmem:[%s1 + $0x158] sm:$0xf]
      %v1215 = vld [vmem:[%s1 + $0x15c] sm:$0xf]
      %v1216 = vld [vmem:[%s1 + $0x160] sm:$0xf]
      %v1217 = vld [vmem:[%s1 + $0x164] sm:$0xf]
      %v1218 = vld [vmem:[%s1 + $0x168] sm:$0xf]
      %v1219 = vld [vmem:[%s1 + $0x16c] sm:$0xf]
      %v1220 = vld [vmem:[%s1 + $0x170] sm:$0xf]
      %v1221 = vld [vmem:[%s1 + $0x174] sm:$0xf]
      %v1222 = vld [vmem:[%s1 + $0x178] sm:$0xf]
      %v1223 = vld [vmem:[%s1 + $0x17c] sm:$0xf]
      %v1224 = vld [vmem:[%s1 + $0x180] sm:$0xf]
      %v1225 = vld [vmem:[%s1 + $0x184] sm:$0xf]
      %v1226 = vld [vmem:[%s1 + $0x188] sm:$0xf]
      %v1227 = vld [vmem:[%s1 + $0x18c] sm:$0xf]
      %v1228 = vld [vmem:[%s1 + $0x190] sm:$0xf]
      %v1229 = vld [vmem:[%s1 + $0x194] sm:$0xf]
      %v1230 = vld [vmem:[%s1 + $0x198] sm:$0xf]
      %v1231 = vld [vmem:[%s1 + $0x19c] sm:$0xf]
      %v1232 = vld [vmem:[%s1 + $0x1a0] sm:$0xf]
      %v1233 = vld [vmem:[%s1 + $0x1a4] sm:$0xf]
      %v1234 = vld [vmem:[%s1 + $0x1a8] sm:$0xf]
      %v1235 = vld [vmem:[%s1 + $0x1ac] sm:$0xf]
      %v1236 = vld [vmem:[%s1 + $0x1b0] sm:$0xf]
      %v1237 = vld [vmem:[%s1 + $0x1b4] sm:$0xf]
      %v1238 = vld [vmem:[%s1 + $0x1b8] sm:$0xf]
      %v1239 = vld [vmem:[%s1 + $0x1bc] sm:$0xf]
      %v1240 = vld [vmem:[%s1 + $0x1c0] sm:$0xf]
      %v1241 = vld [vmem:[%s1 + $0x1c4] sm:$0xf]
      %v1242 = vld [vmem:[%s1 + $0x1c8] sm:$0xf]
      %v1243 = vld [vmem:[%s1 + $0x1cc] sm:$0xf]
      %v1244 = vld [vmem:[%s1 + $0x1d0] sm:$0xf]
      %v1245 = vld [vmem:[%s1 + $0x1d4] sm:$0xf]
      %v1246 = vld [vmem:[%s1 + $0x1d8] sm:$0xf]
      %v1247 = vld [vmem:[%s1 + $0x1dc] sm:$0xf]
      %v1248 = vld [vmem:[%s1 + $0x1e0] sm:$0xf]
      %v1249 = vld [vmem:[%s1 + $0x1e4] sm:$0xf]
      %v1250 = vld [vmem:[%s1 + $0x1e8] sm:$0xf]
      %v1251 = vld [vmem:[%s1 + $0x1ec] sm:$0xf]
      %v1252 = vld [vmem:[%s1 + $0x1f0] sm:$0xf]
      %v1253 = vld [vmem:[%s1 + $0x1f4] sm:$0xf]
      %v1254 = vld [vmem:[%s1 + $0x1f8] sm:$0xf]
      %v1255 = vld [vmem:[%s1 + $0x1fc] sm:$0xf]
      %v1256 = vld [vmem:[%s1 + $0x200] sm:$0xf]
      %v1257 = vld [vmem:[%s1 + $0x204] sm:$0xf]
      %v1258 = vld [vmem:[%s1 + $0x208] sm:$0xf]
      %v1259 = vld [vmem:[%s1 + $0x20c] sm:$0xf]
      %v1260 = vld [vmem:[%s1 + $0x210] sm:$0xf]
      %v1261 = vld [vmem:[%s1 + $0x214] sm:$0xf]
      %v1262 = vld [vmem:[%s1 + $0x218] sm:$0xf]
      %v1263 = vld [vmem:[%s1 + $0x21c] sm:$0xf]
      %v1264 = vld [vmem:[%s1 + $0x220] sm:$0xf]
      %v1265 = vld [vmem:[%s1 + $0x224] sm:$0xf]
      %v1266 = vld [vmem:[%s1 + $0x228] sm:$0xf]
      %v1267 = vld [vmem:[%s1 + $0x22c] sm:$0xf]
      %v1268 = vld [vmem:[%s1 + $0x230] sm:$0xf]
      %v1269 = vld [vmem:[%s1 + $0x234] sm:$0xf]
      %v1270 = vld [vmem:[%s1 + $0x238] sm:$0xf]
      %v1271 = vld [vmem:[%s1 + $0x23c] sm:$0xf]
      %v1272 = vld [vmem:[%s2] sm:$0x1]
      %v1274 = vlaneseq
      %v1275 = vshrl.u32 %v1274, 7
      %v1276 = vsub.s32 0, %v1275
      %v1277 = vrot.slane %v1272, %v1276
      %v1423 = vunpack.c.l.b16 %v1128
      %v1424 = vunpack.c.l.b16 %v1129
      %v1425 = vunpack.c.l.b16 %v1130
      %v1426 = vunpack.c.l.b16 %v1131
      %v1427 = vunpack.c.l.b16 %v1132
      %v1428 = vunpack.c.l.b16 %v1133
      %v1429 = vunpack.c.l.b16 %v1134
      %v1430 = vunpack.c.l.b16 %v1135
      %v1431 = vunpack.c.l.b16 %v1136
      %v1432 = vunpack.c.l.b16 %v1137
      %v1433 = vunpack.c.l.b16 %v1138
      %v1434 = vunpack.c.l.b16 %v1139
      %v1435 = vunpack.c.l.b16 %v1140
      %v1436 = vunpack.c.l.b16 %v1141
      %v1437 = vunpack.c.l.b16 %v1142
      %v1438 = vunpack.c.l.b16 %v1143
      %v1439 = vunpack.c.l.b16 %v1144
      %v1440 = vunpack.c.l.b16 %v1145
      %v1441 = vunpack.c.l.b16 %v1146
      %v1442 = vunpack.c.l.b16 %v1147
      %v1443 = vunpack.c.l.b16 %v1148
      %v1444 = vunpack.c.l.b16 %v1149
      %v1445 = vunpack.c.l.b16 %v1150
      %v1446 = vunpack.c.l.b16 %v1151
      %v1447 = vunpack.c.l.b16 %v1152
      %v1448 = vunpack.c.l.b16 %v1153
      %v1449 = vunpack.c.l.b16 %v1154
      %v1450 = vunpack.c.l.b16 %v1155
      %v1451 = vunpack.c.l.b16 %v1156
      %v1452 = vunpack.c.l.b16 %v1157
      %v1453 = vunpack.c.l.b16 %v1158
      %v1454 = vunpack.c.l.b16 %v1159
      %v1455 = vunpack.c.l.b16 %v1160
      %v1456 = vunpack.c.l.b16 %v1161
      %v1457 = vunpack.c.l.b16 %v1162
      %v1458 = vunpack.c.l.b16 %v1163
      %v1459 = vunpack.c.l.b16 %v1164
      %v1460 = vunpack.c.l.b16 %v1165
      %v1461 = vunpack.c.l.b16 %v1166
      %v1462 = vunpack.c.l.b16 %v1167
      %v1463 = vunpack.c.l.b16 %v1168
      %v1464 = vunpack.c.l.b16 %v1169
      %v1465 = vunpack.c.l.b16 %v1170
      %v1466 = vunpack.c.l.b16 %v1171
      %v1467 = vunpack.c.l.b16 %v1172
      %v1468 = vunpack.c.l.b16 %v1173
      %v1469 = vunpack.c.l.b16 %v1174
      %v1470 = vunpack.c.l.b16 %v1175
      %v1471 = vunpack.c.l.b16 %v1176
      %v1472 = vunpack.c.l.b16 %v1177
      %v1473 = vunpack.c.l.b16 %v1178
      %v1474 = vunpack.c.l.b16 %v1179
      %v1475 = vunpack.c.l.b16 %v1180
      %v1476 = vunpack.c.l.b16 %v1181
      %v1477 = vunpack.c.l.b16 %v1182
      %v1478 = vunpack.c.l.b16 %v1183
      %v1479 = vunpack.c.l.b16 %v1184
      %v1480 = vunpack.c.l.b16 %v1185
      %v1481 = vunpack.c.l.b16 %v1186
      %v1482 = vunpack.c.l.b16 %v1187
      %v1483 = vunpack.c.l.b16 %v1188
      %v1484 = vunpack.c.l.b16 %v1189
      %v1485 = vunpack.c.l.b16 %v1190
      %v1486 = vunpack.c.l.b16 %v1191
      %v1487 = vunpack.c.l.b16 %v1192
      %v1488 = vunpack.c.l.b16 %v1193
      %v1489 = vunpack.c.l.b16 %v1194
      %v1490 = vunpack.c.l.b16 %v1195
      %v1491 = vunpack.c.l.b16 %v1196
      %v1492 = vunpack.c.l.b16 %v1197
      %v1493 = vunpack.c.l.b16 %v1198
      %v1494 = vunpack.c.l.b16 %v1199
      %v1495 = vunpack.c.l.b16 %v1200
      %v1496 = vunpack.c.l.b16 %v1201
      %v1497 = vunpack.c.l.b16 %v1202
      %v1498 = vunpack.c.l.b16 %v1203
      %v1499 = vunpack.c.l.b16 %v1204
      %v1500 = vunpack.c.l.b16 %v1205
      %v1501 = vunpack.c.l.b16 %v1206
      %v1502 = vunpack.c.l.b16 %v1207
      %v1503 = vunpack.c.l.b16 %v1208
      %v1504 = vunpack.c.l.b16 %v1209
      %v1505 = vunpack.c.l.b16 %v1210
      %v1506 = vunpack.c.l.b16 %v1211
      %v1507 = vunpack.c.l.b16 %v1212
      %v1508 = vunpack.c.l.b16 %v1213
      %v1509 = vunpack.c.l.b16 %v1214
      %v1510 = vunpack.c.l.b16 %v1215
      %v1511 = vunpack.c.l.b16 %v1216
      %v1512 = vunpack.c.l.b16 %v1217
      %v1513 = vunpack.c.l.b16 %v1218
      %v1514 = vunpack.c.l.b16 %v1219
      %v1515 = vunpack.c.l.b16 %v1220
      %v1516 = vunpack.c.l.b16 %v1221
      %v1517 = vunpack.c.l.b16 %v1222
      %v1518 = vunpack.c.l.b16 %v1223
      %v1519 = vunpack.c.l.b16 %v1224
      %v1520 = vunpack.c.l.b16 %v1225
      %v1521 = vunpack.c.l.b16 %v1226
      %v1522 = vunpack.c.l.b16 %v1227
      %v1523 = vunpack.c.l.b16 %v1228
      %v1524 = vunpack.c.l.b16 %v1229
      %v1525 = vunpack.c.l.b16 %v1230
      %v1526 = vunpack.c.l.b16 %v1231
      %v1527 = vunpack.c.l.b16 %v1232
      %v1528 = vunpack.c.l.b16 %v1233
      %v1529 = vunpack.c.l.b16 %v1234
      %v1530 = vunpack.c.l.b16 %v1235
      %v1531 = vunpack.c.l.b16 %v1236
      %v1532 = vunpack.c.l.b16 %v1237
      %v1533 = vunpack.c.l.b16 %v1238
      %v1534 = vunpack.c.l.b16 %v1239
      %v1535 = vunpack.c.l.b16 %v1240
      %v1536 = vunpack.c.l.b16 %v1241
      %v1537 = vunpack.c.l.b16 %v1242
      %v1538 = vunpack.c.l.b16 %v1243
      %v1539 = vunpack.c.l.b16 %v1244
      %v1540 = vunpack.c.l.b16 %v1245
      %v1541 = vunpack.c.l.b16 %v1246
      %v1542 = vunpack.c.l.b16 %v1247
      %v1543 = vunpack.c.l.b16 %v1248
      %v1544 = vunpack.c.l.b16 %v1249
      %v1545 = vunpack.c.l.b16 %v1250
      %v1546 = vunpack.c.l.b16 %v1251
      %v1547 = vunpack.c.l.b16 %v1252
      %v1548 = vunpack.c.l.b16 %v1253
      %v1549 = vunpack.c.l.b16 %v1254
      %v1550 = vunpack.c.l.b16 %v1255
      %v1551 = vunpack.c.l.b16 %v1256
      %v1552 = vunpack.c.l.b16 %v1257
      %v1553 = vunpack.c.l.b16 %v1258
      %v1554 = vunpack.c.l.b16 %v1259
      %v1555 = vunpack.c.l.b16 %v1260
      %v1556 = vunpack.c.l.b16 %v1261
      %v1557 = vunpack.c.l.b16 %v1262
      %v1558 = vunpack.c.l.b16 %v1263
      %v1559 = vunpack.c.l.b16 %v1264
      %v1560 = vunpack.c.l.b16 %v1265
      %v1561 = vunpack.c.l.b16 %v1266
      %v1562 = vunpack.c.l.b16 %v1267
      %v1563 = vunpack.c.l.b16 %v1268
      %v1564 = vunpack.c.l.b16 %v1269
      %v1565 = vunpack.c.l.b16 %v1270
      %v1566 = vunpack.c.l.b16 %v1271
      %v1567 = vpack.c.b16 %v1424, %v1423
      %v1568 = vpack.c.b16 %v1426, %v1425
      %v1569 = vpack.c.b16 %v1428, %v1427
      %v1570 = vpack.c.b16 %v1430, %v1429
      %v1571 = vpack.c.b16 %v1432, %v1431
      %v1572 = vpack.c.b16 %v1434, %v1433
      %v1573 = vpack.c.b16 %v1436, %v1435
      %v1574 = vpack.c.b16 %v1438, %v1437
      %v1575 = vpack.c.b16 %v1440, %v1439
      %v1576 = vpack.c.b16 %v1442, %v1441
      %v1577 = vpack.c.b16 %v1444, %v1443
      %v1578 = vpack.c.b16 %v1446, %v1445
      %v1579 = vpack.c.b16 %v1448, %v1447
      %v1580 = vpack.c.b16 %v1450, %v1449
      %v1581 = vpack.c.b16 %v1452, %v1451
      %v1582 = vpack.c.b16 %v1454, %v1453
      %v1583 = vpack.c.b16 %v1456, %v1455
      %v1584 = vpack.c.b16 %v1458, %v1457
      %v1585 = vpack.c.b16 %v1460, %v1459
      %v1586 = vpack.c.b16 %v1462, %v1461
      %v1587 = vpack.c.b16 %v1464, %v1463
      %v1588 = vpack.c.b16 %v1466, %v1465
      %v1589 = vpack.c.b16 %v1468, %v1467
      %v1590 = vpack.c.b16 %v1470, %v1469
      %v1591 = vpack.c.b16 %v1472, %v1471
      %v1592 = vpack.c.b16 %v1474, %v1473
      %v1593 = vpack.c.b16 %v1476, %v1475
      %v1594 = vpack.c.b16 %v1478, %v1477
      %v1595 = vpack.c.b16 %v1480, %v1479
      %v1596 = vpack.c.b16 %v1482, %v1481
      %v1597 = vpack.c.b16 %v1484, %v1483
      %v1598 = vpack.c.b16 %v1486, %v1485
      %v1599 = vpack.c.b16 %v1488, %v1487
      %v1600 = vpack.c.b16 %v1490, %v1489
      %v1601 = vpack.c.b16 %v1492, %v1491
      %v1602 = vpack.c.b16 %v1494, %v1493
      %v1603 = vpack.c.b16 %v1496, %v1495
      %v1604 = vpack.c.b16 %v1498, %v1497
      %v1605 = vpack.c.b16 %v1500, %v1499
      %v1606 = vpack.c.b16 %v1502, %v1501
      %v1607 = vpack.c.b16 %v1504, %v1503
      %v1608 = vpack.c.b16 %v1506, %v1505
      %v1609 = vpack.c.b16 %v1508, %v1507
      %v1610 = vpack.c.b16 %v1510, %v1509
      %v1611 = vpack.c.b16 %v1512, %v1511
      %v1612 = vpack.c.b16 %v1514, %v1513
      %v1613 = vpack.c.b16 %v1516, %v1515
      %v1614 = vpack.c.b16 %v1518, %v1517
      %v1615 = vpack.c.b16 %v1520, %v1519
      %v1616 = vpack.c.b16 %v1522, %v1521
      %v1617 = vpack.c.b16 %v1524, %v1523
      %v1618 = vpack.c.b16 %v1526, %v1525
      %v1619 = vpack.c.b16 %v1528, %v1527
      %v1620 = vpack.c.b16 %v1530, %v1529
      %v1621 = vpack.c.b16 %v1532, %v1531
      %v1622 = vpack.c.b16 %v1534, %v1533
      %v1623 = vpack.c.b16 %v1536, %v1535
      %v1624 = vpack.c.b16 %v1538, %v1537
      %v1625 = vpack.c.b16 %v1540, %v1539
      %v1626 = vpack.c.b16 %v1542, %v1541
      %v1627 = vpack.c.b16 %v1544, %v1543
      %v1628 = vpack.c.b16 %v1546, %v1545
      %v1629 = vpack.c.b16 %v1548, %v1547
      %v1630 = vpack.c.b16 %v1550, %v1549
      %v1631 = vpack.c.b16 %v1552, %v1551
      %v1632 = vpack.c.b16 %v1554, %v1553
      %v1633 = vpack.c.b16 %v1556, %v1555
      %v1634 = vpack.c.b16 %v1558, %v1557
      %v1635 = vpack.c.b16 %v1560, %v1559
      %v1636 = vpack.c.b16 %v1562, %v1561
      %v1637 = vpack.c.b16 %v1564, %v1563
      %v1638 = vpack.c.b16 %v1566, %v1565
      %1711 = vmatprep.subr.bf16.mxu0 0
      %1712 = vmatpush1.bf16.msra.mxu0 %v1567
      %1713 = vmatprep.subr.bf16.mxu0 0
      %1714 = vmatpush1.bf16.msra.mxu0 %v1568
      %1715 = vmatprep.subr.bf16.mxu0 0
      %1716 = vmatpush1.bf16.msra.mxu0 %v1569
      %1717 = vmatprep.subr.bf16.mxu0 0
      %1718 = vmatpush1.bf16.msra.mxu0 %v1570
      %1719 = vmatprep.subr.bf16.mxu0 0
      %1720 = vmatpush1.bf16.msra.mxu0 %v1571
      %1721 = vmatprep.subr.bf16.mxu0 0
      %1722 = vmatpush1.bf16.msra.mxu0 %v1572
      %1723 = vmatprep.subr.bf16.mxu0 0
      %1724 = vmatpush1.bf16.msra.mxu0 %v1573
      %1725 = vmatprep.subr.bf16.mxu0 0
      %1726 = vmatpush1.bf16.msra.mxu0 %v1574
      %1727 = vmatprep.subr.bf16.mxu0 0
      %1728 = vmatpush1.bf16.msra.mxu0 %v1575
      %1729 = vmatprep.subr.bf16.mxu0 0
      %1730 = vmatpush1.bf16.msra.mxu0 %v1576
      %1731 = vmatprep.subr.bf16.mxu0 0
      %1732 = vmatpush1.bf16.msra.mxu0 %v1577
      %1733 = vmatprep.subr.bf16.mxu0 0
      %1734 = vmatpush1.bf16.msra.mxu0 %v1578
      %1735 = vmatprep.subr.bf16.mxu0 0
      %1736 = vmatpush1.bf16.msra.mxu0 %v1579
      %1737 = vmatprep.subr.bf16.mxu0 0
      %1738 = vmatpush1.bf16.msra.mxu0 %v1580
      %1739 = vmatprep.subr.bf16.mxu0 0
      %1740 = vmatpush1.bf16.msra.mxu0 %v1581
      %1741 = vmatprep.subr.bf16.mxu0 0
      %1742 = vmatpush1.bf16.msra.mxu0 %v1582
      %1743 = vmatprep.mubr.bf16.mxu0 %v1093
      %1744 = vmatmul.mubr.bf16.gmra.mrb[0].mxu0 %v1092
      %v1745 = vpop.f32.mrb[0].mxu0
      %v1746 = vadd.f32 %v1277, %v1745
      %v1747 = vpop.f32.mrb[0].mxu0
      %v1748 = vpop.f32.mrb[0].mxu0
      %v1749 = vadd.f32 %v1277, %v1748
      %v1750 = vpop.f32.mrb[0].mxu0
      %1751 = vmatprep.mubr.bf16.mxu0 %v1102
      %1752 = vmatmul.mubr.bf16.gmra.mrb[0].mxu0 %v1101
      %v1753 = vpop.f32.mrb[0].mxu0
      %v1754 = vadd.f32 %v1277, %v1753
      %v1755 = vpop.f32.mrb[0].mxu0
      %v1756 = vpop.f32.mrb[0].mxu0
      %v1757 = vadd.f32 %v1277, %v1756
      %v1758 = vpop.f32.mrb[0].mxu0
      %1759 = vmatprep.mubr.bf16.mxu0 %v1111
      %1760 = vmatmul.mubr.bf16.gmra.mrb[0].mxu0 %v1110
      %v1761 = vpop.f32.mrb[0].mxu0
      %v1762 = vadd.f32 %v1277, %v1761
      %v1763 = vpop.f32.mrb[0].mxu0
      %v1764 = vpop.f32.mrb[0].mxu0
      %v1765 = vadd.f32 %v1277, %v1764
      %v1766 = vpop.f32.mrb[0].mxu0
      %1767 = vmatprep.mubr.bf16.mxu0 %v1120
      %1768 = vmatmul.mubr.bf16.gmra.mrb[0].mxu0 %v1119
      %v1769 = vpop.f32.mrb[0].mxu0
      %v1770 = vadd.f32 %v1277, %v1769
      %v1771 = vpop.f32.mrb[0].mxu0
      %v1772 = vpop.f32.mrb[0].mxu0
      %v1773 = vadd.f32 %v1277, %v1772
      %v1774 = vpop.f32.mrb[0].mxu0
      %1775 = vdwg.mxu0
      %1776 = vmatprep.subr.bf16.mxu0 0
      %1777 = vmatpush1.bf16.msra.mxu0 %v1583
      %1778 = vmatprep.subr.bf16.mxu0 0
      %1779 = vmatpush1.bf16.msra.mxu0 %v1584
      %1780 = vmatprep.subr.bf16.mxu0 0
      %1781 = vmatpush1.bf16.msra.mxu0 %v1585
      %1782 = vmatprep.subr.bf16.mxu0 0
      %1783 = vmatpush1.bf16.msra.mxu0 %v1586
      %1784 = vmatprep.subr.bf16.mxu0 0
      %1785 = vmatpush1.bf16.msra.mxu0 %v1587
      %1786 = vmatprep.subr.bf16.mxu0 0
      %1787 = vmatpush1.bf16.msra.mxu0 %v1588
      %1788 = vmatprep.subr.bf16.mxu0 0
      %1789 = vmatpush1.bf16.msra.mxu0 %v1589
      %1790 = vmatprep.subr.bf16.mxu0 0
      %1791 = vmatpush1.bf16.msra.mxu0 %v1590
      %1792 = vmatprep.subr.bf16.mxu0 0
      %1793 = vmatpush1.bf16.msra.mxu0 %v1591
      %1794 = vmatprep.subr.bf16.mxu0 0
      %1795 = vmatpush1.bf16.msra.mxu0 %v1592
      %1796 = vmatprep.subr.bf16.mxu0 0
      %1797 = vmatpush1.bf16.msra.mxu0 %v1593
      %1798 = vmatprep.subr.bf16.mxu0 0
      %1799 = vmatpush1.bf16.msra.mxu0 %v1594
      %1800 = vmatprep.subr.bf16.mxu0 0
      %1801 = vmatpush1.bf16.msra.mxu0 %v1595
      %1802 = vmatprep.subr.bf16.mxu0 0
      %1803 = vmatpush1.bf16.msra.mxu0 %v1596
      %1804 = vmatprep.subr.bf16.mxu0 0
      %1805 = vmatpush1.bf16.msra.mxu0 %v1597
      %1806 = vmatprep.subr.bf16.mxu0 0
      %1807 = vmatpush1.bf16.msra.mxu0 %v1598
      %1808 = vmatprep.mubr.bf16.mxu0 %v1095
      %1809 = vmatmul.mubr.bf16.gmra.mrb[0].mxu0 %v1094
      %v1810 = vpop.f32.mrb[0].mxu0
      %v1811 = vadd.f32 %v1746, %v1810
      %v1812 = vpop.f32.mrb[0].mxu0
      %v1813 = vpop.f32.mrb[0].mxu0
      %v1814 = vadd.f32 %v1749, %v1813
      %v1815 = vpop.f32.mrb[0].mxu0
      %1816 = vmatprep.mubr.bf16.mxu0 %v1104
      %1817 = vmatmul.mubr.bf16.gmra.mrb[0].mxu0 %v1103
      %v1818 = vpop.f32.mrb[0].mxu0
      %v1819 = vadd.f32 %v1754, %v1818
      %v1820 = vpop.f32.mrb[0].mxu0
      %v1821 = vpop.f32.mrb[0].mxu0
      %v1822 = vadd.f32 %v1757, %v1821
      %v1823 = vpop.f32.mrb[0].mxu0
      %1824 = vmatprep.mubr.bf16.mxu0 %v1113
      %1825 = vmatmul.mubr.bf16.gmra.mrb[0].mxu0 %v1112
      %v1826 = vpop.f32.mrb[0].mxu0
      %v1827 = vadd.f32 %v1762, %v1826
      %v1828 = vpop.f32.mrb[0].mxu0
      %v1829 = vpop.f32.mrb[0].mxu0
      %v1830 = vadd.f32 %v1765, %v1829
      %v1831 = vpop.f32.mrb[0].mxu0
      %1832 = vmatprep.mubr.bf16.mxu0 %v1122
      %1833 = vmatmul.mubr.bf16.gmra.mrb[0].mxu0 %v1121
      %v1834 = vpop.f32.mrb[0].mxu0
      %v1835 = vadd.f32 %v1770, %v1834
      %v1836 = vpop.f32.mrb[0].mxu0
      %v1837 = vpop.f32.mrb[0].mxu0
      %v1838 = vadd.f32 %v1773, %v1837
      %v1839 = vpop.f32.mrb[0].mxu0
      %1840 = vdwg.mxu0
      %1841 = vmatprep.subr.bf16.mxu0 0
      %1842 = vmatpush1.bf16.msra.mxu0 %v1599
      %1843 = vmatprep.subr.bf16.mxu0 0
      %1844 = vmatpush1.bf16.msra.mxu0 %v1600
      %1845 = vmatprep.subr.bf16.mxu0 0
      %1846 = vmatpush1.bf16.msra.mxu0 %v1601
      %1847 = vmatprep.subr.bf16.mxu0 0
      %1848 = vmatpush1.bf16.msra.mxu0 %v1602
      %1849 = vmatprep.subr.bf16.mxu0 0
      %1850 = vmatpush1.bf16.msra.mxu0 %v1603
      %1851 = vmatprep.subr.bf16.mxu0 0
      %1852 = vmatpush1.bf16.msra.mxu0 %v1604
      %1853 = vmatprep.subr.bf16.mxu0 0
      %1854 = vmatpush1.bf16.msra.mxu0 %v1605
      %1855 = vmatprep.subr.bf16.mxu0 0
      %1856 = vmatpush1.bf16.msra.mxu0 %v1606
      %1857 = vmatprep.subr.bf16.mxu0 0
      %1858 = vmatpush1.bf16.msra.mxu0 %v1607
      %1859 = vmatprep.subr.bf16.mxu0 0
      %1860 = vmatpush1.bf16.msra.mxu0 %v1608
      %1861 = vmatprep.subr.bf16.mxu0 0
      %1862 = vmatpush1.bf16.msra.mxu0 %v1609
      %1863 = vmatprep.subr.bf16.mxu0 0
      %1864 = vmatpush1.bf16.msra.mxu0 %v1610
      %1865 = vmatprep.subr.bf16.mxu0 0
      %1866 = vmatpush1.bf16.msra.mxu0 %v1611
      %1867 = vmatprep.subr.bf16.mxu0 0
      %1868 = vmatpush1.bf16.msra.mxu0 %v1612
      %1869 = vmatprep.subr.bf16.mxu0 0
      %1870 = vmatpush1.bf16.msra.mxu0 %v1613
      %1871 = vmatprep.subr.bf16.mxu0 0
      %1872 = vmatpush1.bf16.msra.mxu0 %v1614
      %1873 = vmatprep.mubr.bf16.mxu0 %v1097
      %1874 = vmatmul.mubr.bf16.gmra.mrb[0].mxu0 %v1096
      %v1875 = vpop.f32.mrb[0].mxu0
      %v1876 = vadd.f32 %v1811, %v1875
      %v1877 = vpop.f32.mrb[0].mxu0
      %v1878 = vpop.f32.mrb[0].mxu0
      %v1879 = vadd.f32 %v1814, %v1878
      %v1880 = vpop.f32.mrb[0].mxu0
      %1881 = vmatprep.mubr.bf16.mxu0 %v1106
      %1882 = vmatmul.mubr.bf16.gmra.mrb[0].mxu0 %v1105
      %v1883 = vpop.f32.mrb[0].mxu0
      %v1884 = vadd.f32 %v1819, %v1883
      %v1885 = vpop.f32.mrb[0].mxu0
      %v1886 = vpop.f32.mrb[0].mxu0
      %v1887 = vadd.f32 %v1822, %v1886
      %v1888 = vpop.f32.mrb[0].mxu0
      %1889 = vmatprep.mubr.bf16.mxu0 %v1115
      %1890 = vmatmul.mubr.bf16.gmra.mrb[0].mxu0 %v1114
      %v1891 = vpop.f32.mrb[0].mxu0
      %v1892 = vadd.f32 %v1827, %v1891
      %v1893 = vpop.f32.mrb[0].mxu0
      %v1894 = vpop.f32.mrb[0].mxu0
      %v1895 = vadd.f32 %v1830, %v1894
      %v1896 = vpop.f32.mrb[0].mxu0
      %1897 = vmatprep.mubr.bf16.mxu0 %v1124
      %1898 = vmatmul.mubr.bf16.gmra.mrb[0].mxu0 %v1123
      %v1899 = vpop.f32.mrb[0].mxu0
      %v1900 = vadd.f32 %v1835, %v1899
      %v1901 = vpop.f32.mrb[0].mxu0
      %v1902 = vpop.f32.mrb[0].mxu0
      %v1903 = vadd.f32 %v1838, %v1902
      %v1904 = vpop.f32.mrb[0].mxu0
      %1905 = vdwg.mxu0
      %1906 = vmatprep.subr.bf16.mxu0 0
      %1907 = vmatpush1.bf16.msra.mxu0 %v1615
      %1908 = vmatprep.subr.bf16.mxu0 0
      %1909 = vmatpush1.bf16.msra.mxu0 %v1616
      %1910 = vmatprep.subr.bf16.mxu0 0
      %1911 = vmatpush1.bf16.msra.mxu0 %v1617
      %1912 = vmatprep.subr.bf16.mxu0 0
      %1913 = vmatpush1.bf16.msra.mxu0 %v1618
      %1914 = vmatprep.subr.bf16.mxu0 0
      %1915 = vmatpush1.bf16.msra.mxu0 %v1619
      %1916 = vmatprep.subr.bf16.mxu0 0
      %1917 = vmatpush1.bf16.msra.mxu0 %v1620
      %1918 = vmatprep.subr.bf16.mxu0 0
      %1919 = vmatpush1.bf16.msra.mxu0 %v1621
      %1920 = vmatprep.subr.bf16.mxu0 0
      %1921 = vmatpush1.bf16.msra.mxu0 %v1622
      %1922 = vmatprep.subr.bf16.mxu0 0
      %1923 = vmatpush1.bf16.msra.mxu0 %v1623
      %1924 = vmatprep.subr.bf16.mxu0 0
      %1925 = vmatpush1.bf16.msra.mxu0 %v1624
      %1926 = vmatprep.subr.bf16.mxu0 0
      %1927 = vmatpush1.bf16.msra.mxu0 %v1625
      %1928 = vmatprep.subr.bf16.mxu0 0
      %1929 = vmatpush1.bf16.msra.mxu0 %v1626
      %1930 = vmatprep.subr.bf16.mxu0 0
      %1931 = vmatpush1.bf16.msra.mxu0 %v1627
      %1932 = vmatprep.subr.bf16.mxu0 0
      %1933 = vmatpush1.bf16.msra.mxu0 %v1628
      %1934 = vmatprep.subr.bf16.mxu0 0
      %1935 = vmatpush1.bf16.msra.mxu0 %v1629
      %1936 = vmatprep.subr.bf16.mxu0 0
      %1937 = vmatpush1.bf16.msra.mxu0 %v1630
      %1938 = vmatprep.mubr.bf16.mxu0 %v1099
      %1939 = vmatmul.mubr.bf16.gmra.mrb[0].mxu0 %v1098
      %v1940 = vpop.f32.mrb[0].mxu0
      %v1941 = vadd.f32 %v1876, %v1940
      %v1942 = vpop.f32.mrb[0].mxu0
      %v1943 = vpop.f32.mrb[0].mxu0
      %v1944 = vadd.f32 %v1879, %v1943
      %v1945 = vpop.f32.mrb[0].mxu0
      %1946 = vmatprep.mubr.bf16.mxu0 %v1108
      %1947 = vmatmul.mubr.bf16.gmra.mrb[0].mxu0 %v1107
      %v1948 = vpop.f32.mrb[0].mxu0
      %v1949 = vadd.f32 %v1884, %v1948
      %v1950 = vpop.f32.mrb[0].mxu0
      %v1951 = vpop.f32.mrb[0].mxu0
      %v1952 = vadd.f32 %v1887, %v1951
      %v1953 = vpop.f32.mrb[0].mxu0
      %1954 = vmatprep.mubr.bf16.mxu0 %v1117
      %1955 = vmatmul.mubr.bf16.gmra.mrb[0].mxu0 %v1116
      %v1956 = vpop.f32.mrb[0].mxu0
      %v1957 = vadd.f32 %v1892, %v1956
      %v1958 = vpop.f32.mrb[0].mxu0
      %v1959 = vpop.f32.mrb[0].mxu0
      %v1960 = vadd.f32 %v1895, %v1959
      %v1961 = vpop.f32.mrb[0].mxu0
      %1962 = vmatprep.mubr.bf16.mxu0 %v1126
      %1963 = vmatmul.mubr.bf16.gmra.mrb[0].mxu0 %v1125
      %v1964 = vpop.f32.mrb[0].mxu0
      %v1965 = vadd.f32 %v1900, %v1964
      %v1966 = vpop.f32.mrb[0].mxu0
      %v1967 = vpop.f32.mrb[0].mxu0
      %v1968 = vadd.f32 %v1903, %v1967
      %v1969 = vpop.f32.mrb[0].mxu0
      %1970 = vdwg.mxu0
      %1971 = vmatprep.subr.bf16.mxu0 0
      %1972 = vmatpush1.bf16.msra.mxu0 %v1631
      %1973 = vmatprep.subr.bf16.mxu0 0
      %1974 = vmatpush1.bf16.msra.mxu0 %v1632
      %1975 = vmatprep.subr.bf16.mxu0 0
      %1976 = vmatpush1.bf16.msra.mxu0 %v1633
      %1977 = vmatprep.subr.bf16.mxu0 0
      %1978 = vmatpush1.bf16.msra.mxu0 %v1634
      %1979 = vmatprep.subr.bf16.mxu0 0
      %1980 = vmatpush1.bf16.msra.mxu0 %v1635
      %1981 = vmatprep.subr.bf16.mxu0 0
      %1982 = vmatpush1.bf16.msra.mxu0 %v1636
      %1983 = vmatprep.subr.bf16.mxu0 0
      %1984 = vmatpush1.bf16.msra.mxu0 %v1637
      %1985 = vmatprep.subr.bf16.mxu0 0
      %1986 = vmatpush1.bf16.msra.mxu0 %v1638
      %1987 = vmatprep.subr.bf16.mxu0 0
      %1988 = vmatpush1.bf16.msra.mxu0 0
      %1989 = vmatprep.subr.bf16.mxu0 0
      %1990 = vmatpush1.bf16.msra.mxu0 0
      %1991 = vmatprep.subr.bf16.mxu0 0
      %1992 = vmatpush1.bf16.msra.mxu0 0
      %1993 = vmatprep.subr.bf16.mxu0 0
      %1994 = vmatpush1.bf16.msra.mxu0 0
      %1995 = vmatprep.subr.bf16.mxu0 0
      %1996 = vmatpush1.bf16.msra.mxu0 0
      %1997 = vmatprep.subr.bf16.mxu0 0
      %1998 = vmatpush1.bf16.msra.mxu0 0
      %1999 = vmatprep.subr.bf16.mxu0 0
      %2000 = vmatpush1.bf16.msra.mxu0 0
      %2001 = vmatprep.subr.bf16.mxu0 0
      %2002 = vmatpush1.bf16.msra.mxu0 0
      %2003 = vmatprep.mubr.bf16.mxu0 0
      %2004 = vmatmul.mubr.bf16.gmra.mrb[0].mxu0 %v1100
      %v2005 = vpop.f32.mrb[0].mxu0
      %v2006 = vadd.f32 %v1941, %v2005
      %v2007 = vpop.f32.mrb[0].mxu0
      %v2008 = vpop.f32.mrb[0].mxu0
      %v2009 = vadd.f32 %v1944, %v2008
      %v2010 = vpop.f32.mrb[0].mxu0
      %2011 = vmatprep.mubr.bf16.mxu0 0
      %2012 = vmatmul.mubr.bf16.gmra.mrb[0].mxu0 %v1109
      %v2013 = vpop.f32.mrb[0].mxu0
      %v2014 = vadd.f32 %v1949, %v2013
      %v2015 = vpop.f32.mrb[0].mxu0
      %v2016 = vpop.f32.mrb[0].mxu0
      %v2017 = vadd.f32 %v1952, %v2016
      %v2018 = vpop.f32.mrb[0].mxu0
      %2019 = vmatprep.mubr.bf16.mxu0 0
      %2020 = vmatmul.mubr.bf16.gmra.mrb[0].mxu0 %v1118
      %v2021 = vpop.f32.mrb[0].mxu0
      %v2022 = vadd.f32 %v1957, %v2021
      %v2023 = vpop.f32.mrb[0].mxu0
      %v2024 = vpop.f32.mrb[0].mxu0
      %v2025 = vadd.f32 %v1960, %v2024
      %v2026 = vpop.f32.mrb[0].mxu0
      %2027 = vmatprep.mubr.bf16.mxu0 0
      %2028 = vmatmul.mubr.bf16.gmra.mrb[0].mxu0 %v1127
      %v2029 = vpop.f32.mrb[0].mxu0
      %v2030 = vadd.f32 %v1965, %v2029
      %v2031 = vpop.f32.mrb[0].mxu0
      %v2032 = vpop.f32.mrb[0].mxu0
      %v2033 = vadd.f32 %v1968, %v2032
      %v2034 = vpop.f32.mrb[0].mxu0
      %2035 = vdwg.mxu0
      %v2036 = vmax.f32 %v2006, 0.0
      %v2037 = vmax.f32 %v2009, 0.0
      %v2038 = vmax.f32 %v2014, 0.0
      %v2039 = vmax.f32 %v2017, 0.0
      %v2040 = vmax.f32 %v2022, 0.0
      %v2041 = vmax.f32 %v2025, 0.0
      %v2042 = vmax.f32 %v2030, 0.0
      %v2043 = vmax.f32 %v2033, 0.0
      %v2044 = vadd.f32 %v2036, %v2037
      %v2045 = vadd.f32 %v2044, %v2038
      %v2046 = vadd.f32 %v2045, %v2039
      %v2047 = vadd.f32 %v2046, %v2040
      %v2048 = vadd.f32 %v2047, %v2041
      %v2049 = vadd.f32 %v2048, %v2042
      %v2050 = vadd.f32 %v2049, %v2043
      %v2051 = vrot.slane %v2050, 4
      %v2052 = vadd.f32 %v2050, %v2051
      %v2053 = vrot.slane %v2052, 2
      %v2054 = vadd.f32 %v2052, %v2053
      %v2055 = vrot.slane %v2054, 1
      %v2056 = vadd.f32 %v2054, %v2055
      %v2057 = vmul.f32 %v2036, %v2036
      %v2058 = vmul.f32 %v2037, %v2037
      %v2059 = vmul.f32 %v2038, %v2038
      %v2060 = vmul.f32 %v2039, %v2039
      %v2061 = vmul.f32 %v2040, %v2040
      %v2062 = vmul.f32 %v2041, %v2041
      %v2063 = vmul.f32 %v2042, %v2042
      %v2064 = vmul.f32 %v2043, %v2043
      %v2065 = vadd.f32 %v2057, %v2058
      %v2066 = vadd.f32 %v2065, %v2059
      %v2067 = vadd.f32 %v2066, %v2060
      %v2068 = vadd.f32 %v2067, %v2061
      %v2069 = vadd.f32 %v2068, %v2062
      %v2070 = vadd.f32 %v2069, %v2063
      %v2071 = vadd.f32 %v2070, %v2064
      %v2072 = vrot.slane %v2071, 4
      %v2073 = vadd.f32 %v2071, %v2072
      %v2074 = vrot.slane %v2073, 2
      %v2075 = vadd.f32 %v2073, %v2074
      %v2076 = vrot.slane %v2075, 1
      %v2077 = vadd.f32 %v2075, %v2076
      %v2078 = vld [vmem:[%s5] sm:$0xff]
      %v2079 = vld [vmem:[%s6] sm:$0xff]
      %v2080 = vld [vmem:[%s6 + $0x8] sm:$0xff]
      %v2081 = vld [vmem:[%s6 + $0x10] sm:$0xff]
      %v2082 = vld [vmem:[%s6 + $0x18] sm:$0xff]
      %v2083 = vld [vmem:[%s6 + $0x20] sm:$0xff]
      %v2084 = vld [vmem:[%s6 + $0x28] sm:$0xff]
      %v2085 = vld [vmem:[%s6 + $0x30] sm:$0xff]
      %v2086 = vld [vmem:[%s6 + $0x38] sm:$0xff]
      %v2087 = vld [vmem:[%s6 + $0x40] sm:$0xff]
      %v2088 = vld [vmem:[%s6 + $0x48] sm:$0xff]
      %v2089 = vld [vmem:[%s6 + $0x50] sm:$0xff]
      %v2090 = vld [vmem:[%s6 + $0x58] sm:$0xff]
      %v2091 = vld [vmem:[%s6 + $0x60] sm:$0xff]
      %v2092 = vld [vmem:[%s6 + $0x68] sm:$0xff]
      %v2093 = vld [vmem:[%s6 + $0x70] sm:$0xff]
      %v2094 = vld [vmem:[%s6 + $0x78] sm:$0xff]
      %v2095 = vld [vmem:[%s3] sm:$0x1]
      %v2096 = vld [vmem:[%s4] sm:$0x1]
      %2097 = vmatprep.subr.mxu0 0.0
      %2098 = vmatpush1.msra.mxu0 %v2079
      %2099 = vmatprep.subr.mxu0 0.0
      %2100 = vmatpush1.msra.mxu0 %v2080
      %2101 = vmatprep.subr.mxu0 0.0
      %2102 = vmatpush1.msra.mxu0 %v2081
      %2103 = vmatprep.subr.mxu0 0.0
      %2104 = vmatpush1.msra.mxu0 %v2082
      %2105 = vmatprep.subr.mxu0 0.0
      %2106 = vmatpush1.msra.mxu0 %v2083
      %2107 = vmatprep.subr.mxu0 0.0
      %2108 = vmatpush1.msra.mxu0 %v2084
      %2109 = vmatprep.subr.mxu0 0.0
      %2110 = vmatpush1.msra.mxu0 %v2085
      %2111 = vmatprep.subr.mxu0 0.0
      %2112 = vmatpush1.msra.mxu0 %v2086
      %2113 = vmatprep.subr.mxu0 0.0
      %2114 = vmatpush1.msra.mxu0 %v2087
      %2115 = vmatprep.subr.mxu0 0.0
      %2116 = vmatpush1.msra.mxu0 %v2088
      %2117 = vmatprep.subr.mxu0 0.0
      %2118 = vmatpush1.msra.mxu0 %v2089
      %2119 = vmatprep.subr.mxu0 0.0
      %2120 = vmatpush1.msra.mxu0 %v2090
      %2121 = vmatprep.subr.mxu0 0.0
      %2122 = vmatpush1.msra.mxu0 %v2091
      %2123 = vmatprep.subr.mxu0 0.0
      %2124 = vmatpush1.msra.mxu0 %v2092
      %2125 = vmatprep.subr.mxu0 0.0
      %2126 = vmatpush1.msra.mxu0 %v2093
      %2127 = vmatprep.subr.mxu0 0.0
      %2128 = vmatpush1.msra.mxu0 %v2094
      %2129 = vmatprep.subr.mxu0 0.0
      %2130 = vmatpush1.msra.mxu0 0.0
      %2131 = vmatprep.subr.mxu0 0.0
      %2132 = vmatpush1.msra.mxu0 0.0
      %2133 = vmatprep.subr.mxu0 0.0
      %2134 = vmatpush1.msra.mxu0 0.0
      %2135 = vmatprep.subr.mxu0 0.0
      %2136 = vmatpush1.msra.mxu0 0.0
      %2137 = vmatprep.subr.mxu0 0.0
      %2138 = vmatpush1.msra.mxu0 0.0
      %2139 = vmatprep.subr.mxu0 0.0
      %2140 = vmatpush1.msra.mxu0 0.0
      %2141 = vmatprep.subr.mxu0 0.0
      %2142 = vmatpush1.msra.mxu0 0.0
      %2143 = vmatprep.subr.mxu0 0.0
      %2144 = vmatpush1.msra.mxu0 0.0
      %2145 = vmatprep.subr.mxu0 0.0
      %2146 = vmatpush1.msra.mxu0 0.0
      %2147 = vmatprep.subr.mxu0 0.0
      %2148 = vmatpush1.msra.mxu0 0.0
      %2149 = vmatprep.subr.mxu0 0.0
      %2150 = vmatpush1.msra.mxu0 0.0
      %2151 = vmatprep.subr.mxu0 0.0
      %2152 = vmatpush1.msra.mxu0 0.0
      %2153 = vmatprep.subr.mxu0 0.0
      %2154 = vmatpush1.msra.mxu0 0.0
      %2155 = vmatprep.subr.mxu0 0.0
      %2156 = vmatpush1.msra.mxu0 0.0
      %2157 = vmatprep.subr.mxu0 0.0
      %2158 = vmatpush1.msra.mxu0 0.0
      %2159 = vmatprep.subr.mxu0 0.0
      %2160 = vmatpush1.msra.mxu0 0.0
      %2161 = vmatprep.mubr.f32.mxu0 0.0
      %2162 = vmatmul.mubr.f32.gmra.mrb[0].mxu0 %v2056
      %v2163 = vpop.f32.mrb[0].mxu0
      %v2164 = vadd.f32 0.0, %v2163
      %v2165 = vpop.f32.mrb[0].mxu0
      %2166 = vdwg.mxu0
      %v2167 = vmul.f32 %v2164, 0.0009765625
      %2168 = vmatprep.subr.mxu0 0.0
      %2169 = vmatpush1.msra.mxu0 %v2079
      %2170 = vmatprep.subr.mxu0 0.0
      %2171 = vmatpush1.msra.mxu0 %v2080
      %2172 = vmatprep.subr.mxu0 0.0
      %2173 = vmatpush1.msra.mxu0 %v2081
      %2174 = vmatprep.subr.mxu0 0.0
      %2175 = vmatpush1.msra.mxu0 %v2082
      %2176 = vmatprep.subr.mxu0 0.0
      %2177 = vmatpush1.msra.mxu0 %v2083
      %2178 = vmatprep.subr.mxu0 0.0
      %2179 = vmatpush1.msra.mxu0 %v2084
      %2180 = vmatprep.subr.mxu0 0.0
      %2181 = vmatpush1.msra.mxu0 %v2085
      %2182 = vmatprep.subr.mxu0 0.0
      %2183 = vmatpush1.msra.mxu0 %v2086
      %2184 = vmatprep.subr.mxu0 0.0
      %2185 = vmatpush1.msra.mxu0 %v2087
      %2186 = vmatprep.subr.mxu0 0.0
      %2187 = vmatpush1.msra.mxu0 %v2088
      %2188 = vmatprep.subr.mxu0 0.0
      %2189 = vmatpush1.msra.mxu0 %v2089
      %2190 = vmatprep.subr.mxu0 0.0
      %2191 = vmatpush1.msra.mxu0 %v2090
      %2192 = vmatprep.subr.mxu0 0.0
      %2193 = vmatpush1.msra.mxu0 %v2091
      %2194 = vmatprep.subr.mxu0 0.0
      %2195 = vmatpush1.msra.mxu0 %v2092
      %2196 = vmatprep.subr.mxu0 0.0
      %2197 = vmatpush1.msra.mxu0 %v2093
      %2198 = vmatprep.subr.mxu0 0.0
      %2199 = vmatpush1.msra.mxu0 %v2094
      %2200 = vmatprep.subr.mxu0 0.0
      %2201 = vmatpush1.msra.mxu0 0.0
      %2202 = vmatprep.subr.mxu0 0.0
      %2203 = vmatpush1.msra.mxu0 0.0
      %2204 = vmatprep.subr.mxu0 0.0
      %2205 = vmatpush1.msra.mxu0 0.0
      %2206 = vmatprep.subr.mxu0 0.0
      %2207 = vmatpush1.msra.mxu0 0.0
      %2208 = vmatprep.subr.mxu0 0.0
      %2209 = vmatpush1.msra.mxu0 0.0
      %2210 = vmatprep.subr.mxu0 0.0
      %2211 = vmatpush1.msra.mxu0 0.0
      %2212 = vmatprep.subr.mxu0 0.0
      %2213 = vmatpush1.msra.mxu0 0.0
      %2214 = vmatprep.subr.mxu0 0.0
      %2215 = vmatpush1.msra.mxu0 0.0
      %2216 = vmatprep.subr.mxu0 0.0
      %2217 = vmatpush1.msra.mxu0 0.0
      %2218 = vmatprep.subr.mxu0 0.0
      %2219 = vmatpush1.msra.mxu0 0.0
      %2220 = vmatprep.subr.mxu0 0.0
      %2221 = vmatpush1.msra.mxu0 0.0
      %2222 = vmatprep.subr.mxu0 0.0
      %2223 = vmatpush1.msra.mxu0 0.0
      %2224 = vmatprep.subr.mxu0 0.0
      %2225 = vmatpush1.msra.mxu0 0.0
      %2226 = vmatprep.subr.mxu0 0.0
      %2227 = vmatpush1.msra.mxu0 0.0
      %2228 = vmatprep.subr.mxu0 0.0
      %2229 = vmatpush1.msra.mxu0 0.0
      %2230 = vmatprep.subr.mxu0 0.0
      %2231 = vmatpush1.msra.mxu0 0.0
      %2232 = vmatprep.mubr.f32.mxu0 0.0
      %2233 = vmatmul.mubr.f32.gmra.mrb[0].mxu0 %v2077
      %v2234 = vpop.f32.mrb[0].mxu0
      %v2235 = vadd.f32 0.0, %v2234
      %v2236 = vpop.f32.mrb[0].mxu0
      %2237 = vdwg.mxu0
      %v2238 = vmul.f32 %v2235, 0.0009765625
      %v2239 = vmul.f32 %v2167, %v2167
      %v2240 = vsub.f32 %v2238, %v2239
      %v2241 = vmax.f32 %v2240, 0.0
      %v2242 = vadd.f32 %v2241, 1e-05
      %v2243 = vrsqrt.pop %v2242
      %vm2244 = vcmask 64512
      %v2246 = vsel %vm2244, %v2167, 0
      %2248 = vmatprep.subr.mxu0 0.0
      %2249 = vmatpush1.msra.mxu0 %v2078
      %2250 = vmatprep.subr.mxu0 0.0
      %2251 = vmatpush1.msra.mxu0 0.0
      %2252 = vmatprep.subr.mxu0 0.0
      %2253 = vmatpush1.msra.mxu0 0.0
      %2254 = vmatprep.subr.mxu0 0.0
      %2255 = vmatpush1.msra.mxu0 0.0
      %2256 = vmatprep.subr.mxu0 0.0
      %2257 = vmatpush1.msra.mxu0 0.0
      %2258 = vmatprep.subr.mxu0 0.0
      %2259 = vmatpush1.msra.mxu0 0.0
      %2260 = vmatprep.subr.mxu0 0.0
      %2261 = vmatpush1.msra.mxu0 0.0
      %2262 = vmatprep.subr.mxu0 0.0
      %2263 = vmatpush1.msra.mxu0 0.0
      %2264 = vmatprep.subr.mxu0 0.0
      %2265 = vmatpush1.msra.mxu0 0.0
      %2266 = vmatprep.subr.mxu0 0.0
      %2267 = vmatpush1.msra.mxu0 0.0
      %2268 = vmatprep.subr.mxu0 0.0
      %2269 = vmatpush1.msra.mxu0 0.0
      %2270 = vmatprep.subr.mxu0 0.0
      %2271 = vmatpush1.msra.mxu0 0.0
      %2272 = vmatprep.subr.mxu0 0.0
      %2273 = vmatpush1.msra.mxu0 0.0
      %2274 = vmatprep.subr.mxu0 0.0
      %2275 = vmatpush1.msra.mxu0 0.0
      %2276 = vmatprep.subr.mxu0 0.0
      %2277 = vmatpush1.msra.mxu0 0.0
      %2278 = vmatprep.subr.mxu0 0.0
      %2279 = vmatpush1.msra.mxu0 0.0
      %2280 = vmatprep.subr.mxu0 0.0
      %2281 = vmatpush1.msra.mxu0 0.0
      %2282 = vmatprep.subr.mxu0 0.0
      %2283 = vmatpush1.msra.mxu0 0.0
      %2284 = vmatprep.subr.mxu0 0.0
      %2285 = vmatpush1.msra.mxu0 0.0
      %2286 = vmatprep.subr.mxu0 0.0
      %2287 = vmatpush1.msra.mxu0 0.0
      %2288 = vmatprep.subr.mxu0 0.0
      %2289 = vmatpush1.msra.mxu0 0.0
      %2290 = vmatprep.subr.mxu0 0.0
      %2291 = vmatpush1.msra.mxu0 0.0
      %2292 = vmatprep.subr.mxu0 0.0
      %2293 = vmatpush1.msra.mxu0 0.0
      %2294 = vmatprep.subr.mxu0 0.0
      %2295 = vmatpush1.msra.mxu0 0.0
      %2296 = vmatprep.subr.mxu0 0.0
      %2297 = vmatpush1.msra.mxu0 0.0
      %2298 = vmatprep.subr.mxu0 0.0
      %2299 = vmatpush1.msra.mxu0 0.0
      %2300 = vmatprep.subr.mxu0 0.0
      %2301 = vmatpush1.msra.mxu0 0.0
      %2302 = vmatprep.subr.mxu0 0.0
      %2303 = vmatpush1.msra.mxu0 0.0
      %2304 = vmatprep.subr.mxu0 0.0
      %2305 = vmatpush1.msra.mxu0 0.0
      %2306 = vmatprep.subr.mxu0 0.0
      %2307 = vmatpush1.msra.mxu0 0.0
      %2308 = vmatprep.subr.mxu0 0.0
      %2309 = vmatpush1.msra.mxu0 0.0
      %2310 = vmatprep.subr.mxu0 0.0
      %2311 = vmatpush1.msra.mxu0 0.0
      %2312 = vmatprep.mubr.f32.mxu0 0.0
      %2313 = vmatmul.mubr.f32.gmra.mrb[0].mxu0 %v2246
      %v2314 = vpop.f32.mrb[0].mxu0
      %v2315 = vadd.f32 0.0, %v2314
      %v2316 = vpop.f32.mrb[0].mxu0
      %2317 = vdwg.mxu0
      %v2319 = vsel %vm2244, %v2243, 0
      %2321 = vmatprep.subr.mxu0 0.0
      %2322 = vmatpush1.msra.mxu0 %v2078
      %2323 = vmatprep.subr.mxu0 0.0
      %2324 = vmatpush1.msra.mxu0 0.0
      %2325 = vmatprep.subr.mxu0 0.0
      %2326 = vmatpush1.msra.mxu0 0.0
      %2327 = vmatprep.subr.mxu0 0.0
      %2328 = vmatpush1.msra.mxu0 0.0
      %2329 = vmatprep.subr.mxu0 0.0
      %2330 = vmatpush1.msra.mxu0 0.0
      %2331 = vmatprep.subr.mxu0 0.0
      %2332 = vmatpush1.msra.mxu0 0.0
      %2333 = vmatprep.subr.mxu0 0.0
      %2334 = vmatpush1.msra.mxu0 0.0
      %2335 = vmatprep.subr.mxu0 0.0
      %2336 = vmatpush1.msra.mxu0 0.0
      %2337 = vmatprep.subr.mxu0 0.0
      %2338 = vmatpush1.msra.mxu0 0.0
      %2339 = vmatprep.subr.mxu0 0.0
      %2340 = vmatpush1.msra.mxu0 0.0
      %2341 = vmatprep.subr.mxu0 0.0
      %2342 = vmatpush1.msra.mxu0 0.0
      %2343 = vmatprep.subr.mxu0 0.0
      %2344 = vmatpush1.msra.mxu0 0.0
      %2345 = vmatprep.subr.mxu0 0.0
      %2346 = vmatpush1.msra.mxu0 0.0
      %2347 = vmatprep.subr.mxu0 0.0
      %2348 = vmatpush1.msra.mxu0 0.0
      %2349 = vmatprep.subr.mxu0 0.0
      %2350 = vmatpush1.msra.mxu0 0.0
      %2351 = vmatprep.subr.mxu0 0.0
      %2352 = vmatpush1.msra.mxu0 0.0
      %2353 = vmatprep.subr.mxu0 0.0
      %2354 = vmatpush1.msra.mxu0 0.0
      %2355 = vmatprep.subr.mxu0 0.0
      %2356 = vmatpush1.msra.mxu0 0.0
      %2357 = vmatprep.subr.mxu0 0.0
      %2358 = vmatpush1.msra.mxu0 0.0
      %2359 = vmatprep.subr.mxu0 0.0
      %2360 = vmatpush1.msra.mxu0 0.0
      %2361 = vmatprep.subr.mxu0 0.0
      %2362 = vmatpush1.msra.mxu0 0.0
      %2363 = vmatprep.subr.mxu0 0.0
      %2364 = vmatpush1.msra.mxu0 0.0
      %2365 = vmatprep.subr.mxu0 0.0
      %2366 = vmatpush1.msra.mxu0 0.0
      %2367 = vmatprep.subr.mxu0 0.0
      %2368 = vmatpush1.msra.mxu0 0.0
      %2369 = vmatprep.subr.mxu0 0.0
      %2370 = vmatpush1.msra.mxu0 0.0
      %2371 = vmatprep.subr.mxu0 0.0
      %2372 = vmatpush1.msra.mxu0 0.0
      %2373 = vmatprep.subr.mxu0 0.0
      %2374 = vmatpush1.msra.mxu0 0.0
      %2375 = vmatprep.subr.mxu0 0.0
      %2376 = vmatpush1.msra.mxu0 0.0
      %2377 = vmatprep.subr.mxu0 0.0
      %2378 = vmatpush1.msra.mxu0 0.0
      %2379 = vmatprep.subr.mxu0 0.0
      %2380 = vmatpush1.msra.mxu0 0.0
      %2381 = vmatprep.subr.mxu0 0.0
      %2382 = vmatpush1.msra.mxu0 0.0
      %2383 = vmatprep.subr.mxu0 0.0
      %2384 = vmatpush1.msra.mxu0 0.0
      %2385 = vmatprep.mubr.f32.mxu0 0.0
      %2386 = vmatmul.mubr.f32.gmra.mrb[0].mxu0 %v2319
      %v2387 = vpop.f32.mrb[0].mxu0
      %v2388 = vadd.f32 0.0, %v2387
      %v2389 = vpop.f32.mrb[0].mxu0
      %2390 = vdwg.mxu0
      %v2391 = vmul.f32 %v2388, %v2095
      %v2392 = vmul.f32 %v2315, %v2391
      %v2393 = vsub.f32 %v2096, %v2392
      %v2394 = vlaneseq
      %v2395 = vshrl.u32 %v2394, 7
      %v2396 = vsub.s32 0, %v2395
      %v2397 = vrot.slane %v2391, %v2396
      %v2398 = vmul.f32 %v2036, %v2397
      %v2399 = vmul.f32 %v2037, %v2397
      %v2400 = vmul.f32 %v2038, %v2397
      %v2401 = vmul.f32 %v2039, %v2397
      %v2402 = vmul.f32 %v2040, %v2397
      %v2403 = vmul.f32 %v2041, %v2397
      %v2404 = vmul.f32 %v2042, %v2397
      %v2405 = vmul.f32 %v2043, %v2397
      %v2407 = vlaneseq
      %v2408 = vshrl.u32 %v2407, 7
      %v2409 = vsub.s32 0, %v2408
      %v2410 = vrot.slane %v2393, %v2409
      %v2412 = vadd.f32 %v2398, %v2410
      %v2413 = vadd.f32 %v2399, %v2410
      %v2414 = vadd.f32 %v2400, %v2410
      %v2415 = vadd.f32 %v2401, %v2410
      %v2416 = vadd.f32 %v2402, %v2410
      %v2417 = vadd.f32 %v2403, %v2410
      %v2418 = vadd.f32 %v2404, %v2410
      %v2419 = vadd.f32 %v2405, %v2410
      %2420 = vst [vmem:[%s278] sm:$0xf] 0
      %2421 = vst [vmem:[%s278 + $0x4] sm:$0x1] 0
      %s2422 = scalar_lea.vmem %s278, 72
      %2423 = vst [vmem:[%s2422] sm:$0xf] 0
      %2424 = vst [vmem:[%s2422 + $0x4] sm:$0x1] 0
      %s2425 = scalar_lea.vmem %s278, 8
      %vm2426 = vcmask 1040384
      %vm2427 = vsmask.f32 256
      %vm2428 = vmand %vm2426, %vm2427
      %v2429 = vld [vmem:[%s2425] sm:$0x1]
      %v2430 = vsel %vm2428, 0, %v2429
      %2431 = vst [vmem:[%s2425] sm:$0x1] %v2430
      %v2432 = vld [vmem:[%s2425 + $0x8] sm:$0x1]
      %v2433 = vsel %vm2428, 0, %v2432
      %2434 = vst [vmem:[%s2425 + $0x8] sm:$0x1] %v2433
      %v2435 = vld [vmem:[%s2425 + $0x10] sm:$0x1]
      %v2436 = vsel %vm2428, 0, %v2435
      %2437 = vst [vmem:[%s2425 + $0x10] sm:$0x1] %v2436
      %v2438 = vld [vmem:[%s2425 + $0x18] sm:$0x1]
      %v2439 = vsel %vm2428, 0, %v2438
      %2440 = vst [vmem:[%s2425 + $0x18] sm:$0x1] %v2439
      %v2441 = vld [vmem:[%s2425 + $0x20] sm:$0x1]
      %v2442 = vsel %vm2428, 0, %v2441
      %2443 = vst [vmem:[%s2425 + $0x20] sm:$0x1] %v2442
      %v2444 = vld [vmem:[%s2425 + $0x28] sm:$0x1]
      %v2445 = vsel %vm2428, 0, %v2444
      %2446 = vst [vmem:[%s2425 + $0x28] sm:$0x1] %v2445
      %v2447 = vld [vmem:[%s2425 + $0x30] sm:$0x1]
      %v2448 = vsel %vm2428, 0, %v2447
      %2449 = vst [vmem:[%s2425 + $0x30] sm:$0x1] %v2448
      %v2450 = vld [vmem:[%s2425 + $0x38] sm:$0x1]
      %v2451 = vsel %vm2428, 0, %v2450
      %2452 = vst [vmem:[%s2425 + $0x38] sm:$0x1] %v2451
      %vm2453 = vsmask.f32 7938
      %vm2454 = vmand %vm2426, %vm2453
      %v2455 = vld [vmem:[%s2425 + $0x4] sm:$0x1]
      %v2456 = vsel %vm2454, 0, %v2455
      %2457 = vst [vmem:[%s2425 + $0x4] sm:$0x1] %v2456
      %v2458 = vld [vmem:[%s2425 + $0xc] sm:$0x1]
      %v2459 = vsel %vm2454, 0, %v2458
      %2460 = vst [vmem:[%s2425 + $0xc] sm:$0x1] %v2459
      %v2461 = vld [vmem:[%s2425 + $0x14] sm:$0x1]
      %v2462 = vsel %vm2454, 0, %v2461
      %2463 = vst [vmem:[%s2425 + $0x14] sm:$0x1] %v2462
      %v2464 = vld [vmem:[%s2425 + $0x1c] sm:$0x1]
      %v2465 = vsel %vm2454, 0, %v2464
      %2466 = vst [vmem:[%s2425 + $0x1c] sm:$0x1] %v2465
      %v2467 = vld [vmem:[%s2425 + $0x24] sm:$0x1]
      %v2468 = vsel %vm2454, 0, %v2467
      %2469 = vst [vmem:[%s2425 + $0x24] sm:$0x1] %v2468
      %v2470 = vld [vmem:[%s2425 + $0x2c] sm:$0x1]
      %v2471 = vsel %vm2454, 0, %v2470
      %2472 = vst [vmem:[%s2425 + $0x2c] sm:$0x1] %v2471
      %v2473 = vld [vmem:[%s2425 + $0x34] sm:$0x1]
      %v2474 = vsel %vm2454, 0, %v2473
      %2475 = vst [vmem:[%s2425 + $0x34] sm:$0x1] %v2474
      %v2476 = vld [vmem:[%s2425 + $0x3c] sm:$0x1]
      %v2477 = vsel %vm2454, 0, %v2476
      %2478 = vst [vmem:[%s2425 + $0x3c] sm:$0x1] %v2477
      %v2479 = vpack.c.bf16 %v2412, %v2412
      %v2480 = vpack.c.bf16 %v2413, %v2413
      %v2481 = vpack.c.bf16 %v2414, %v2414
      %v2482 = vpack.c.bf16 %v2415, %v2415
      %v2483 = vpack.c.bf16 %v2416, %v2416
      %v2484 = vpack.c.bf16 %v2417, %v2417
      %v2485 = vpack.c.bf16 %v2418, %v2418
      %v2486 = vpack.c.bf16 %v2419, %v2419
      %v2495 = vunpack.c.l.b16 %v2479
      %v2496 = vunpack.c.l.b16 %v2480
      %v2497 = vunpack.c.l.b16 %v2481
      %v2498 = vunpack.c.l.b16 %v2482
      %v2499 = vunpack.c.l.b16 %v2483
      %v2500 = vunpack.c.l.b16 %v2484
      %v2501 = vunpack.c.l.b16 %v2485
      %v2502 = vunpack.c.l.b16 %v2486
      %v2503 = vpack.c.b16 %v2495, %v2495
      %v2504 = vpack.c.b16 %v2496, %v2496
      %v2505 = vpack.c.b16 %v2497, %v2497
      %v2506 = vpack.c.b16 %v2498, %v2498
      %v2507 = vpack.c.b16 %v2499, %v2499
      %v2508 = vpack.c.b16 %v2500, %v2500
      %v2509 = vpack.c.b16 %v2501, %v2501
      %v2510 = vpack.c.b16 %v2502, %v2502
      %v2512 = vshrl.u32 %v2503, 16
      %v2514 = vrot.slane %v2512, 7
      %v2515 = vshll.u32 %v2503, 16
      %v2517 = vor.u32 %v2514, %v2515
      %v2518 = vrot.slane %v2514, 4
      %v2520 = vshrl.u32 %v2504, 16
      %v2522 = vrot.slane %v2520, 7
      %v2523 = vshll.u32 %v2504, 16
      %v2525 = vor.u32 %v2522, %v2523
      %v2526 = vrot.slane %v2522, 4
      %v2528 = vshrl.u32 %v2505, 16
      %v2530 = vrot.slane %v2528, 7
      %v2531 = vshll.u32 %v2505, 16
      %v2533 = vor.u32 %v2530, %v2531
      %v2534 = vrot.slane %v2530, 4
      %v2536 = vshrl.u32 %v2506, 16
      %v2538 = vrot.slane %v2536, 7
      %v2539 = vshll.u32 %v2506, 16
      %v2541 = vor.u32 %v2538, %v2539
      %v2542 = vrot.slane %v2538, 4
      %v2544 = vshrl.u32 %v2507, 16
      %v2546 = vrot.slane %v2544, 7
      %v2547 = vshll.u32 %v2507, 16
      %v2549 = vor.u32 %v2546, %v2547
      %v2550 = vrot.slane %v2546, 4
      %v2552 = vshrl.u32 %v2508, 16
      %v2554 = vrot.slane %v2552, 7
      %v2555 = vshll.u32 %v2508, 16
      %v2557 = vor.u32 %v2554, %v2555
      %v2558 = vrot.slane %v2554, 4
      %v2560 = vshrl.u32 %v2509, 16
      %v2562 = vrot.slane %v2560, 7
      %v2563 = vshll.u32 %v2509, 16
      %v2565 = vor.u32 %v2562, %v2563
      %v2566 = vrot.slane %v2562, 4
      %v2568 = vshrl.u32 %v2510, 16
      %v2570 = vrot.slane %v2568, 7
      %v2571 = vshll.u32 %v2510, 16
      %v2573 = vor.u32 %v2570, %v2571
      %v2574 = vrot.slane %v2570, 4
      %vm2591 = vcmask 1043456
      %vm2592 = vmand %vm2591, %vm2453
      %v2593 = vld [vmem:[%s2425] sm:$0xf]
      %v2594 = vsel %vm2592, %v2517, %v2593
      %2595 = vst [vmem:[%s2425] sm:$0xf] %v2594
      %v2596 = vld [vmem:[%s2425 + $0x4] sm:$0x1]
      %v2597 = vsel %vm2428, %v2518, %v2596
      %2598 = vst [vmem:[%s2425 + $0x4] sm:$0x1] %v2597
      %v2599 = vld [vmem:[%s2425 + $0x8] sm:$0xf]
      %v2600 = vsel %vm2592, %v2525, %v2599
      %2601 = vst [vmem:[%s2425 + $0x8] sm:$0xf] %v2600
      %v2602 = vld [vmem:[%s2425 + $0xc] sm:$0x1]
      %v2603 = vsel %vm2428, %v2526, %v2602
      %2604 = vst [vmem:[%s2425 + $0xc] sm:$0x1] %v2603
      %v2605 = vld [vmem:[%s2425 + $0x10] sm:$0xf]
      %v2606 = vsel %vm2592, %v2533, %v2605
      %2607 = vst [vmem:[%s2425 + $0x10] sm:$0xf] %v2606
      %v2608 = vld [vmem:[%s2425 + $0x14] sm:$0x1]
      %v2609 = vsel %vm2428, %v2534, %v2608
      %2610 = vst [vmem:[%s2425 + $0x14] sm:$0x1] %v2609
      %v2611 = vld [vmem:[%s2425 + $0x18] sm:$0xf]
      %v2612 = vsel %vm2592, %v2541, %v2611
      %2613 = vst [vmem:[%s2425 + $0x18] sm:$0xf] %v2612
      %v2614 = vld [vmem:[%s2425 + $0x1c] sm:$0x1]
      %v2615 = vsel %vm2428, %v2542, %v2614
      %2616 = vst [vmem:[%s2425 + $0x1c] sm:$0x1] %v2615
      %v2617 = vld [vmem:[%s2425 + $0x20] sm:$0xf]
      %v2618 = vsel %vm2592, %v2549, %v2617
      %2619 = vst [vmem:[%s2425 + $0x20] sm:$0xf] %v2618
      %v2620 = vld [vmem:[%s2425 + $0x24] sm:$0x1]
      %v2621 = vsel %vm2428, %v2550, %v2620
      %2622 = vst [vmem:[%s2425 + $0x24] sm:$0x1] %v2621
      %v2623 = vld [vmem:[%s2425 + $0x28] sm:$0xf]
      %v2624 = vsel %vm2592, %v2557, %v2623
      %2625 = vst [vmem:[%s2425 + $0x28] sm:$0xf] %v2624
      %v2626 = vld [vmem:[%s2425 + $0x2c] sm:$0x1]
      %v2627 = vsel %vm2428, %v2558, %v2626
      %2628 = vst [vmem:[%s2425 + $0x2c] sm:$0x1] %v2627
      %v2629 = vld [vmem:[%s2425 + $0x30] sm:$0xf]
      %v2630 = vsel %vm2592, %v2565, %v2629
      %2631 = vst [vmem:[%s2425 + $0x30] sm:$0xf] %v2630
      %v2632 = vld [vmem:[%s2425 + $0x34] sm:$0x1]
      %v2633 = vsel %vm2428, %v2566, %v2632
      %2634 = vst [vmem:[%s2425 + $0x34] sm:$0x1] %v2633
      %v2635 = vld [vmem:[%s2425 + $0x38] sm:$0xf]
      %v2636 = vsel %vm2592, %v2573, %v2635
      %2637 = vst [vmem:[%s2425 + $0x38] sm:$0xf] %v2636
      %v2638 = vld [vmem:[%s2425 + $0x3c] sm:$0x1]
      %v2639 = vsel %vm2428, %v2574, %v2638
      %2640 = vst [vmem:[%s2425 + $0x3c] sm:$0x1] %v2639
      %p2641 = scmp.lt.s32.totalorder %s18, 1
      %s2642 = scalar_select %p2641, %s18, 1
      %s2643 = smul.addr %s2642, 20
      %s2644 = smul.addr %s2643, 4
      %s2645 = scalar_lea.vmem %s7, %s2644
      // Predicated region
      $region49: #{mnist_cnn_forward.6} parent=47 // pred_check
        %p2646 = pneg %p188
      $region50: #{mnist_cnn_forward.6} parent=47 // pred_check_branch
        %2648 = sbr.rel (%p2646) target = $region52
      $region51: #{mnist_cnn_forward.6} parent=47 // pred_region
        _
      $region52: #{mnist_cnn_forward.6} parent=47 // pred_fallthru
        _
    $region48: #{mnist_cnn_forward.6} parent=5 // pred_fallthru
      _
    %p2649 = scmp.le.s32.totalorder 2, %s13
    // Predicated region
    $region53: #{mnist_cnn_forward.6} parent=5 // pred_check
      %p2650 = pneg %p2649
    $region54: #{mnist_cnn_forward.6} parent=5 // pred_check_branch
      %2652 = sbr.rel (%p2650) target = $region56
    $region55: #{mnist_cnn_forward.6} parent=5 // pred_region
      %s2653 = ssub.s32 %s13, 2
      // Predicated region
      $region57: #{mnist_cnn_forward.6} parent=55 // pred_check
        %p2654 = pneg %p194
      $region58: #{mnist_cnn_forward.6} parent=55 // pred_check_branch
        %2656 = sbr.rel (%p2654) target = $region60
      $region59: #{mnist_cnn_forward.6} parent=55 // pred_region
        %p2657 = scmp.lt.s32.totalorder %s19, 1
        %s2658 = scalar_select %p2657, %s19, 1
        %s2659 = smul.addr %s2658, 20
        %s2660 = smul.addr %s2659, 4
        %s2661 = scalar_lea.vmem %s7, %s2660
      $region60: #{mnist_cnn_forward.6} parent=55 // pred_fallthru
        _
    $region56: #{mnist_cnn_forward.6} parent=5 // pred_fallthru
      _
  $region6: #{mnist_cnn_forward.6} parent=0 // loop_footer
    %s17 = sadd.s32 1, %s13
  $region7: #{mnist_cnn_forward.6} parent=0 // loop_footer_branch
    %12 = sbr.rel target = $region3
  $region8: #{mnist_cnn_forward.6} parent=0 // loop_exit
    _

</llo_original>
